<compile_context>
chip_gen: v7x
topology: tpu7x:2x2x1
jax: 0.10.0
libtpu: 0.0.40
codegen_flags: <defaults>
</compile_context>

<pallas_src>
import math

import jax
import jax.numpy as jnp
from jax import lax
from jax.experimental import pallas as pl
from jax.experimental.pallas import tpu as pltpu


# ---------------------------------------------------------------------------
# Pallas kernels
# ---------------------------------------------------------------------------
def _conv1_relu_pool_kernel(w_ref, b_ref, p0_ref, p1_ref, p2_ref, p3_ref, o_ref):
    # out = max over the 4 pool-window positions of relu(W @ p_i + b)
    #     = relu(max_i(W @ p_i) + b)        (shared bias, relu is monotone)
    w = w_ref[...]
    acc = jnp.dot(w, p0_ref[...], preferred_element_type=jnp.float32)
    acc = jnp.maximum(acc, jnp.dot(w, p1_ref[...], preferred_element_type=jnp.float32))
    acc = jnp.maximum(acc, jnp.dot(w, p2_ref[...], preferred_element_type=jnp.float32))
    acc = jnp.maximum(acc, jnp.dot(w, p3_ref[...], preferred_element_type=jnp.float32))
    o_ref[...] = jnp.maximum(acc + b_ref[...], 0.0)


def conv1_relu_pool(w, b, patches, *, tile=512):
    """Fused conv1 + ReLU + MaxPool(2,2) as lane-dense matmuls.

    `patches` is a list of 4 (K, M) matrices (one per 2x2 pool position) with
    M = N * 29 * 29.  Output is (O, M), tiled over M with a parallel grid.
    """
    O, K = w.shape
    M = patches[0].shape[1]
    pat_spec = pl.BlockSpec((K, tile), lambda m: (0, m))
    return pl.pallas_call(
        _conv1_relu_pool_kernel,
        out_shape=jax.ShapeDtypeStruct((O, M), jnp.float32),
        grid=(pl.cdiv(M, tile),),
        in_specs=[
            pl.BlockSpec((O, K), lambda m: (0, 0)),   # weights stay resident
            pl.BlockSpec((O, 1), lambda m: (0, 0)),   # bias column
            pat_spec, pat_spec, pat_spec, pat_spec,
        ],
        out_specs=pl.BlockSpec((O, tile), lambda m: (0, m)),
        compiler_params=pltpu.CompilerParams(
            dimension_semantics=("parallel",),         # v7x: both TCs split M
            vmem_limit_bytes=32 * 1024 * 1024,         # fits v7x 64 MiB VMEM
        ),
    )(w, b.reshape(O, 1), *patches)


_VMEM = pl.BlockSpec(memory_space=pltpu.MemorySpace.VMEM)  # whole array in VMEM


def _matmul_bias_relu_kernel(w_ref, p_ref, b_ref, o_ref):
    o_ref[...] = jnp.maximum(
        jnp.dot(w_ref[...], p_ref[...], preferred_element_type=jnp.float32)
        + b_ref[...], 0.0)


def conv_relu(w, p, b):
    """relu(W(O,K) @ P(K,M) + b) for the small conv2 problem (single block)."""
    O, K = w.shape
    M = p.shape[1]
    return pl.pallas_call(
        _matmul_bias_relu_kernel,
        out_shape=jax.ShapeDtypeStruct((O, M), jnp.float32),
        in_specs=[_VMEM, _VMEM, _VMEM],
        out_specs=_VMEM,
    )(w, p, b.reshape(O, 1))


def _mlp_kernel(x_ref, w3_ref, b3_ref, w4_ref, b4_ref, o_ref):
    h = jnp.maximum(
        jnp.dot(x_ref[...], w3_ref[...], preferred_element_type=jnp.float32)
        + b3_ref[...], 0.0)
    o_ref[...] = jnp.maximum(
        jnp.dot(h, w4_ref[...], preferred_element_type=jnp.float32)
        + b4_ref[...], 0.0)


def mlp(x, w3, b3, w4, b4):
    """Fused Linear(135,96)+ReLU -> Linear(96,15)+ReLU, weights VMEM-resident."""
    M = x.shape[0]
    N = w4.shape[0]
    return pl.pallas_call(
        _mlp_kernel,
        out_shape=jax.ShapeDtypeStruct((M, N), jnp.float32),
        in_specs=[_VMEM] * 5,
        out_specs=_VMEM,
    )(x, w3.T, b3.reshape(1, -1), w4.T, b4.reshape(1, -1))


# ---------------------------------------------------------------------------
# Layout glue (strided slices only; no big transposes, patch matrices are
# built directly in the K-major orientation the kernels consume)
# ---------------------------------------------------------------------------
def _pool_fused_patches(x, *, k, stride, pad, pool):
    """im2col for conv1, one (C*k*k, N*Hp*Wp) matrix per pool-window position.

    x: (N, C, H, W).  Hp/Wp are the pooled output spatial dims; column order
    is (n, hp, wp).  Row order is (c, kh, kw), matching w.reshape(O, -1).
    """
    xp = jnp.pad(x, ((0, 0), (0, 0), (pad, pad), (pad, pad)))
    N, C, H, W = xp.shape
    Ho = (H - k) // stride + 1
    Wo = (W - k) // stride + 1
    Hp, Wp = Ho // pool, Wo // pool
    s = stride * pool
    mats = []
    for dh in range(pool):
        for dw in range(pool):
            rows = []
            for c in range(C):
                for i in range(k):
                    for j in range(k):
                        r0 = dh * stride + i
                        c0 = dw * stride + j
                        sl = lax.slice(
                            xp, (0, c, r0, c0),
                            (N, c + 1, r0 + (Hp - 1) * s + 1, c0 + (Wp - 1) * s + 1),
                            (1, 1, s, s))                       # (N, 1, Hp, Wp)
                        rows.append(sl.reshape(1, N * Hp * Wp))
            mats.append(jnp.concatenate(rows, axis=0))          # (C*k*k, N*Hp*Wp)
    return mats, Hp, Wp


def _im2col_cmajor(x, *, k, stride, pad):
    """K-major im2col for an activation stored channel-major.

    x: (C, N, H, W) -> (C*k*k, N*Ho*Wo); column order (n, ho, wo)."""
    xp = jnp.pad(x, ((0, 0), (0, 0), (pad, pad), (pad, pad)))
    C, N, H, W = xp.shape
    Ho = (H - k) // stride + 1
    Wo = (W - k) // stride + 1
    rows = []
    for c in range(C):
        for i in range(k):
            for j in range(k):
                sl = lax.slice(
                    xp, (c, 0, i, j),
                    (c + 1, N, i + (Ho - 1) * stride + 1, j + (Wo - 1) * stride + 1),
                    (1, 1, stride, stride))                      # (1, N, Ho, Wo)
                rows.append(sl.reshape(1, N * Ho * Wo))
    return jnp.concatenate(rows, axis=0), Ho, Wo


# ---------------------------------------------------------------------------
# Model
# ---------------------------------------------------------------------------
def init_params(key):
    ks = jax.random.split(key, 8)

    def u(k, shape, fan_in):
        bound = 1.0 / math.sqrt(fan_in)
        return jax.random.uniform(k, shape, jnp.float32, -bound, bound)

    return {
        "w1": u(ks[0], (6, 3, 11, 11), 3 * 11 * 11),
        "b1": u(ks[1], (6,), 3 * 11 * 11),
        "w2": u(ks[2], (15, 6, 5, 5), 6 * 5 * 5),
        "b2": u(ks[3], (15,), 6 * 5 * 5),
        "w3": u(ks[4], (96, 135), 135),
        "b3": u(ks[5], (96,), 135),
        "w4": u(ks[6], (15, 96), 96),
        "b4": u(ks[7], (15,), 96),
    }


def forward(params, x):
    n = x.shape[0]

    # conv_1 (3->6, k=11, s=7, p=2) + ReLU + MaxPool(2,2): one fused Pallas kernel.
    p1, hp1, wp1 = _pool_fused_patches(x, k=11, stride=7, pad=2, pool=2)
    y = conv1_relu_pool(params["w1"].reshape(6, -1), params["b1"], p1)   # (6, n*29*29)
    y = y.reshape(6, n, hp1, wp1)                                        # channel-major

    # conv_2 (6->15, k=5, s=2, p=2) + ReLU: lane-dense Pallas matmul.
    p2, ho2, wo2 = _im2col_cmajor(y, k=5, stride=2, pad=2)               # (150, n*225)
    y = conv_relu(params["w2"].reshape(15, -1), p2, params["b2"])        # (15, n*225)
    y = y.reshape(15, n, ho2, wo2)

    # MaxPool(4,4) + Flatten to PyTorch (n, C*H*W) order: only 450->270 floats,
    # kept as XLA glue per the perf review (lane-sparse Pallas kernel not worth it).
    hp2, wp2 = ho2 // 4, wo2 // 4
    y = y[:, :, : hp2 * 4, : wp2 * 4].reshape(15, n, hp2, 4, wp2, 4).max(axis=(3, 5))
    feat = y.transpose(1, 0, 2, 3).reshape(n, 15 * hp2 * wp2)            # (n, 135)

    # Linear(135,96)+ReLU -> Linear(96,15)+ReLU: one fused Pallas kernel.
    return mlp(feat, params["w3"], params["b3"], params["w4"], params["b4"])


def forward_ref(params, x):
    # Pure-JAX reference for correctness checking.
    dn = ("NCHW", "OIHW", "NCHW")
    hp = lax.Precision.HIGHEST
    y = lax.conv_general_dilated(x, params["w1"], (7, 7), [(2, 2), (2, 2)],
                                 dimension_numbers=dn, precision=hp)
    y = jnp.maximum(y + params["b1"][None, :, None, None], 0.0)
    y = lax.reduce_window(y, -jnp.inf, lax.max, (1, 1, 2, 2), (1, 1, 2, 2), "VALID")
    y = lax.conv_general_dilated(y, params["w2"], (2, 2), [(2, 2), (2, 2)],
                                 dimension_numbers=dn, precision=hp)
    y = jnp.maximum(y + params["b2"][None, :, None, None], 0.0)
    y = lax.reduce_window(y, -jnp.inf, lax.max, (1, 1, 4, 4), (1, 1, 4, 4), "VALID")
    y = y.reshape(y.shape[0], -1)
    y = jnp.maximum(jnp.dot(y, params["w3"].T, precision=hp) + params["b3"], 0.0)
    y = jnp.maximum(jnp.dot(y, params["w4"].T, precision=hp) + params["b4"], 0.0)
    return y


if __name__ == "__main__":
    key = jax.random.PRNGKey(0)
    pkey, xkey = jax.random.split(key)
    params = init_params(pkey)

    # The module's Flatten -> Linear(in_features=135) wiring implies 3x416x416
    # inputs (image_dimensions in __init__); batch kept small (2).
    X = jax.random.uniform(xkey, (2, 3, 416, 416), dtype=jnp.float32)

    out = jax.block_until_ready(jax.jit(forward)(params, X))
    assert out.shape == (2, 15), out.shape

    ref = jax.block_until_ready(jax.jit(forward_ref)(params, X))
    if not jnp.allclose(out, ref, rtol=5e-3, atol=5e-3):
        raise AssertionError(
            f"kernel/reference mismatch, max abs diff = "
            f"{float(jnp.max(jnp.abs(out - ref)))}")
    print("KERNEL_OK")
</pallas_src>

<mosaic_0001>
module attributes {stable_mosaic.version = 11 : i64} {
  func.func @_conv1_relu_pool_kernel(%arg0: i32, %arg1: memref<6x363xf32, #tpu.memory_space<vmem>>, %arg2: memref<6x1xf32, #tpu.memory_space<vmem>>, %arg3: memref<363x512xf32, #tpu.memory_space<vmem>>, %arg4: memref<363x512xf32, #tpu.memory_space<vmem>>, %arg5: memref<363x512xf32, #tpu.memory_space<vmem>>, %arg6: memref<363x512xf32, #tpu.memory_space<vmem>>, %arg7: memref<6x512xf32, #tpu.memory_space<vmem>>) attributes {dimension_semantics = [#tpu.dimension_semantics<parallel>], iteration_bounds = array<i64: 4>, scalar_prefetch = 0 : i64, scratch_operands = 0 : i64, tpu.core_type = #tpu.core_type<tc>, window_params = [{pipeline_mode = #tpu.pipeline_mode<synchronous>, transform_indices = @transform_0, window_bounds = array<i64: 6, 363>}, {pipeline_mode = #tpu.pipeline_mode<synchronous>, transform_indices = @transform_1, window_bounds = array<i64: 6, 1>}, {transform_indices = @transform_2, window_bounds = array<i64: 363, 512>}, {transform_indices = @transform_3, window_bounds = array<i64: 363, 512>}, {transform_indices = @transform_4, window_bounds = array<i64: 363, 512>}, {transform_indices = @transform_5, window_bounds = array<i64: 363, 512>}, {transform_indices = @transform_6, window_bounds = array<i64: 6, 512>}]} {
    %c0 = arith.constant 0 : index
    %c0_0 = arith.constant 0 : index
    %0 = vector.load %arg1[%c0, %c0_0] : memref<6x363xf32, #tpu.memory_space<vmem>>, vector<6x363xf32>
    %c0_1 = arith.constant 0 : index
    %c0_2 = arith.constant 0 : index
    %1 = vector.load %arg3[%c0_1, %c0_2] : memref<363x512xf32, #tpu.memory_space<vmem>>, vector<363x512xf32>
    %cst = arith.constant dense<0.000000e+00> : vector<6x512xf32>
    %2 = tpu.matmul %0, %1, %cst {dimension_numbers = #tpu.dot_dimension_numbers<[1], [0], [0], [1], [0, 0, 1, 1], [], []>} : vector<6x363xf32>, vector<363x512xf32>, vector<6x512xf32> -> vector<6x512xf32>
    %c0_3 = arith.constant 0 : index
    %c0_4 = arith.constant 0 : index
    %3 = vector.load %arg4[%c0_3, %c0_4] : memref<363x512xf32, #tpu.memory_space<vmem>>, vector<363x512xf32>
    %cst_5 = arith.constant dense<0.000000e+00> : vector<6x512xf32>
    %4 = tpu.matmul %0, %3, %cst_5 {dimension_numbers = #tpu.dot_dimension_numbers<[1], [0], [0], [1], [0, 0, 1, 1], [], []>} : vector<6x363xf32>, vector<363x512xf32>, vector<6x512xf32> -> vector<6x512xf32>
    %5 = arith.maximumf %2, %4 : vector<6x512xf32>
    %c0_6 = arith.constant 0 : index
    %c0_7 = arith.constant 0 : index
    %6 = vector.load %arg5[%c0_6, %c0_7] : memref<363x512xf32, #tpu.memory_space<vmem>>, vector<363x512xf32>
    %cst_8 = arith.constant dense<0.000000e+00> : vector<6x512xf32>
    %7 = tpu.matmul %0, %6, %cst_8 {dimension_numbers = #tpu.dot_dimension_numbers<[1], [0], [0], [1], [0, 0, 1, 1], [], []>} : vector<6x363xf32>, vector<363x512xf32>, vector<6x512xf32> -> vector<6x512xf32>
    %8 = arith.maximumf %5, %7 : vector<6x512xf32>
    %c0_9 = arith.constant 0 : index
    %c0_10 = arith.constant 0 : index
    %9 = vector.load %arg6[%c0_9, %c0_10] : memref<363x512xf32, #tpu.memory_space<vmem>>, vector<363x512xf32>
    %cst_11 = arith.constant dense<0.000000e+00> : vector<6x512xf32>
    %10 = tpu.matmul %0, %9, %cst_11 {dimension_numbers = #tpu.dot_dimension_numbers<[1], [0], [0], [1], [0, 0, 1, 1], [], []>} : vector<6x363xf32>, vector<363x512xf32>, vector<6x512xf32> -> vector<6x512xf32>
    %11 = arith.maximumf %8, %10 : vector<6x512xf32>
    %c0_12 = arith.constant 0 : index
    %c0_13 = arith.constant 0 : index
    %12 = vector.load %arg2[%c0_12, %c0_13] : memref<6x1xf32, #tpu.memory_space<vmem>>, vector<6x1xf32>
    %13 = vector.broadcast %12 : vector<6x1xf32> to vector<6x512xf32>
    %14 = arith.addf %11, %13 : vector<6x512xf32>
    %cst_14 = arith.constant 0.000000e+00 : f32
    %15 = vector.broadcast %cst_14 : f32 to vector<6x512xf32>
    %16 = arith.maximumf %14, %15 : vector<6x512xf32>
    %c0_15 = arith.constant 0 : index
    %c0_16 = arith.constant 0 : index
    %17 = vector.load %arg7[%c0_15, %c0_16] : memref<6x512xf32, #tpu.memory_space<vmem>>, vector<6x512xf32>
    tpu.vector_store %arg7[%c0_15, %c0_16], %16 {strides = array<i32>} : memref<6x512xf32, #tpu.memory_space<vmem>>, vector<6x512xf32>,
    return
  }
  func.func @transform_0(%arg0: i32) -> (i32, i32) {
    %c0_i32 = arith.constant 0 : i32
    %c0_i32_0 = arith.constant 0 : i32
    %c0_i32_1 = arith.constant 0 : i32
    return %c0_i32, %c0_i32_0 : i32, i32
  }
  func.func @transform_1(%arg0: i32) -> (i32, i32) {
    %c0_i32 = arith.constant 0 : i32
    %c0_i32_0 = arith.constant 0 : i32
    %c0_i32_1 = arith.constant 0 : i32
    return %c0_i32, %c0_i32_0 : i32, i32
  }
  func.func @transform_2(%arg0: i32) -> (i32, i32) {
    %c0_i32 = arith.constant 0 : i32
    %c0_i32_0 = arith.constant 0 : i32
    return %c0_i32, %arg0 : i32, i32
  }
  func.func @transform_3(%arg0: i32) -> (i32, i32) {
    %c0_i32 = arith.constant 0 : i32
    %c0_i32_0 = arith.constant 0 : i32
    return %c0_i32, %arg0 : i32, i32
  }
  func.func @transform_4(%arg0: i32) -> (i32, i32) {
    %c0_i32 = arith.constant 0 : i32
    %c0_i32_0 = arith.constant 0 : i32
    return %c0_i32, %arg0 : i32, i32
  }
  func.func @transform_5(%arg0: i32) -> (i32, i32) {
    %c0_i32 = arith.constant 0 : i32
    %c0_i32_0 = arith.constant 0 : i32
    return %c0_i32, %arg0 : i32, i32
  }
  func.func @transform_6(%arg0: i32) -> (i32, i32) {
    %c0_i32 = arith.constant 0 : i32
    %c0_i32_0 = arith.constant 0 : i32
    return %c0_i32, %arg0 : i32, i32
  }
}

module attributes {stable_mosaic.version = 11 : i64} {
  func.func @_matmul_bias_relu_kernel(%arg0: memref<15x150xf32, #tpu.memory_space<vmem>>, %arg1: memref<150x450xf32, #tpu.memory_space<vmem>>, %arg2: memref<15x1xf32, #tpu.memory_space<vmem>>, %arg3: memref<15x450xf32, #tpu.memory_space<vmem>>) attributes {dimension_semantics = [], scalar_prefetch = 0 : i64, scratch_operands = 0 : i64, tpu.core_type = #tpu.core_type<tc>} {
    %c0 = arith.constant 0 : index
    %c0_0 = arith.constant 0 : index
    %0 = vector.load %arg0[%c0, %c0_0] : memref<15x150xf32, #tpu.memory_space<vmem>>, vector<15x150xf32>
    %c0_1 = arith.constant 0 : index
    %c0_2 = arith.constant 0 : index
    %1 = vector.load %arg1[%c0_1, %c0_2] : memref<150x450xf32, #tpu.memory_space<vmem>>, vector<150x450xf32>
    %cst = arith.constant dense<0.000000e+00> : vector<15x450xf32>
    %2 = tpu.matmul %0, %1, %cst {dimension_numbers = #tpu.dot_dimension_numbers<[1], [0], [0], [1], [0, 0, 1, 1], [], []>} : vector<15x150xf32>, vector<150x450xf32>, vector<15x450xf32> -> vector<15x450xf32>
    %c0_3 = arith.constant 0 : index
    %c0_4 = arith.constant 0 : index
    %3 = vector.load %arg2[%c0_3, %c0_4] : memref<15x1xf32, #tpu.memory_space<vmem>>, vector<15x1xf32>
    %4 = vector.broadcast %3 : vector<15x1xf32> to vector<15x450xf32>
    %5 = arith.addf %2, %4 : vector<15x450xf32>
    %cst_5 = arith.constant 0.000000e+00 : f32
    %6 = vector.broadcast %cst_5 : f32 to vector<15x450xf32>
    %7 = arith.maximumf %5, %6 : vector<15x450xf32>
    %c0_6 = arith.constant 0 : index
    %c0_7 = arith.constant 0 : index
    %8 = vector.load %arg3[%c0_6, %c0_7] : memref<15x450xf32, #tpu.memory_space<vmem>>, vector<15x450xf32>
    tpu.vector_store %arg3[%c0_6, %c0_7], %7 {strides = array<i32>} : memref<15x450xf32, #tpu.memory_space<vmem>>, vector<15x450xf32>,
    return
  }
}

module attributes {stable_mosaic.version = 11 : i64} {
  func.func @_mlp_kernel(%arg0: memref<2x135xf32, #tpu.memory_space<vmem>>, %arg1: memref<135x96xf32, #tpu.memory_space<vmem>>, %arg2: memref<1x96xf32, #tpu.memory_space<vmem>>, %arg3: memref<96x15xf32, #tpu.memory_space<vmem>>, %arg4: memref<1x15xf32, #tpu.memory_space<vmem>>, %arg5: memref<2x15xf32, #tpu.memory_space<vmem>>) attributes {dimension_semantics = [], scalar_prefetch = 0 : i64, scratch_operands = 0 : i64, tpu.core_type = #tpu.core_type<tc>} {
    %c0 = arith.constant 0 : index
    %c0_0 = arith.constant 0 : index
    %0 = vector.load %arg0[%c0, %c0_0] : memref<2x135xf32, #tpu.memory_space<vmem>>, vector<2x135xf32>
    %c0_1 = arith.constant 0 : index
    %c0_2 = arith.constant 0 : index
    %1 = vector.load %arg1[%c0_1, %c0_2] : memref<135x96xf32, #tpu.memory_space<vmem>>, vector<135x96xf32>
    %cst = arith.constant dense<0.000000e+00> : vector<2x96xf32>
    %2 = tpu.matmul %0, %1, %cst {dimension_numbers = #tpu.dot_dimension_numbers<[1], [0], [0], [1], [0, 0, 1, 1], [], []>} : vector<2x135xf32>, vector<135x96xf32>, vector<2x96xf32> -> vector<2x96xf32>
    %c0_3 = arith.constant 0 : index
    %c0_4 = arith.constant 0 : index
    %3 = vector.load %arg2[%c0_3, %c0_4] : memref<1x96xf32, #tpu.memory_space<vmem>>, vector<1x96xf32>
    %4 = vector.broadcast %3 : vector<1x96xf32> to vector<2x96xf32>
    %5 = arith.addf %2, %4 : vector<2x96xf32>
    %cst_5 = arith.constant 0.000000e+00 : f32
    %6 = vector.broadcast %cst_5 : f32 to vector<2x96xf32>
    %7 = arith.maximumf %5, %6 : vector<2x96xf32>
    %c0_6 = arith.constant 0 : index
    %c0_7 = arith.constant 0 : index
    %8 = vector.load %arg3[%c0_6, %c0_7] : memref<96x15xf32, #tpu.memory_space<vmem>>, vector<96x15xf32>
    %cst_8 = arith.constant dense<0.000000e+00> : vector<2x15xf32>
    %9 = tpu.matmul %7, %8, %cst_8 {dimension_numbers = #tpu.dot_dimension_numbers<[1], [0], [0], [1], [0, 0, 1, 1], [], []>} : vector<2x96xf32>, vector<96x15xf32>, vector<2x15xf32> -> vector<2x15xf32>
    %c0_9 = arith.constant 0 : index
    %c0_10 = arith.constant 0 : index
    %10 = vector.load %arg4[%c0_9, %c0_10] : memref<1x15xf32, #tpu.memory_space<vmem>>, vector<1x15xf32>
    %11 = vector.broadcast %10 : vector<1x15xf32> to vector<2x15xf32>
    %12 = arith.addf %9, %11 : vector<2x15xf32>
    %cst_11 = arith.constant 0.000000e+00 : f32
    %13 = vector.broadcast %cst_11 : f32 to vector<2x15xf32>
    %14 = arith.maximumf %12, %13 : vector<2x15xf32>
    %c0_12 = arith.constant 0 : index
    %c0_13 = arith.constant 0 : index
    %15 = vector.load %arg5[%c0_12, %c0_13] : memref<2x15xf32, #tpu.memory_space<vmem>>, vector<2x15xf32>
    tpu.vector_store %arg5[%c0_12, %c0_13], %14 {strides = array<i32>} : memref<2x15xf32, #tpu.memory_space<vmem>>, vector<2x15xf32>,
    return
  }
}

</mosaic_0001>

<llo_original>
// kernel: forward.3
$region0: #{forward.3}
  #allocation0 [shape = 'u32[]', space=smem, size = 0x4, offset = 0x4, fixed_abs, tag = 'smem constant byte address 0x4 - core index']
  #allocation1 [shape = 'u32[144,128]{1,0:T(1,128)}', space=vmem, size = 0x12000, scoped, tag = 'internal scratch']
  %s0 = inlined_call_operand.vmem [shape: f32[6,363], index: 0, kind: input, shape index: {}]
  %s1 = inlined_call_operand.vmem [shape: f32[6,1], index: 1, kind: input, shape index: {}]
  %s2 = inlined_call_operand.vmem [shape: f32[363,1682], index: 2, kind: input, shape index: {}]
  %s3 = inlined_call_operand.vmem [shape: f32[363,1682], index: 3, kind: input, shape index: {}]
  %s4 = inlined_call_operand.vmem [shape: f32[363,1682], index: 4, kind: input, shape index: {}]
  %s5 = inlined_call_operand.vmem [shape: f32[363,1682], index: 5, kind: input, shape index: {}]
  %s6 = inlined_call_operand.vmem [shape: f32[6,1682], index: 6, kind: output, shape index: {}]
  %s7 = sld [smem:[#allocation0]]
  $region383: #{forward.3} parent=0
    _
  %s9 = ssub.s32 1, %s7
  %s10 = scalar_select 0, %s9, %s7
  $region1: #{forward.3} parent=0
    #allocation2 [shape = 'u8[1507328]{0}', space=vmem, size = 0x170000, scoped, tag = 'input window, operand 2']
    #allocation3 [shape = 'u8[1507328]{0}', space=vmem, size = 0x170000, scoped, tag = 'input window, operand 3']
    #allocation4 [shape = 'u8[1507328]{0}', space=vmem, size = 0x170000, scoped, tag = 'input window, operand 4']
    #allocation5 [shape = 'u8[1507328]{0}', space=vmem, size = 0x170000, scoped, tag = 'input window, operand 5']
    #allocation6 [shape = 'u8[32768]{0}', space=vmem, size = 0x8000, scoped, tag = 'output window, operand 0']
    loop: start=0, step=1, limit=6
    $region2: #{forward.3} parent=1 // loop_pre_header
      _
    $region3: #{forward.3} parent=1 // loop_header
      %s12 = sphi 0, %s16
      %p13 = scmp.ge.s32.totalorder %s12, 6
      %s20 = sphi 0, %s20
      %s22 = sphi 0, %s20
      %s23 = sphi 0, %s22
      %s37 = sphi 0, %s23
      %s41 = sphi 0, %s41
      %s43 = sphi 0, %s41
      %s44 = sphi 0, %s43
      %s58 = sphi 0, %s44
      %s64 = sphi 0, %s66
      %s67 = sphi 0, %s64
      %s68 = sphi 0, %s67
      %s84 = sphi 0, %s68
      %s90 = sphi 0, %s92
      %s93 = sphi 0, %s90
      %s94 = sphi 0, %s93
      %s110 = sphi 0, %s94
      %s116 = sphi 0, %s118
      %s119 = sphi 0, %s116
      %s120 = sphi 0, %s119
      %s136 = sphi 0, %s120
      %s142 = sphi 0, %s144
      %s145 = sphi 0, %s142
      %s146 = sphi 0, %s145
      %s162 = sphi 0, %s146
      %s168 = sphi 0, %s170
      %s171 = sphi 0, %s168
      %s172 = sphi 0, %s171
      %s188 = sphi 0, %s172
    $region4: #{forward.3} parent=1 // loop_header_branch
      %15 = sbr.rel (%p13) target = $region8
    $region5: #{forward.3} parent=1 // loop_body
      %s17 = ssub.s32 %s12, 1
      %s18 = ssub.s32 %s12, 2
      %s19 = sadd.s32 %s12, 1
      %s21 = sadd.s32 %s20, 1
      %p24 = scmp.eq.s32.totalorder %s12, 3
      %p25 = scmp.ne.s32.totalorder %s20, %s22
      %p26 = scmp.eq.s32.totalorder %s12, 0
      %p27 = por %p25, %p26
      %p28 = scmp.ne.s32.totalorder %s20, %s22
      %p29 = scmp.eq.s32.totalorder %s17, 3
      %p30 = por %p28, %p29
      %p31 = scmp.ne.s32.totalorder %s22, %s23
      %p32 = scmp.eq.s32.totalorder %s17, 0
      %p33 = por %p31, %p32
      %p34 = scmp.ne.s32.totalorder %s22, %s23
      %p35 = scmp.eq.s32.totalorder %s18, 3
      %p36 = por %p34, %p35
      %p38 = scmp.ne.s32.totalorder %s23, %s37
      %p39 = scmp.eq.s32.totalorder %s18, 0
      %p40 = por %p38, %p39
      %s42 = sadd.s32 %s41, 1
      %p45 = scmp.eq.s32.totalorder %s12, 3
      %p46 = scmp.ne.s32.totalorder %s41, %s43
      %p47 = scmp.eq.s32.totalorder %s12, 0
      %p48 = por %p46, %p47
      %p49 = scmp.ne.s32.totalorder %s41, %s43
      %p50 = scmp.eq.s32.totalorder %s17, 3
      %p51 = por %p49, %p50
      %p52 = scmp.ne.s32.totalorder %s43, %s44
      %p53 = scmp.eq.s32.totalorder %s17, 0
      %p54 = por %p52, %p53
      %p55 = scmp.ne.s32.totalorder %s43, %s44
      %p56 = scmp.eq.s32.totalorder %s18, 3
      %p57 = por %p55, %p56
      %p59 = scmp.ne.s32.totalorder %s44, %s58
      %p60 = scmp.eq.s32.totalorder %s18, 0
      %p61 = por %p59, %p60
      %s62 = ssub.s32 %s12, %s19
      %p63 = scmp.eq.s32.totalorder %s62, 0
      %s65 = sadd.s32 %s64, 1
      %s66 = scalar_select %p63, %s64, %s65
      %p69 = pneg %p63
      %p70 = scmp.eq.s32.totalorder %s12, 3
      %p71 = por %p69, %p70
      %p72 = scmp.ne.s32.totalorder %s64, %s67
      %p73 = scmp.eq.s32.totalorder %s12, 0
      %p74 = por %p72, %p73
      %p75 = scmp.ne.s32.totalorder %s64, %s67
      %p76 = scmp.eq.s32.totalorder %s17, 3
      %p77 = por %p75, %p76
      %p78 = scmp.ne.s32.totalorder %s67, %s68
      %p79 = scmp.eq.s32.totalorder %s17, 0
      %p80 = por %p78, %p79
      %p81 = scmp.ne.s32.totalorder %s67, %s68
      %p82 = scmp.eq.s32.totalorder %s18, 3
      %p83 = por %p81, %p82
      %p85 = scmp.ne.s32.totalorder %s68, %s84
      %p86 = scmp.eq.s32.totalorder %s18, 0
      %p87 = por %p85, %p86
      %s88 = ssub.s32 %s12, %s19
      %p89 = scmp.eq.s32.totalorder %s88, 0
      %s91 = sadd.s32 %s90, 1
      %s92 = scalar_select %p89, %s90, %s91
      %p95 = pneg %p89
      %p96 = scmp.eq.s32.totalorder %s12, 3
      %p97 = por %p95, %p96
      %p98 = scmp.ne.s32.totalorder %s90, %s93
      %p99 = scmp.eq.s32.totalorder %s12, 0
      %p100 = por %p98, %p99
      %p101 = scmp.ne.s32.totalorder %s90, %s93
      %p102 = scmp.eq.s32.totalorder %s17, 3
      %p103 = por %p101, %p102
      %p104 = scmp.ne.s32.totalorder %s93, %s94
      %p105 = scmp.eq.s32.totalorder %s17, 0
      %p106 = por %p104, %p105
      %p107 = scmp.ne.s32.totalorder %s93, %s94
      %p108 = scmp.eq.s32.totalorder %s18, 3
      %p109 = por %p107, %p108
      %p111 = scmp.ne.s32.totalorder %s94, %s110
      %p112 = scmp.eq.s32.totalorder %s18, 0
      %p113 = por %p111, %p112
      %s114 = ssub.s32 %s12, %s19
      %p115 = scmp.eq.s32.totalorder %s114, 0
      %s117 = sadd.s32 %s116, 1
      %s118 = scalar_select %p115, %s116, %s117
      %p121 = pneg %p115
      %p122 = scmp.eq.s32.totalorder %s12, 3
      %p123 = por %p121, %p122
      %p124 = scmp.ne.s32.totalorder %s116, %s119
      %p125 = scmp.eq.s32.totalorder %s12, 0
      %p126 = por %p124, %p125
      %p127 = scmp.ne.s32.totalorder %s116, %s119
      %p128 = scmp.eq.s32.totalorder %s17, 3
      %p129 = por %p127, %p128
      %p130 = scmp.ne.s32.totalorder %s119, %s120
      %p131 = scmp.eq.s32.totalorder %s17, 0
      %p132 = por %p130, %p131
      %p133 = scmp.ne.s32.totalorder %s119, %s120
      %p134 = scmp.eq.s32.totalorder %s18, 3
      %p135 = por %p133, %p134
      %p137 = scmp.ne.s32.totalorder %s120, %s136
      %p138 = scmp.eq.s32.totalorder %s18, 0
      %p139 = por %p137, %p138
      %s140 = ssub.s32 %s12, %s19
      %p141 = scmp.eq.s32.totalorder %s140, 0
      %s143 = sadd.s32 %s142, 1
      %s144 = scalar_select %p141, %s142, %s143
      %p147 = pneg %p141
      %p148 = scmp.eq.s32.totalorder %s12, 3
      %p149 = por %p147, %p148
      %p150 = scmp.ne.s32.totalorder %s142, %s145
      %p151 = scmp.eq.s32.totalorder %s12, 0
      %p152 = por %p150, %p151
      %p153 = scmp.ne.s32.totalorder %s142, %s145
      %p154 = scmp.eq.s32.totalorder %s17, 3
      %p155 = por %p153, %p154
      %p156 = scmp.ne.s32.totalorder %s145, %s146
      %p157 = scmp.eq.s32.totalorder %s17, 0
      %p158 = por %p156, %p157
      %p159 = scmp.ne.s32.totalorder %s145, %s146
      %p160 = scmp.eq.s32.totalorder %s18, 3
      %p161 = por %p159, %p160
      %p163 = scmp.ne.s32.totalorder %s146, %s162
      %p164 = scmp.eq.s32.totalorder %s18, 0
      %p165 = por %p163, %p164
      %s166 = ssub.s32 %s12, %s19
      %p167 = scmp.eq.s32.totalorder %s166, 0
      %s169 = sadd.s32 %s168, 1
      %s170 = scalar_select %p167, %s168, %s169
      %p173 = pneg %p167
      %p174 = scmp.eq.s32.totalorder %s12, 3
      %p175 = por %p173, %p174
      %p176 = scmp.ne.s32.totalorder %s168, %s171
      %p177 = scmp.eq.s32.totalorder %s12, 0
      %p178 = por %p176, %p177
      %p179 = scmp.ne.s32.totalorder %s168, %s171
      %p180 = scmp.eq.s32.totalorder %s17, 3
      %p181 = por %p179, %p180
      %p182 = scmp.ne.s32.totalorder %s171, %s172
      %p183 = scmp.eq.s32.totalorder %s17, 0
      %p184 = por %p182, %p183
      %p185 = scmp.ne.s32.totalorder %s171, %s172
      %p186 = scmp.eq.s32.totalorder %s18, 3
      %p187 = por %p185, %p186
      %p189 = scmp.ne.s32.totalorder %s172, %s188
      %p190 = scmp.eq.s32.totalorder %s18, 0
      %p191 = por %p189, %p190
      %p192 = scmp.le.s32.totalorder 1, %s12
      %p193 = scmp.lt.s32.totalorder %s12, 5
      %p194 = pnand %p192, %p193
      %p195 = pneg %p194
      // Predicated region
      $region9: #{forward.3} parent=5 // pred_check
        _
      $region10: #{forward.3} parent=5 // pred_check_branch
        %197 = sbr.rel (%p194) target = $region12
      $region11: #{forward.3} parent=5 // pred_region
        %s198 = ssub.s32 %s12, 1
        // Predicated region
        $region13: #{forward.3} parent=11 // pred_check
          %p199 = pneg %p33
        $region14: #{forward.3} parent=11 // pred_check_branch
          %201 = sbr.rel (%p199) target = $region16
        $region15: #{forward.3} parent=11 // pred_region
          _
        $region16: #{forward.3} parent=11 // pred_fallthru
          _
        // Predicated region
        $region17: #{forward.3} parent=11 // pred_check
          %p202 = pneg %p54
        $region18: #{forward.3} parent=11 // pred_check_branch
          %204 = sbr.rel (%p202) target = $region20
        $region19: #{forward.3} parent=11 // pred_region
          _
        $region20: #{forward.3} parent=11 // pred_fallthru
          _
      $region12: #{forward.3} parent=5 // pred_fallthru
        _
      %p205 = scmp.lt.s32.totalorder %s12, 4
      // Predicated region
      $region21: #{forward.3} parent=5 // pred_check
        %p206 = pneg %p205
      $region22: #{forward.3} parent=5 // pred_check_branch
        %208 = sbr.rel (%p206) target = $region24
      $region23: #{forward.3} parent=5 // pred_region
        // Predicated region
        $region25: #{forward.3} parent=23 // pred_check
          %p209 = pneg %p74
        $region26: #{forward.3} parent=23 // pred_check_branch
          %211 = sbr.rel (%p209) target = $region28
        $region27: #{forward.3} parent=23 // pred_region
          %s212 = sand.u32 %s64, 1
          %s213 = sand.u32 %s64, 1
          %s214 = smul.addr %s213, 1472
          %s215 = scalar_lea.vmem [#allocation2], %s214
          %s216 = smul.u32 4, %s12
          %s217 = ssub.s32 14, %s216
          %p218 = scmp.lt.s32.totalorder %s217, 4
          %s219 = scalar_select %p218, %s217, 4
          %s220 = smul.u32 5888, %s219
          %p221 = scmp.ne.s32.totalorder 0, %s220
          %s222 = smul.addr %s216, 8
          %s223 = scalar_lea.vmem %s2, %s222
          %s224 = smul.u32 %s219, 8
          // Predicated region
          $region29: #{forward.3} parent=27 // pred_check
            %p225 = pneg %p221
          $region30: #{forward.3} parent=27 // pred_check_branch
            %227 = sbr.rel (%p225) target = $region32
          $region31: #{forward.3} parent=27 // pred_region
            %p228 = scmp.lt.u32.totalorder %s224, 8
            %p229 = pneg %p228
            // Predicated region
            $region33: #{forward.3} parent=31 // pred_check
              _
            $region34: #{forward.3} parent=31 // pred_check_branch
              %231 = sbr.rel (%p228) target = $region36
            $region35: #{forward.3} parent=31 // pred_region
              %s336 = sand.u32 %s224, 7
              %p337 = scmp.eq.s32.totalorder %s336, 0
              // Predicated region
              $region48: #{forward.3} parent=35 // pred_check
                %p338 = pneg %p337
              $region49: #{forward.3} parent=35 // pred_check_branch
                %340 = sbr.rel (%p338) target = $region51
              $region50: #{forward.3} parent=35 // pred_region
                %s341 = sshrl.u32 %s224, 3
                %s342 = sshrl.u32 %s341, 1
                // While loop
                $region52: #{forward.3} parent=50 // loop_pre_header
                  _
                $region53: #{forward.3} parent=50 // loop_header
                  %s346 = sphi 0, %s348
                  %p347 = scmp.ge.s32.totalorder %s346, %s342
                  %s351 = sphi 0, %s540
                  %s352 = sphi %s223, %s543
                  %s353 = sphi %s215, %s544
                $region54: #{forward.3} parent=50 // loop_header_branch
                  %350 = sbr.rel (%p347) target = $region58
                $region55: #{forward.3} parent=50 // loop_body
                  %v354 = vld [vmem:[%s352] sm:$0xff]
                  %355 = vst [vmem:[%s353] sm:$0xff] %v354
                  %v356 = vld [vmem:[%s352 + $0x8] sm:$0xff]
                  %357 = vst [vmem:[%s353 + $0x8] sm:$0xff] %v356
                  %v358 = vld [vmem:[%s352 + $0x70] sm:$0xff]
                  %359 = vst [vmem:[%s353 + $0x20] sm:$0xff] %v358
                  %v360 = vld [vmem:[%s352 + $0x78] sm:$0xff]
                  %361 = vst [vmem:[%s353 + $0x28] sm:$0xff] %v360
                  %v362 = vld [vmem:[%s352 + $0xe0] sm:$0xff]
                  %363 = vst [vmem:[%s353 + $0x40] sm:$0xff] %v362
                  %v364 = vld [vmem:[%s352 + $0xe8] sm:$0xff]
                  %365 = vst [vmem:[%s353 + $0x48] sm:$0xff] %v364
                  %v366 = vld [vmem:[%s352 + $0x150] sm:$0xff]
                  %367 = vst [vmem:[%s353 + $0x60] sm:$0xff] %v366
                  %v368 = vld [vmem:[%s352 + $0x158] sm:$0xff]
                  %369 = vst [vmem:[%s353 + $0x68] sm:$0xff] %v368
                  %v370 = vld [vmem:[%s352 + $0x1c0] sm:$0xff]
                  %371 = vst [vmem:[%s353 + $0x80] sm:$0xff] %v370
                  %v372 = vld [vmem:[%s352 + $0x1c8] sm:$0xff]
                  %373 = vst [vmem:[%s353 + $0x88] sm:$0xff] %v372
                  %v374 = vld [vmem:[%s352 + $0x230] sm:$0xff]
                  %375 = vst [vmem:[%s353 + $0xa0] sm:$0xff] %v374
                  %v376 = vld [vmem:[%s352 + $0x238] sm:$0xff]
                  %377 = vst [vmem:[%s353 + $0xa8] sm:$0xff] %v376
                  %v378 = vld [vmem:[%s352 + $0x2a0] sm:$0xff]
                  %379 = vst [vmem:[%s353 + $0xc0] sm:$0xff] %v378
                  %v380 = vld [vmem:[%s352 + $0x2a8] sm:$0xff]
                  %381 = vst [vmem:[%s353 + $0xc8] sm:$0xff] %v380
                  %v382 = vld [vmem:[%s352 + $0x310] sm:$0xff]
                  %383 = vst [vmem:[%s353 + $0xe0] sm:$0xff] %v382
                  %v384 = vld [vmem:[%s352 + $0x318] sm:$0xff]
                  %385 = vst [vmem:[%s353 + $0xe8] sm:$0xff] %v384
                  %v386 = vld [vmem:[%s352 + $0x380] sm:$0xff]
                  %387 = vst [vmem:[%s353 + $0x100] sm:$0xff] %v386
                  %v388 = vld [vmem:[%s352 + $0x388] sm:$0xff]
                  %389 = vst [vmem:[%s353 + $0x108] sm:$0xff] %v388
                  %v390 = vld [vmem:[%s352 + $0x3f0] sm:$0xff]
                  %391 = vst [vmem:[%s353 + $0x120] sm:$0xff] %v390
                  %v392 = vld [vmem:[%s352 + $0x3f8] sm:$0xff]
                  %393 = vst [vmem:[%s353 + $0x128] sm:$0xff] %v392
                  %v394 = vld [vmem:[%s352 + $0x460] sm:$0xff]
                  %395 = vst [vmem:[%s353 + $0x140] sm:$0xff] %v394
                  %v396 = vld [vmem:[%s352 + $0x468] sm:$0xff]
                  %397 = vst [vmem:[%s353 + $0x148] sm:$0xff] %v396
                  %v398 = vld [vmem:[%s352 + $0x4d0] sm:$0xff]
                  %399 = vst [vmem:[%s353 + $0x160] sm:$0xff] %v398
                  %v400 = vld [vmem:[%s352 + $0x4d8] sm:$0xff]
                  %401 = vst [vmem:[%s353 + $0x168] sm:$0xff] %v400
                  %v402 = vld [vmem:[%s352 + $0x540] sm:$0xff]
                  %403 = vst [vmem:[%s353 + $0x180] sm:$0xff] %v402
                  %v404 = vld [vmem:[%s352 + $0x548] sm:$0xff]
                  %405 = vst [vmem:[%s353 + $0x188] sm:$0xff] %v404
                  %v406 = vld [vmem:[%s352 + $0x5b0] sm:$0xff]
                  %407 = vst [vmem:[%s353 + $0x1a0] sm:$0xff] %v406
                  %v408 = vld [vmem:[%s352 + $0x5b8] sm:$0xff]
                  %409 = vst [vmem:[%s353 + $0x1a8] sm:$0xff] %v408
                  %v410 = vld [vmem:[%s352 + $0x620] sm:$0xff]
                  %411 = vst [vmem:[%s353 + $0x1c0] sm:$0xff] %v410
                  %v412 = vld [vmem:[%s352 + $0x628] sm:$0xff]
                  %413 = vst [vmem:[%s353 + $0x1c8] sm:$0xff] %v412
                  %v414 = vld [vmem:[%s352 + $0x690] sm:$0xff]
                  %415 = vst [vmem:[%s353 + $0x1e0] sm:$0xff] %v414
                  %v416 = vld [vmem:[%s352 + $0x698] sm:$0xff]
                  %417 = vst [vmem:[%s353 + $0x1e8] sm:$0xff] %v416
                  %v418 = vld [vmem:[%s352 + $0x700] sm:$0xff]
                  %419 = vst [vmem:[%s353 + $0x200] sm:$0xff] %v418
                  %v420 = vld [vmem:[%s352 + $0x708] sm:$0xff]
                  %421 = vst [vmem:[%s353 + $0x208] sm:$0xff] %v420
                  %v422 = vld [vmem:[%s352 + $0x770] sm:$0xff]
                  %423 = vst [vmem:[%s353 + $0x220] sm:$0xff] %v422
                  %v424 = vld [vmem:[%s352 + $0x778] sm:$0xff]
                  %425 = vst [vmem:[%s353 + $0x228] sm:$0xff] %v424
                  %v426 = vld [vmem:[%s352 + $0x7e0] sm:$0xff]
                  %427 = vst [vmem:[%s353 + $0x240] sm:$0xff] %v426
                  %v428 = vld [vmem:[%s352 + $0x7e8] sm:$0xff]
                  %429 = vst [vmem:[%s353 + $0x248] sm:$0xff] %v428
                  %v430 = vld [vmem:[%s352 + $0x850] sm:$0xff]
                  %431 = vst [vmem:[%s353 + $0x260] sm:$0xff] %v430
                  %v432 = vld [vmem:[%s352 + $0x858] sm:$0xff]
                  %433 = vst [vmem:[%s353 + $0x268] sm:$0xff] %v432
                  %v434 = vld [vmem:[%s352 + $0x8c0] sm:$0xff]
                  %435 = vst [vmem:[%s353 + $0x280] sm:$0xff] %v434
                  %v436 = vld [vmem:[%s352 + $0x8c8] sm:$0xff]
                  %437 = vst [vmem:[%s353 + $0x288] sm:$0xff] %v436
                  %v438 = vld [vmem:[%s352 + $0x930] sm:$0xff]
                  %439 = vst [vmem:[%s353 + $0x2a0] sm:$0xff] %v438
                  %v440 = vld [vmem:[%s352 + $0x938] sm:$0xff]
                  %441 = vst [vmem:[%s353 + $0x2a8] sm:$0xff] %v440
                  %v442 = vld [vmem:[%s352 + $0x9a0] sm:$0xff]
                  %443 = vst [vmem:[%s353 + $0x2c0] sm:$0xff] %v442
                  %v444 = vld [vmem:[%s352 + $0x9a8] sm:$0xff]
                  %445 = vst [vmem:[%s353 + $0x2c8] sm:$0xff] %v444
                  %v446 = vld [vmem:[%s352 + $0xa10] sm:$0xff]
                  %447 = vst [vmem:[%s353 + $0x2e0] sm:$0xff] %v446
                  %v448 = vld [vmem:[%s352 + $0xa18] sm:$0xff]
                  %449 = vst [vmem:[%s353 + $0x2e8] sm:$0xff] %v448
                  %v450 = vld [vmem:[%s352 + $0xa80] sm:$0xff]
                  %451 = vst [vmem:[%s353 + $0x300] sm:$0xff] %v450
                  %v452 = vld [vmem:[%s352 + $0xa88] sm:$0xff]
                  %453 = vst [vmem:[%s353 + $0x308] sm:$0xff] %v452
                  %v454 = vld [vmem:[%s352 + $0xaf0] sm:$0xff]
                  %455 = vst [vmem:[%s353 + $0x320] sm:$0xff] %v454
                  %v456 = vld [vmem:[%s352 + $0xaf8] sm:$0xff]
                  %457 = vst [vmem:[%s353 + $0x328] sm:$0xff] %v456
                  %v458 = vld [vmem:[%s352 + $0xb60] sm:$0xff]
                  %459 = vst [vmem:[%s353 + $0x340] sm:$0xff] %v458
                  %v460 = vld [vmem:[%s352 + $0xb68] sm:$0xff]
                  %461 = vst [vmem:[%s353 + $0x348] sm:$0xff] %v460
                  %v462 = vld [vmem:[%s352 + $0xbd0] sm:$0xff]
                  %463 = vst [vmem:[%s353 + $0x360] sm:$0xff] %v462
                  %v464 = vld [vmem:[%s352 + $0xbd8] sm:$0xff]
                  %465 = vst [vmem:[%s353 + $0x368] sm:$0xff] %v464
                  %v466 = vld [vmem:[%s352 + $0xc40] sm:$0xff]
                  %467 = vst [vmem:[%s353 + $0x380] sm:$0xff] %v466
                  %v468 = vld [vmem:[%s352 + $0xc48] sm:$0xff]
                  %469 = vst [vmem:[%s353 + $0x388] sm:$0xff] %v468
                  %v470 = vld [vmem:[%s352 + $0xcb0] sm:$0xff]
                  %471 = vst [vmem:[%s353 + $0x3a0] sm:$0xff] %v470
                  %v472 = vld [vmem:[%s352 + $0xcb8] sm:$0xff]
                  %473 = vst [vmem:[%s353 + $0x3a8] sm:$0xff] %v472
                  %v474 = vld [vmem:[%s352 + $0xd20] sm:$0xff]
                  %475 = vst [vmem:[%s353 + $0x3c0] sm:$0xff] %v474
                  %v476 = vld [vmem:[%s352 + $0xd28] sm:$0xff]
                  %477 = vst [vmem:[%s353 + $0x3c8] sm:$0xff] %v476
                  %v478 = vld [vmem:[%s352 + $0xd90] sm:$0xff]
                  %479 = vst [vmem:[%s353 + $0x3e0] sm:$0xff] %v478
                  %v480 = vld [vmem:[%s352 + $0xd98] sm:$0xff]
                  %481 = vst [vmem:[%s353 + $0x3e8] sm:$0xff] %v480
                  %v482 = vld [vmem:[%s352 + $0xe00] sm:$0xff]
                  %483 = vst [vmem:[%s353 + $0x400] sm:$0xff] %v482
                  %v484 = vld [vmem:[%s352 + $0xe08] sm:$0xff]
                  %485 = vst [vmem:[%s353 + $0x408] sm:$0xff] %v484
                  %v486 = vld [vmem:[%s352 + $0xe70] sm:$0xff]
                  %487 = vst [vmem:[%s353 + $0x420] sm:$0xff] %v486
                  %v488 = vld [vmem:[%s352 + $0xe78] sm:$0xff]
                  %489 = vst [vmem:[%s353 + $0x428] sm:$0xff] %v488
                  %v490 = vld [vmem:[%s352 + $0xee0] sm:$0xff]
                  %491 = vst [vmem:[%s353 + $0x440] sm:$0xff] %v490
                  %v492 = vld [vmem:[%s352 + $0xee8] sm:$0xff]
                  %493 = vst [vmem:[%s353 + $0x448] sm:$0xff] %v492
                  %v494 = vld [vmem:[%s352 + $0xf50] sm:$0xff]
                  %495 = vst [vmem:[%s353 + $0x460] sm:$0xff] %v494
                  %v496 = vld [vmem:[%s352 + $0xf58] sm:$0xff]
                  %497 = vst [vmem:[%s353 + $0x468] sm:$0xff] %v496
                  %v498 = vld [vmem:[%s352 + $0xfc0] sm:$0xff]
                  %499 = vst [vmem:[%s353 + $0x480] sm:$0xff] %v498
                  %v500 = vld [vmem:[%s352 + $0xfc8] sm:$0xff]
                  %501 = vst [vmem:[%s353 + $0x488] sm:$0xff] %v500
                  %v502 = vld [vmem:[%s352 + $0x1030] sm:$0xff]
                  %503 = vst [vmem:[%s353 + $0x4a0] sm:$0xff] %v502
                  %v504 = vld [vmem:[%s352 + $0x1038] sm:$0xff]
                  %505 = vst [vmem:[%s353 + $0x4a8] sm:$0xff] %v504
                  %v506 = vld [vmem:[%s352 + $0x10a0] sm:$0xff]
                  %507 = vst [vmem:[%s353 + $0x4c0] sm:$0xff] %v506
                  %v508 = vld [vmem:[%s352 + $0x10a8] sm:$0xff]
                  %509 = vst [vmem:[%s353 + $0x4c8] sm:$0xff] %v508
                  %v510 = vld [vmem:[%s352 + $0x1110] sm:$0xff]
                  %511 = vst [vmem:[%s353 + $0x4e0] sm:$0xff] %v510
                  %v512 = vld [vmem:[%s352 + $0x1118] sm:$0xff]
                  %513 = vst [vmem:[%s353 + $0x4e8] sm:$0xff] %v512
                  %v514 = vld [vmem:[%s352 + $0x1180] sm:$0xff]
                  %515 = vst [vmem:[%s353 + $0x500] sm:$0xff] %v514
                  %v516 = vld [vmem:[%s352 + $0x1188] sm:$0xff]
                  %517 = vst [vmem:[%s353 + $0x508] sm:$0xff] %v516
                  %v518 = vld [vmem:[%s352 + $0x11f0] sm:$0xff]
                  %519 = vst [vmem:[%s353 + $0x520] sm:$0xff] %v518
                  %v520 = vld [vmem:[%s352 + $0x11f8] sm:$0xff]
                  %521 = vst [vmem:[%s353 + $0x528] sm:$0xff] %v520
                  %v522 = vld [vmem:[%s352 + $0x1260] sm:$0xff]
                  %523 = vst [vmem:[%s353 + $0x540] sm:$0xff] %v522
                  %v524 = vld [vmem:[%s352 + $0x1268] sm:$0xff]
                  %525 = vst [vmem:[%s353 + $0x548] sm:$0xff] %v524
                  %v526 = vld [vmem:[%s352 + $0x12d0] sm:$0xff]
                  %527 = vst [vmem:[%s353 + $0x560] sm:$0xff] %v526
                  %v528 = vld [vmem:[%s352 + $0x12d8] sm:$0xff]
                  %529 = vst [vmem:[%s353 + $0x568] sm:$0xff] %v528
                  %v530 = vld [vmem:[%s352 + $0x1340] sm:$0xff]
                  %531 = vst [vmem:[%s353 + $0x580] sm:$0xff] %v530
                  %v532 = vld [vmem:[%s352 + $0x1348] sm:$0xff]
                  %533 = vst [vmem:[%s353 + $0x588] sm:$0xff] %v532
                  %v534 = vld [vmem:[%s352 + $0x13b0] sm:$0xff]
                  %535 = vst [vmem:[%s353 + $0x5a0] sm:$0xff] %v534
                  %v536 = vld [vmem:[%s352 + $0x13b8] sm:$0xff]
                  %537 = vst [vmem:[%s353 + $0x5a8] sm:$0xff] %v536
                  %s538 = sadd.s32 1, %s351
                  %p539 = scmp.ge.s32.totalorder %s538, %s342
                  %s540 = scalar_select %p539, 0, %s538
                  %s541 = smul.u32 %s540, 16
                  %s542 = smul.u32 %s540, 16
                  %s543 = scalar_lea.vmem %s223, %s541
                  %s544 = scalar_lea.vmem %s215, %s542 [#allocation2]
                $region56: #{forward.3} parent=50 // loop_footer
                  %s348 = sadd.s32 %s346, 1
                $region57: #{forward.3} parent=50 // loop_footer_branch
                  %345 = sbr.rel target = $region53
                $region58: #{forward.3} parent=50 // loop_exit
                  _
                %s545 = sshrl.u32 %s341, 1
                %s546 = sand.u32 %s341, 1
                %s547 = smul.u32 %s545, 2
                %s548 = smul.u32 128, %s547
                %s549 = sshra.s32 %s548, 4
                %s550 = scalar_lea.vmem %s223, %s549
                %s551 = smul.u32 128, %s547
                %s552 = sshra.s32 %s551, 4
                %s553 = scalar_lea.vmem %s215, %s552 [#allocation2]
                // While loop
                $region59: #{forward.3} parent=50 // loop_pre_header
                  _
                $region60: #{forward.3} parent=50 // loop_header
                  %s557 = sphi 0, %s559
                  %p558 = scmp.ge.s32.totalorder %s557, %s546
                  %s562 = sphi 0, %s659
                  %s563 = sphi %s550, %s662
                  %s564 = sphi %s553, %s663
                $region61: #{forward.3} parent=50 // loop_header_branch
                  %561 = sbr.rel (%p558) target = $region65
                $region62: #{forward.3} parent=50 // loop_body
                  %v565 = vld [vmem:[%s563] sm:$0xff]
                  %566 = vst [vmem:[%s564] sm:$0xff] %v565
                  %v567 = vld [vmem:[%s563 + $0x70] sm:$0xff]
                  %568 = vst [vmem:[%s564 + $0x20] sm:$0xff] %v567
                  %v569 = vld [vmem:[%s563 + $0xe0] sm:$0xff]
                  %570 = vst [vmem:[%s564 + $0x40] sm:$0xff] %v569
                  %v571 = vld [vmem:[%s563 + $0x150] sm:$0xff]
                  %572 = vst [vmem:[%s564 + $0x60] sm:$0xff] %v571
                  %v573 = vld [vmem:[%s563 + $0x1c0] sm:$0xff]
                  %574 = vst [vmem:[%s564 + $0x80] sm:$0xff] %v573
                  %v575 = vld [vmem:[%s563 + $0x230] sm:$0xff]
                  %576 = vst [vmem:[%s564 + $0xa0] sm:$0xff] %v575
                  %v577 = vld [vmem:[%s563 + $0x2a0] sm:$0xff]
                  %578 = vst [vmem:[%s564 + $0xc0] sm:$0xff] %v577
                  %v579 = vld [vmem:[%s563 + $0x310] sm:$0xff]
                  %580 = vst [vmem:[%s564 + $0xe0] sm:$0xff] %v579
                  %v581 = vld [vmem:[%s563 + $0x380] sm:$0xff]
                  %582 = vst [vmem:[%s564 + $0x100] sm:$0xff] %v581
                  %v583 = vld [vmem:[%s563 + $0x3f0] sm:$0xff]
                  %584 = vst [vmem:[%s564 + $0x120] sm:$0xff] %v583
                  %v585 = vld [vmem:[%s563 + $0x460] sm:$0xff]
                  %586 = vst [vmem:[%s564 + $0x140] sm:$0xff] %v585
                  %v587 = vld [vmem:[%s563 + $0x4d0] sm:$0xff]
                  %588 = vst [vmem:[%s564 + $0x160] sm:$0xff] %v587
                  %v589 = vld [vmem:[%s563 + $0x540] sm:$0xff]
                  %590 = vst [vmem:[%s564 + $0x180] sm:$0xff] %v589
                  %v591 = vld [vmem:[%s563 + $0x5b0] sm:$0xff]
                  %592 = vst [vmem:[%s564 + $0x1a0] sm:$0xff] %v591
                  %v593 = vld [vmem:[%s563 + $0x620] sm:$0xff]
                  %594 = vst [vmem:[%s564 + $0x1c0] sm:$0xff] %v593
                  %v595 = vld [vmem:[%s563 + $0x690] sm:$0xff]
                  %596 = vst [vmem:[%s564 + $0x1e0] sm:$0xff] %v595
                  %v597 = vld [vmem:[%s563 + $0x700] sm:$0xff]
                  %598 = vst [vmem:[%s564 + $0x200] sm:$0xff] %v597
                  %v599 = vld [vmem:[%s563 + $0x770] sm:$0xff]
                  %600 = vst [vmem:[%s564 + $0x220] sm:$0xff] %v599
                  %v601 = vld [vmem:[%s563 + $0x7e0] sm:$0xff]
                  %602 = vst [vmem:[%s564 + $0x240] sm:$0xff] %v601
                  %v603 = vld [vmem:[%s563 + $0x850] sm:$0xff]
                  %604 = vst [vmem:[%s564 + $0x260] sm:$0xff] %v603
                  %v605 = vld [vmem:[%s563 + $0x8c0] sm:$0xff]
                  %606 = vst [vmem:[%s564 + $0x280] sm:$0xff] %v605
                  %v607 = vld [vmem:[%s563 + $0x930] sm:$0xff]
                  %608 = vst [vmem:[%s564 + $0x2a0] sm:$0xff] %v607
                  %v609 = vld [vmem:[%s563 + $0x9a0] sm:$0xff]
                  %610 = vst [vmem:[%s564 + $0x2c0] sm:$0xff] %v609
                  %v611 = vld [vmem:[%s563 + $0xa10] sm:$0xff]
                  %612 = vst [vmem:[%s564 + $0x2e0] sm:$0xff] %v611
                  %v613 = vld [vmem:[%s563 + $0xa80] sm:$0xff]
                  %614 = vst [vmem:[%s564 + $0x300] sm:$0xff] %v613
                  %v615 = vld [vmem:[%s563 + $0xaf0] sm:$0xff]
                  %616 = vst [vmem:[%s564 + $0x320] sm:$0xff] %v615
                  %v617 = vld [vmem:[%s563 + $0xb60] sm:$0xff]
                  %618 = vst [vmem:[%s564 + $0x340] sm:$0xff] %v617
                  %v619 = vld [vmem:[%s563 + $0xbd0] sm:$0xff]
                  %620 = vst [vmem:[%s564 + $0x360] sm:$0xff] %v619
                  %v621 = vld [vmem:[%s563 + $0xc40] sm:$0xff]
                  %622 = vst [vmem:[%s564 + $0x380] sm:$0xff] %v621
                  %v623 = vld [vmem:[%s563 + $0xcb0] sm:$0xff]
                  %624 = vst [vmem:[%s564 + $0x3a0] sm:$0xff] %v623
                  %v625 = vld [vmem:[%s563 + $0xd20] sm:$0xff]
                  %626 = vst [vmem:[%s564 + $0x3c0] sm:$0xff] %v625
                  %v627 = vld [vmem:[%s563 + $0xd90] sm:$0xff]
                  %628 = vst [vmem:[%s564 + $0x3e0] sm:$0xff] %v627
                  %v629 = vld [vmem:[%s563 + $0xe00] sm:$0xff]
                  %630 = vst [vmem:[%s564 + $0x400] sm:$0xff] %v629
                  %v631 = vld [vmem:[%s563 + $0xe70] sm:$0xff]
                  %632 = vst [vmem:[%s564 + $0x420] sm:$0xff] %v631
                  %v633 = vld [vmem:[%s563 + $0xee0] sm:$0xff]
                  %634 = vst [vmem:[%s564 + $0x440] sm:$0xff] %v633
                  %v635 = vld [vmem:[%s563 + $0xf50] sm:$0xff]
                  %636 = vst [vmem:[%s564 + $0x460] sm:$0xff] %v635
                  %v637 = vld [vmem:[%s563 + $0xfc0] sm:$0xff]
                  %638 = vst [vmem:[%s564 + $0x480] sm:$0xff] %v637
                  %v639 = vld [vmem:[%s563 + $0x1030] sm:$0xff]
                  %640 = vst [vmem:[%s564 + $0x4a0] sm:$0xff] %v639
                  %v641 = vld [vmem:[%s563 + $0x10a0] sm:$0xff]
                  %642 = vst [vmem:[%s564 + $0x4c0] sm:$0xff] %v641
                  %v643 = vld [vmem:[%s563 + $0x1110] sm:$0xff]
                  %644 = vst [vmem:[%s564 + $0x4e0] sm:$0xff] %v643
                  %v645 = vld [vmem:[%s563 + $0x1180] sm:$0xff]
                  %646 = vst [vmem:[%s564 + $0x500] sm:$0xff] %v645
                  %v647 = vld [vmem:[%s563 + $0x11f0] sm:$0xff]
                  %648 = vst [vmem:[%s564 + $0x520] sm:$0xff] %v647
                  %v649 = vld [vmem:[%s563 + $0x1260] sm:$0xff]
                  %650 = vst [vmem:[%s564 + $0x540] sm:$0xff] %v649
                  %v651 = vld [vmem:[%s563 + $0x12d0] sm:$0xff]
                  %652 = vst [vmem:[%s564 + $0x560] sm:$0xff] %v651
                  %v653 = vld [vmem:[%s563 + $0x1340] sm:$0xff]
                  %654 = vst [vmem:[%s564 + $0x580] sm:$0xff] %v653
                  %v655 = vld [vmem:[%s563 + $0x13b0] sm:$0xff]
                  %656 = vst [vmem:[%s564 + $0x5a0] sm:$0xff] %v655
                  %s657 = sadd.s32 1, %s562
                  %p658 = scmp.ge.s32.totalorder %s657, %s546
                  %s659 = scalar_select %p658, 0, %s657
                  %s660 = smul.u32 %s659, 8
                  %s661 = smul.u32 %s659, 8
                  %s662 = scalar_lea.vmem %s550, %s660
                  %s663 = scalar_lea.vmem %s553, %s661 [#allocation2]
                $region63: #{forward.3} parent=50 // loop_footer
                  %s559 = sadd.s32 %s557, 1
                $region64: #{forward.3} parent=50 // loop_footer_branch
                  %556 = sbr.rel target = $region60
                $region65: #{forward.3} parent=50 // loop_exit
                  _
              $region51: #{forward.3} parent=35 // pred_fallthru
                _
              %p664 = pneg %p337
              // Predicated region
              $region66: #{forward.3} parent=35 // pred_check
                _
              $region67: #{forward.3} parent=35 // pred_check_branch
                %666 = sbr.rel (%p337) target = $region69
              $region68: #{forward.3} parent=35 // pred_region
                %s667 = sand.u32 %s224, 7
                %s668 = ssub.s32 %s224, %s667
                %s669 = scalar_lea.vmem %s223, %s668
                %s670 = ssub.s32 %s224, %s667
                %s671 = scalar_lea.vmem %s215, %s670 [#allocation2]
                %s672 = sshrl.u32 %s224, 3
                %s673 = sshrl.u32 %s672, 1
                // While loop
                $region70: #{forward.3} parent=68 // loop_pre_header
                  _
                $region71: #{forward.3} parent=68 // loop_header
                  %s677 = sphi 0, %s679
                  %p678 = scmp.ge.s32.totalorder %s677, %s673
                  %s682 = sphi 0, %s871
                  %s683 = sphi %s223, %s874
                  %s684 = sphi %s215, %s875
                $region72: #{forward.3} parent=68 // loop_header_branch
                  %681 = sbr.rel (%p678) target = $region76
                $region73: #{forward.3} parent=68 // loop_body
                  %v685 = vld [vmem:[%s683] sm:$0xff]
                  %686 = vst [vmem:[%s684] sm:$0xff] %v685
                  %v687 = vld [vmem:[%s683 + $0x8] sm:$0xff]
                  %688 = vst [vmem:[%s684 + $0x8] sm:$0xff] %v687
                  %v689 = vld [vmem:[%s683 + $0x70] sm:$0xff]
                  %690 = vst [vmem:[%s684 + $0x20] sm:$0xff] %v689
                  %v691 = vld [vmem:[%s683 + $0x78] sm:$0xff]
                  %692 = vst [vmem:[%s684 + $0x28] sm:$0xff] %v691
                  %v693 = vld [vmem:[%s683 + $0xe0] sm:$0xff]
                  %694 = vst [vmem:[%s684 + $0x40] sm:$0xff] %v693
                  %v695 = vld [vmem:[%s683 + $0xe8] sm:$0xff]
                  %696 = vst [vmem:[%s684 + $0x48] sm:$0xff] %v695
                  %v697 = vld [vmem:[%s683 + $0x150] sm:$0xff]
                  %698 = vst [vmem:[%s684 + $0x60] sm:$0xff] %v697
                  %v699 = vld [vmem:[%s683 + $0x158] sm:$0xff]
                  %700 = vst [vmem:[%s684 + $0x68] sm:$0xff] %v699
                  %v701 = vld [vmem:[%s683 + $0x1c0] sm:$0xff]
                  %702 = vst [vmem:[%s684 + $0x80] sm:$0xff] %v701
                  %v703 = vld [vmem:[%s683 + $0x1c8] sm:$0xff]
                  %704 = vst [vmem:[%s684 + $0x88] sm:$0xff] %v703
                  %v705 = vld [vmem:[%s683 + $0x230] sm:$0xff]
                  %706 = vst [vmem:[%s684 + $0xa0] sm:$0xff] %v705
                  %v707 = vld [vmem:[%s683 + $0x238] sm:$0xff]
                  %708 = vst [vmem:[%s684 + $0xa8] sm:$0xff] %v707
                  %v709 = vld [vmem:[%s683 + $0x2a0] sm:$0xff]
                  %710 = vst [vmem:[%s684 + $0xc0] sm:$0xff] %v709
                  %v711 = vld [vmem:[%s683 + $0x2a8] sm:$0xff]
                  %712 = vst [vmem:[%s684 + $0xc8] sm:$0xff] %v711
                  %v713 = vld [vmem:[%s683 + $0x310] sm:$0xff]
                  %714 = vst [vmem:[%s684 + $0xe0] sm:$0xff] %v713
                  %v715 = vld [vmem:[%s683 + $0x318] sm:$0xff]
                  %716 = vst [vmem:[%s684 + $0xe8] sm:$0xff] %v715
                  %v717 = vld [vmem:[%s683 + $0x380] sm:$0xff]
                  %718 = vst [vmem:[%s684 + $0x100] sm:$0xff] %v717
                  %v719 = vld [vmem:[%s683 + $0x388] sm:$0xff]
                  %720 = vst [vmem:[%s684 + $0x108] sm:$0xff] %v719
                  %v721 = vld [vmem:[%s683 + $0x3f0] sm:$0xff]
                  %722 = vst [vmem:[%s684 + $0x120] sm:$0xff] %v721
                  %v723 = vld [vmem:[%s683 + $0x3f8] sm:$0xff]
                  %724 = vst [vmem:[%s684 + $0x128] sm:$0xff] %v723
                  %v725 = vld [vmem:[%s683 + $0x460] sm:$0xff]
                  %726 = vst [vmem:[%s684 + $0x140] sm:$0xff] %v725
                  %v727 = vld [vmem:[%s683 + $0x468] sm:$0xff]
                  %728 = vst [vmem:[%s684 + $0x148] sm:$0xff] %v727
                  %v729 = vld [vmem:[%s683 + $0x4d0] sm:$0xff]
                  %730 = vst [vmem:[%s684 + $0x160] sm:$0xff] %v729
                  %v731 = vld [vmem:[%s683 + $0x4d8] sm:$0xff]
                  %732 = vst [vmem:[%s684 + $0x168] sm:$0xff] %v731
                  %v733 = vld [vmem:[%s683 + $0x540] sm:$0xff]
                  %734 = vst [vmem:[%s684 + $0x180] sm:$0xff] %v733
                  %v735 = vld [vmem:[%s683 + $0x548] sm:$0xff]
                  %736 = vst [vmem:[%s684 + $0x188] sm:$0xff] %v735
                  %v737 = vld [vmem:[%s683 + $0x5b0] sm:$0xff]
                  %738 = vst [vmem:[%s684 + $0x1a0] sm:$0xff] %v737
                  %v739 = vld [vmem:[%s683 + $0x5b8] sm:$0xff]
                  %740 = vst [vmem:[%s684 + $0x1a8] sm:$0xff] %v739
                  %v741 = vld [vmem:[%s683 + $0x620] sm:$0xff]
                  %742 = vst [vmem:[%s684 + $0x1c0] sm:$0xff] %v741
                  %v743 = vld [vmem:[%s683 + $0x628] sm:$0xff]
                  %744 = vst [vmem:[%s684 + $0x1c8] sm:$0xff] %v743
                  %v745 = vld [vmem:[%s683 + $0x690] sm:$0xff]
                  %746 = vst [vmem:[%s684 + $0x1e0] sm:$0xff] %v745
                  %v747 = vld [vmem:[%s683 + $0x698] sm:$0xff]
                  %748 = vst [vmem:[%s684 + $0x1e8] sm:$0xff] %v747
                  %v749 = vld [vmem:[%s683 + $0x700] sm:$0xff]
                  %750 = vst [vmem:[%s684 + $0x200] sm:$0xff] %v749
                  %v751 = vld [vmem:[%s683 + $0x708] sm:$0xff]
                  %752 = vst [vmem:[%s684 + $0x208] sm:$0xff] %v751
                  %v753 = vld [vmem:[%s683 + $0x770] sm:$0xff]
                  %754 = vst [vmem:[%s684 + $0x220] sm:$0xff] %v753
                  %v755 = vld [vmem:[%s683 + $0x778] sm:$0xff]
                  %756 = vst [vmem:[%s684 + $0x228] sm:$0xff] %v755
                  %v757 = vld [vmem:[%s683 + $0x7e0] sm:$0xff]
                  %758 = vst [vmem:[%s684 + $0x240] sm:$0xff] %v757
                  %v759 = vld [vmem:[%s683 + $0x7e8] sm:$0xff]
                  %760 = vst [vmem:[%s684 + $0x248] sm:$0xff] %v759
                  %v761 = vld [vmem:[%s683 + $0x850] sm:$0xff]
                  %762 = vst [vmem:[%s684 + $0x260] sm:$0xff] %v761
                  %v763 = vld [vmem:[%s683 + $0x858] sm:$0xff]
                  %764 = vst [vmem:[%s684 + $0x268] sm:$0xff] %v763
                  %v765 = vld [vmem:[%s683 + $0x8c0] sm:$0xff]
                  %766 = vst [vmem:[%s684 + $0x280] sm:$0xff] %v765
                  %v767 = vld [vmem:[%s683 + $0x8c8] sm:$0xff]
                  %768 = vst [vmem:[%s684 + $0x288] sm:$0xff] %v767
                  %v769 = vld [vmem:[%s683 + $0x930] sm:$0xff]
                  %770 = vst [vmem:[%s684 + $0x2a0] sm:$0xff] %v769
                  %v771 = vld [vmem:[%s683 + $0x938] sm:$0xff]
                  %772 = vst [vmem:[%s684 + $0x2a8] sm:$0xff] %v771
                  %v773 = vld [vmem:[%s683 + $0x9a0] sm:$0xff]
                  %774 = vst [vmem:[%s684 + $0x2c0] sm:$0xff] %v773
                  %v775 = vld [vmem:[%s683 + $0x9a8] sm:$0xff]
                  %776 = vst [vmem:[%s684 + $0x2c8] sm:$0xff] %v775
                  %v777 = vld [vmem:[%s683 + $0xa10] sm:$0xff]
                  %778 = vst [vmem:[%s684 + $0x2e0] sm:$0xff] %v777
                  %v779 = vld [vmem:[%s683 + $0xa18] sm:$0xff]
                  %780 = vst [vmem:[%s684 + $0x2e8] sm:$0xff] %v779
                  %v781 = vld [vmem:[%s683 + $0xa80] sm:$0xff]
                  %782 = vst [vmem:[%s684 + $0x300] sm:$0xff] %v781
                  %v783 = vld [vmem:[%s683 + $0xa88] sm:$0xff]
                  %784 = vst [vmem:[%s684 + $0x308] sm:$0xff] %v783
                  %v785 = vld [vmem:[%s683 + $0xaf0] sm:$0xff]
                  %786 = vst [vmem:[%s684 + $0x320] sm:$0xff] %v785
                  %v787 = vld [vmem:[%s683 + $0xaf8] sm:$0xff]
                  %788 = vst [vmem:[%s684 + $0x328] sm:$0xff] %v787
                  %v789 = vld [vmem:[%s683 + $0xb60] sm:$0xff]
                  %790 = vst [vmem:[%s684 + $0x340] sm:$0xff] %v789
                  %v791 = vld [vmem:[%s683 + $0xb68] sm:$0xff]
                  %792 = vst [vmem:[%s684 + $0x348] sm:$0xff] %v791
                  %v793 = vld [vmem:[%s683 + $0xbd0] sm:$0xff]
                  %794 = vst [vmem:[%s684 + $0x360] sm:$0xff] %v793
                  %v795 = vld [vmem:[%s683 + $0xbd8] sm:$0xff]
                  %796 = vst [vmem:[%s684 + $0x368] sm:$0xff] %v795
                  %v797 = vld [vmem:[%s683 + $0xc40] sm:$0xff]
                  %798 = vst [vmem:[%s684 + $0x380] sm:$0xff] %v797
                  %v799 = vld [vmem:[%s683 + $0xc48] sm:$0xff]
                  %800 = vst [vmem:[%s684 + $0x388] sm:$0xff] %v799
                  %v801 = vld [vmem:[%s683 + $0xcb0] sm:$0xff]
                  %802 = vst [vmem:[%s684 + $0x3a0] sm:$0xff] %v801
                  %v803 = vld [vmem:[%s683 + $0xcb8] sm:$0xff]
                  %804 = vst [vmem:[%s684 + $0x3a8] sm:$0xff] %v803
                  %v805 = vld [vmem:[%s683 + $0xd20] sm:$0xff]
                  %806 = vst [vmem:[%s684 + $0x3c0] sm:$0xff] %v805
                  %v807 = vld [vmem:[%s683 + $0xd28] sm:$0xff]
                  %808 = vst [vmem:[%s684 + $0x3c8] sm:$0xff] %v807
                  %v809 = vld [vmem:[%s683 + $0xd90] sm:$0xff]
                  %810 = vst [vmem:[%s684 + $0x3e0] sm:$0xff] %v809
                  %v811 = vld [vmem:[%s683 + $0xd98] sm:$0xff]
                  %812 = vst [vmem:[%s684 + $0x3e8] sm:$0xff] %v811
                  %v813 = vld [vmem:[%s683 + $0xe00] sm:$0xff]
                  %814 = vst [vmem:[%s684 + $0x400] sm:$0xff] %v813
                  %v815 = vld [vmem:[%s683 + $0xe08] sm:$0xff]
                  %816 = vst [vmem:[%s684 + $0x408] sm:$0xff] %v815
                  %v817 = vld [vmem:[%s683 + $0xe70] sm:$0xff]
                  %818 = vst [vmem:[%s684 + $0x420] sm:$0xff] %v817
                  %v819 = vld [vmem:[%s683 + $0xe78] sm:$0xff]
                  %820 = vst [vmem:[%s684 + $0x428] sm:$0xff] %v819
                  %v821 = vld [vmem:[%s683 + $0xee0] sm:$0xff]
                  %822 = vst [vmem:[%s684 + $0x440] sm:$0xff] %v821
                  %v823 = vld [vmem:[%s683 + $0xee8] sm:$0xff]
                  %824 = vst [vmem:[%s684 + $0x448] sm:$0xff] %v823
                  %v825 = vld [vmem:[%s683 + $0xf50] sm:$0xff]
                  %826 = vst [vmem:[%s684 + $0x460] sm:$0xff] %v825
                  %v827 = vld [vmem:[%s683 + $0xf58] sm:$0xff]
                  %828 = vst [vmem:[%s684 + $0x468] sm:$0xff] %v827
                  %v829 = vld [vmem:[%s683 + $0xfc0] sm:$0xff]
                  %830 = vst [vmem:[%s684 + $0x480] sm:$0xff] %v829
                  %v831 = vld [vmem:[%s683 + $0xfc8] sm:$0xff]
                  %832 = vst [vmem:[%s684 + $0x488] sm:$0xff] %v831
                  %v833 = vld [vmem:[%s683 + $0x1030] sm:$0xff]
                  %834 = vst [vmem:[%s684 + $0x4a0] sm:$0xff] %v833
                  %v835 = vld [vmem:[%s683 + $0x1038] sm:$0xff]
                  %836 = vst [vmem:[%s684 + $0x4a8] sm:$0xff] %v835
                  %v837 = vld [vmem:[%s683 + $0x10a0] sm:$0xff]
                  %838 = vst [vmem:[%s684 + $0x4c0] sm:$0xff] %v837
                  %v839 = vld [vmem:[%s683 + $0x10a8] sm:$0xff]
                  %840 = vst [vmem:[%s684 + $0x4c8] sm:$0xff] %v839
                  %v841 = vld [vmem:[%s683 + $0x1110] sm:$0xff]
                  %842 = vst [vmem:[%s684 + $0x4e0] sm:$0xff] %v841
                  %v843 = vld [vmem:[%s683 + $0x1118] sm:$0xff]
                  %844 = vst [vmem:[%s684 + $0x4e8] sm:$0xff] %v843
                  %v845 = vld [vmem:[%s683 + $0x1180] sm:$0xff]
                  %846 = vst [vmem:[%s684 + $0x500] sm:$0xff] %v845
                  %v847 = vld [vmem:[%s683 + $0x1188] sm:$0xff]
                  %848 = vst [vmem:[%s684 + $0x508] sm:$0xff] %v847
                  %v849 = vld [vmem:[%s683 + $0x11f0] sm:$0xff]
                  %850 = vst [vmem:[%s684 + $0x520] sm:$0xff] %v849
                  %v851 = vld [vmem:[%s683 + $0x11f8] sm:$0xff]
                  %852 = vst [vmem:[%s684 + $0x528] sm:$0xff] %v851
                  %v853 = vld [vmem:[%s683 + $0x1260] sm:$0xff]
                  %854 = vst [vmem:[%s684 + $0x540] sm:$0xff] %v853
                  %v855 = vld [vmem:[%s683 + $0x1268] sm:$0xff]
                  %856 = vst [vmem:[%s684 + $0x548] sm:$0xff] %v855
                  %v857 = vld [vmem:[%s683 + $0x12d0] sm:$0xff]
                  %858 = vst [vmem:[%s684 + $0x560] sm:$0xff] %v857
                  %v859 = vld [vmem:[%s683 + $0x12d8] sm:$0xff]
                  %860 = vst [vmem:[%s684 + $0x568] sm:$0xff] %v859
                  %v861 = vld [vmem:[%s683 + $0x1340] sm:$0xff]
                  %862 = vst [vmem:[%s684 + $0x580] sm:$0xff] %v861
                  %v863 = vld [vmem:[%s683 + $0x1348] sm:$0xff]
                  %864 = vst [vmem:[%s684 + $0x588] sm:$0xff] %v863
                  %v865 = vld [vmem:[%s683 + $0x13b0] sm:$0xff]
                  %866 = vst [vmem:[%s684 + $0x5a0] sm:$0xff] %v865
                  %v867 = vld [vmem:[%s683 + $0x13b8] sm:$0xff]
                  %868 = vst [vmem:[%s684 + $0x5a8] sm:$0xff] %v867
                  %s869 = sadd.s32 1, %s682
                  %p870 = scmp.ge.s32.totalorder %s869, %s673
                  %s871 = scalar_select %p870, 0, %s869
                  %s872 = smul.u32 %s871, 16
                  %s873 = smul.u32 %s871, 16
                  %s874 = scalar_lea.vmem %s223, %s872
                  %s875 = scalar_lea.vmem %s215, %s873 [#allocation2]
                $region74: #{forward.3} parent=68 // loop_footer
                  %s679 = sadd.s32 %s677, 1
                $region75: #{forward.3} parent=68 // loop_footer_branch
                  %676 = sbr.rel target = $region71
                $region76: #{forward.3} parent=68 // loop_exit
                  _
                %s876 = sshrl.u32 %s672, 1
                %s877 = sand.u32 %s672, 1
                %s878 = smul.u32 %s876, 2
                %s879 = smul.u32 128, %s878
                %s880 = sshra.s32 %s879, 4
                %s881 = scalar_lea.vmem %s223, %s880
                %s882 = smul.u32 128, %s878
                %s883 = sshra.s32 %s882, 4
                %s884 = scalar_lea.vmem %s215, %s883 [#allocation2]
                // While loop
                $region77: #{forward.3} parent=68 // loop_pre_header
                  _
                $region78: #{forward.3} parent=68 // loop_header
                  %s888 = sphi 0, %s890
                  %p889 = scmp.ge.s32.totalorder %s888, %s877
                  %s893 = sphi 0, %s990
                  %s894 = sphi %s881, %s993
                  %s895 = sphi %s884, %s994
                $region79: #{forward.3} parent=68 // loop_header_branch
                  %892 = sbr.rel (%p889) target = $region83
                $region80: #{forward.3} parent=68 // loop_body
                  %v896 = vld [vmem:[%s894] sm:$0xff]
                  %897 = vst [vmem:[%s895] sm:$0xff] %v896
                  %v898 = vld [vmem:[%s894 + $0x70] sm:$0xff]
                  %899 = vst [vmem:[%s895 + $0x20] sm:$0xff] %v898
                  %v900 = vld [vmem:[%s894 + $0xe0] sm:$0xff]
                  %901 = vst [vmem:[%s895 + $0x40] sm:$0xff] %v900
                  %v902 = vld [vmem:[%s894 + $0x150] sm:$0xff]
                  %903 = vst [vmem:[%s895 + $0x60] sm:$0xff] %v902
                  %v904 = vld [vmem:[%s894 + $0x1c0] sm:$0xff]
                  %905 = vst [vmem:[%s895 + $0x80] sm:$0xff] %v904
                  %v906 = vld [vmem:[%s894 + $0x230] sm:$0xff]
                  %907 = vst [vmem:[%s895 + $0xa0] sm:$0xff] %v906
                  %v908 = vld [vmem:[%s894 + $0x2a0] sm:$0xff]
                  %909 = vst [vmem:[%s895 + $0xc0] sm:$0xff] %v908
                  %v910 = vld [vmem:[%s894 + $0x310] sm:$0xff]
                  %911 = vst [vmem:[%s895 + $0xe0] sm:$0xff] %v910
                  %v912 = vld [vmem:[%s894 + $0x380] sm:$0xff]
                  %913 = vst [vmem:[%s895 + $0x100] sm:$0xff] %v912
                  %v914 = vld [vmem:[%s894 + $0x3f0] sm:$0xff]
                  %915 = vst [vmem:[%s895 + $0x120] sm:$0xff] %v914
                  %v916 = vld [vmem:[%s894 + $0x460] sm:$0xff]
                  %917 = vst [vmem:[%s895 + $0x140] sm:$0xff] %v916
                  %v918 = vld [vmem:[%s894 + $0x4d0] sm:$0xff]
                  %919 = vst [vmem:[%s895 + $0x160] sm:$0xff] %v918
                  %v920 = vld [vmem:[%s894 + $0x540] sm:$0xff]
                  %921 = vst [vmem:[%s895 + $0x180] sm:$0xff] %v920
                  %v922 = vld [vmem:[%s894 + $0x5b0] sm:$0xff]
                  %923 = vst [vmem:[%s895 + $0x1a0] sm:$0xff] %v922
                  %v924 = vld [vmem:[%s894 + $0x620] sm:$0xff]
                  %925 = vst [vmem:[%s895 + $0x1c0] sm:$0xff] %v924
                  %v926 = vld [vmem:[%s894 + $0x690] sm:$0xff]
                  %927 = vst [vmem:[%s895 + $0x1e0] sm:$0xff] %v926
                  %v928 = vld [vmem:[%s894 + $0x700] sm:$0xff]
                  %929 = vst [vmem:[%s895 + $0x200] sm:$0xff] %v928
                  %v930 = vld [vmem:[%s894 + $0x770] sm:$0xff]
                  %931 = vst [vmem:[%s895 + $0x220] sm:$0xff] %v930
                  %v932 = vld [vmem:[%s894 + $0x7e0] sm:$0xff]
                  %933 = vst [vmem:[%s895 + $0x240] sm:$0xff] %v932
                  %v934 = vld [vmem:[%s894 + $0x850] sm:$0xff]
                  %935 = vst [vmem:[%s895 + $0x260] sm:$0xff] %v934
                  %v936 = vld [vmem:[%s894 + $0x8c0] sm:$0xff]
                  %937 = vst [vmem:[%s895 + $0x280] sm:$0xff] %v936
                  %v938 = vld [vmem:[%s894 + $0x930] sm:$0xff]
                  %939 = vst [vmem:[%s895 + $0x2a0] sm:$0xff] %v938
                  %v940 = vld [vmem:[%s894 + $0x9a0] sm:$0xff]
                  %941 = vst [vmem:[%s895 + $0x2c0] sm:$0xff] %v940
                  %v942 = vld [vmem:[%s894 + $0xa10] sm:$0xff]
                  %943 = vst [vmem:[%s895 + $0x2e0] sm:$0xff] %v942
                  %v944 = vld [vmem:[%s894 + $0xa80] sm:$0xff]
                  %945 = vst [vmem:[%s895 + $0x300] sm:$0xff] %v944
                  %v946 = vld [vmem:[%s894 + $0xaf0] sm:$0xff]
                  %947 = vst [vmem:[%s895 + $0x320] sm:$0xff] %v946
                  %v948 = vld [vmem:[%s894 + $0xb60] sm:$0xff]
                  %949 = vst [vmem:[%s895 + $0x340] sm:$0xff] %v948
                  %v950 = vld [vmem:[%s894 + $0xbd0] sm:$0xff]
                  %951 = vst [vmem:[%s895 + $0x360] sm:$0xff] %v950
                  %v952 = vld [vmem:[%s894 + $0xc40] sm:$0xff]
                  %953 = vst [vmem:[%s895 + $0x380] sm:$0xff] %v952
                  %v954 = vld [vmem:[%s894 + $0xcb0] sm:$0xff]
                  %955 = vst [vmem:[%s895 + $0x3a0] sm:$0xff] %v954
                  %v956 = vld [vmem:[%s894 + $0xd20] sm:$0xff]
                  %957 = vst [vmem:[%s895 + $0x3c0] sm:$0xff] %v956
                  %v958 = vld [vmem:[%s894 + $0xd90] sm:$0xff]
                  %959 = vst [vmem:[%s895 + $0x3e0] sm:$0xff] %v958
                  %v960 = vld [vmem:[%s894 + $0xe00] sm:$0xff]
                  %961 = vst [vmem:[%s895 + $0x400] sm:$0xff] %v960
                  %v962 = vld [vmem:[%s894 + $0xe70] sm:$0xff]
                  %963 = vst [vmem:[%s895 + $0x420] sm:$0xff] %v962
                  %v964 = vld [vmem:[%s894 + $0xee0] sm:$0xff]
                  %965 = vst [vmem:[%s895 + $0x440] sm:$0xff] %v964
                  %v966 = vld [vmem:[%s894 + $0xf50] sm:$0xff]
                  %967 = vst [vmem:[%s895 + $0x460] sm:$0xff] %v966
                  %v968 = vld [vmem:[%s894 + $0xfc0] sm:$0xff]
                  %969 = vst [vmem:[%s895 + $0x480] sm:$0xff] %v968
                  %v970 = vld [vmem:[%s894 + $0x1030] sm:$0xff]
                  %971 = vst [vmem:[%s895 + $0x4a0] sm:$0xff] %v970
                  %v972 = vld [vmem:[%s894 + $0x10a0] sm:$0xff]
                  %973 = vst [vmem:[%s895 + $0x4c0] sm:$0xff] %v972
                  %v974 = vld [vmem:[%s894 + $0x1110] sm:$0xff]
                  %975 = vst [vmem:[%s895 + $0x4e0] sm:$0xff] %v974
                  %v976 = vld [vmem:[%s894 + $0x1180] sm:$0xff]
                  %977 = vst [vmem:[%s895 + $0x500] sm:$0xff] %v976
                  %v978 = vld [vmem:[%s894 + $0x11f0] sm:$0xff]
                  %979 = vst [vmem:[%s895 + $0x520] sm:$0xff] %v978
                  %v980 = vld [vmem:[%s894 + $0x1260] sm:$0xff]
                  %981 = vst [vmem:[%s895 + $0x540] sm:$0xff] %v980
                  %v982 = vld [vmem:[%s894 + $0x12d0] sm:$0xff]
                  %983 = vst [vmem:[%s895 + $0x560] sm:$0xff] %v982
                  %v984 = vld [vmem:[%s894 + $0x1340] sm:$0xff]
                  %985 = vst [vmem:[%s895 + $0x580] sm:$0xff] %v984
                  %v986 = vld [vmem:[%s894 + $0x13b0] sm:$0xff]
                  %987 = vst [vmem:[%s895 + $0x5a0] sm:$0xff] %v986
                  %s988 = sadd.s32 1, %s893
                  %p989 = scmp.ge.s32.totalorder %s988, %s877
                  %s990 = scalar_select %p989, 0, %s988
                  %s991 = smul.u32 %s990, 8
                  %s992 = smul.u32 %s990, 8
                  %s993 = scalar_lea.vmem %s881, %s991
                  %s994 = scalar_lea.vmem %s884, %s992 [#allocation2]
                $region81: #{forward.3} parent=68 // loop_footer
                  %s890 = sadd.s32 %s888, 1
                $region82: #{forward.3} parent=68 // loop_footer_branch
                  %887 = sbr.rel target = $region78
                $region83: #{forward.3} parent=68 // loop_exit
                  _
                %s995 = sshllo.u32 0, %s667
                loop: start=0, step=1, limit=1
                $region84: #{forward.3} parent=68 // loop_pre_header
                  _
                $region85: #{forward.3} parent=68 // loop_header
                  %s997 = sphi 0, %s1001
                  %p998 = scmp.ge.s32.totalorder %s997, 1
                  %s1002 = sphi %s669, %s669
                  %s1003 = sphi %s671, %s671
                $region86: #{forward.3} parent=68 // loop_header_branch
                  %1000 = sbr.rel (%p998) target = $region90
                $region87: #{forward.3} parent=68 // loop_body
                  %v1004 = vld [vmem:[%s1002] sm:%s995]
                  %1005 = vst [vmem:[%s1003] sm:%s995] %v1004
                  %v1006 = vld [vmem:[%s1002 + $0x70] sm:%s995]
                  %1007 = vst [vmem:[%s1003 + $0x20] sm:%s995] %v1006
                  %v1008 = vld [vmem:[%s1002 + $0xe0] sm:%s995]
                  %1009 = vst [vmem:[%s1003 + $0x40] sm:%s995] %v1008
                  %v1010 = vld [vmem:[%s1002 + $0x150] sm:%s995]
                  %1011 = vst [vmem:[%s1003 + $0x60] sm:%s995] %v1010
                  %v1012 = vld [vmem:[%s1002 + $0x1c0] sm:%s995]
                  %1013 = vst [vmem:[%s1003 + $0x80] sm:%s995] %v1012
                  %v1014 = vld [vmem:[%s1002 + $0x230] sm:%s995]
                  %1015 = vst [vmem:[%s1003 + $0xa0] sm:%s995] %v1014
                  %v1016 = vld [vmem:[%s1002 + $0x2a0] sm:%s995]
                  %1017 = vst [vmem:[%s1003 + $0xc0] sm:%s995] %v1016
                  %v1018 = vld [vmem:[%s1002 + $0x310] sm:%s995]
                  %1019 = vst [vmem:[%s1003 + $0xe0] sm:%s995] %v1018
                  %v1020 = vld [vmem:[%s1002 + $0x380] sm:%s995]
                  %1021 = vst [vmem:[%s1003 + $0x100] sm:%s995] %v1020
                  %v1022 = vld [vmem:[%s1002 + $0x3f0] sm:%s995]
                  %1023 = vst [vmem:[%s1003 + $0x120] sm:%s995] %v1022
                  %v1024 = vld [vmem:[%s1002 + $0x460] sm:%s995]
                  %1025 = vst [vmem:[%s1003 + $0x140] sm:%s995] %v1024
                  %v1026 = vld [vmem:[%s1002 + $0x4d0] sm:%s995]
                  %1027 = vst [vmem:[%s1003 + $0x160] sm:%s995] %v1026
                  %v1028 = vld [vmem:[%s1002 + $0x540] sm:%s995]
                  %1029 = vst [vmem:[%s1003 + $0x180] sm:%s995] %v1028
                  %v1030 = vld [vmem:[%s1002 + $0x5b0] sm:%s995]
                  %1031 = vst [vmem:[%s1003 + $0x1a0] sm:%s995] %v1030
                  %v1032 = vld [vmem:[%s1002 + $0x620] sm:%s995]
                  %1033 = vst [vmem:[%s1003 + $0x1c0] sm:%s995] %v1032
                  %v1034 = vld [vmem:[%s1002 + $0x690] sm:%s995]
                  %1035 = vst [vmem:[%s1003 + $0x1e0] sm:%s995] %v1034
                  %v1036 = vld [vmem:[%s1002 + $0x700] sm:%s995]
                  %1037 = vst [vmem:[%s1003 + $0x200] sm:%s995] %v1036
                  %v1038 = vld [vmem:[%s1002 + $0x770] sm:%s995]
                  %1039 = vst [vmem:[%s1003 + $0x220] sm:%s995] %v1038
                  %v1040 = vld [vmem:[%s1002 + $0x7e0] sm:%s995]
                  %1041 = vst [vmem:[%s1003 + $0x240] sm:%s995] %v1040
                  %v1042 = vld [vmem:[%s1002 + $0x850] sm:%s995]
                  %1043 = vst [vmem:[%s1003 + $0x260] sm:%s995] %v1042
                  %v1044 = vld [vmem:[%s1002 + $0x8c0] sm:%s995]
                  %1045 = vst [vmem:[%s1003 + $0x280] sm:%s995] %v1044
                  %v1046 = vld [vmem:[%s1002 + $0x930] sm:%s995]
                  %1047 = vst [vmem:[%s1003 + $0x2a0] sm:%s995] %v1046
                  %v1048 = vld [vmem:[%s1002 + $0x9a0] sm:%s995]
                  %1049 = vst [vmem:[%s1003 + $0x2c0] sm:%s995] %v1048
                  %v1050 = vld [vmem:[%s1002 + $0xa10] sm:%s995]
                  %1051 = vst [vmem:[%s1003 + $0x2e0] sm:%s995] %v1050
                  %v1052 = vld [vmem:[%s1002 + $0xa80] sm:%s995]
                  %1053 = vst [vmem:[%s1003 + $0x300] sm:%s995] %v1052
                  %v1054 = vld [vmem:[%s1002 + $0xaf0] sm:%s995]
                  %1055 = vst [vmem:[%s1003 + $0x320] sm:%s995] %v1054
                  %v1056 = vld [vmem:[%s1002 + $0xb60] sm:%s995]
                  %1057 = vst [vmem:[%s1003 + $0x340] sm:%s995] %v1056
                  %v1058 = vld [vmem:[%s1002 + $0xbd0] sm:%s995]
                  %1059 = vst [vmem:[%s1003 + $0x360] sm:%s995] %v1058
                  %v1060 = vld [vmem:[%s1002 + $0xc40] sm:%s995]
                  %1061 = vst [vmem:[%s1003 + $0x380] sm:%s995] %v1060
                  %v1062 = vld [vmem:[%s1002 + $0xcb0] sm:%s995]
                  %1063 = vst [vmem:[%s1003 + $0x3a0] sm:%s995] %v1062
                  %v1064 = vld [vmem:[%s1002 + $0xd20] sm:%s995]
                  %1065 = vst [vmem:[%s1003 + $0x3c0] sm:%s995] %v1064
                  %v1066 = vld [vmem:[%s1002 + $0xd90] sm:%s995]
                  %1067 = vst [vmem:[%s1003 + $0x3e0] sm:%s995] %v1066
                  %v1068 = vld [vmem:[%s1002 + $0xe00] sm:%s995]
                  %1069 = vst [vmem:[%s1003 + $0x400] sm:%s995] %v1068
                  %v1070 = vld [vmem:[%s1002 + $0xe70] sm:%s995]
                  %1071 = vst [vmem:[%s1003 + $0x420] sm:%s995] %v1070
                  %v1072 = vld [vmem:[%s1002 + $0xee0] sm:%s995]
                  %1073 = vst [vmem:[%s1003 + $0x440] sm:%s995] %v1072
                  %v1074 = vld [vmem:[%s1002 + $0xf50] sm:%s995]
                  %1075 = vst [vmem:[%s1003 + $0x460] sm:%s995] %v1074
                  %v1076 = vld [vmem:[%s1002 + $0xfc0] sm:%s995]
                  %1077 = vst [vmem:[%s1003 + $0x480] sm:%s995] %v1076
                  %v1078 = vld [vmem:[%s1002 + $0x1030] sm:%s995]
                  %1079 = vst [vmem:[%s1003 + $0x4a0] sm:%s995] %v1078
                  %v1080 = vld [vmem:[%s1002 + $0x10a0] sm:%s995]
                  %1081 = vst [vmem:[%s1003 + $0x4c0] sm:%s995] %v1080
                  %v1082 = vld [vmem:[%s1002 + $0x1110] sm:%s995]
                  %1083 = vst [vmem:[%s1003 + $0x4e0] sm:%s995] %v1082
                  %v1084 = vld [vmem:[%s1002 + $0x1180] sm:%s995]
                  %1085 = vst [vmem:[%s1003 + $0x500] sm:%s995] %v1084
                  %v1086 = vld [vmem:[%s1002 + $0x11f0] sm:%s995]
                  %1087 = vst [vmem:[%s1003 + $0x520] sm:%s995] %v1086
                  %v1088 = vld [vmem:[%s1002 + $0x1260] sm:%s995]
                  %1089 = vst [vmem:[%s1003 + $0x540] sm:%s995] %v1088
                  %v1090 = vld [vmem:[%s1002 + $0x12d0] sm:%s995]
                  %1091 = vst [vmem:[%s1003 + $0x560] sm:%s995] %v1090
                  %v1092 = vld [vmem:[%s1002 + $0x1340] sm:%s995]
                  %1093 = vst [vmem:[%s1003 + $0x580] sm:%s995] %v1092
                  %v1094 = vld [vmem:[%s1002 + $0x13b0] sm:%s995]
                  %1095 = vst [vmem:[%s1003 + $0x5a0] sm:%s995] %v1094
                $region88: #{forward.3} parent=68 // loop_footer
                  %s1001 = sadd.s32 1, %s997
                $region89: #{forward.3} parent=68 // loop_footer_branch
                  %996 = sbr.rel target = $region85
                $region90: #{forward.3} parent=68 // loop_exit
                  _
              $region69: #{forward.3} parent=35 // pred_fallthru
                _
            $region36: #{forward.3} parent=31 // pred_fallthru
              _
            // Predicated region
            $region37: #{forward.3} parent=31 // pred_check
              %p232 = pneg %p228
            $region38: #{forward.3} parent=31 // pred_check_branch
              %234 = sbr.rel (%p232) target = $region40
            $region39: #{forward.3} parent=31 // pred_region
              %s235 = sshllo.u32 0, %s224
              loop: start=0, step=1, limit=1
              $region41: #{forward.3} parent=39 // loop_pre_header
                _
              $region42: #{forward.3} parent=39 // loop_header
                %s237 = sphi 0, %s241
                %p238 = scmp.ge.s32.totalorder %s237, 1
                %s242 = sphi %s223, %s223
                %s243 = sphi %s215, %s215
              $region43: #{forward.3} parent=39 // loop_header_branch
                %240 = sbr.rel (%p238) target = $region47
              $region44: #{forward.3} parent=39 // loop_body
                %v244 = vld [vmem:[%s242] sm:%s235]
                %245 = vst [vmem:[%s243] sm:%s235] %v244
                %v246 = vld [vmem:[%s242 + $0x70] sm:%s235]
                %247 = vst [vmem:[%s243 + $0x20] sm:%s235] %v246
                %v248 = vld [vmem:[%s242 + $0xe0] sm:%s235]
                %249 = vst [vmem:[%s243 + $0x40] sm:%s235] %v248
                %v250 = vld [vmem:[%s242 + $0x150] sm:%s235]
                %251 = vst [vmem:[%s243 + $0x60] sm:%s235] %v250
                %v252 = vld [vmem:[%s242 + $0x1c0] sm:%s235]
                %253 = vst [vmem:[%s243 + $0x80] sm:%s235] %v252
                %v254 = vld [vmem:[%s242 + $0x230] sm:%s235]
                %255 = vst [vmem:[%s243 + $0xa0] sm:%s235] %v254
                %v256 = vld [vmem:[%s242 + $0x2a0] sm:%s235]
                %257 = vst [vmem:[%s243 + $0xc0] sm:%s235] %v256
                %v258 = vld [vmem:[%s242 + $0x310] sm:%s235]
                %259 = vst [vmem:[%s243 + $0xe0] sm:%s235] %v258
                %v260 = vld [vmem:[%s242 + $0x380] sm:%s235]
                %261 = vst [vmem:[%s243 + $0x100] sm:%s235] %v260
                %v262 = vld [vmem:[%s242 + $0x3f0] sm:%s235]
                %263 = vst [vmem:[%s243 + $0x120] sm:%s235] %v262
                %v264 = vld [vmem:[%s242 + $0x460] sm:%s235]
                %265 = vst [vmem:[%s243 + $0x140] sm:%s235] %v264
                %v266 = vld [vmem:[%s242 + $0x4d0] sm:%s235]
                %267 = vst [vmem:[%s243 + $0x160] sm:%s235] %v266
                %v268 = vld [vmem:[%s242 + $0x540] sm:%s235]
                %269 = vst [vmem:[%s243 + $0x180] sm:%s235] %v268
                %v270 = vld [vmem:[%s242 + $0x5b0] sm:%s235]
                %271 = vst [vmem:[%s243 + $0x1a0] sm:%s235] %v270
                %v272 = vld [vmem:[%s242 + $0x620] sm:%s235]
                %273 = vst [vmem:[%s243 + $0x1c0] sm:%s235] %v272
                %v274 = vld [vmem:[%s242 + $0x690] sm:%s235]
                %275 = vst [vmem:[%s243 + $0x1e0] sm:%s235] %v274
                %v276 = vld [vmem:[%s242 + $0x700] sm:%s235]
                %277 = vst [vmem:[%s243 + $0x200] sm:%s235] %v276
                %v278 = vld [vmem:[%s242 + $0x770] sm:%s235]
                %279 = vst [vmem:[%s243 + $0x220] sm:%s235] %v278
                %v280 = vld [vmem:[%s242 + $0x7e0] sm:%s235]
                %281 = vst [vmem:[%s243 + $0x240] sm:%s235] %v280
                %v282 = vld [vmem:[%s242 + $0x850] sm:%s235]
                %283 = vst [vmem:[%s243 + $0x260] sm:%s235] %v282
                %v284 = vld [vmem:[%s242 + $0x8c0] sm:%s235]
                %285 = vst [vmem:[%s243 + $0x280] sm:%s235] %v284
                %v286 = vld [vmem:[%s242 + $0x930] sm:%s235]
                %287 = vst [vmem:[%s243 + $0x2a0] sm:%s235] %v286
                %v288 = vld [vmem:[%s242 + $0x9a0] sm:%s235]
                %289 = vst [vmem:[%s243 + $0x2c0] sm:%s235] %v288
                %v290 = vld [vmem:[%s242 + $0xa10] sm:%s235]
                %291 = vst [vmem:[%s243 + $0x2e0] sm:%s235] %v290
                %v292 = vld [vmem:[%s242 + $0xa80] sm:%s235]
                %293 = vst [vmem:[%s243 + $0x300] sm:%s235] %v292
                %v294 = vld [vmem:[%s242 + $0xaf0] sm:%s235]
                %295 = vst [vmem:[%s243 + $0x320] sm:%s235] %v294
                %v296 = vld [vmem:[%s242 + $0xb60] sm:%s235]
                %297 = vst [vmem:[%s243 + $0x340] sm:%s235] %v296
                %v298 = vld [vmem:[%s242 + $0xbd0] sm:%s235]
                %299 = vst [vmem:[%s243 + $0x360] sm:%s235] %v298
                %v300 = vld [vmem:[%s242 + $0xc40] sm:%s235]
                %301 = vst [vmem:[%s243 + $0x380] sm:%s235] %v300
                %v302 = vld [vmem:[%s242 + $0xcb0] sm:%s235]
                %303 = vst [vmem:[%s243 + $0x3a0] sm:%s235] %v302
                %v304 = vld [vmem:[%s242 + $0xd20] sm:%s235]
                %305 = vst [vmem:[%s243 + $0x3c0] sm:%s235] %v304
                %v306 = vld [vmem:[%s242 + $0xd90] sm:%s235]
                %307 = vst [vmem:[%s243 + $0x3e0] sm:%s235] %v306
                %v308 = vld [vmem:[%s242 + $0xe00] sm:%s235]
                %309 = vst [vmem:[%s243 + $0x400] sm:%s235] %v308
                %v310 = vld [vmem:[%s242 + $0xe70] sm:%s235]
                %311 = vst [vmem:[%s243 + $0x420] sm:%s235] %v310
                %v312 = vld [vmem:[%s242 + $0xee0] sm:%s235]
                %313 = vst [vmem:[%s243 + $0x440] sm:%s235] %v312
                %v314 = vld [vmem:[%s242 + $0xf50] sm:%s235]
                %315 = vst [vmem:[%s243 + $0x460] sm:%s235] %v314
                %v316 = vld [vmem:[%s242 + $0xfc0] sm:%s235]
                %317 = vst [vmem:[%s243 + $0x480] sm:%s235] %v316
                %v318 = vld [vmem:[%s242 + $0x1030] sm:%s235]
                %319 = vst [vmem:[%s243 + $0x4a0] sm:%s235] %v318
                %v320 = vld [vmem:[%s242 + $0x10a0] sm:%s235]
                %321 = vst [vmem:[%s243 + $0x4c0] sm:%s235] %v320
                %v322 = vld [vmem:[%s242 + $0x1110] sm:%s235]
                %323 = vst [vmem:[%s243 + $0x4e0] sm:%s235] %v322
                %v324 = vld [vmem:[%s242 + $0x1180] sm:%s235]
                %325 = vst [vmem:[%s243 + $0x500] sm:%s235] %v324
                %v326 = vld [vmem:[%s242 + $0x11f0] sm:%s235]
                %327 = vst [vmem:[%s243 + $0x520] sm:%s235] %v326
                %v328 = vld [vmem:[%s242 + $0x1260] sm:%s235]
                %329 = vst [vmem:[%s243 + $0x540] sm:%s235] %v328
                %v330 = vld [vmem:[%s242 + $0x12d0] sm:%s235]
                %331 = vst [vmem:[%s243 + $0x560] sm:%s235] %v330
                %v332 = vld [vmem:[%s242 + $0x1340] sm:%s235]
                %333 = vst [vmem:[%s243 + $0x580] sm:%s235] %v332
                %v334 = vld [vmem:[%s242 + $0x13b0] sm:%s235]
                %335 = vst [vmem:[%s243 + $0x5a0] sm:%s235] %v334
              $region45: #{forward.3} parent=39 // loop_footer
                %s241 = sadd.s32 1, %s237
              $region46: #{forward.3} parent=39 // loop_footer_branch
                %236 = sbr.rel target = $region42
              $region47: #{forward.3} parent=39 // loop_exit
                _
            $region40: #{forward.3} parent=31 // pred_fallthru
              _
          $region32: #{forward.3} parent=27 // pred_fallthru
            _
          %1096 = vnop
        $region28: #{forward.3} parent=23 // pred_fallthru
          _
        // Predicated region
        $region91: #{forward.3} parent=23 // pred_check
          %p1097 = pneg %p100
        $region92: #{forward.3} parent=23 // pred_check_branch
          %1099 = sbr.rel (%p1097) target = $region94
        $region93: #{forward.3} parent=23 // pred_region
          %s1100 = sand.u32 %s90, 1
          %s1101 = sand.u32 %s90, 1
          %s1102 = smul.addr %s1101, 1472
          %s1103 = scalar_lea.vmem [#allocation3], %s1102
          %s1104 = smul.u32 4, %s12
          %s1105 = ssub.s32 14, %s1104
          %p1106 = scmp.lt.s32.totalorder %s1105, 4
          %s1107 = scalar_select %p1106, %s1105, 4
          %s1108 = smul.u32 5888, %s1107
          %p1109 = scmp.ne.s32.totalorder 0, %s1108
          %s1110 = smul.addr %s1104, 8
          %s1111 = scalar_lea.vmem %s3, %s1110
          %s1112 = smul.u32 %s1107, 8
          // Predicated region
          $region95: #{forward.3} parent=93 // pred_check
            %p1113 = pneg %p1109
          $region96: #{forward.3} parent=93 // pred_check_branch
            %1115 = sbr.rel (%p1113) target = $region98
          $region97: #{forward.3} parent=93 // pred_region
            %p1116 = scmp.lt.u32.totalorder %s1112, 8
            %p1117 = pneg %p1116
            // Predicated region
            $region99: #{forward.3} parent=97 // pred_check
              _
            $region100: #{forward.3} parent=97 // pred_check_branch
              %1119 = sbr.rel (%p1116) target = $region102
            $region101: #{forward.3} parent=97 // pred_region
              %s1224 = sand.u32 %s1112, 7
              %p1225 = scmp.eq.s32.totalorder %s1224, 0
              // Predicated region
              $region114: #{forward.3} parent=101 // pred_check
                %p1226 = pneg %p1225
              $region115: #{forward.3} parent=101 // pred_check_branch
                %1228 = sbr.rel (%p1226) target = $region117
              $region116: #{forward.3} parent=101 // pred_region
                %s1229 = sshrl.u32 %s1112, 3
                %s1230 = sshrl.u32 %s1229, 1
                // While loop
                $region118: #{forward.3} parent=116 // loop_pre_header
                  _
                $region119: #{forward.3} parent=116 // loop_header
                  %s1234 = sphi 0, %s1236
                  %p1235 = scmp.ge.s32.totalorder %s1234, %s1230
                  %s1239 = sphi 0, %s1428
                  %s1240 = sphi %s1111, %s1431
                  %s1241 = sphi %s1103, %s1432
                $region120: #{forward.3} parent=116 // loop_header_branch
                  %1238 = sbr.rel (%p1235) target = $region124
                $region121: #{forward.3} parent=116 // loop_body
                  %v1242 = vld [vmem:[%s1240] sm:$0xff]
                  %1243 = vst [vmem:[%s1241] sm:$0xff] %v1242
                  %v1244 = vld [vmem:[%s1240 + $0x8] sm:$0xff]
                  %1245 = vst [vmem:[%s1241 + $0x8] sm:$0xff] %v1244
                  %v1246 = vld [vmem:[%s1240 + $0x70] sm:$0xff]
                  %1247 = vst [vmem:[%s1241 + $0x20] sm:$0xff] %v1246
                  %v1248 = vld [vmem:[%s1240 + $0x78] sm:$0xff]
                  %1249 = vst [vmem:[%s1241 + $0x28] sm:$0xff] %v1248
                  %v1250 = vld [vmem:[%s1240 + $0xe0] sm:$0xff]
                  %1251 = vst [vmem:[%s1241 + $0x40] sm:$0xff] %v1250
                  %v1252 = vld [vmem:[%s1240 + $0xe8] sm:$0xff]
                  %1253 = vst [vmem:[%s1241 + $0x48] sm:$0xff] %v1252
                  %v1254 = vld [vmem:[%s1240 + $0x150] sm:$0xff]
                  %1255 = vst [vmem:[%s1241 + $0x60] sm:$0xff] %v1254
                  %v1256 = vld [vmem:[%s1240 + $0x158] sm:$0xff]
                  %1257 = vst [vmem:[%s1241 + $0x68] sm:$0xff] %v1256
                  %v1258 = vld [vmem:[%s1240 + $0x1c0] sm:$0xff]
                  %1259 = vst [vmem:[%s1241 + $0x80] sm:$0xff] %v1258
                  %v1260 = vld [vmem:[%s1240 + $0x1c8] sm:$0xff]
                  %1261 = vst [vmem:[%s1241 + $0x88] sm:$0xff] %v1260
                  %v1262 = vld [vmem:[%s1240 + $0x230] sm:$0xff]
                  %1263 = vst [vmem:[%s1241 + $0xa0] sm:$0xff] %v1262
                  %v1264 = vld [vmem:[%s1240 + $0x238] sm:$0xff]
                  %1265 = vst [vmem:[%s1241 + $0xa8] sm:$0xff] %v1264
                  %v1266 = vld [vmem:[%s1240 + $0x2a0] sm:$0xff]
                  %1267 = vst [vmem:[%s1241 + $0xc0] sm:$0xff] %v1266
                  %v1268 = vld [vmem:[%s1240 + $0x2a8] sm:$0xff]
                  %1269 = vst [vmem:[%s1241 + $0xc8] sm:$0xff] %v1268
                  %v1270 = vld [vmem:[%s1240 + $0x310] sm:$0xff]
                  %1271 = vst [vmem:[%s1241 + $0xe0] sm:$0xff] %v1270
                  %v1272 = vld [vmem:[%s1240 + $0x318] sm:$0xff]
                  %1273 = vst [vmem:[%s1241 + $0xe8] sm:$0xff] %v1272
                  %v1274 = vld [vmem:[%s1240 + $0x380] sm:$0xff]
                  %1275 = vst [vmem:[%s1241 + $0x100] sm:$0xff] %v1274
                  %v1276 = vld [vmem:[%s1240 + $0x388] sm:$0xff]
                  %1277 = vst [vmem:[%s1241 + $0x108] sm:$0xff] %v1276
                  %v1278 = vld [vmem:[%s1240 + $0x3f0] sm:$0xff]
                  %1279 = vst [vmem:[%s1241 + $0x120] sm:$0xff] %v1278
                  %v1280 = vld [vmem:[%s1240 + $0x3f8] sm:$0xff]
                  %1281 = vst [vmem:[%s1241 + $0x128] sm:$0xff] %v1280
                  %v1282 = vld [vmem:[%s1240 + $0x460] sm:$0xff]
                  %1283 = vst [vmem:[%s1241 + $0x140] sm:$0xff] %v1282
                  %v1284 = vld [vmem:[%s1240 + $0x468] sm:$0xff]
                  %1285 = vst [vmem:[%s1241 + $0x148] sm:$0xff] %v1284
                  %v1286 = vld [vmem:[%s1240 + $0x4d0] sm:$0xff]
                  %1287 = vst [vmem:[%s1241 + $0x160] sm:$0xff] %v1286
                  %v1288 = vld [vmem:[%s1240 + $0x4d8] sm:$0xff]
                  %1289 = vst [vmem:[%s1241 + $0x168] sm:$0xff] %v1288
                  %v1290 = vld [vmem:[%s1240 + $0x540] sm:$0xff]
                  %1291 = vst [vmem:[%s1241 + $0x180] sm:$0xff] %v1290
                  %v1292 = vld [vmem:[%s1240 + $0x548] sm:$0xff]
                  %1293 = vst [vmem:[%s1241 + $0x188] sm:$0xff] %v1292
                  %v1294 = vld [vmem:[%s1240 + $0x5b0] sm:$0xff]
                  %1295 = vst [vmem:[%s1241 + $0x1a0] sm:$0xff] %v1294
                  %v1296 = vld [vmem:[%s1240 + $0x5b8] sm:$0xff]
                  %1297 = vst [vmem:[%s1241 + $0x1a8] sm:$0xff] %v1296
                  %v1298 = vld [vmem:[%s1240 + $0x620] sm:$0xff]
                  %1299 = vst [vmem:[%s1241 + $0x1c0] sm:$0xff] %v1298
                  %v1300 = vld [vmem:[%s1240 + $0x628] sm:$0xff]
                  %1301 = vst [vmem:[%s1241 + $0x1c8] sm:$0xff] %v1300
                  %v1302 = vld [vmem:[%s1240 + $0x690] sm:$0xff]
                  %1303 = vst [vmem:[%s1241 + $0x1e0] sm:$0xff] %v1302
                  %v1304 = vld [vmem:[%s1240 + $0x698] sm:$0xff]
                  %1305 = vst [vmem:[%s1241 + $0x1e8] sm:$0xff] %v1304
                  %v1306 = vld [vmem:[%s1240 + $0x700] sm:$0xff]
                  %1307 = vst [vmem:[%s1241 + $0x200] sm:$0xff] %v1306
                  %v1308 = vld [vmem:[%s1240 + $0x708] sm:$0xff]
                  %1309 = vst [vmem:[%s1241 + $0x208] sm:$0xff] %v1308
                  %v1310 = vld [vmem:[%s1240 + $0x770] sm:$0xff]
                  %1311 = vst [vmem:[%s1241 + $0x220] sm:$0xff] %v1310
                  %v1312 = vld [vmem:[%s1240 + $0x778] sm:$0xff]
                  %1313 = vst [vmem:[%s1241 + $0x228] sm:$0xff] %v1312
                  %v1314 = vld [vmem:[%s1240 + $0x7e0] sm:$0xff]
                  %1315 = vst [vmem:[%s1241 + $0x240] sm:$0xff] %v1314
                  %v1316 = vld [vmem:[%s1240 + $0x7e8] sm:$0xff]
                  %1317 = vst [vmem:[%s1241 + $0x248] sm:$0xff] %v1316
                  %v1318 = vld [vmem:[%s1240 + $0x850] sm:$0xff]
                  %1319 = vst [vmem:[%s1241 + $0x260] sm:$0xff] %v1318
                  %v1320 = vld [vmem:[%s1240 + $0x858] sm:$0xff]
                  %1321 = vst [vmem:[%s1241 + $0x268] sm:$0xff] %v1320
                  %v1322 = vld [vmem:[%s1240 + $0x8c0] sm:$0xff]
                  %1323 = vst [vmem:[%s1241 + $0x280] sm:$0xff] %v1322
                  %v1324 = vld [vmem:[%s1240 + $0x8c8] sm:$0xff]
                  %1325 = vst [vmem:[%s1241 + $0x288] sm:$0xff] %v1324
                  %v1326 = vld [vmem:[%s1240 + $0x930] sm:$0xff]
                  %1327 = vst [vmem:[%s1241 + $0x2a0] sm:$0xff] %v1326
                  %v1328 = vld [vmem:[%s1240 + $0x938] sm:$0xff]
                  %1329 = vst [vmem:[%s1241 + $0x2a8] sm:$0xff] %v1328
                  %v1330 = vld [vmem:[%s1240 + $0x9a0] sm:$0xff]
                  %1331 = vst [vmem:[%s1241 + $0x2c0] sm:$0xff] %v1330
                  %v1332 = vld [vmem:[%s1240 + $0x9a8] sm:$0xff]
                  %1333 = vst [vmem:[%s1241 + $0x2c8] sm:$0xff] %v1332
                  %v1334 = vld [vmem:[%s1240 + $0xa10] sm:$0xff]
                  %1335 = vst [vmem:[%s1241 + $0x2e0] sm:$0xff] %v1334
                  %v1336 = vld [vmem:[%s1240 + $0xa18] sm:$0xff]
                  %1337 = vst [vmem:[%s1241 + $0x2e8] sm:$0xff] %v1336
                  %v1338 = vld [vmem:[%s1240 + $0xa80] sm:$0xff]
                  %1339 = vst [vmem:[%s1241 + $0x300] sm:$0xff] %v1338
                  %v1340 = vld [vmem:[%s1240 + $0xa88] sm:$0xff]
                  %1341 = vst [vmem:[%s1241 + $0x308] sm:$0xff] %v1340
                  %v1342 = vld [vmem:[%s1240 + $0xaf0] sm:$0xff]
                  %1343 = vst [vmem:[%s1241 + $0x320] sm:$0xff] %v1342
                  %v1344 = vld [vmem:[%s1240 + $0xaf8] sm:$0xff]
                  %1345 = vst [vmem:[%s1241 + $0x328] sm:$0xff] %v1344
                  %v1346 = vld [vmem:[%s1240 + $0xb60] sm:$0xff]
                  %1347 = vst [vmem:[%s1241 + $0x340] sm:$0xff] %v1346
                  %v1348 = vld [vmem:[%s1240 + $0xb68] sm:$0xff]
                  %1349 = vst [vmem:[%s1241 + $0x348] sm:$0xff] %v1348
                  %v1350 = vld [vmem:[%s1240 + $0xbd0] sm:$0xff]
                  %1351 = vst [vmem:[%s1241 + $0x360] sm:$0xff] %v1350
                  %v1352 = vld [vmem:[%s1240 + $0xbd8] sm:$0xff]
                  %1353 = vst [vmem:[%s1241 + $0x368] sm:$0xff] %v1352
                  %v1354 = vld [vmem:[%s1240 + $0xc40] sm:$0xff]
                  %1355 = vst [vmem:[%s1241 + $0x380] sm:$0xff] %v1354
                  %v1356 = vld [vmem:[%s1240 + $0xc48] sm:$0xff]
                  %1357 = vst [vmem:[%s1241 + $0x388] sm:$0xff] %v1356
                  %v1358 = vld [vmem:[%s1240 + $0xcb0] sm:$0xff]
                  %1359 = vst [vmem:[%s1241 + $0x3a0] sm:$0xff] %v1358
                  %v1360 = vld [vmem:[%s1240 + $0xcb8] sm:$0xff]
                  %1361 = vst [vmem:[%s1241 + $0x3a8] sm:$0xff] %v1360
                  %v1362 = vld [vmem:[%s1240 + $0xd20] sm:$0xff]
                  %1363 = vst [vmem:[%s1241 + $0x3c0] sm:$0xff] %v1362
                  %v1364 = vld [vmem:[%s1240 + $0xd28] sm:$0xff]
                  %1365 = vst [vmem:[%s1241 + $0x3c8] sm:$0xff] %v1364
                  %v1366 = vld [vmem:[%s1240 + $0xd90] sm:$0xff]
                  %1367 = vst [vmem:[%s1241 + $0x3e0] sm:$0xff] %v1366
                  %v1368 = vld [vmem:[%s1240 + $0xd98] sm:$0xff]
                  %1369 = vst [vmem:[%s1241 + $0x3e8] sm:$0xff] %v1368
                  %v1370 = vld [vmem:[%s1240 + $0xe00] sm:$0xff]
                  %1371 = vst [vmem:[%s1241 + $0x400] sm:$0xff] %v1370
                  %v1372 = vld [vmem:[%s1240 + $0xe08] sm:$0xff]
                  %1373 = vst [vmem:[%s1241 + $0x408] sm:$0xff] %v1372
                  %v1374 = vld [vmem:[%s1240 + $0xe70] sm:$0xff]
                  %1375 = vst [vmem:[%s1241 + $0x420] sm:$0xff] %v1374
                  %v1376 = vld [vmem:[%s1240 + $0xe78] sm:$0xff]
                  %1377 = vst [vmem:[%s1241 + $0x428] sm:$0xff] %v1376
                  %v1378 = vld [vmem:[%s1240 + $0xee0] sm:$0xff]
                  %1379 = vst [vmem:[%s1241 + $0x440] sm:$0xff] %v1378
                  %v1380 = vld [vmem:[%s1240 + $0xee8] sm:$0xff]
                  %1381 = vst [vmem:[%s1241 + $0x448] sm:$0xff] %v1380
                  %v1382 = vld [vmem:[%s1240 + $0xf50] sm:$0xff]
                  %1383 = vst [vmem:[%s1241 + $0x460] sm:$0xff] %v1382
                  %v1384 = vld [vmem:[%s1240 + $0xf58] sm:$0xff]
                  %1385 = vst [vmem:[%s1241 + $0x468] sm:$0xff] %v1384
                  %v1386 = vld [vmem:[%s1240 + $0xfc0] sm:$0xff]
                  %1387 = vst [vmem:[%s1241 + $0x480] sm:$0xff] %v1386
                  %v1388 = vld [vmem:[%s1240 + $0xfc8] sm:$0xff]
                  %1389 = vst [vmem:[%s1241 + $0x488] sm:$0xff] %v1388
                  %v1390 = vld [vmem:[%s1240 + $0x1030] sm:$0xff]
                  %1391 = vst [vmem:[%s1241 + $0x4a0] sm:$0xff] %v1390
                  %v1392 = vld [vmem:[%s1240 + $0x1038] sm:$0xff]
                  %1393 = vst [vmem:[%s1241 + $0x4a8] sm:$0xff] %v1392
                  %v1394 = vld [vmem:[%s1240 + $0x10a0] sm:$0xff]
                  %1395 = vst [vmem:[%s1241 + $0x4c0] sm:$0xff] %v1394
                  %v1396 = vld [vmem:[%s1240 + $0x10a8] sm:$0xff]
                  %1397 = vst [vmem:[%s1241 + $0x4c8] sm:$0xff] %v1396
                  %v1398 = vld [vmem:[%s1240 + $0x1110] sm:$0xff]
                  %1399 = vst [vmem:[%s1241 + $0x4e0] sm:$0xff] %v1398
                  %v1400 = vld [vmem:[%s1240 + $0x1118] sm:$0xff]
                  %1401 = vst [vmem:[%s1241 + $0x4e8] sm:$0xff] %v1400
                  %v1402 = vld [vmem:[%s1240 + $0x1180] sm:$0xff]
                  %1403 = vst [vmem:[%s1241 + $0x500] sm:$0xff] %v1402
                  %v1404 = vld [vmem:[%s1240 + $0x1188] sm:$0xff]
                  %1405 = vst [vmem:[%s1241 + $0x508] sm:$0xff] %v1404
                  %v1406 = vld [vmem:[%s1240 + $0x11f0] sm:$0xff]
                  %1407 = vst [vmem:[%s1241 + $0x520] sm:$0xff] %v1406
                  %v1408 = vld [vmem:[%s1240 + $0x11f8] sm:$0xff]
                  %1409 = vst [vmem:[%s1241 + $0x528] sm:$0xff] %v1408
                  %v1410 = vld [vmem:[%s1240 + $0x1260] sm:$0xff]
                  %1411 = vst [vmem:[%s1241 + $0x540] sm:$0xff] %v1410
                  %v1412 = vld [vmem:[%s1240 + $0x1268] sm:$0xff]
                  %1413 = vst [vmem:[%s1241 + $0x548] sm:$0xff] %v1412
                  %v1414 = vld [vmem:[%s1240 + $0x12d0] sm:$0xff]
                  %1415 = vst [vmem:[%s1241 + $0x560] sm:$0xff] %v1414
                  %v1416 = vld [vmem:[%s1240 + $0x12d8] sm:$0xff]
                  %1417 = vst [vmem:[%s1241 + $0x568] sm:$0xff] %v1416
                  %v1418 = vld [vmem:[%s1240 + $0x1340] sm:$0xff]
                  %1419 = vst [vmem:[%s1241 + $0x580] sm:$0xff] %v1418
                  %v1420 = vld [vmem:[%s1240 + $0x1348] sm:$0xff]
                  %1421 = vst [vmem:[%s1241 + $0x588] sm:$0xff] %v1420
                  %v1422 = vld [vmem:[%s1240 + $0x13b0] sm:$0xff]
                  %1423 = vst [vmem:[%s1241 + $0x5a0] sm:$0xff] %v1422
                  %v1424 = vld [vmem:[%s1240 + $0x13b8] sm:$0xff]
                  %1425 = vst [vmem:[%s1241 + $0x5a8] sm:$0xff] %v1424
                  %s1426 = sadd.s32 1, %s1239
                  %p1427 = scmp.ge.s32.totalorder %s1426, %s1230
                  %s1428 = scalar_select %p1427, 0, %s1426
                  %s1429 = smul.u32 %s1428, 16
                  %s1430 = smul.u32 %s1428, 16
                  %s1431 = scalar_lea.vmem %s1111, %s1429
                  %s1432 = scalar_lea.vmem %s1103, %s1430 [#allocation3]
                $region122: #{forward.3} parent=116 // loop_footer
                  %s1236 = sadd.s32 %s1234, 1
                $region123: #{forward.3} parent=116 // loop_footer_branch
                  %1233 = sbr.rel target = $region119
                $region124: #{forward.3} parent=116 // loop_exit
                  _
                %s1433 = sshrl.u32 %s1229, 1
                %s1434 = sand.u32 %s1229, 1
                %s1435 = smul.u32 %s1433, 2
                %s1436 = smul.u32 128, %s1435
                %s1437 = sshra.s32 %s1436, 4
                %s1438 = scalar_lea.vmem %s1111, %s1437
                %s1439 = smul.u32 128, %s1435
                %s1440 = sshra.s32 %s1439, 4
                %s1441 = scalar_lea.vmem %s1103, %s1440 [#allocation3]
                // While loop
                $region125: #{forward.3} parent=116 // loop_pre_header
                  _
                $region126: #{forward.3} parent=116 // loop_header
                  %s1445 = sphi 0, %s1447
                  %p1446 = scmp.ge.s32.totalorder %s1445, %s1434
                  %s1450 = sphi 0, %s1547
                  %s1451 = sphi %s1438, %s1550
                  %s1452 = sphi %s1441, %s1551
                $region127: #{forward.3} parent=116 // loop_header_branch
                  %1449 = sbr.rel (%p1446) target = $region131
                $region128: #{forward.3} parent=116 // loop_body
                  %v1453 = vld [vmem:[%s1451] sm:$0xff]
                  %1454 = vst [vmem:[%s1452] sm:$0xff] %v1453
                  %v1455 = vld [vmem:[%s1451 + $0x70] sm:$0xff]
                  %1456 = vst [vmem:[%s1452 + $0x20] sm:$0xff] %v1455
                  %v1457 = vld [vmem:[%s1451 + $0xe0] sm:$0xff]
                  %1458 = vst [vmem:[%s1452 + $0x40] sm:$0xff] %v1457
                  %v1459 = vld [vmem:[%s1451 + $0x150] sm:$0xff]
                  %1460 = vst [vmem:[%s1452 + $0x60] sm:$0xff] %v1459
                  %v1461 = vld [vmem:[%s1451 + $0x1c0] sm:$0xff]
                  %1462 = vst [vmem:[%s1452 + $0x80] sm:$0xff] %v1461
                  %v1463 = vld [vmem:[%s1451 + $0x230] sm:$0xff]
                  %1464 = vst [vmem:[%s1452 + $0xa0] sm:$0xff] %v1463
                  %v1465 = vld [vmem:[%s1451 + $0x2a0] sm:$0xff]
                  %1466 = vst [vmem:[%s1452 + $0xc0] sm:$0xff] %v1465
                  %v1467 = vld [vmem:[%s1451 + $0x310] sm:$0xff]
                  %1468 = vst [vmem:[%s1452 + $0xe0] sm:$0xff] %v1467
                  %v1469 = vld [vmem:[%s1451 + $0x380] sm:$0xff]
                  %1470 = vst [vmem:[%s1452 + $0x100] sm:$0xff] %v1469
                  %v1471 = vld [vmem:[%s1451 + $0x3f0] sm:$0xff]
                  %1472 = vst [vmem:[%s1452 + $0x120] sm:$0xff] %v1471
                  %v1473 = vld [vmem:[%s1451 + $0x460] sm:$0xff]
                  %1474 = vst [vmem:[%s1452 + $0x140] sm:$0xff] %v1473
                  %v1475 = vld [vmem:[%s1451 + $0x4d0] sm:$0xff]
                  %1476 = vst [vmem:[%s1452 + $0x160] sm:$0xff] %v1475
                  %v1477 = vld [vmem:[%s1451 + $0x540] sm:$0xff]
                  %1478 = vst [vmem:[%s1452 + $0x180] sm:$0xff] %v1477
                  %v1479 = vld [vmem:[%s1451 + $0x5b0] sm:$0xff]
                  %1480 = vst [vmem:[%s1452 + $0x1a0] sm:$0xff] %v1479
                  %v1481 = vld [vmem:[%s1451 + $0x620] sm:$0xff]
                  %1482 = vst [vmem:[%s1452 + $0x1c0] sm:$0xff] %v1481
                  %v1483 = vld [vmem:[%s1451 + $0x690] sm:$0xff]
                  %1484 = vst [vmem:[%s1452 + $0x1e0] sm:$0xff] %v1483
                  %v1485 = vld [vmem:[%s1451 + $0x700] sm:$0xff]
                  %1486 = vst [vmem:[%s1452 + $0x200] sm:$0xff] %v1485
                  %v1487 = vld [vmem:[%s1451 + $0x770] sm:$0xff]
                  %1488 = vst [vmem:[%s1452 + $0x220] sm:$0xff] %v1487
                  %v1489 = vld [vmem:[%s1451 + $0x7e0] sm:$0xff]
                  %1490 = vst [vmem:[%s1452 + $0x240] sm:$0xff] %v1489
                  %v1491 = vld [vmem:[%s1451 + $0x850] sm:$0xff]
                  %1492 = vst [vmem:[%s1452 + $0x260] sm:$0xff] %v1491
                  %v1493 = vld [vmem:[%s1451 + $0x8c0] sm:$0xff]
                  %1494 = vst [vmem:[%s1452 + $0x280] sm:$0xff] %v1493
                  %v1495 = vld [vmem:[%s1451 + $0x930] sm:$0xff]
                  %1496 = vst [vmem:[%s1452 + $0x2a0] sm:$0xff] %v1495
                  %v1497 = vld [vmem:[%s1451 + $0x9a0] sm:$0xff]
                  %1498 = vst [vmem:[%s1452 + $0x2c0] sm:$0xff] %v1497
                  %v1499 = vld [vmem:[%s1451 + $0xa10] sm:$0xff]
                  %1500 = vst [vmem:[%s1452 + $0x2e0] sm:$0xff] %v1499
                  %v1501 = vld [vmem:[%s1451 + $0xa80] sm:$0xff]
                  %1502 = vst [vmem:[%s1452 + $0x300] sm:$0xff] %v1501
                  %v1503 = vld [vmem:[%s1451 + $0xaf0] sm:$0xff]
                  %1504 = vst [vmem:[%s1452 + $0x320] sm:$0xff] %v1503
                  %v1505 = vld [vmem:[%s1451 + $0xb60] sm:$0xff]
                  %1506 = vst [vmem:[%s1452 + $0x340] sm:$0xff] %v1505
                  %v1507 = vld [vmem:[%s1451 + $0xbd0] sm:$0xff]
                  %1508 = vst [vmem:[%s1452 + $0x360] sm:$0xff] %v1507
                  %v1509 = vld [vmem:[%s1451 + $0xc40] sm:$0xff]
                  %1510 = vst [vmem:[%s1452 + $0x380] sm:$0xff] %v1509
                  %v1511 = vld [vmem:[%s1451 + $0xcb0] sm:$0xff]
                  %1512 = vst [vmem:[%s1452 + $0x3a0] sm:$0xff] %v1511
                  %v1513 = vld [vmem:[%s1451 + $0xd20] sm:$0xff]
                  %1514 = vst [vmem:[%s1452 + $0x3c0] sm:$0xff] %v1513
                  %v1515 = vld [vmem:[%s1451 + $0xd90] sm:$0xff]
                  %1516 = vst [vmem:[%s1452 + $0x3e0] sm:$0xff] %v1515
                  %v1517 = vld [vmem:[%s1451 + $0xe00] sm:$0xff]
                  %1518 = vst [vmem:[%s1452 + $0x400] sm:$0xff] %v1517
                  %v1519 = vld [vmem:[%s1451 + $0xe70] sm:$0xff]
                  %1520 = vst [vmem:[%s1452 + $0x420] sm:$0xff] %v1519
                  %v1521 = vld [vmem:[%s1451 + $0xee0] sm:$0xff]
                  %1522 = vst [vmem:[%s1452 + $0x440] sm:$0xff] %v1521
                  %v1523 = vld [vmem:[%s1451 + $0xf50] sm:$0xff]
                  %1524 = vst [vmem:[%s1452 + $0x460] sm:$0xff] %v1523
                  %v1525 = vld [vmem:[%s1451 + $0xfc0] sm:$0xff]
                  %1526 = vst [vmem:[%s1452 + $0x480] sm:$0xff] %v1525
                  %v1527 = vld [vmem:[%s1451 + $0x1030] sm:$0xff]
                  %1528 = vst [vmem:[%s1452 + $0x4a0] sm:$0xff] %v1527
                  %v1529 = vld [vmem:[%s1451 + $0x10a0] sm:$0xff]
                  %1530 = vst [vmem:[%s1452 + $0x4c0] sm:$0xff] %v1529
                  %v1531 = vld [vmem:[%s1451 + $0x1110] sm:$0xff]
                  %1532 = vst [vmem:[%s1452 + $0x4e0] sm:$0xff] %v1531
                  %v1533 = vld [vmem:[%s1451 + $0x1180] sm:$0xff]
                  %1534 = vst [vmem:[%s1452 + $0x500] sm:$0xff] %v1533
                  %v1535 = vld [vmem:[%s1451 + $0x11f0] sm:$0xff]
                  %1536 = vst [vmem:[%s1452 + $0x520] sm:$0xff] %v1535
                  %v1537 = vld [vmem:[%s1451 + $0x1260] sm:$0xff]
                  %1538 = vst [vmem:[%s1452 + $0x540] sm:$0xff] %v1537
                  %v1539 = vld [vmem:[%s1451 + $0x12d0] sm:$0xff]
                  %1540 = vst [vmem:[%s1452 + $0x560] sm:$0xff] %v1539
                  %v1541 = vld [vmem:[%s1451 + $0x1340] sm:$0xff]
                  %1542 = vst [vmem:[%s1452 + $0x580] sm:$0xff] %v1541
                  %v1543 = vld [vmem:[%s1451 + $0x13b0] sm:$0xff]
                  %1544 = vst [vmem:[%s1452 + $0x5a0] sm:$0xff] %v1543
                  %s1545 = sadd.s32 1, %s1450
                  %p1546 = scmp.ge.s32.totalorder %s1545, %s1434
                  %s1547 = scalar_select %p1546, 0, %s1545
                  %s1548 = smul.u32 %s1547, 8
                  %s1549 = smul.u32 %s1547, 8
                  %s1550 = scalar_lea.vmem %s1438, %s1548
                  %s1551 = scalar_lea.vmem %s1441, %s1549 [#allocation3]
                $region129: #{forward.3} parent=116 // loop_footer
                  %s1447 = sadd.s32 %s1445, 1
                $region130: #{forward.3} parent=116 // loop_footer_branch
                  %1444 = sbr.rel target = $region126
                $region131: #{forward.3} parent=116 // loop_exit
                  _
              $region117: #{forward.3} parent=101 // pred_fallthru
                _
              %p1552 = pneg %p1225
              // Predicated region
              $region132: #{forward.3} parent=101 // pred_check
                _
              $region133: #{forward.3} parent=101 // pred_check_branch
                %1554 = sbr.rel (%p1225) target = $region135
              $region134: #{forward.3} parent=101 // pred_region
                %s1555 = sand.u32 %s1112, 7
                %s1556 = ssub.s32 %s1112, %s1555
                %s1557 = scalar_lea.vmem %s1111, %s1556
                %s1558 = ssub.s32 %s1112, %s1555
                %s1559 = scalar_lea.vmem %s1103, %s1558 [#allocation3]
                %s1560 = sshrl.u32 %s1112, 3
                %s1561 = sshrl.u32 %s1560, 1
                // While loop
                $region136: #{forward.3} parent=134 // loop_pre_header
                  _
                $region137: #{forward.3} parent=134 // loop_header
                  %s1565 = sphi 0, %s1567
                  %p1566 = scmp.ge.s32.totalorder %s1565, %s1561
                  %s1570 = sphi 0, %s1759
                  %s1571 = sphi %s1111, %s1762
                  %s1572 = sphi %s1103, %s1763
                $region138: #{forward.3} parent=134 // loop_header_branch
                  %1569 = sbr.rel (%p1566) target = $region142
                $region139: #{forward.3} parent=134 // loop_body
                  %v1573 = vld [vmem:[%s1571] sm:$0xff]
                  %1574 = vst [vmem:[%s1572] sm:$0xff] %v1573
                  %v1575 = vld [vmem:[%s1571 + $0x8] sm:$0xff]
                  %1576 = vst [vmem:[%s1572 + $0x8] sm:$0xff] %v1575
                  %v1577 = vld [vmem:[%s1571 + $0x70] sm:$0xff]
                  %1578 = vst [vmem:[%s1572 + $0x20] sm:$0xff] %v1577
                  %v1579 = vld [vmem:[%s1571 + $0x78] sm:$0xff]
                  %1580 = vst [vmem:[%s1572 + $0x28] sm:$0xff] %v1579
                  %v1581 = vld [vmem:[%s1571 + $0xe0] sm:$0xff]
                  %1582 = vst [vmem:[%s1572 + $0x40] sm:$0xff] %v1581
                  %v1583 = vld [vmem:[%s1571 + $0xe8] sm:$0xff]
                  %1584 = vst [vmem:[%s1572 + $0x48] sm:$0xff] %v1583
                  %v1585 = vld [vmem:[%s1571 + $0x150] sm:$0xff]
                  %1586 = vst [vmem:[%s1572 + $0x60] sm:$0xff] %v1585
                  %v1587 = vld [vmem:[%s1571 + $0x158] sm:$0xff]
                  %1588 = vst [vmem:[%s1572 + $0x68] sm:$0xff] %v1587
                  %v1589 = vld [vmem:[%s1571 + $0x1c0] sm:$0xff]
                  %1590 = vst [vmem:[%s1572 + $0x80] sm:$0xff] %v1589
                  %v1591 = vld [vmem:[%s1571 + $0x1c8] sm:$0xff]
                  %1592 = vst [vmem:[%s1572 + $0x88] sm:$0xff] %v1591
                  %v1593 = vld [vmem:[%s1571 + $0x230] sm:$0xff]
                  %1594 = vst [vmem:[%s1572 + $0xa0] sm:$0xff] %v1593
                  %v1595 = vld [vmem:[%s1571 + $0x238] sm:$0xff]
                  %1596 = vst [vmem:[%s1572 + $0xa8] sm:$0xff] %v1595
                  %v1597 = vld [vmem:[%s1571 + $0x2a0] sm:$0xff]
                  %1598 = vst [vmem:[%s1572 + $0xc0] sm:$0xff] %v1597
                  %v1599 = vld [vmem:[%s1571 + $0x2a8] sm:$0xff]
                  %1600 = vst [vmem:[%s1572 + $0xc8] sm:$0xff] %v1599
                  %v1601 = vld [vmem:[%s1571 + $0x310] sm:$0xff]
                  %1602 = vst [vmem:[%s1572 + $0xe0] sm:$0xff] %v1601
                  %v1603 = vld [vmem:[%s1571 + $0x318] sm:$0xff]
                  %1604 = vst [vmem:[%s1572 + $0xe8] sm:$0xff] %v1603
                  %v1605 = vld [vmem:[%s1571 + $0x380] sm:$0xff]
                  %1606 = vst [vmem:[%s1572 + $0x100] sm:$0xff] %v1605
                  %v1607 = vld [vmem:[%s1571 + $0x388] sm:$0xff]
                  %1608 = vst [vmem:[%s1572 + $0x108] sm:$0xff] %v1607
                  %v1609 = vld [vmem:[%s1571 + $0x3f0] sm:$0xff]
                  %1610 = vst [vmem:[%s1572 + $0x120] sm:$0xff] %v1609
                  %v1611 = vld [vmem:[%s1571 + $0x3f8] sm:$0xff]
                  %1612 = vst [vmem:[%s1572 + $0x128] sm:$0xff] %v1611
                  %v1613 = vld [vmem:[%s1571 + $0x460] sm:$0xff]
                  %1614 = vst [vmem:[%s1572 + $0x140] sm:$0xff] %v1613
                  %v1615 = vld [vmem:[%s1571 + $0x468] sm:$0xff]
                  %1616 = vst [vmem:[%s1572 + $0x148] sm:$0xff] %v1615
                  %v1617 = vld [vmem:[%s1571 + $0x4d0] sm:$0xff]
                  %1618 = vst [vmem:[%s1572 + $0x160] sm:$0xff] %v1617
                  %v1619 = vld [vmem:[%s1571 + $0x4d8] sm:$0xff]
                  %1620 = vst [vmem:[%s1572 + $0x168] sm:$0xff] %v1619
                  %v1621 = vld [vmem:[%s1571 + $0x540] sm:$0xff]
                  %1622 = vst [vmem:[%s1572 + $0x180] sm:$0xff] %v1621
                  %v1623 = vld [vmem:[%s1571 + $0x548] sm:$0xff]
                  %1624 = vst [vmem:[%s1572 + $0x188] sm:$0xff] %v1623
                  %v1625 = vld [vmem:[%s1571 + $0x5b0] sm:$0xff]
                  %1626 = vst [vmem:[%s1572 + $0x1a0] sm:$0xff] %v1625
                  %v1627 = vld [vmem:[%s1571 + $0x5b8] sm:$0xff]
                  %1628 = vst [vmem:[%s1572 + $0x1a8] sm:$0xff] %v1627
                  %v1629 = vld [vmem:[%s1571 + $0x620] sm:$0xff]
                  %1630 = vst [vmem:[%s1572 + $0x1c0] sm:$0xff] %v1629
                  %v1631 = vld [vmem:[%s1571 + $0x628] sm:$0xff]
                  %1632 = vst [vmem:[%s1572 + $0x1c8] sm:$0xff] %v1631
                  %v1633 = vld [vmem:[%s1571 + $0x690] sm:$0xff]
                  %1634 = vst [vmem:[%s1572 + $0x1e0] sm:$0xff] %v1633
                  %v1635 = vld [vmem:[%s1571 + $0x698] sm:$0xff]
                  %1636 = vst [vmem:[%s1572 + $0x1e8] sm:$0xff] %v1635
                  %v1637 = vld [vmem:[%s1571 + $0x700] sm:$0xff]
                  %1638 = vst [vmem:[%s1572 + $0x200] sm:$0xff] %v1637
                  %v1639 = vld [vmem:[%s1571 + $0x708] sm:$0xff]
                  %1640 = vst [vmem:[%s1572 + $0x208] sm:$0xff] %v1639
                  %v1641 = vld [vmem:[%s1571 + $0x770] sm:$0xff]
                  %1642 = vst [vmem:[%s1572 + $0x220] sm:$0xff] %v1641
                  %v1643 = vld [vmem:[%s1571 + $0x778] sm:$0xff]
                  %1644 = vst [vmem:[%s1572 + $0x228] sm:$0xff] %v1643
                  %v1645 = vld [vmem:[%s1571 + $0x7e0] sm:$0xff]
                  %1646 = vst [vmem:[%s1572 + $0x240] sm:$0xff] %v1645
                  %v1647 = vld [vmem:[%s1571 + $0x7e8] sm:$0xff]
                  %1648 = vst [vmem:[%s1572 + $0x248] sm:$0xff] %v1647
                  %v1649 = vld [vmem:[%s1571 + $0x850] sm:$0xff]
                  %1650 = vst [vmem:[%s1572 + $0x260] sm:$0xff] %v1649
                  %v1651 = vld [vmem:[%s1571 + $0x858] sm:$0xff]
                  %1652 = vst [vmem:[%s1572 + $0x268] sm:$0xff] %v1651
                  %v1653 = vld [vmem:[%s1571 + $0x8c0] sm:$0xff]
                  %1654 = vst [vmem:[%s1572 + $0x280] sm:$0xff] %v1653
                  %v1655 = vld [vmem:[%s1571 + $0x8c8] sm:$0xff]
                  %1656 = vst [vmem:[%s1572 + $0x288] sm:$0xff] %v1655
                  %v1657 = vld [vmem:[%s1571 + $0x930] sm:$0xff]
                  %1658 = vst [vmem:[%s1572 + $0x2a0] sm:$0xff] %v1657
                  %v1659 = vld [vmem:[%s1571 + $0x938] sm:$0xff]
                  %1660 = vst [vmem:[%s1572 + $0x2a8] sm:$0xff] %v1659
                  %v1661 = vld [vmem:[%s1571 + $0x9a0] sm:$0xff]
                  %1662 = vst [vmem:[%s1572 + $0x2c0] sm:$0xff] %v1661
                  %v1663 = vld [vmem:[%s1571 + $0x9a8] sm:$0xff]
                  %1664 = vst [vmem:[%s1572 + $0x2c8] sm:$0xff] %v1663
                  %v1665 = vld [vmem:[%s1571 + $0xa10] sm:$0xff]
                  %1666 = vst [vmem:[%s1572 + $0x2e0] sm:$0xff] %v1665
                  %v1667 = vld [vmem:[%s1571 + $0xa18] sm:$0xff]
                  %1668 = vst [vmem:[%s1572 + $0x2e8] sm:$0xff] %v1667
                  %v1669 = vld [vmem:[%s1571 + $0xa80] sm:$0xff]
                  %1670 = vst [vmem:[%s1572 + $0x300] sm:$0xff] %v1669
                  %v1671 = vld [vmem:[%s1571 + $0xa88] sm:$0xff]
                  %1672 = vst [vmem:[%s1572 + $0x308] sm:$0xff] %v1671
                  %v1673 = vld [vmem:[%s1571 + $0xaf0] sm:$0xff]
                  %1674 = vst [vmem:[%s1572 + $0x320] sm:$0xff] %v1673
                  %v1675 = vld [vmem:[%s1571 + $0xaf8] sm:$0xff]
                  %1676 = vst [vmem:[%s1572 + $0x328] sm:$0xff] %v1675
                  %v1677 = vld [vmem:[%s1571 + $0xb60] sm:$0xff]
                  %1678 = vst [vmem:[%s1572 + $0x340] sm:$0xff] %v1677
                  %v1679 = vld [vmem:[%s1571 + $0xb68] sm:$0xff]
                  %1680 = vst [vmem:[%s1572 + $0x348] sm:$0xff] %v1679
                  %v1681 = vld [vmem:[%s1571 + $0xbd0] sm:$0xff]
                  %1682 = vst [vmem:[%s1572 + $0x360] sm:$0xff] %v1681
                  %v1683 = vld [vmem:[%s1571 + $0xbd8] sm:$0xff]
                  %1684 = vst [vmem:[%s1572 + $0x368] sm:$0xff] %v1683
                  %v1685 = vld [vmem:[%s1571 + $0xc40] sm:$0xff]
                  %1686 = vst [vmem:[%s1572 + $0x380] sm:$0xff] %v1685
                  %v1687 = vld [vmem:[%s1571 + $0xc48] sm:$0xff]
                  %1688 = vst [vmem:[%s1572 + $0x388] sm:$0xff] %v1687
                  %v1689 = vld [vmem:[%s1571 + $0xcb0] sm:$0xff]
                  %1690 = vst [vmem:[%s1572 + $0x3a0] sm:$0xff] %v1689
                  %v1691 = vld [vmem:[%s1571 + $0xcb8] sm:$0xff]
                  %1692 = vst [vmem:[%s1572 + $0x3a8] sm:$0xff] %v1691
                  %v1693 = vld [vmem:[%s1571 + $0xd20] sm:$0xff]
                  %1694 = vst [vmem:[%s1572 + $0x3c0] sm:$0xff] %v1693
                  %v1695 = vld [vmem:[%s1571 + $0xd28] sm:$0xff]
                  %1696 = vst [vmem:[%s1572 + $0x3c8] sm:$0xff] %v1695
                  %v1697 = vld [vmem:[%s1571 + $0xd90] sm:$0xff]
                  %1698 = vst [vmem:[%s1572 + $0x3e0] sm:$0xff] %v1697
                  %v1699 = vld [vmem:[%s1571 + $0xd98] sm:$0xff]
                  %1700 = vst [vmem:[%s1572 + $0x3e8] sm:$0xff] %v1699
                  %v1701 = vld [vmem:[%s1571 + $0xe00] sm:$0xff]
                  %1702 = vst [vmem:[%s1572 + $0x400] sm:$0xff] %v1701
                  %v1703 = vld [vmem:[%s1571 + $0xe08] sm:$0xff]
                  %1704 = vst [vmem:[%s1572 + $0x408] sm:$0xff] %v1703
                  %v1705 = vld [vmem:[%s1571 + $0xe70] sm:$0xff]
                  %1706 = vst [vmem:[%s1572 + $0x420] sm:$0xff] %v1705
                  %v1707 = vld [vmem:[%s1571 + $0xe78] sm:$0xff]
                  %1708 = vst [vmem:[%s1572 + $0x428] sm:$0xff] %v1707
                  %v1709 = vld [vmem:[%s1571 + $0xee0] sm:$0xff]
                  %1710 = vst [vmem:[%s1572 + $0x440] sm:$0xff] %v1709
                  %v1711 = vld [vmem:[%s1571 + $0xee8] sm:$0xff]
                  %1712 = vst [vmem:[%s1572 + $0x448] sm:$0xff] %v1711
                  %v1713 = vld [vmem:[%s1571 + $0xf50] sm:$0xff]
                  %1714 = vst [vmem:[%s1572 + $0x460] sm:$0xff] %v1713
                  %v1715 = vld [vmem:[%s1571 + $0xf58] sm:$0xff]
                  %1716 = vst [vmem:[%s1572 + $0x468] sm:$0xff] %v1715
                  %v1717 = vld [vmem:[%s1571 + $0xfc0] sm:$0xff]
                  %1718 = vst [vmem:[%s1572 + $0x480] sm:$0xff] %v1717
                  %v1719 = vld [vmem:[%s1571 + $0xfc8] sm:$0xff]
                  %1720 = vst [vmem:[%s1572 + $0x488] sm:$0xff] %v1719
                  %v1721 = vld [vmem:[%s1571 + $0x1030] sm:$0xff]
                  %1722 = vst [vmem:[%s1572 + $0x4a0] sm:$0xff] %v1721
                  %v1723 = vld [vmem:[%s1571 + $0x1038] sm:$0xff]
                  %1724 = vst [vmem:[%s1572 + $0x4a8] sm:$0xff] %v1723
                  %v1725 = vld [vmem:[%s1571 + $0x10a0] sm:$0xff]
                  %1726 = vst [vmem:[%s1572 + $0x4c0] sm:$0xff] %v1725
                  %v1727 = vld [vmem:[%s1571 + $0x10a8] sm:$0xff]
                  %1728 = vst [vmem:[%s1572 + $0x4c8] sm:$0xff] %v1727
                  %v1729 = vld [vmem:[%s1571 + $0x1110] sm:$0xff]
                  %1730 = vst [vmem:[%s1572 + $0x4e0] sm:$0xff] %v1729
                  %v1731 = vld [vmem:[%s1571 + $0x1118] sm:$0xff]
                  %1732 = vst [vmem:[%s1572 + $0x4e8] sm:$0xff] %v1731
                  %v1733 = vld [vmem:[%s1571 + $0x1180] sm:$0xff]
                  %1734 = vst [vmem:[%s1572 + $0x500] sm:$0xff] %v1733
                  %v1735 = vld [vmem:[%s1571 + $0x1188] sm:$0xff]
                  %1736 = vst [vmem:[%s1572 + $0x508] sm:$0xff] %v1735
                  %v1737 = vld [vmem:[%s1571 + $0x11f0] sm:$0xff]
                  %1738 = vst [vmem:[%s1572 + $0x520] sm:$0xff] %v1737
                  %v1739 = vld [vmem:[%s1571 + $0x11f8] sm:$0xff]
                  %1740 = vst [vmem:[%s1572 + $0x528] sm:$0xff] %v1739
                  %v1741 = vld [vmem:[%s1571 + $0x1260] sm:$0xff]
                  %1742 = vst [vmem:[%s1572 + $0x540] sm:$0xff] %v1741
                  %v1743 = vld [vmem:[%s1571 + $0x1268] sm:$0xff]
                  %1744 = vst [vmem:[%s1572 + $0x548] sm:$0xff] %v1743
                  %v1745 = vld [vmem:[%s1571 + $0x12d0] sm:$0xff]
                  %1746 = vst [vmem:[%s1572 + $0x560] sm:$0xff] %v1745
                  %v1747 = vld [vmem:[%s1571 + $0x12d8] sm:$0xff]
                  %1748 = vst [vmem:[%s1572 + $0x568] sm:$0xff] %v1747
                  %v1749 = vld [vmem:[%s1571 + $0x1340] sm:$0xff]
                  %1750 = vst [vmem:[%s1572 + $0x580] sm:$0xff] %v1749
                  %v1751 = vld [vmem:[%s1571 + $0x1348] sm:$0xff]
                  %1752 = vst [vmem:[%s1572 + $0x588] sm:$0xff] %v1751
                  %v1753 = vld [vmem:[%s1571 + $0x13b0] sm:$0xff]
                  %1754 = vst [vmem:[%s1572 + $0x5a0] sm:$0xff] %v1753
                  %v1755 = vld [vmem:[%s1571 + $0x13b8] sm:$0xff]
                  %1756 = vst [vmem:[%s1572 + $0x5a8] sm:$0xff] %v1755
                  %s1757 = sadd.s32 1, %s1570
                  %p1758 = scmp.ge.s32.totalorder %s1757, %s1561
                  %s1759 = scalar_select %p1758, 0, %s1757
                  %s1760 = smul.u32 %s1759, 16
                  %s1761 = smul.u32 %s1759, 16
                  %s1762 = scalar_lea.vmem %s1111, %s1760
                  %s1763 = scalar_lea.vmem %s1103, %s1761 [#allocation3]
                $region140: #{forward.3} parent=134 // loop_footer
                  %s1567 = sadd.s32 %s1565, 1
                $region141: #{forward.3} parent=134 // loop_footer_branch
                  %1564 = sbr.rel target = $region137
                $region142: #{forward.3} parent=134 // loop_exit
                  _
                %s1764 = sshrl.u32 %s1560, 1
                %s1765 = sand.u32 %s1560, 1
                %s1766 = smul.u32 %s1764, 2
                %s1767 = smul.u32 128, %s1766
                %s1768 = sshra.s32 %s1767, 4
                %s1769 = scalar_lea.vmem %s1111, %s1768
                %s1770 = smul.u32 128, %s1766
                %s1771 = sshra.s32 %s1770, 4
                %s1772 = scalar_lea.vmem %s1103, %s1771 [#allocation3]
                // While loop
                $region143: #{forward.3} parent=134 // loop_pre_header
                  _
                $region144: #{forward.3} parent=134 // loop_header
                  %s1776 = sphi 0, %s1778
                  %p1777 = scmp.ge.s32.totalorder %s1776, %s1765
                  %s1781 = sphi 0, %s1878
                  %s1782 = sphi %s1769, %s1881
                  %s1783 = sphi %s1772, %s1882
                $region145: #{forward.3} parent=134 // loop_header_branch
                  %1780 = sbr.rel (%p1777) target = $region149
                $region146: #{forward.3} parent=134 // loop_body
                  %v1784 = vld [vmem:[%s1782] sm:$0xff]
                  %1785 = vst [vmem:[%s1783] sm:$0xff] %v1784
                  %v1786 = vld [vmem:[%s1782 + $0x70] sm:$0xff]
                  %1787 = vst [vmem:[%s1783 + $0x20] sm:$0xff] %v1786
                  %v1788 = vld [vmem:[%s1782 + $0xe0] sm:$0xff]
                  %1789 = vst [vmem:[%s1783 + $0x40] sm:$0xff] %v1788
                  %v1790 = vld [vmem:[%s1782 + $0x150] sm:$0xff]
                  %1791 = vst [vmem:[%s1783 + $0x60] sm:$0xff] %v1790
                  %v1792 = vld [vmem:[%s1782 + $0x1c0] sm:$0xff]
                  %1793 = vst [vmem:[%s1783 + $0x80] sm:$0xff] %v1792
                  %v1794 = vld [vmem:[%s1782 + $0x230] sm:$0xff]
                  %1795 = vst [vmem:[%s1783 + $0xa0] sm:$0xff] %v1794
                  %v1796 = vld [vmem:[%s1782 + $0x2a0] sm:$0xff]
                  %1797 = vst [vmem:[%s1783 + $0xc0] sm:$0xff] %v1796
                  %v1798 = vld [vmem:[%s1782 + $0x310] sm:$0xff]
                  %1799 = vst [vmem:[%s1783 + $0xe0] sm:$0xff] %v1798
                  %v1800 = vld [vmem:[%s1782 + $0x380] sm:$0xff]
                  %1801 = vst [vmem:[%s1783 + $0x100] sm:$0xff] %v1800
                  %v1802 = vld [vmem:[%s1782 + $0x3f0] sm:$0xff]
                  %1803 = vst [vmem:[%s1783 + $0x120] sm:$0xff] %v1802
                  %v1804 = vld [vmem:[%s1782 + $0x460] sm:$0xff]
                  %1805 = vst [vmem:[%s1783 + $0x140] sm:$0xff] %v1804
                  %v1806 = vld [vmem:[%s1782 + $0x4d0] sm:$0xff]
                  %1807 = vst [vmem:[%s1783 + $0x160] sm:$0xff] %v1806
                  %v1808 = vld [vmem:[%s1782 + $0x540] sm:$0xff]
                  %1809 = vst [vmem:[%s1783 + $0x180] sm:$0xff] %v1808
                  %v1810 = vld [vmem:[%s1782 + $0x5b0] sm:$0xff]
                  %1811 = vst [vmem:[%s1783 + $0x1a0] sm:$0xff] %v1810
                  %v1812 = vld [vmem:[%s1782 + $0x620] sm:$0xff]
                  %1813 = vst [vmem:[%s1783 + $0x1c0] sm:$0xff] %v1812
                  %v1814 = vld [vmem:[%s1782 + $0x690] sm:$0xff]
                  %1815 = vst [vmem:[%s1783 + $0x1e0] sm:$0xff] %v1814
                  %v1816 = vld [vmem:[%s1782 + $0x700] sm:$0xff]
                  %1817 = vst [vmem:[%s1783 + $0x200] sm:$0xff] %v1816
                  %v1818 = vld [vmem:[%s1782 + $0x770] sm:$0xff]
                  %1819 = vst [vmem:[%s1783 + $0x220] sm:$0xff] %v1818
                  %v1820 = vld [vmem:[%s1782 + $0x7e0] sm:$0xff]
                  %1821 = vst [vmem:[%s1783 + $0x240] sm:$0xff] %v1820
                  %v1822 = vld [vmem:[%s1782 + $0x850] sm:$0xff]
                  %1823 = vst [vmem:[%s1783 + $0x260] sm:$0xff] %v1822
                  %v1824 = vld [vmem:[%s1782 + $0x8c0] sm:$0xff]
                  %1825 = vst [vmem:[%s1783 + $0x280] sm:$0xff] %v1824
                  %v1826 = vld [vmem:[%s1782 + $0x930] sm:$0xff]
                  %1827 = vst [vmem:[%s1783 + $0x2a0] sm:$0xff] %v1826
                  %v1828 = vld [vmem:[%s1782 + $0x9a0] sm:$0xff]
                  %1829 = vst [vmem:[%s1783 + $0x2c0] sm:$0xff] %v1828
                  %v1830 = vld [vmem:[%s1782 + $0xa10] sm:$0xff]
                  %1831 = vst [vmem:[%s1783 + $0x2e0] sm:$0xff] %v1830
                  %v1832 = vld [vmem:[%s1782 + $0xa80] sm:$0xff]
                  %1833 = vst [vmem:[%s1783 + $0x300] sm:$0xff] %v1832
                  %v1834 = vld [vmem:[%s1782 + $0xaf0] sm:$0xff]
                  %1835 = vst [vmem:[%s1783 + $0x320] sm:$0xff] %v1834
                  %v1836 = vld [vmem:[%s1782 + $0xb60] sm:$0xff]
                  %1837 = vst [vmem:[%s1783 + $0x340] sm:$0xff] %v1836
                  %v1838 = vld [vmem:[%s1782 + $0xbd0] sm:$0xff]
                  %1839 = vst [vmem:[%s1783 + $0x360] sm:$0xff] %v1838
                  %v1840 = vld [vmem:[%s1782 + $0xc40] sm:$0xff]
                  %1841 = vst [vmem:[%s1783 + $0x380] sm:$0xff] %v1840
                  %v1842 = vld [vmem:[%s1782 + $0xcb0] sm:$0xff]
                  %1843 = vst [vmem:[%s1783 + $0x3a0] sm:$0xff] %v1842
                  %v1844 = vld [vmem:[%s1782 + $0xd20] sm:$0xff]
                  %1845 = vst [vmem:[%s1783 + $0x3c0] sm:$0xff] %v1844
                  %v1846 = vld [vmem:[%s1782 + $0xd90] sm:$0xff]
                  %1847 = vst [vmem:[%s1783 + $0x3e0] sm:$0xff] %v1846
                  %v1848 = vld [vmem:[%s1782 + $0xe00] sm:$0xff]
                  %1849 = vst [vmem:[%s1783 + $0x400] sm:$0xff] %v1848
                  %v1850 = vld [vmem:[%s1782 + $0xe70] sm:$0xff]
                  %1851 = vst [vmem:[%s1783 + $0x420] sm:$0xff] %v1850
                  %v1852 = vld [vmem:[%s1782 + $0xee0] sm:$0xff]
                  %1853 = vst [vmem:[%s1783 + $0x440] sm:$0xff] %v1852
                  %v1854 = vld [vmem:[%s1782 + $0xf50] sm:$0xff]
                  %1855 = vst [vmem:[%s1783 + $0x460] sm:$0xff] %v1854
                  %v1856 = vld [vmem:[%s1782 + $0xfc0] sm:$0xff]
                  %1857 = vst [vmem:[%s1783 + $0x480] sm:$0xff] %v1856
                  %v1858 = vld [vmem:[%s1782 + $0x1030] sm:$0xff]
                  %1859 = vst [vmem:[%s1783 + $0x4a0] sm:$0xff] %v1858
                  %v1860 = vld [vmem:[%s1782 + $0x10a0] sm:$0xff]
                  %1861 = vst [vmem:[%s1783 + $0x4c0] sm:$0xff] %v1860
                  %v1862 = vld [vmem:[%s1782 + $0x1110] sm:$0xff]
                  %1863 = vst [vmem:[%s1783 + $0x4e0] sm:$0xff] %v1862
                  %v1864 = vld [vmem:[%s1782 + $0x1180] sm:$0xff]
                  %1865 = vst [vmem:[%s1783 + $0x500] sm:$0xff] %v1864
                  %v1866 = vld [vmem:[%s1782 + $0x11f0] sm:$0xff]
                  %1867 = vst [vmem:[%s1783 + $0x520] sm:$0xff] %v1866
                  %v1868 = vld [vmem:[%s1782 + $0x1260] sm:$0xff]
                  %1869 = vst [vmem:[%s1783 + $0x540] sm:$0xff] %v1868
                  %v1870 = vld [vmem:[%s1782 + $0x12d0] sm:$0xff]
                  %1871 = vst [vmem:[%s1783 + $0x560] sm:$0xff] %v1870
                  %v1872 = vld [vmem:[%s1782 + $0x1340] sm:$0xff]
                  %1873 = vst [vmem:[%s1783 + $0x580] sm:$0xff] %v1872
                  %v1874 = vld [vmem:[%s1782 + $0x13b0] sm:$0xff]
                  %1875 = vst [vmem:[%s1783 + $0x5a0] sm:$0xff] %v1874
                  %s1876 = sadd.s32 1, %s1781
                  %p1877 = scmp.ge.s32.totalorder %s1876, %s1765
                  %s1878 = scalar_select %p1877, 0, %s1876
                  %s1879 = smul.u32 %s1878, 8
                  %s1880 = smul.u32 %s1878, 8
                  %s1881 = scalar_lea.vmem %s1769, %s1879
                  %s1882 = scalar_lea.vmem %s1772, %s1880 [#allocation3]
                $region147: #{forward.3} parent=134 // loop_footer
                  %s1778 = sadd.s32 %s1776, 1
                $region148: #{forward.3} parent=134 // loop_footer_branch
                  %1775 = sbr.rel target = $region144
                $region149: #{forward.3} parent=134 // loop_exit
                  _
                %s1883 = sshllo.u32 0, %s1555
                loop: start=0, step=1, limit=1
                $region150: #{forward.3} parent=134 // loop_pre_header
                  _
                $region151: #{forward.3} parent=134 // loop_header
                  %s1885 = sphi 0, %s1889
                  %p1886 = scmp.ge.s32.totalorder %s1885, 1
                  %s1890 = sphi %s1557, %s1557
                  %s1891 = sphi %s1559, %s1559
                $region152: #{forward.3} parent=134 // loop_header_branch
                  %1888 = sbr.rel (%p1886) target = $region156
                $region153: #{forward.3} parent=134 // loop_body
                  %v1892 = vld [vmem:[%s1890] sm:%s1883]
                  %1893 = vst [vmem:[%s1891] sm:%s1883] %v1892
                  %v1894 = vld [vmem:[%s1890 + $0x70] sm:%s1883]
                  %1895 = vst [vmem:[%s1891 + $0x20] sm:%s1883] %v1894
                  %v1896 = vld [vmem:[%s1890 + $0xe0] sm:%s1883]
                  %1897 = vst [vmem:[%s1891 + $0x40] sm:%s1883] %v1896
                  %v1898 = vld [vmem:[%s1890 + $0x150] sm:%s1883]
                  %1899 = vst [vmem:[%s1891 + $0x60] sm:%s1883] %v1898
                  %v1900 = vld [vmem:[%s1890 + $0x1c0] sm:%s1883]
                  %1901 = vst [vmem:[%s1891 + $0x80] sm:%s1883] %v1900
                  %v1902 = vld [vmem:[%s1890 + $0x230] sm:%s1883]
                  %1903 = vst [vmem:[%s1891 + $0xa0] sm:%s1883] %v1902
                  %v1904 = vld [vmem:[%s1890 + $0x2a0] sm:%s1883]
                  %1905 = vst [vmem:[%s1891 + $0xc0] sm:%s1883] %v1904
                  %v1906 = vld [vmem:[%s1890 + $0x310] sm:%s1883]
                  %1907 = vst [vmem:[%s1891 + $0xe0] sm:%s1883] %v1906
                  %v1908 = vld [vmem:[%s1890 + $0x380] sm:%s1883]
                  %1909 = vst [vmem:[%s1891 + $0x100] sm:%s1883] %v1908
                  %v1910 = vld [vmem:[%s1890 + $0x3f0] sm:%s1883]
                  %1911 = vst [vmem:[%s1891 + $0x120] sm:%s1883] %v1910
                  %v1912 = vld [vmem:[%s1890 + $0x460] sm:%s1883]
                  %1913 = vst [vmem:[%s1891 + $0x140] sm:%s1883] %v1912
                  %v1914 = vld [vmem:[%s1890 + $0x4d0] sm:%s1883]
                  %1915 = vst [vmem:[%s1891 + $0x160] sm:%s1883] %v1914
                  %v1916 = vld [vmem:[%s1890 + $0x540] sm:%s1883]
                  %1917 = vst [vmem:[%s1891 + $0x180] sm:%s1883] %v1916
                  %v1918 = vld [vmem:[%s1890 + $0x5b0] sm:%s1883]
                  %1919 = vst [vmem:[%s1891 + $0x1a0] sm:%s1883] %v1918
                  %v1920 = vld [vmem:[%s1890 + $0x620] sm:%s1883]
                  %1921 = vst [vmem:[%s1891 + $0x1c0] sm:%s1883] %v1920
                  %v1922 = vld [vmem:[%s1890 + $0x690] sm:%s1883]
                  %1923 = vst [vmem:[%s1891 + $0x1e0] sm:%s1883] %v1922
                  %v1924 = vld [vmem:[%s1890 + $0x700] sm:%s1883]
                  %1925 = vst [vmem:[%s1891 + $0x200] sm:%s1883] %v1924
                  %v1926 = vld [vmem:[%s1890 + $0x770] sm:%s1883]
                  %1927 = vst [vmem:[%s1891 + $0x220] sm:%s1883] %v1926
                  %v1928 = vld [vmem:[%s1890 + $0x7e0] sm:%s1883]
                  %1929 = vst [vmem:[%s1891 + $0x240] sm:%s1883] %v1928
                  %v1930 = vld [vmem:[%s1890 + $0x850] sm:%s1883]
                  %1931 = vst [vmem:[%s1891 + $0x260] sm:%s1883] %v1930
                  %v1932 = vld [vmem:[%s1890 + $0x8c0] sm:%s1883]
                  %1933 = vst [vmem:[%s1891 + $0x280] sm:%s1883] %v1932
                  %v1934 = vld [vmem:[%s1890 + $0x930] sm:%s1883]
                  %1935 = vst [vmem:[%s1891 + $0x2a0] sm:%s1883] %v1934
                  %v1936 = vld [vmem:[%s1890 + $0x9a0] sm:%s1883]
                  %1937 = vst [vmem:[%s1891 + $0x2c0] sm:%s1883] %v1936
                  %v1938 = vld [vmem:[%s1890 + $0xa10] sm:%s1883]
                  %1939 = vst [vmem:[%s1891 + $0x2e0] sm:%s1883] %v1938
                  %v1940 = vld [vmem:[%s1890 + $0xa80] sm:%s1883]
                  %1941 = vst [vmem:[%s1891 + $0x300] sm:%s1883] %v1940
                  %v1942 = vld [vmem:[%s1890 + $0xaf0] sm:%s1883]
                  %1943 = vst [vmem:[%s1891 + $0x320] sm:%s1883] %v1942
                  %v1944 = vld [vmem:[%s1890 + $0xb60] sm:%s1883]
                  %1945 = vst [vmem:[%s1891 + $0x340] sm:%s1883] %v1944
                  %v1946 = vld [vmem:[%s1890 + $0xbd0] sm:%s1883]
                  %1947 = vst [vmem:[%s1891 + $0x360] sm:%s1883] %v1946
                  %v1948 = vld [vmem:[%s1890 + $0xc40] sm:%s1883]
                  %1949 = vst [vmem:[%s1891 + $0x380] sm:%s1883] %v1948
                  %v1950 = vld [vmem:[%s1890 + $0xcb0] sm:%s1883]
                  %1951 = vst [vmem:[%s1891 + $0x3a0] sm:%s1883] %v1950
                  %v1952 = vld [vmem:[%s1890 + $0xd20] sm:%s1883]
                  %1953 = vst [vmem:[%s1891 + $0x3c0] sm:%s1883] %v1952
                  %v1954 = vld [vmem:[%s1890 + $0xd90] sm:%s1883]
                  %1955 = vst [vmem:[%s1891 + $0x3e0] sm:%s1883] %v1954
                  %v1956 = vld [vmem:[%s1890 + $0xe00] sm:%s1883]
                  %1957 = vst [vmem:[%s1891 + $0x400] sm:%s1883] %v1956
                  %v1958 = vld [vmem:[%s1890 + $0xe70] sm:%s1883]
                  %1959 = vst [vmem:[%s1891 + $0x420] sm:%s1883] %v1958
                  %v1960 = vld [vmem:[%s1890 + $0xee0] sm:%s1883]
                  %1961 = vst [vmem:[%s1891 + $0x440] sm:%s1883] %v1960
                  %v1962 = vld [vmem:[%s1890 + $0xf50] sm:%s1883]
                  %1963 = vst [vmem:[%s1891 + $0x460] sm:%s1883] %v1962
                  %v1964 = vld [vmem:[%s1890 + $0xfc0] sm:%s1883]
                  %1965 = vst [vmem:[%s1891 + $0x480] sm:%s1883] %v1964
                  %v1966 = vld [vmem:[%s1890 + $0x1030] sm:%s1883]
                  %1967 = vst [vmem:[%s1891 + $0x4a0] sm:%s1883] %v1966
                  %v1968 = vld [vmem:[%s1890 + $0x10a0] sm:%s1883]
                  %1969 = vst [vmem:[%s1891 + $0x4c0] sm:%s1883] %v1968
                  %v1970 = vld [vmem:[%s1890 + $0x1110] sm:%s1883]
                  %1971 = vst [vmem:[%s1891 + $0x4e0] sm:%s1883] %v1970
                  %v1972 = vld [vmem:[%s1890 + $0x1180] sm:%s1883]
                  %1973 = vst [vmem:[%s1891 + $0x500] sm:%s1883] %v1972
                  %v1974 = vld [vmem:[%s1890 + $0x11f0] sm:%s1883]
                  %1975 = vst [vmem:[%s1891 + $0x520] sm:%s1883] %v1974
                  %v1976 = vld [vmem:[%s1890 + $0x1260] sm:%s1883]
                  %1977 = vst [vmem:[%s1891 + $0x540] sm:%s1883] %v1976
                  %v1978 = vld [vmem:[%s1890 + $0x12d0] sm:%s1883]
                  %1979 = vst [vmem:[%s1891 + $0x560] sm:%s1883] %v1978
                  %v1980 = vld [vmem:[%s1890 + $0x1340] sm:%s1883]
                  %1981 = vst [vmem:[%s1891 + $0x580] sm:%s1883] %v1980
                  %v1982 = vld [vmem:[%s1890 + $0x13b0] sm:%s1883]
                  %1983 = vst [vmem:[%s1891 + $0x5a0] sm:%s1883] %v1982
                $region154: #{forward.3} parent=134 // loop_footer
                  %s1889 = sadd.s32 1, %s1885
                $region155: #{forward.3} parent=134 // loop_footer_branch
                  %1884 = sbr.rel target = $region151
                $region156: #{forward.3} parent=134 // loop_exit
                  _
              $region135: #{forward.3} parent=101 // pred_fallthru
                _
            $region102: #{forward.3} parent=97 // pred_fallthru
              _
            // Predicated region
            $region103: #{forward.3} parent=97 // pred_check
              %p1120 = pneg %p1116
            $region104: #{forward.3} parent=97 // pred_check_branch
              %1122 = sbr.rel (%p1120) target = $region106
            $region105: #{forward.3} parent=97 // pred_region
              %s1123 = sshllo.u32 0, %s1112
              loop: start=0, step=1, limit=1
              $region107: #{forward.3} parent=105 // loop_pre_header
                _
              $region108: #{forward.3} parent=105 // loop_header
                %s1125 = sphi 0, %s1129
                %p1126 = scmp.ge.s32.totalorder %s1125, 1
                %s1130 = sphi %s1111, %s1111
                %s1131 = sphi %s1103, %s1103
              $region109: #{forward.3} parent=105 // loop_header_branch
                %1128 = sbr.rel (%p1126) target = $region113
              $region110: #{forward.3} parent=105 // loop_body
                %v1132 = vld [vmem:[%s1130] sm:%s1123]
                %1133 = vst [vmem:[%s1131] sm:%s1123] %v1132
                %v1134 = vld [vmem:[%s1130 + $0x70] sm:%s1123]
                %1135 = vst [vmem:[%s1131 + $0x20] sm:%s1123] %v1134
                %v1136 = vld [vmem:[%s1130 + $0xe0] sm:%s1123]
                %1137 = vst [vmem:[%s1131 + $0x40] sm:%s1123] %v1136
                %v1138 = vld [vmem:[%s1130 + $0x150] sm:%s1123]
                %1139 = vst [vmem:[%s1131 + $0x60] sm:%s1123] %v1138
                %v1140 = vld [vmem:[%s1130 + $0x1c0] sm:%s1123]
                %1141 = vst [vmem:[%s1131 + $0x80] sm:%s1123] %v1140
                %v1142 = vld [vmem:[%s1130 + $0x230] sm:%s1123]
                %1143 = vst [vmem:[%s1131 + $0xa0] sm:%s1123] %v1142
                %v1144 = vld [vmem:[%s1130 + $0x2a0] sm:%s1123]
                %1145 = vst [vmem:[%s1131 + $0xc0] sm:%s1123] %v1144
                %v1146 = vld [vmem:[%s1130 + $0x310] sm:%s1123]
                %1147 = vst [vmem:[%s1131 + $0xe0] sm:%s1123] %v1146
                %v1148 = vld [vmem:[%s1130 + $0x380] sm:%s1123]
                %1149 = vst [vmem:[%s1131 + $0x100] sm:%s1123] %v1148
                %v1150 = vld [vmem:[%s1130 + $0x3f0] sm:%s1123]
                %1151 = vst [vmem:[%s1131 + $0x120] sm:%s1123] %v1150
                %v1152 = vld [vmem:[%s1130 + $0x460] sm:%s1123]
                %1153 = vst [vmem:[%s1131 + $0x140] sm:%s1123] %v1152
                %v1154 = vld [vmem:[%s1130 + $0x4d0] sm:%s1123]
                %1155 = vst [vmem:[%s1131 + $0x160] sm:%s1123] %v1154
                %v1156 = vld [vmem:[%s1130 + $0x540] sm:%s1123]
                %1157 = vst [vmem:[%s1131 + $0x180] sm:%s1123] %v1156
                %v1158 = vld [vmem:[%s1130 + $0x5b0] sm:%s1123]
                %1159 = vst [vmem:[%s1131 + $0x1a0] sm:%s1123] %v1158
                %v1160 = vld [vmem:[%s1130 + $0x620] sm:%s1123]
                %1161 = vst [vmem:[%s1131 + $0x1c0] sm:%s1123] %v1160
                %v1162 = vld [vmem:[%s1130 + $0x690] sm:%s1123]
                %1163 = vst [vmem:[%s1131 + $0x1e0] sm:%s1123] %v1162
                %v1164 = vld [vmem:[%s1130 + $0x700] sm:%s1123]
                %1165 = vst [vmem:[%s1131 + $0x200] sm:%s1123] %v1164
                %v1166 = vld [vmem:[%s1130 + $0x770] sm:%s1123]
                %1167 = vst [vmem:[%s1131 + $0x220] sm:%s1123] %v1166
                %v1168 = vld [vmem:[%s1130 + $0x7e0] sm:%s1123]
                %1169 = vst [vmem:[%s1131 + $0x240] sm:%s1123] %v1168
                %v1170 = vld [vmem:[%s1130 + $0x850] sm:%s1123]
                %1171 = vst [vmem:[%s1131 + $0x260] sm:%s1123] %v1170
                %v1172 = vld [vmem:[%s1130 + $0x8c0] sm:%s1123]
                %1173 = vst [vmem:[%s1131 + $0x280] sm:%s1123] %v1172
                %v1174 = vld [vmem:[%s1130 + $0x930] sm:%s1123]
                %1175 = vst [vmem:[%s1131 + $0x2a0] sm:%s1123] %v1174
                %v1176 = vld [vmem:[%s1130 + $0x9a0] sm:%s1123]
                %1177 = vst [vmem:[%s1131 + $0x2c0] sm:%s1123] %v1176
                %v1178 = vld [vmem:[%s1130 + $0xa10] sm:%s1123]
                %1179 = vst [vmem:[%s1131 + $0x2e0] sm:%s1123] %v1178
                %v1180 = vld [vmem:[%s1130 + $0xa80] sm:%s1123]
                %1181 = vst [vmem:[%s1131 + $0x300] sm:%s1123] %v1180
                %v1182 = vld [vmem:[%s1130 + $0xaf0] sm:%s1123]
                %1183 = vst [vmem:[%s1131 + $0x320] sm:%s1123] %v1182
                %v1184 = vld [vmem:[%s1130 + $0xb60] sm:%s1123]
                %1185 = vst [vmem:[%s1131 + $0x340] sm:%s1123] %v1184
                %v1186 = vld [vmem:[%s1130 + $0xbd0] sm:%s1123]
                %1187 = vst [vmem:[%s1131 + $0x360] sm:%s1123] %v1186
                %v1188 = vld [vmem:[%s1130 + $0xc40] sm:%s1123]
                %1189 = vst [vmem:[%s1131 + $0x380] sm:%s1123] %v1188
                %v1190 = vld [vmem:[%s1130 + $0xcb0] sm:%s1123]
                %1191 = vst [vmem:[%s1131 + $0x3a0] sm:%s1123] %v1190
                %v1192 = vld [vmem:[%s1130 + $0xd20] sm:%s1123]
                %1193 = vst [vmem:[%s1131 + $0x3c0] sm:%s1123] %v1192
                %v1194 = vld [vmem:[%s1130 + $0xd90] sm:%s1123]
                %1195 = vst [vmem:[%s1131 + $0x3e0] sm:%s1123] %v1194
                %v1196 = vld [vmem:[%s1130 + $0xe00] sm:%s1123]
                %1197 = vst [vmem:[%s1131 + $0x400] sm:%s1123] %v1196
                %v1198 = vld [vmem:[%s1130 + $0xe70] sm:%s1123]
                %1199 = vst [vmem:[%s1131 + $0x420] sm:%s1123] %v1198
                %v1200 = vld [vmem:[%s1130 + $0xee0] sm:%s1123]
                %1201 = vst [vmem:[%s1131 + $0x440] sm:%s1123] %v1200
                %v1202 = vld [vmem:[%s1130 + $0xf50] sm:%s1123]
                %1203 = vst [vmem:[%s1131 + $0x460] sm:%s1123] %v1202
                %v1204 = vld [vmem:[%s1130 + $0xfc0] sm:%s1123]
                %1205 = vst [vmem:[%s1131 + $0x480] sm:%s1123] %v1204
                %v1206 = vld [vmem:[%s1130 + $0x1030] sm:%s1123]
                %1207 = vst [vmem:[%s1131 + $0x4a0] sm:%s1123] %v1206
                %v1208 = vld [vmem:[%s1130 + $0x10a0] sm:%s1123]
                %1209 = vst [vmem:[%s1131 + $0x4c0] sm:%s1123] %v1208
                %v1210 = vld [vmem:[%s1130 + $0x1110] sm:%s1123]
                %1211 = vst [vmem:[%s1131 + $0x4e0] sm:%s1123] %v1210
                %v1212 = vld [vmem:[%s1130 + $0x1180] sm:%s1123]
                %1213 = vst [vmem:[%s1131 + $0x500] sm:%s1123] %v1212
                %v1214 = vld [vmem:[%s1130 + $0x11f0] sm:%s1123]
                %1215 = vst [vmem:[%s1131 + $0x520] sm:%s1123] %v1214
                %v1216 = vld [vmem:[%s1130 + $0x1260] sm:%s1123]
                %1217 = vst [vmem:[%s1131 + $0x540] sm:%s1123] %v1216
                %v1218 = vld [vmem:[%s1130 + $0x12d0] sm:%s1123]
                %1219 = vst [vmem:[%s1131 + $0x560] sm:%s1123] %v1218
                %v1220 = vld [vmem:[%s1130 + $0x1340] sm:%s1123]
                %1221 = vst [vmem:[%s1131 + $0x580] sm:%s1123] %v1220
                %v1222 = vld [vmem:[%s1130 + $0x13b0] sm:%s1123]
                %1223 = vst [vmem:[%s1131 + $0x5a0] sm:%s1123] %v1222
              $region111: #{forward.3} parent=105 // loop_footer
                %s1129 = sadd.s32 1, %s1125
              $region112: #{forward.3} parent=105 // loop_footer_branch
                %1124 = sbr.rel target = $region108
              $region113: #{forward.3} parent=105 // loop_exit
                _
            $region106: #{forward.3} parent=97 // pred_fallthru
              _
          $region98: #{forward.3} parent=93 // pred_fallthru
            _
          %1984 = vnop
        $region94: #{forward.3} parent=23 // pred_fallthru
          _
        // Predicated region
        $region157: #{forward.3} parent=23 // pred_check
          %p1985 = pneg %p126
        $region158: #{forward.3} parent=23 // pred_check_branch
          %1987 = sbr.rel (%p1985) target = $region160
        $region159: #{forward.3} parent=23 // pred_region
          %s1988 = sand.u32 %s116, 1
          %s1989 = sand.u32 %s116, 1
          %s1990 = smul.addr %s1989, 1472
          %s1991 = scalar_lea.vmem [#allocation4], %s1990
          %s1992 = smul.u32 4, %s12
          %s1993 = ssub.s32 14, %s1992
          %p1994 = scmp.lt.s32.totalorder %s1993, 4
          %s1995 = scalar_select %p1994, %s1993, 4
          %s1996 = smul.u32 5888, %s1995
          %p1997 = scmp.ne.s32.totalorder 0, %s1996
          %s1998 = smul.addr %s1992, 8
          %s1999 = scalar_lea.vmem %s4, %s1998
          %s2000 = smul.u32 %s1995, 8
          // Predicated region
          $region161: #{forward.3} parent=159 // pred_check
            %p2001 = pneg %p1997
          $region162: #{forward.3} parent=159 // pred_check_branch
            %2003 = sbr.rel (%p2001) target = $region164
          $region163: #{forward.3} parent=159 // pred_region
            %p2004 = scmp.lt.u32.totalorder %s2000, 8
            %p2005 = pneg %p2004
            // Predicated region
            $region165: #{forward.3} parent=163 // pred_check
              _
            $region166: #{forward.3} parent=163 // pred_check_branch
              %2007 = sbr.rel (%p2004) target = $region168
            $region167: #{forward.3} parent=163 // pred_region
              %s2112 = sand.u32 %s2000, 7
              %p2113 = scmp.eq.s32.totalorder %s2112, 0
              // Predicated region
              $region180: #{forward.3} parent=167 // pred_check
                %p2114 = pneg %p2113
              $region181: #{forward.3} parent=167 // pred_check_branch
                %2116 = sbr.rel (%p2114) target = $region183
              $region182: #{forward.3} parent=167 // pred_region
                %s2117 = sshrl.u32 %s2000, 3
                %s2118 = sshrl.u32 %s2117, 1
                // While loop
                $region184: #{forward.3} parent=182 // loop_pre_header
                  _
                $region185: #{forward.3} parent=182 // loop_header
                  %s2122 = sphi 0, %s2124
                  %p2123 = scmp.ge.s32.totalorder %s2122, %s2118
                  %s2127 = sphi 0, %s2316
                  %s2128 = sphi %s1999, %s2319
                  %s2129 = sphi %s1991, %s2320
                $region186: #{forward.3} parent=182 // loop_header_branch
                  %2126 = sbr.rel (%p2123) target = $region190
                $region187: #{forward.3} parent=182 // loop_body
                  %v2130 = vld [vmem:[%s2128] sm:$0xff]
                  %2131 = vst [vmem:[%s2129] sm:$0xff] %v2130
                  %v2132 = vld [vmem:[%s2128 + $0x8] sm:$0xff]
                  %2133 = vst [vmem:[%s2129 + $0x8] sm:$0xff] %v2132
                  %v2134 = vld [vmem:[%s2128 + $0x70] sm:$0xff]
                  %2135 = vst [vmem:[%s2129 + $0x20] sm:$0xff] %v2134
                  %v2136 = vld [vmem:[%s2128 + $0x78] sm:$0xff]
                  %2137 = vst [vmem:[%s2129 + $0x28] sm:$0xff] %v2136
                  %v2138 = vld [vmem:[%s2128 + $0xe0] sm:$0xff]
                  %2139 = vst [vmem:[%s2129 + $0x40] sm:$0xff] %v2138
                  %v2140 = vld [vmem:[%s2128 + $0xe8] sm:$0xff]
                  %2141 = vst [vmem:[%s2129 + $0x48] sm:$0xff] %v2140
                  %v2142 = vld [vmem:[%s2128 + $0x150] sm:$0xff]
                  %2143 = vst [vmem:[%s2129 + $0x60] sm:$0xff] %v2142
                  %v2144 = vld [vmem:[%s2128 + $0x158] sm:$0xff]
                  %2145 = vst [vmem:[%s2129 + $0x68] sm:$0xff] %v2144
                  %v2146 = vld [vmem:[%s2128 + $0x1c0] sm:$0xff]
                  %2147 = vst [vmem:[%s2129 + $0x80] sm:$0xff] %v2146
                  %v2148 = vld [vmem:[%s2128 + $0x1c8] sm:$0xff]
                  %2149 = vst [vmem:[%s2129 + $0x88] sm:$0xff] %v2148
                  %v2150 = vld [vmem:[%s2128 + $0x230] sm:$0xff]
                  %2151 = vst [vmem:[%s2129 + $0xa0] sm:$0xff] %v2150
                  %v2152 = vld [vmem:[%s2128 + $0x238] sm:$0xff]
                  %2153 = vst [vmem:[%s2129 + $0xa8] sm:$0xff] %v2152
                  %v2154 = vld [vmem:[%s2128 + $0x2a0] sm:$0xff]
                  %2155 = vst [vmem:[%s2129 + $0xc0] sm:$0xff] %v2154
                  %v2156 = vld [vmem:[%s2128 + $0x2a8] sm:$0xff]
                  %2157 = vst [vmem:[%s2129 + $0xc8] sm:$0xff] %v2156
                  %v2158 = vld [vmem:[%s2128 + $0x310] sm:$0xff]
                  %2159 = vst [vmem:[%s2129 + $0xe0] sm:$0xff] %v2158
                  %v2160 = vld [vmem:[%s2128 + $0x318] sm:$0xff]
                  %2161 = vst [vmem:[%s2129 + $0xe8] sm:$0xff] %v2160
                  %v2162 = vld [vmem:[%s2128 + $0x380] sm:$0xff]
                  %2163 = vst [vmem:[%s2129 + $0x100] sm:$0xff] %v2162
                  %v2164 = vld [vmem:[%s2128 + $0x388] sm:$0xff]
                  %2165 = vst [vmem:[%s2129 + $0x108] sm:$0xff] %v2164
                  %v2166 = vld [vmem:[%s2128 + $0x3f0] sm:$0xff]
                  %2167 = vst [vmem:[%s2129 + $0x120] sm:$0xff] %v2166
                  %v2168 = vld [vmem:[%s2128 + $0x3f8] sm:$0xff]
                  %2169 = vst [vmem:[%s2129 + $0x128] sm:$0xff] %v2168
                  %v2170 = vld [vmem:[%s2128 + $0x460] sm:$0xff]
                  %2171 = vst [vmem:[%s2129 + $0x140] sm:$0xff] %v2170
                  %v2172 = vld [vmem:[%s2128 + $0x468] sm:$0xff]
                  %2173 = vst [vmem:[%s2129 + $0x148] sm:$0xff] %v2172
                  %v2174 = vld [vmem:[%s2128 + $0x4d0] sm:$0xff]
                  %2175 = vst [vmem:[%s2129 + $0x160] sm:$0xff] %v2174
                  %v2176 = vld [vmem:[%s2128 + $0x4d8] sm:$0xff]
                  %2177 = vst [vmem:[%s2129 + $0x168] sm:$0xff] %v2176
                  %v2178 = vld [vmem:[%s2128 + $0x540] sm:$0xff]
                  %2179 = vst [vmem:[%s2129 + $0x180] sm:$0xff] %v2178
                  %v2180 = vld [vmem:[%s2128 + $0x548] sm:$0xff]
                  %2181 = vst [vmem:[%s2129 + $0x188] sm:$0xff] %v2180
                  %v2182 = vld [vmem:[%s2128 + $0x5b0] sm:$0xff]
                  %2183 = vst [vmem:[%s2129 + $0x1a0] sm:$0xff] %v2182
                  %v2184 = vld [vmem:[%s2128 + $0x5b8] sm:$0xff]
                  %2185 = vst [vmem:[%s2129 + $0x1a8] sm:$0xff] %v2184
                  %v2186 = vld [vmem:[%s2128 + $0x620] sm:$0xff]
                  %2187 = vst [vmem:[%s2129 + $0x1c0] sm:$0xff] %v2186
                  %v2188 = vld [vmem:[%s2128 + $0x628] sm:$0xff]
                  %2189 = vst [vmem:[%s2129 + $0x1c8] sm:$0xff] %v2188
                  %v2190 = vld [vmem:[%s2128 + $0x690] sm:$0xff]
                  %2191 = vst [vmem:[%s2129 + $0x1e0] sm:$0xff] %v2190
                  %v2192 = vld [vmem:[%s2128 + $0x698] sm:$0xff]
                  %2193 = vst [vmem:[%s2129 + $0x1e8] sm:$0xff] %v2192
                  %v2194 = vld [vmem:[%s2128 + $0x700] sm:$0xff]
                  %2195 = vst [vmem:[%s2129 + $0x200] sm:$0xff] %v2194
                  %v2196 = vld [vmem:[%s2128 + $0x708] sm:$0xff]
                  %2197 = vst [vmem:[%s2129 + $0x208] sm:$0xff] %v2196
                  %v2198 = vld [vmem:[%s2128 + $0x770] sm:$0xff]
                  %2199 = vst [vmem:[%s2129 + $0x220] sm:$0xff] %v2198
                  %v2200 = vld [vmem:[%s2128 + $0x778] sm:$0xff]
                  %2201 = vst [vmem:[%s2129 + $0x228] sm:$0xff] %v2200
                  %v2202 = vld [vmem:[%s2128 + $0x7e0] sm:$0xff]
                  %2203 = vst [vmem:[%s2129 + $0x240] sm:$0xff] %v2202
                  %v2204 = vld [vmem:[%s2128 + $0x7e8] sm:$0xff]
                  %2205 = vst [vmem:[%s2129 + $0x248] sm:$0xff] %v2204
                  %v2206 = vld [vmem:[%s2128 + $0x850] sm:$0xff]
                  %2207 = vst [vmem:[%s2129 + $0x260] sm:$0xff] %v2206
                  %v2208 = vld [vmem:[%s2128 + $0x858] sm:$0xff]
                  %2209 = vst [vmem:[%s2129 + $0x268] sm:$0xff] %v2208
                  %v2210 = vld [vmem:[%s2128 + $0x8c0] sm:$0xff]
                  %2211 = vst [vmem:[%s2129 + $0x280] sm:$0xff] %v2210
                  %v2212 = vld [vmem:[%s2128 + $0x8c8] sm:$0xff]
                  %2213 = vst [vmem:[%s2129 + $0x288] sm:$0xff] %v2212
                  %v2214 = vld [vmem:[%s2128 + $0x930] sm:$0xff]
                  %2215 = vst [vmem:[%s2129 + $0x2a0] sm:$0xff] %v2214
                  %v2216 = vld [vmem:[%s2128 + $0x938] sm:$0xff]
                  %2217 = vst [vmem:[%s2129 + $0x2a8] sm:$0xff] %v2216
                  %v2218 = vld [vmem:[%s2128 + $0x9a0] sm:$0xff]
                  %2219 = vst [vmem:[%s2129 + $0x2c0] sm:$0xff] %v2218
                  %v2220 = vld [vmem:[%s2128 + $0x9a8] sm:$0xff]
                  %2221 = vst [vmem:[%s2129 + $0x2c8] sm:$0xff] %v2220
                  %v2222 = vld [vmem:[%s2128 + $0xa10] sm:$0xff]
                  %2223 = vst [vmem:[%s2129 + $0x2e0] sm:$0xff] %v2222
                  %v2224 = vld [vmem:[%s2128 + $0xa18] sm:$0xff]
                  %2225 = vst [vmem:[%s2129 + $0x2e8] sm:$0xff] %v2224
                  %v2226 = vld [vmem:[%s2128 + $0xa80] sm:$0xff]
                  %2227 = vst [vmem:[%s2129 + $0x300] sm:$0xff] %v2226
                  %v2228 = vld [vmem:[%s2128 + $0xa88] sm:$0xff]
                  %2229 = vst [vmem:[%s2129 + $0x308] sm:$0xff] %v2228
                  %v2230 = vld [vmem:[%s2128 + $0xaf0] sm:$0xff]
                  %2231 = vst [vmem:[%s2129 + $0x320] sm:$0xff] %v2230
                  %v2232 = vld [vmem:[%s2128 + $0xaf8] sm:$0xff]
                  %2233 = vst [vmem:[%s2129 + $0x328] sm:$0xff] %v2232
                  %v2234 = vld [vmem:[%s2128 + $0xb60] sm:$0xff]
                  %2235 = vst [vmem:[%s2129 + $0x340] sm:$0xff] %v2234
                  %v2236 = vld [vmem:[%s2128 + $0xb68] sm:$0xff]
                  %2237 = vst [vmem:[%s2129 + $0x348] sm:$0xff] %v2236
                  %v2238 = vld [vmem:[%s2128 + $0xbd0] sm:$0xff]
                  %2239 = vst [vmem:[%s2129 + $0x360] sm:$0xff] %v2238
                  %v2240 = vld [vmem:[%s2128 + $0xbd8] sm:$0xff]
                  %2241 = vst [vmem:[%s2129 + $0x368] sm:$0xff] %v2240
                  %v2242 = vld [vmem:[%s2128 + $0xc40] sm:$0xff]
                  %2243 = vst [vmem:[%s2129 + $0x380] sm:$0xff] %v2242
                  %v2244 = vld [vmem:[%s2128 + $0xc48] sm:$0xff]
                  %2245 = vst [vmem:[%s2129 + $0x388] sm:$0xff] %v2244
                  %v2246 = vld [vmem:[%s2128 + $0xcb0] sm:$0xff]
                  %2247 = vst [vmem:[%s2129 + $0x3a0] sm:$0xff] %v2246
                  %v2248 = vld [vmem:[%s2128 + $0xcb8] sm:$0xff]
                  %2249 = vst [vmem:[%s2129 + $0x3a8] sm:$0xff] %v2248
                  %v2250 = vld [vmem:[%s2128 + $0xd20] sm:$0xff]
                  %2251 = vst [vmem:[%s2129 + $0x3c0] sm:$0xff] %v2250
                  %v2252 = vld [vmem:[%s2128 + $0xd28] sm:$0xff]
                  %2253 = vst [vmem:[%s2129 + $0x3c8] sm:$0xff] %v2252
                  %v2254 = vld [vmem:[%s2128 + $0xd90] sm:$0xff]
                  %2255 = vst [vmem:[%s2129 + $0x3e0] sm:$0xff] %v2254
                  %v2256 = vld [vmem:[%s2128 + $0xd98] sm:$0xff]
                  %2257 = vst [vmem:[%s2129 + $0x3e8] sm:$0xff] %v2256
                  %v2258 = vld [vmem:[%s2128 + $0xe00] sm:$0xff]
                  %2259 = vst [vmem:[%s2129 + $0x400] sm:$0xff] %v2258
                  %v2260 = vld [vmem:[%s2128 + $0xe08] sm:$0xff]
                  %2261 = vst [vmem:[%s2129 + $0x408] sm:$0xff] %v2260
                  %v2262 = vld [vmem:[%s2128 + $0xe70] sm:$0xff]
                  %2263 = vst [vmem:[%s2129 + $0x420] sm:$0xff] %v2262
                  %v2264 = vld [vmem:[%s2128 + $0xe78] sm:$0xff]
                  %2265 = vst [vmem:[%s2129 + $0x428] sm:$0xff] %v2264
                  %v2266 = vld [vmem:[%s2128 + $0xee0] sm:$0xff]
                  %2267 = vst [vmem:[%s2129 + $0x440] sm:$0xff] %v2266
                  %v2268 = vld [vmem:[%s2128 + $0xee8] sm:$0xff]
                  %2269 = vst [vmem:[%s2129 + $0x448] sm:$0xff] %v2268
                  %v2270 = vld [vmem:[%s2128 + $0xf50] sm:$0xff]
                  %2271 = vst [vmem:[%s2129 + $0x460] sm:$0xff] %v2270
                  %v2272 = vld [vmem:[%s2128 + $0xf58] sm:$0xff]
                  %2273 = vst [vmem:[%s2129 + $0x468] sm:$0xff] %v2272
                  %v2274 = vld [vmem:[%s2128 + $0xfc0] sm:$0xff]
                  %2275 = vst [vmem:[%s2129 + $0x480] sm:$0xff] %v2274
                  %v2276 = vld [vmem:[%s2128 + $0xfc8] sm:$0xff]
                  %2277 = vst [vmem:[%s2129 + $0x488] sm:$0xff] %v2276
                  %v2278 = vld [vmem:[%s2128 + $0x1030] sm:$0xff]
                  %2279 = vst [vmem:[%s2129 + $0x4a0] sm:$0xff] %v2278
                  %v2280 = vld [vmem:[%s2128 + $0x1038] sm:$0xff]
                  %2281 = vst [vmem:[%s2129 + $0x4a8] sm:$0xff] %v2280
                  %v2282 = vld [vmem:[%s2128 + $0x10a0] sm:$0xff]
                  %2283 = vst [vmem:[%s2129 + $0x4c0] sm:$0xff] %v2282
                  %v2284 = vld [vmem:[%s2128 + $0x10a8] sm:$0xff]
                  %2285 = vst [vmem:[%s2129 + $0x4c8] sm:$0xff] %v2284
                  %v2286 = vld [vmem:[%s2128 + $0x1110] sm:$0xff]
                  %2287 = vst [vmem:[%s2129 + $0x4e0] sm:$0xff] %v2286
                  %v2288 = vld [vmem:[%s2128 + $0x1118] sm:$0xff]
                  %2289 = vst [vmem:[%s2129 + $0x4e8] sm:$0xff] %v2288
                  %v2290 = vld [vmem:[%s2128 + $0x1180] sm:$0xff]
                  %2291 = vst [vmem:[%s2129 + $0x500] sm:$0xff] %v2290
                  %v2292 = vld [vmem:[%s2128 + $0x1188] sm:$0xff]
                  %2293 = vst [vmem:[%s2129 + $0x508] sm:$0xff] %v2292
                  %v2294 = vld [vmem:[%s2128 + $0x11f0] sm:$0xff]
                  %2295 = vst [vmem:[%s2129 + $0x520] sm:$0xff] %v2294
                  %v2296 = vld [vmem:[%s2128 + $0x11f8] sm:$0xff]
                  %2297 = vst [vmem:[%s2129 + $0x528] sm:$0xff] %v2296
                  %v2298 = vld [vmem:[%s2128 + $0x1260] sm:$0xff]
                  %2299 = vst [vmem:[%s2129 + $0x540] sm:$0xff] %v2298
                  %v2300 = vld [vmem:[%s2128 + $0x1268] sm:$0xff]
                  %2301 = vst [vmem:[%s2129 + $0x548] sm:$0xff] %v2300
                  %v2302 = vld [vmem:[%s2128 + $0x12d0] sm:$0xff]
                  %2303 = vst [vmem:[%s2129 + $0x560] sm:$0xff] %v2302
                  %v2304 = vld [vmem:[%s2128 + $0x12d8] sm:$0xff]
                  %2305 = vst [vmem:[%s2129 + $0x568] sm:$0xff] %v2304
                  %v2306 = vld [vmem:[%s2128 + $0x1340] sm:$0xff]
                  %2307 = vst [vmem:[%s2129 + $0x580] sm:$0xff] %v2306
                  %v2308 = vld [vmem:[%s2128 + $0x1348] sm:$0xff]
                  %2309 = vst [vmem:[%s2129 + $0x588] sm:$0xff] %v2308
                  %v2310 = vld [vmem:[%s2128 + $0x13b0] sm:$0xff]
                  %2311 = vst [vmem:[%s2129 + $0x5a0] sm:$0xff] %v2310
                  %v2312 = vld [vmem:[%s2128 + $0x13b8] sm:$0xff]
                  %2313 = vst [vmem:[%s2129 + $0x5a8] sm:$0xff] %v2312
                  %s2314 = sadd.s32 1, %s2127
                  %p2315 = scmp.ge.s32.totalorder %s2314, %s2118
                  %s2316 = scalar_select %p2315, 0, %s2314
                  %s2317 = smul.u32 %s2316, 16
                  %s2318 = smul.u32 %s2316, 16
                  %s2319 = scalar_lea.vmem %s1999, %s2317
                  %s2320 = scalar_lea.vmem %s1991, %s2318 [#allocation4]
                $region188: #{forward.3} parent=182 // loop_footer
                  %s2124 = sadd.s32 %s2122, 1
                $region189: #{forward.3} parent=182 // loop_footer_branch
                  %2121 = sbr.rel target = $region185
                $region190: #{forward.3} parent=182 // loop_exit
                  _
                %s2321 = sshrl.u32 %s2117, 1
                %s2322 = sand.u32 %s2117, 1
                %s2323 = smul.u32 %s2321, 2
                %s2324 = smul.u32 128, %s2323
                %s2325 = sshra.s32 %s2324, 4
                %s2326 = scalar_lea.vmem %s1999, %s2325
                %s2327 = smul.u32 128, %s2323
                %s2328 = sshra.s32 %s2327, 4
                %s2329 = scalar_lea.vmem %s1991, %s2328 [#allocation4]
                // While loop
                $region191: #{forward.3} parent=182 // loop_pre_header
                  _
                $region192: #{forward.3} parent=182 // loop_header
                  %s2333 = sphi 0, %s2335
                  %p2334 = scmp.ge.s32.totalorder %s2333, %s2322
                  %s2338 = sphi 0, %s2435
                  %s2339 = sphi %s2326, %s2438
                  %s2340 = sphi %s2329, %s2439
                $region193: #{forward.3} parent=182 // loop_header_branch
                  %2337 = sbr.rel (%p2334) target = $region197
                $region194: #{forward.3} parent=182 // loop_body
                  %v2341 = vld [vmem:[%s2339] sm:$0xff]
                  %2342 = vst [vmem:[%s2340] sm:$0xff] %v2341
                  %v2343 = vld [vmem:[%s2339 + $0x70] sm:$0xff]
                  %2344 = vst [vmem:[%s2340 + $0x20] sm:$0xff] %v2343
                  %v2345 = vld [vmem:[%s2339 + $0xe0] sm:$0xff]
                  %2346 = vst [vmem:[%s2340 + $0x40] sm:$0xff] %v2345
                  %v2347 = vld [vmem:[%s2339 + $0x150] sm:$0xff]
                  %2348 = vst [vmem:[%s2340 + $0x60] sm:$0xff] %v2347
                  %v2349 = vld [vmem:[%s2339 + $0x1c0] sm:$0xff]
                  %2350 = vst [vmem:[%s2340 + $0x80] sm:$0xff] %v2349
                  %v2351 = vld [vmem:[%s2339 + $0x230] sm:$0xff]
                  %2352 = vst [vmem:[%s2340 + $0xa0] sm:$0xff] %v2351
                  %v2353 = vld [vmem:[%s2339 + $0x2a0] sm:$0xff]
                  %2354 = vst [vmem:[%s2340 + $0xc0] sm:$0xff] %v2353
                  %v2355 = vld [vmem:[%s2339 + $0x310] sm:$0xff]
                  %2356 = vst [vmem:[%s2340 + $0xe0] sm:$0xff] %v2355
                  %v2357 = vld [vmem:[%s2339 + $0x380] sm:$0xff]
                  %2358 = vst [vmem:[%s2340 + $0x100] sm:$0xff] %v2357
                  %v2359 = vld [vmem:[%s2339 + $0x3f0] sm:$0xff]
                  %2360 = vst [vmem:[%s2340 + $0x120] sm:$0xff] %v2359
                  %v2361 = vld [vmem:[%s2339 + $0x460] sm:$0xff]
                  %2362 = vst [vmem:[%s2340 + $0x140] sm:$0xff] %v2361
                  %v2363 = vld [vmem:[%s2339 + $0x4d0] sm:$0xff]
                  %2364 = vst [vmem:[%s2340 + $0x160] sm:$0xff] %v2363
                  %v2365 = vld [vmem:[%s2339 + $0x540] sm:$0xff]
                  %2366 = vst [vmem:[%s2340 + $0x180] sm:$0xff] %v2365
                  %v2367 = vld [vmem:[%s2339 + $0x5b0] sm:$0xff]
                  %2368 = vst [vmem:[%s2340 + $0x1a0] sm:$0xff] %v2367
                  %v2369 = vld [vmem:[%s2339 + $0x620] sm:$0xff]
                  %2370 = vst [vmem:[%s2340 + $0x1c0] sm:$0xff] %v2369
                  %v2371 = vld [vmem:[%s2339 + $0x690] sm:$0xff]
                  %2372 = vst [vmem:[%s2340 + $0x1e0] sm:$0xff] %v2371
                  %v2373 = vld [vmem:[%s2339 + $0x700] sm:$0xff]
                  %2374 = vst [vmem:[%s2340 + $0x200] sm:$0xff] %v2373
                  %v2375 = vld [vmem:[%s2339 + $0x770] sm:$0xff]
                  %2376 = vst [vmem:[%s2340 + $0x220] sm:$0xff] %v2375
                  %v2377 = vld [vmem:[%s2339 + $0x7e0] sm:$0xff]
                  %2378 = vst [vmem:[%s2340 + $0x240] sm:$0xff] %v2377
                  %v2379 = vld [vmem:[%s2339 + $0x850] sm:$0xff]
                  %2380 = vst [vmem:[%s2340 + $0x260] sm:$0xff] %v2379
                  %v2381 = vld [vmem:[%s2339 + $0x8c0] sm:$0xff]
                  %2382 = vst [vmem:[%s2340 + $0x280] sm:$0xff] %v2381
                  %v2383 = vld [vmem:[%s2339 + $0x930] sm:$0xff]
                  %2384 = vst [vmem:[%s2340 + $0x2a0] sm:$0xff] %v2383
                  %v2385 = vld [vmem:[%s2339 + $0x9a0] sm:$0xff]
                  %2386 = vst [vmem:[%s2340 + $0x2c0] sm:$0xff] %v2385
                  %v2387 = vld [vmem:[%s2339 + $0xa10] sm:$0xff]
                  %2388 = vst [vmem:[%s2340 + $0x2e0] sm:$0xff] %v2387
                  %v2389 = vld [vmem:[%s2339 + $0xa80] sm:$0xff]
                  %2390 = vst [vmem:[%s2340 + $0x300] sm:$0xff] %v2389
                  %v2391 = vld [vmem:[%s2339 + $0xaf0] sm:$0xff]
                  %2392 = vst [vmem:[%s2340 + $0x320] sm:$0xff] %v2391
                  %v2393 = vld [vmem:[%s2339 + $0xb60] sm:$0xff]
                  %2394 = vst [vmem:[%s2340 + $0x340] sm:$0xff] %v2393
                  %v2395 = vld [vmem:[%s2339 + $0xbd0] sm:$0xff]
                  %2396 = vst [vmem:[%s2340 + $0x360] sm:$0xff] %v2395
                  %v2397 = vld [vmem:[%s2339 + $0xc40] sm:$0xff]
                  %2398 = vst [vmem:[%s2340 + $0x380] sm:$0xff] %v2397
                  %v2399 = vld [vmem:[%s2339 + $0xcb0] sm:$0xff]
                  %2400 = vst [vmem:[%s2340 + $0x3a0] sm:$0xff] %v2399
                  %v2401 = vld [vmem:[%s2339 + $0xd20] sm:$0xff]
                  %2402 = vst [vmem:[%s2340 + $0x3c0] sm:$0xff] %v2401
                  %v2403 = vld [vmem:[%s2339 + $0xd90] sm:$0xff]
                  %2404 = vst [vmem:[%s2340 + $0x3e0] sm:$0xff] %v2403
                  %v2405 = vld [vmem:[%s2339 + $0xe00] sm:$0xff]
                  %2406 = vst [vmem:[%s2340 + $0x400] sm:$0xff] %v2405
                  %v2407 = vld [vmem:[%s2339 + $0xe70] sm:$0xff]
                  %2408 = vst [vmem:[%s2340 + $0x420] sm:$0xff] %v2407
                  %v2409 = vld [vmem:[%s2339 + $0xee0] sm:$0xff]
                  %2410 = vst [vmem:[%s2340 + $0x440] sm:$0xff] %v2409
                  %v2411 = vld [vmem:[%s2339 + $0xf50] sm:$0xff]
                  %2412 = vst [vmem:[%s2340 + $0x460] sm:$0xff] %v2411
                  %v2413 = vld [vmem:[%s2339 + $0xfc0] sm:$0xff]
                  %2414 = vst [vmem:[%s2340 + $0x480] sm:$0xff] %v2413
                  %v2415 = vld [vmem:[%s2339 + $0x1030] sm:$0xff]
                  %2416 = vst [vmem:[%s2340 + $0x4a0] sm:$0xff] %v2415
                  %v2417 = vld [vmem:[%s2339 + $0x10a0] sm:$0xff]
                  %2418 = vst [vmem:[%s2340 + $0x4c0] sm:$0xff] %v2417
                  %v2419 = vld [vmem:[%s2339 + $0x1110] sm:$0xff]
                  %2420 = vst [vmem:[%s2340 + $0x4e0] sm:$0xff] %v2419
                  %v2421 = vld [vmem:[%s2339 + $0x1180] sm:$0xff]
                  %2422 = vst [vmem:[%s2340 + $0x500] sm:$0xff] %v2421
                  %v2423 = vld [vmem:[%s2339 + $0x11f0] sm:$0xff]
                  %2424 = vst [vmem:[%s2340 + $0x520] sm:$0xff] %v2423
                  %v2425 = vld [vmem:[%s2339 + $0x1260] sm:$0xff]
                  %2426 = vst [vmem:[%s2340 + $0x540] sm:$0xff] %v2425
                  %v2427 = vld [vmem:[%s2339 + $0x12d0] sm:$0xff]
                  %2428 = vst [vmem:[%s2340 + $0x560] sm:$0xff] %v2427
                  %v2429 = vld [vmem:[%s2339 + $0x1340] sm:$0xff]
                  %2430 = vst [vmem:[%s2340 + $0x580] sm:$0xff] %v2429
                  %v2431 = vld [vmem:[%s2339 + $0x13b0] sm:$0xff]
                  %2432 = vst [vmem:[%s2340 + $0x5a0] sm:$0xff] %v2431
                  %s2433 = sadd.s32 1, %s2338
                  %p2434 = scmp.ge.s32.totalorder %s2433, %s2322
                  %s2435 = scalar_select %p2434, 0, %s2433
                  %s2436 = smul.u32 %s2435, 8
                  %s2437 = smul.u32 %s2435, 8
                  %s2438 = scalar_lea.vmem %s2326, %s2436
                  %s2439 = scalar_lea.vmem %s2329, %s2437 [#allocation4]
                $region195: #{forward.3} parent=182 // loop_footer
                  %s2335 = sadd.s32 %s2333, 1
                $region196: #{forward.3} parent=182 // loop_footer_branch
                  %2332 = sbr.rel target = $region192
                $region197: #{forward.3} parent=182 // loop_exit
                  _
              $region183: #{forward.3} parent=167 // pred_fallthru
                _
              %p2440 = pneg %p2113
              // Predicated region
              $region198: #{forward.3} parent=167 // pred_check
                _
              $region199: #{forward.3} parent=167 // pred_check_branch
                %2442 = sbr.rel (%p2113) target = $region201
              $region200: #{forward.3} parent=167 // pred_region
                %s2443 = sand.u32 %s2000, 7
                %s2444 = ssub.s32 %s2000, %s2443
                %s2445 = scalar_lea.vmem %s1999, %s2444
                %s2446 = ssub.s32 %s2000, %s2443
                %s2447 = scalar_lea.vmem %s1991, %s2446 [#allocation4]
                %s2448 = sshrl.u32 %s2000, 3
                %s2449 = sshrl.u32 %s2448, 1
                // While loop
                $region202: #{forward.3} parent=200 // loop_pre_header
                  _
                $region203: #{forward.3} parent=200 // loop_header
                  %s2453 = sphi 0, %s2455
                  %p2454 = scmp.ge.s32.totalorder %s2453, %s2449
                  %s2458 = sphi 0, %s2647
                  %s2459 = sphi %s1999, %s2650
                  %s2460 = sphi %s1991, %s2651
                $region204: #{forward.3} parent=200 // loop_header_branch
                  %2457 = sbr.rel (%p2454) target = $region208
                $region205: #{forward.3} parent=200 // loop_body
                  %v2461 = vld [vmem:[%s2459] sm:$0xff]
                  %2462 = vst [vmem:[%s2460] sm:$0xff] %v2461
                  %v2463 = vld [vmem:[%s2459 + $0x8] sm:$0xff]
                  %2464 = vst [vmem:[%s2460 + $0x8] sm:$0xff] %v2463
                  %v2465 = vld [vmem:[%s2459 + $0x70] sm:$0xff]
                  %2466 = vst [vmem:[%s2460 + $0x20] sm:$0xff] %v2465
                  %v2467 = vld [vmem:[%s2459 + $0x78] sm:$0xff]
                  %2468 = vst [vmem:[%s2460 + $0x28] sm:$0xff] %v2467
                  %v2469 = vld [vmem:[%s2459 + $0xe0] sm:$0xff]
                  %2470 = vst [vmem:[%s2460 + $0x40] sm:$0xff] %v2469
                  %v2471 = vld [vmem:[%s2459 + $0xe8] sm:$0xff]
                  %2472 = vst [vmem:[%s2460 + $0x48] sm:$0xff] %v2471
                  %v2473 = vld [vmem:[%s2459 + $0x150] sm:$0xff]
                  %2474 = vst [vmem:[%s2460 + $0x60] sm:$0xff] %v2473
                  %v2475 = vld [vmem:[%s2459 + $0x158] sm:$0xff]
                  %2476 = vst [vmem:[%s2460 + $0x68] sm:$0xff] %v2475
                  %v2477 = vld [vmem:[%s2459 + $0x1c0] sm:$0xff]
                  %2478 = vst [vmem:[%s2460 + $0x80] sm:$0xff] %v2477
                  %v2479 = vld [vmem:[%s2459 + $0x1c8] sm:$0xff]
                  %2480 = vst [vmem:[%s2460 + $0x88] sm:$0xff] %v2479
                  %v2481 = vld [vmem:[%s2459 + $0x230] sm:$0xff]
                  %2482 = vst [vmem:[%s2460 + $0xa0] sm:$0xff] %v2481
                  %v2483 = vld [vmem:[%s2459 + $0x238] sm:$0xff]
                  %2484 = vst [vmem:[%s2460 + $0xa8] sm:$0xff] %v2483
                  %v2485 = vld [vmem:[%s2459 + $0x2a0] sm:$0xff]
                  %2486 = vst [vmem:[%s2460 + $0xc0] sm:$0xff] %v2485
                  %v2487 = vld [vmem:[%s2459 + $0x2a8] sm:$0xff]
                  %2488 = vst [vmem:[%s2460 + $0xc8] sm:$0xff] %v2487
                  %v2489 = vld [vmem:[%s2459 + $0x310] sm:$0xff]
                  %2490 = vst [vmem:[%s2460 + $0xe0] sm:$0xff] %v2489
                  %v2491 = vld [vmem:[%s2459 + $0x318] sm:$0xff]
                  %2492 = vst [vmem:[%s2460 + $0xe8] sm:$0xff] %v2491
                  %v2493 = vld [vmem:[%s2459 + $0x380] sm:$0xff]
                  %2494 = vst [vmem:[%s2460 + $0x100] sm:$0xff] %v2493
                  %v2495 = vld [vmem:[%s2459 + $0x388] sm:$0xff]
                  %2496 = vst [vmem:[%s2460 + $0x108] sm:$0xff] %v2495
                  %v2497 = vld [vmem:[%s2459 + $0x3f0] sm:$0xff]
                  %2498 = vst [vmem:[%s2460 + $0x120] sm:$0xff] %v2497
                  %v2499 = vld [vmem:[%s2459 + $0x3f8] sm:$0xff]
                  %2500 = vst [vmem:[%s2460 + $0x128] sm:$0xff] %v2499
                  %v2501 = vld [vmem:[%s2459 + $0x460] sm:$0xff]
                  %2502 = vst [vmem:[%s2460 + $0x140] sm:$0xff] %v2501
                  %v2503 = vld [vmem:[%s2459 + $0x468] sm:$0xff]
                  %2504 = vst [vmem:[%s2460 + $0x148] sm:$0xff] %v2503
                  %v2505 = vld [vmem:[%s2459 + $0x4d0] sm:$0xff]
                  %2506 = vst [vmem:[%s2460 + $0x160] sm:$0xff] %v2505
                  %v2507 = vld [vmem:[%s2459 + $0x4d8] sm:$0xff]
                  %2508 = vst [vmem:[%s2460 + $0x168] sm:$0xff] %v2507
                  %v2509 = vld [vmem:[%s2459 + $0x540] sm:$0xff]
                  %2510 = vst [vmem:[%s2460 + $0x180] sm:$0xff] %v2509
                  %v2511 = vld [vmem:[%s2459 + $0x548] sm:$0xff]
                  %2512 = vst [vmem:[%s2460 + $0x188] sm:$0xff] %v2511
                  %v2513 = vld [vmem:[%s2459 + $0x5b0] sm:$0xff]
                  %2514 = vst [vmem:[%s2460 + $0x1a0] sm:$0xff] %v2513
                  %v2515 = vld [vmem:[%s2459 + $0x5b8] sm:$0xff]
                  %2516 = vst [vmem:[%s2460 + $0x1a8] sm:$0xff] %v2515
                  %v2517 = vld [vmem:[%s2459 + $0x620] sm:$0xff]
                  %2518 = vst [vmem:[%s2460 + $0x1c0] sm:$0xff] %v2517
                  %v2519 = vld [vmem:[%s2459 + $0x628] sm:$0xff]
                  %2520 = vst [vmem:[%s2460 + $0x1c8] sm:$0xff] %v2519
                  %v2521 = vld [vmem:[%s2459 + $0x690] sm:$0xff]
                  %2522 = vst [vmem:[%s2460 + $0x1e0] sm:$0xff] %v2521
                  %v2523 = vld [vmem:[%s2459 + $0x698] sm:$0xff]
                  %2524 = vst [vmem:[%s2460 + $0x1e8] sm:$0xff] %v2523
                  %v2525 = vld [vmem:[%s2459 + $0x700] sm:$0xff]
                  %2526 = vst [vmem:[%s2460 + $0x200] sm:$0xff] %v2525
                  %v2527 = vld [vmem:[%s2459 + $0x708] sm:$0xff]
                  %2528 = vst [vmem:[%s2460 + $0x208] sm:$0xff] %v2527
                  %v2529 = vld [vmem:[%s2459 + $0x770] sm:$0xff]
                  %2530 = vst [vmem:[%s2460 + $0x220] sm:$0xff] %v2529
                  %v2531 = vld [vmem:[%s2459 + $0x778] sm:$0xff]
                  %2532 = vst [vmem:[%s2460 + $0x228] sm:$0xff] %v2531
                  %v2533 = vld [vmem:[%s2459 + $0x7e0] sm:$0xff]
                  %2534 = vst [vmem:[%s2460 + $0x240] sm:$0xff] %v2533
                  %v2535 = vld [vmem:[%s2459 + $0x7e8] sm:$0xff]
                  %2536 = vst [vmem:[%s2460 + $0x248] sm:$0xff] %v2535
                  %v2537 = vld [vmem:[%s2459 + $0x850] sm:$0xff]
                  %2538 = vst [vmem:[%s2460 + $0x260] sm:$0xff] %v2537
                  %v2539 = vld [vmem:[%s2459 + $0x858] sm:$0xff]
                  %2540 = vst [vmem:[%s2460 + $0x268] sm:$0xff] %v2539
                  %v2541 = vld [vmem:[%s2459 + $0x8c0] sm:$0xff]
                  %2542 = vst [vmem:[%s2460 + $0x280] sm:$0xff] %v2541
                  %v2543 = vld [vmem:[%s2459 + $0x8c8] sm:$0xff]
                  %2544 = vst [vmem:[%s2460 + $0x288] sm:$0xff] %v2543
                  %v2545 = vld [vmem:[%s2459 + $0x930] sm:$0xff]
                  %2546 = vst [vmem:[%s2460 + $0x2a0] sm:$0xff] %v2545
                  %v2547 = vld [vmem:[%s2459 + $0x938] sm:$0xff]
                  %2548 = vst [vmem:[%s2460 + $0x2a8] sm:$0xff] %v2547
                  %v2549 = vld [vmem:[%s2459 + $0x9a0] sm:$0xff]
                  %2550 = vst [vmem:[%s2460 + $0x2c0] sm:$0xff] %v2549
                  %v2551 = vld [vmem:[%s2459 + $0x9a8] sm:$0xff]
                  %2552 = vst [vmem:[%s2460 + $0x2c8] sm:$0xff] %v2551
                  %v2553 = vld [vmem:[%s2459 + $0xa10] sm:$0xff]
                  %2554 = vst [vmem:[%s2460 + $0x2e0] sm:$0xff] %v2553
                  %v2555 = vld [vmem:[%s2459 + $0xa18] sm:$0xff]
                  %2556 = vst [vmem:[%s2460 + $0x2e8] sm:$0xff] %v2555
                  %v2557 = vld [vmem:[%s2459 + $0xa80] sm:$0xff]
                  %2558 = vst [vmem:[%s2460 + $0x300] sm:$0xff] %v2557
                  %v2559 = vld [vmem:[%s2459 + $0xa88] sm:$0xff]
                  %2560 = vst [vmem:[%s2460 + $0x308] sm:$0xff] %v2559
                  %v2561 = vld [vmem:[%s2459 + $0xaf0] sm:$0xff]
                  %2562 = vst [vmem:[%s2460 + $0x320] sm:$0xff] %v2561
                  %v2563 = vld [vmem:[%s2459 + $0xaf8] sm:$0xff]
                  %2564 = vst [vmem:[%s2460 + $0x328] sm:$0xff] %v2563
                  %v2565 = vld [vmem:[%s2459 + $0xb60] sm:$0xff]
                  %2566 = vst [vmem:[%s2460 + $0x340] sm:$0xff] %v2565
                  %v2567 = vld [vmem:[%s2459 + $0xb68] sm:$0xff]
                  %2568 = vst [vmem:[%s2460 + $0x348] sm:$0xff] %v2567
                  %v2569 = vld [vmem:[%s2459 + $0xbd0] sm:$0xff]
                  %2570 = vst [vmem:[%s2460 + $0x360] sm:$0xff] %v2569
                  %v2571 = vld [vmem:[%s2459 + $0xbd8] sm:$0xff]
                  %2572 = vst [vmem:[%s2460 + $0x368] sm:$0xff] %v2571
                  %v2573 = vld [vmem:[%s2459 + $0xc40] sm:$0xff]
                  %2574 = vst [vmem:[%s2460 + $0x380] sm:$0xff] %v2573
                  %v2575 = vld [vmem:[%s2459 + $0xc48] sm:$0xff]
                  %2576 = vst [vmem:[%s2460 + $0x388] sm:$0xff] %v2575
                  %v2577 = vld [vmem:[%s2459 + $0xcb0] sm:$0xff]
                  %2578 = vst [vmem:[%s2460 + $0x3a0] sm:$0xff] %v2577
                  %v2579 = vld [vmem:[%s2459 + $0xcb8] sm:$0xff]
                  %2580 = vst [vmem:[%s2460 + $0x3a8] sm:$0xff] %v2579
                  %v2581 = vld [vmem:[%s2459 + $0xd20] sm:$0xff]
                  %2582 = vst [vmem:[%s2460 + $0x3c0] sm:$0xff] %v2581
                  %v2583 = vld [vmem:[%s2459 + $0xd28] sm:$0xff]
                  %2584 = vst [vmem:[%s2460 + $0x3c8] sm:$0xff] %v2583
                  %v2585 = vld [vmem:[%s2459 + $0xd90] sm:$0xff]
                  %2586 = vst [vmem:[%s2460 + $0x3e0] sm:$0xff] %v2585
                  %v2587 = vld [vmem:[%s2459 + $0xd98] sm:$0xff]
                  %2588 = vst [vmem:[%s2460 + $0x3e8] sm:$0xff] %v2587
                  %v2589 = vld [vmem:[%s2459 + $0xe00] sm:$0xff]
                  %2590 = vst [vmem:[%s2460 + $0x400] sm:$0xff] %v2589
                  %v2591 = vld [vmem:[%s2459 + $0xe08] sm:$0xff]
                  %2592 = vst [vmem:[%s2460 + $0x408] sm:$0xff] %v2591
                  %v2593 = vld [vmem:[%s2459 + $0xe70] sm:$0xff]
                  %2594 = vst [vmem:[%s2460 + $0x420] sm:$0xff] %v2593
                  %v2595 = vld [vmem:[%s2459 + $0xe78] sm:$0xff]
                  %2596 = vst [vmem:[%s2460 + $0x428] sm:$0xff] %v2595
                  %v2597 = vld [vmem:[%s2459 + $0xee0] sm:$0xff]
                  %2598 = vst [vmem:[%s2460 + $0x440] sm:$0xff] %v2597
                  %v2599 = vld [vmem:[%s2459 + $0xee8] sm:$0xff]
                  %2600 = vst [vmem:[%s2460 + $0x448] sm:$0xff] %v2599
                  %v2601 = vld [vmem:[%s2459 + $0xf50] sm:$0xff]
                  %2602 = vst [vmem:[%s2460 + $0x460] sm:$0xff] %v2601
                  %v2603 = vld [vmem:[%s2459 + $0xf58] sm:$0xff]
                  %2604 = vst [vmem:[%s2460 + $0x468] sm:$0xff] %v2603
                  %v2605 = vld [vmem:[%s2459 + $0xfc0] sm:$0xff]
                  %2606 = vst [vmem:[%s2460 + $0x480] sm:$0xff] %v2605
                  %v2607 = vld [vmem:[%s2459 + $0xfc8] sm:$0xff]
                  %2608 = vst [vmem:[%s2460 + $0x488] sm:$0xff] %v2607
                  %v2609 = vld [vmem:[%s2459 + $0x1030] sm:$0xff]
                  %2610 = vst [vmem:[%s2460 + $0x4a0] sm:$0xff] %v2609
                  %v2611 = vld [vmem:[%s2459 + $0x1038] sm:$0xff]
                  %2612 = vst [vmem:[%s2460 + $0x4a8] sm:$0xff] %v2611
                  %v2613 = vld [vmem:[%s2459 + $0x10a0] sm:$0xff]
                  %2614 = vst [vmem:[%s2460 + $0x4c0] sm:$0xff] %v2613
                  %v2615 = vld [vmem:[%s2459 + $0x10a8] sm:$0xff]
                  %2616 = vst [vmem:[%s2460 + $0x4c8] sm:$0xff] %v2615
                  %v2617 = vld [vmem:[%s2459 + $0x1110] sm:$0xff]
                  %2618 = vst [vmem:[%s2460 + $0x4e0] sm:$0xff] %v2617
                  %v2619 = vld [vmem:[%s2459 + $0x1118] sm:$0xff]
                  %2620 = vst [vmem:[%s2460 + $0x4e8] sm:$0xff] %v2619
                  %v2621 = vld [vmem:[%s2459 + $0x1180] sm:$0xff]
                  %2622 = vst [vmem:[%s2460 + $0x500] sm:$0xff] %v2621
                  %v2623 = vld [vmem:[%s2459 + $0x1188] sm:$0xff]
                  %2624 = vst [vmem:[%s2460 + $0x508] sm:$0xff] %v2623
                  %v2625 = vld [vmem:[%s2459 + $0x11f0] sm:$0xff]
                  %2626 = vst [vmem:[%s2460 + $0x520] sm:$0xff] %v2625
                  %v2627 = vld [vmem:[%s2459 + $0x11f8] sm:$0xff]
                  %2628 = vst [vmem:[%s2460 + $0x528] sm:$0xff] %v2627
                  %v2629 = vld [vmem:[%s2459 + $0x1260] sm:$0xff]
                  %2630 = vst [vmem:[%s2460 + $0x540] sm:$0xff] %v2629
                  %v2631 = vld [vmem:[%s2459 + $0x1268] sm:$0xff]
                  %2632 = vst [vmem:[%s2460 + $0x548] sm:$0xff] %v2631
                  %v2633 = vld [vmem:[%s2459 + $0x12d0] sm:$0xff]
                  %2634 = vst [vmem:[%s2460 + $0x560] sm:$0xff] %v2633
                  %v2635 = vld [vmem:[%s2459 + $0x12d8] sm:$0xff]
                  %2636 = vst [vmem:[%s2460 + $0x568] sm:$0xff] %v2635
                  %v2637 = vld [vmem:[%s2459 + $0x1340] sm:$0xff]
                  %2638 = vst [vmem:[%s2460 + $0x580] sm:$0xff] %v2637
                  %v2639 = vld [vmem:[%s2459 + $0x1348] sm:$0xff]
                  %2640 = vst [vmem:[%s2460 + $0x588] sm:$0xff] %v2639
                  %v2641 = vld [vmem:[%s2459 + $0x13b0] sm:$0xff]
                  %2642 = vst [vmem:[%s2460 + $0x5a0] sm:$0xff] %v2641
                  %v2643 = vld [vmem:[%s2459 + $0x13b8] sm:$0xff]
                  %2644 = vst [vmem:[%s2460 + $0x5a8] sm:$0xff] %v2643
                  %s2645 = sadd.s32 1, %s2458
                  %p2646 = scmp.ge.s32.totalorder %s2645, %s2449
                  %s2647 = scalar_select %p2646, 0, %s2645
                  %s2648 = smul.u32 %s2647, 16
                  %s2649 = smul.u32 %s2647, 16
                  %s2650 = scalar_lea.vmem %s1999, %s2648
                  %s2651 = scalar_lea.vmem %s1991, %s2649 [#allocation4]
                $region206: #{forward.3} parent=200 // loop_footer
                  %s2455 = sadd.s32 %s2453, 1
                $region207: #{forward.3} parent=200 // loop_footer_branch
                  %2452 = sbr.rel target = $region203
                $region208: #{forward.3} parent=200 // loop_exit
                  _
                %s2652 = sshrl.u32 %s2448, 1
                %s2653 = sand.u32 %s2448, 1
                %s2654 = smul.u32 %s2652, 2
                %s2655 = smul.u32 128, %s2654
                %s2656 = sshra.s32 %s2655, 4
                %s2657 = scalar_lea.vmem %s1999, %s2656
                %s2658 = smul.u32 128, %s2654
                %s2659 = sshra.s32 %s2658, 4
                %s2660 = scalar_lea.vmem %s1991, %s2659 [#allocation4]
                // While loop
                $region209: #{forward.3} parent=200 // loop_pre_header
                  _
                $region210: #{forward.3} parent=200 // loop_header
                  %s2664 = sphi 0, %s2666
                  %p2665 = scmp.ge.s32.totalorder %s2664, %s2653
                  %s2669 = sphi 0, %s2766
                  %s2670 = sphi %s2657, %s2769
                  %s2671 = sphi %s2660, %s2770
                $region211: #{forward.3} parent=200 // loop_header_branch
                  %2668 = sbr.rel (%p2665) target = $region215
                $region212: #{forward.3} parent=200 // loop_body
                  %v2672 = vld [vmem:[%s2670] sm:$0xff]
                  %2673 = vst [vmem:[%s2671] sm:$0xff] %v2672
                  %v2674 = vld [vmem:[%s2670 + $0x70] sm:$0xff]
                  %2675 = vst [vmem:[%s2671 + $0x20] sm:$0xff] %v2674
                  %v2676 = vld [vmem:[%s2670 + $0xe0] sm:$0xff]
                  %2677 = vst [vmem:[%s2671 + $0x40] sm:$0xff] %v2676
                  %v2678 = vld [vmem:[%s2670 + $0x150] sm:$0xff]
                  %2679 = vst [vmem:[%s2671 + $0x60] sm:$0xff] %v2678
                  %v2680 = vld [vmem:[%s2670 + $0x1c0] sm:$0xff]
                  %2681 = vst [vmem:[%s2671 + $0x80] sm:$0xff] %v2680
                  %v2682 = vld [vmem:[%s2670 + $0x230] sm:$0xff]
                  %2683 = vst [vmem:[%s2671 + $0xa0] sm:$0xff] %v2682
                  %v2684 = vld [vmem:[%s2670 + $0x2a0] sm:$0xff]
                  %2685 = vst [vmem:[%s2671 + $0xc0] sm:$0xff] %v2684
                  %v2686 = vld [vmem:[%s2670 + $0x310] sm:$0xff]
                  %2687 = vst [vmem:[%s2671 + $0xe0] sm:$0xff] %v2686
                  %v2688 = vld [vmem:[%s2670 + $0x380] sm:$0xff]
                  %2689 = vst [vmem:[%s2671 + $0x100] sm:$0xff] %v2688
                  %v2690 = vld [vmem:[%s2670 + $0x3f0] sm:$0xff]
                  %2691 = vst [vmem:[%s2671 + $0x120] sm:$0xff] %v2690
                  %v2692 = vld [vmem:[%s2670 + $0x460] sm:$0xff]
                  %2693 = vst [vmem:[%s2671 + $0x140] sm:$0xff] %v2692
                  %v2694 = vld [vmem:[%s2670 + $0x4d0] sm:$0xff]
                  %2695 = vst [vmem:[%s2671 + $0x160] sm:$0xff] %v2694
                  %v2696 = vld [vmem:[%s2670 + $0x540] sm:$0xff]
                  %2697 = vst [vmem:[%s2671 + $0x180] sm:$0xff] %v2696
                  %v2698 = vld [vmem:[%s2670 + $0x5b0] sm:$0xff]
                  %2699 = vst [vmem:[%s2671 + $0x1a0] sm:$0xff] %v2698
                  %v2700 = vld [vmem:[%s2670 + $0x620] sm:$0xff]
                  %2701 = vst [vmem:[%s2671 + $0x1c0] sm:$0xff] %v2700
                  %v2702 = vld [vmem:[%s2670 + $0x690] sm:$0xff]
                  %2703 = vst [vmem:[%s2671 + $0x1e0] sm:$0xff] %v2702
                  %v2704 = vld [vmem:[%s2670 + $0x700] sm:$0xff]
                  %2705 = vst [vmem:[%s2671 + $0x200] sm:$0xff] %v2704
                  %v2706 = vld [vmem:[%s2670 + $0x770] sm:$0xff]
                  %2707 = vst [vmem:[%s2671 + $0x220] sm:$0xff] %v2706
                  %v2708 = vld [vmem:[%s2670 + $0x7e0] sm:$0xff]
                  %2709 = vst [vmem:[%s2671 + $0x240] sm:$0xff] %v2708
                  %v2710 = vld [vmem:[%s2670 + $0x850] sm:$0xff]
                  %2711 = vst [vmem:[%s2671 + $0x260] sm:$0xff] %v2710
                  %v2712 = vld [vmem:[%s2670 + $0x8c0] sm:$0xff]
                  %2713 = vst [vmem:[%s2671 + $0x280] sm:$0xff] %v2712
                  %v2714 = vld [vmem:[%s2670 + $0x930] sm:$0xff]
                  %2715 = vst [vmem:[%s2671 + $0x2a0] sm:$0xff] %v2714
                  %v2716 = vld [vmem:[%s2670 + $0x9a0] sm:$0xff]
                  %2717 = vst [vmem:[%s2671 + $0x2c0] sm:$0xff] %v2716
                  %v2718 = vld [vmem:[%s2670 + $0xa10] sm:$0xff]
                  %2719 = vst [vmem:[%s2671 + $0x2e0] sm:$0xff] %v2718
                  %v2720 = vld [vmem:[%s2670 + $0xa80] sm:$0xff]
                  %2721 = vst [vmem:[%s2671 + $0x300] sm:$0xff] %v2720
                  %v2722 = vld [vmem:[%s2670 + $0xaf0] sm:$0xff]
                  %2723 = vst [vmem:[%s2671 + $0x320] sm:$0xff] %v2722
                  %v2724 = vld [vmem:[%s2670 + $0xb60] sm:$0xff]
                  %2725 = vst [vmem:[%s2671 + $0x340] sm:$0xff] %v2724
                  %v2726 = vld [vmem:[%s2670 + $0xbd0] sm:$0xff]
                  %2727 = vst [vmem:[%s2671 + $0x360] sm:$0xff] %v2726
                  %v2728 = vld [vmem:[%s2670 + $0xc40] sm:$0xff]
                  %2729 = vst [vmem:[%s2671 + $0x380] sm:$0xff] %v2728
                  %v2730 = vld [vmem:[%s2670 + $0xcb0] sm:$0xff]
                  %2731 = vst [vmem:[%s2671 + $0x3a0] sm:$0xff] %v2730
                  %v2732 = vld [vmem:[%s2670 + $0xd20] sm:$0xff]
                  %2733 = vst [vmem:[%s2671 + $0x3c0] sm:$0xff] %v2732
                  %v2734 = vld [vmem:[%s2670 + $0xd90] sm:$0xff]
                  %2735 = vst [vmem:[%s2671 + $0x3e0] sm:$0xff] %v2734
                  %v2736 = vld [vmem:[%s2670 + $0xe00] sm:$0xff]
                  %2737 = vst [vmem:[%s2671 + $0x400] sm:$0xff] %v2736
                  %v2738 = vld [vmem:[%s2670 + $0xe70] sm:$0xff]
                  %2739 = vst [vmem:[%s2671 + $0x420] sm:$0xff] %v2738
                  %v2740 = vld [vmem:[%s2670 + $0xee0] sm:$0xff]
                  %2741 = vst [vmem:[%s2671 + $0x440] sm:$0xff] %v2740
                  %v2742 = vld [vmem:[%s2670 + $0xf50] sm:$0xff]
                  %2743 = vst [vmem:[%s2671 + $0x460] sm:$0xff] %v2742
                  %v2744 = vld [vmem:[%s2670 + $0xfc0] sm:$0xff]
                  %2745 = vst [vmem:[%s2671 + $0x480] sm:$0xff] %v2744
                  %v2746 = vld [vmem:[%s2670 + $0x1030] sm:$0xff]
                  %2747 = vst [vmem:[%s2671 + $0x4a0] sm:$0xff] %v2746
                  %v2748 = vld [vmem:[%s2670 + $0x10a0] sm:$0xff]
                  %2749 = vst [vmem:[%s2671 + $0x4c0] sm:$0xff] %v2748
                  %v2750 = vld [vmem:[%s2670 + $0x1110] sm:$0xff]
                  %2751 = vst [vmem:[%s2671 + $0x4e0] sm:$0xff] %v2750
                  %v2752 = vld [vmem:[%s2670 + $0x1180] sm:$0xff]
                  %2753 = vst [vmem:[%s2671 + $0x500] sm:$0xff] %v2752
                  %v2754 = vld [vmem:[%s2670 + $0x11f0] sm:$0xff]
                  %2755 = vst [vmem:[%s2671 + $0x520] sm:$0xff] %v2754
                  %v2756 = vld [vmem:[%s2670 + $0x1260] sm:$0xff]
                  %2757 = vst [vmem:[%s2671 + $0x540] sm:$0xff] %v2756
                  %v2758 = vld [vmem:[%s2670 + $0x12d0] sm:$0xff]
                  %2759 = vst [vmem:[%s2671 + $0x560] sm:$0xff] %v2758
                  %v2760 = vld [vmem:[%s2670 + $0x1340] sm:$0xff]
                  %2761 = vst [vmem:[%s2671 + $0x580] sm:$0xff] %v2760
                  %v2762 = vld [vmem:[%s2670 + $0x13b0] sm:$0xff]
                  %2763 = vst [vmem:[%s2671 + $0x5a0] sm:$0xff] %v2762
                  %s2764 = sadd.s32 1, %s2669
                  %p2765 = scmp.ge.s32.totalorder %s2764, %s2653
                  %s2766 = scalar_select %p2765, 0, %s2764
                  %s2767 = smul.u32 %s2766, 8
                  %s2768 = smul.u32 %s2766, 8
                  %s2769 = scalar_lea.vmem %s2657, %s2767
                  %s2770 = scalar_lea.vmem %s2660, %s2768 [#allocation4]
                $region213: #{forward.3} parent=200 // loop_footer
                  %s2666 = sadd.s32 %s2664, 1
                $region214: #{forward.3} parent=200 // loop_footer_branch
                  %2663 = sbr.rel target = $region210
                $region215: #{forward.3} parent=200 // loop_exit
                  _
                %s2771 = sshllo.u32 0, %s2443
                loop: start=0, step=1, limit=1
                $region216: #{forward.3} parent=200 // loop_pre_header
                  _
                $region217: #{forward.3} parent=200 // loop_header
                  %s2773 = sphi 0, %s2777
                  %p2774 = scmp.ge.s32.totalorder %s2773, 1
                  %s2778 = sphi %s2445, %s2445
                  %s2779 = sphi %s2447, %s2447
                $region218: #{forward.3} parent=200 // loop_header_branch
                  %2776 = sbr.rel (%p2774) target = $region222
                $region219: #{forward.3} parent=200 // loop_body
                  %v2780 = vld [vmem:[%s2778] sm:%s2771]
                  %2781 = vst [vmem:[%s2779] sm:%s2771] %v2780
                  %v2782 = vld [vmem:[%s2778 + $0x70] sm:%s2771]
                  %2783 = vst [vmem:[%s2779 + $0x20] sm:%s2771] %v2782
                  %v2784 = vld [vmem:[%s2778 + $0xe0] sm:%s2771]
                  %2785 = vst [vmem:[%s2779 + $0x40] sm:%s2771] %v2784
                  %v2786 = vld [vmem:[%s2778 + $0x150] sm:%s2771]
                  %2787 = vst [vmem:[%s2779 + $0x60] sm:%s2771] %v2786
                  %v2788 = vld [vmem:[%s2778 + $0x1c0] sm:%s2771]
                  %2789 = vst [vmem:[%s2779 + $0x80] sm:%s2771] %v2788
                  %v2790 = vld [vmem:[%s2778 + $0x230] sm:%s2771]
                  %2791 = vst [vmem:[%s2779 + $0xa0] sm:%s2771] %v2790
                  %v2792 = vld [vmem:[%s2778 + $0x2a0] sm:%s2771]
                  %2793 = vst [vmem:[%s2779 + $0xc0] sm:%s2771] %v2792
                  %v2794 = vld [vmem:[%s2778 + $0x310] sm:%s2771]
                  %2795 = vst [vmem:[%s2779 + $0xe0] sm:%s2771] %v2794
                  %v2796 = vld [vmem:[%s2778 + $0x380] sm:%s2771]
                  %2797 = vst [vmem:[%s2779 + $0x100] sm:%s2771] %v2796
                  %v2798 = vld [vmem:[%s2778 + $0x3f0] sm:%s2771]
                  %2799 = vst [vmem:[%s2779 + $0x120] sm:%s2771] %v2798
                  %v2800 = vld [vmem:[%s2778 + $0x460] sm:%s2771]
                  %2801 = vst [vmem:[%s2779 + $0x140] sm:%s2771] %v2800
                  %v2802 = vld [vmem:[%s2778 + $0x4d0] sm:%s2771]
                  %2803 = vst [vmem:[%s2779 + $0x160] sm:%s2771] %v2802
                  %v2804 = vld [vmem:[%s2778 + $0x540] sm:%s2771]
                  %2805 = vst [vmem:[%s2779 + $0x180] sm:%s2771] %v2804
                  %v2806 = vld [vmem:[%s2778 + $0x5b0] sm:%s2771]
                  %2807 = vst [vmem:[%s2779 + $0x1a0] sm:%s2771] %v2806
                  %v2808 = vld [vmem:[%s2778 + $0x620] sm:%s2771]
                  %2809 = vst [vmem:[%s2779 + $0x1c0] sm:%s2771] %v2808
                  %v2810 = vld [vmem:[%s2778 + $0x690] sm:%s2771]
                  %2811 = vst [vmem:[%s2779 + $0x1e0] sm:%s2771] %v2810
                  %v2812 = vld [vmem:[%s2778 + $0x700] sm:%s2771]
                  %2813 = vst [vmem:[%s2779 + $0x200] sm:%s2771] %v2812
                  %v2814 = vld [vmem:[%s2778 + $0x770] sm:%s2771]
                  %2815 = vst [vmem:[%s2779 + $0x220] sm:%s2771] %v2814
                  %v2816 = vld [vmem:[%s2778 + $0x7e0] sm:%s2771]
                  %2817 = vst [vmem:[%s2779 + $0x240] sm:%s2771] %v2816
                  %v2818 = vld [vmem:[%s2778 + $0x850] sm:%s2771]
                  %2819 = vst [vmem:[%s2779 + $0x260] sm:%s2771] %v2818
                  %v2820 = vld [vmem:[%s2778 + $0x8c0] sm:%s2771]
                  %2821 = vst [vmem:[%s2779 + $0x280] sm:%s2771] %v2820
                  %v2822 = vld [vmem:[%s2778 + $0x930] sm:%s2771]
                  %2823 = vst [vmem:[%s2779 + $0x2a0] sm:%s2771] %v2822
                  %v2824 = vld [vmem:[%s2778 + $0x9a0] sm:%s2771]
                  %2825 = vst [vmem:[%s2779 + $0x2c0] sm:%s2771] %v2824
                  %v2826 = vld [vmem:[%s2778 + $0xa10] sm:%s2771]
                  %2827 = vst [vmem:[%s2779 + $0x2e0] sm:%s2771] %v2826
                  %v2828 = vld [vmem:[%s2778 + $0xa80] sm:%s2771]
                  %2829 = vst [vmem:[%s2779 + $0x300] sm:%s2771] %v2828
                  %v2830 = vld [vmem:[%s2778 + $0xaf0] sm:%s2771]
                  %2831 = vst [vmem:[%s2779 + $0x320] sm:%s2771] %v2830
                  %v2832 = vld [vmem:[%s2778 + $0xb60] sm:%s2771]
                  %2833 = vst [vmem:[%s2779 + $0x340] sm:%s2771] %v2832
                  %v2834 = vld [vmem:[%s2778 + $0xbd0] sm:%s2771]
                  %2835 = vst [vmem:[%s2779 + $0x360] sm:%s2771] %v2834
                  %v2836 = vld [vmem:[%s2778 + $0xc40] sm:%s2771]
                  %2837 = vst [vmem:[%s2779 + $0x380] sm:%s2771] %v2836
                  %v2838 = vld [vmem:[%s2778 + $0xcb0] sm:%s2771]
                  %2839 = vst [vmem:[%s2779 + $0x3a0] sm:%s2771] %v2838
                  %v2840 = vld [vmem:[%s2778 + $0xd20] sm:%s2771]
                  %2841 = vst [vmem:[%s2779 + $0x3c0] sm:%s2771] %v2840
                  %v2842 = vld [vmem:[%s2778 + $0xd90] sm:%s2771]
                  %2843 = vst [vmem:[%s2779 + $0x3e0] sm:%s2771] %v2842
                  %v2844 = vld [vmem:[%s2778 + $0xe00] sm:%s2771]
                  %2845 = vst [vmem:[%s2779 + $0x400] sm:%s2771] %v2844
                  %v2846 = vld [vmem:[%s2778 + $0xe70] sm:%s2771]
                  %2847 = vst [vmem:[%s2779 + $0x420] sm:%s2771] %v2846
                  %v2848 = vld [vmem:[%s2778 + $0xee0] sm:%s2771]
                  %2849 = vst [vmem:[%s2779 + $0x440] sm:%s2771] %v2848
                  %v2850 = vld [vmem:[%s2778 + $0xf50] sm:%s2771]
                  %2851 = vst [vmem:[%s2779 + $0x460] sm:%s2771] %v2850
                  %v2852 = vld [vmem:[%s2778 + $0xfc0] sm:%s2771]
                  %2853 = vst [vmem:[%s2779 + $0x480] sm:%s2771] %v2852
                  %v2854 = vld [vmem:[%s2778 + $0x1030] sm:%s2771]
                  %2855 = vst [vmem:[%s2779 + $0x4a0] sm:%s2771] %v2854
                  %v2856 = vld [vmem:[%s2778 + $0x10a0] sm:%s2771]
                  %2857 = vst [vmem:[%s2779 + $0x4c0] sm:%s2771] %v2856
                  %v2858 = vld [vmem:[%s2778 + $0x1110] sm:%s2771]
                  %2859 = vst [vmem:[%s2779 + $0x4e0] sm:%s2771] %v2858
                  %v2860 = vld [vmem:[%s2778 + $0x1180] sm:%s2771]
                  %2861 = vst [vmem:[%s2779 + $0x500] sm:%s2771] %v2860
                  %v2862 = vld [vmem:[%s2778 + $0x11f0] sm:%s2771]
                  %2863 = vst [vmem:[%s2779 + $0x520] sm:%s2771] %v2862
                  %v2864 = vld [vmem:[%s2778 + $0x1260] sm:%s2771]
                  %2865 = vst [vmem:[%s2779 + $0x540] sm:%s2771] %v2864
                  %v2866 = vld [vmem:[%s2778 + $0x12d0] sm:%s2771]
                  %2867 = vst [vmem:[%s2779 + $0x560] sm:%s2771] %v2866
                  %v2868 = vld [vmem:[%s2778 + $0x1340] sm:%s2771]
                  %2869 = vst [vmem:[%s2779 + $0x580] sm:%s2771] %v2868
                  %v2870 = vld [vmem:[%s2778 + $0x13b0] sm:%s2771]
                  %2871 = vst [vmem:[%s2779 + $0x5a0] sm:%s2771] %v2870
                $region220: #{forward.3} parent=200 // loop_footer
                  %s2777 = sadd.s32 1, %s2773
                $region221: #{forward.3} parent=200 // loop_footer_branch
                  %2772 = sbr.rel target = $region217
                $region222: #{forward.3} parent=200 // loop_exit
                  _
              $region201: #{forward.3} parent=167 // pred_fallthru
                _
            $region168: #{forward.3} parent=163 // pred_fallthru
              _
            // Predicated region
            $region169: #{forward.3} parent=163 // pred_check
              %p2008 = pneg %p2004
            $region170: #{forward.3} parent=163 // pred_check_branch
              %2010 = sbr.rel (%p2008) target = $region172
            $region171: #{forward.3} parent=163 // pred_region
              %s2011 = sshllo.u32 0, %s2000
              loop: start=0, step=1, limit=1
              $region173: #{forward.3} parent=171 // loop_pre_header
                _
              $region174: #{forward.3} parent=171 // loop_header
                %s2013 = sphi 0, %s2017
                %p2014 = scmp.ge.s32.totalorder %s2013, 1
                %s2018 = sphi %s1999, %s1999
                %s2019 = sphi %s1991, %s1991
              $region175: #{forward.3} parent=171 // loop_header_branch
                %2016 = sbr.rel (%p2014) target = $region179
              $region176: #{forward.3} parent=171 // loop_body
                %v2020 = vld [vmem:[%s2018] sm:%s2011]
                %2021 = vst [vmem:[%s2019] sm:%s2011] %v2020
                %v2022 = vld [vmem:[%s2018 + $0x70] sm:%s2011]
                %2023 = vst [vmem:[%s2019 + $0x20] sm:%s2011] %v2022
                %v2024 = vld [vmem:[%s2018 + $0xe0] sm:%s2011]
                %2025 = vst [vmem:[%s2019 + $0x40] sm:%s2011] %v2024
                %v2026 = vld [vmem:[%s2018 + $0x150] sm:%s2011]
                %2027 = vst [vmem:[%s2019 + $0x60] sm:%s2011] %v2026
                %v2028 = vld [vmem:[%s2018 + $0x1c0] sm:%s2011]
                %2029 = vst [vmem:[%s2019 + $0x80] sm:%s2011] %v2028
                %v2030 = vld [vmem:[%s2018 + $0x230] sm:%s2011]
                %2031 = vst [vmem:[%s2019 + $0xa0] sm:%s2011] %v2030
                %v2032 = vld [vmem:[%s2018 + $0x2a0] sm:%s2011]
                %2033 = vst [vmem:[%s2019 + $0xc0] sm:%s2011] %v2032
                %v2034 = vld [vmem:[%s2018 + $0x310] sm:%s2011]
                %2035 = vst [vmem:[%s2019 + $0xe0] sm:%s2011] %v2034
                %v2036 = vld [vmem:[%s2018 + $0x380] sm:%s2011]
                %2037 = vst [vmem:[%s2019 + $0x100] sm:%s2011] %v2036
                %v2038 = vld [vmem:[%s2018 + $0x3f0] sm:%s2011]
                %2039 = vst [vmem:[%s2019 + $0x120] sm:%s2011] %v2038
                %v2040 = vld [vmem:[%s2018 + $0x460] sm:%s2011]
                %2041 = vst [vmem:[%s2019 + $0x140] sm:%s2011] %v2040
                %v2042 = vld [vmem:[%s2018 + $0x4d0] sm:%s2011]
                %2043 = vst [vmem:[%s2019 + $0x160] sm:%s2011] %v2042
                %v2044 = vld [vmem:[%s2018 + $0x540] sm:%s2011]
                %2045 = vst [vmem:[%s2019 + $0x180] sm:%s2011] %v2044
                %v2046 = vld [vmem:[%s2018 + $0x5b0] sm:%s2011]
                %2047 = vst [vmem:[%s2019 + $0x1a0] sm:%s2011] %v2046
                %v2048 = vld [vmem:[%s2018 + $0x620] sm:%s2011]
                %2049 = vst [vmem:[%s2019 + $0x1c0] sm:%s2011] %v2048
                %v2050 = vld [vmem:[%s2018 + $0x690] sm:%s2011]
                %2051 = vst [vmem:[%s2019 + $0x1e0] sm:%s2011] %v2050
                %v2052 = vld [vmem:[%s2018 + $0x700] sm:%s2011]
                %2053 = vst [vmem:[%s2019 + $0x200] sm:%s2011] %v2052
                %v2054 = vld [vmem:[%s2018 + $0x770] sm:%s2011]
                %2055 = vst [vmem:[%s2019 + $0x220] sm:%s2011] %v2054
                %v2056 = vld [vmem:[%s2018 + $0x7e0] sm:%s2011]
                %2057 = vst [vmem:[%s2019 + $0x240] sm:%s2011] %v2056
                %v2058 = vld [vmem:[%s2018 + $0x850] sm:%s2011]
                %2059 = vst [vmem:[%s2019 + $0x260] sm:%s2011] %v2058
                %v2060 = vld [vmem:[%s2018 + $0x8c0] sm:%s2011]
                %2061 = vst [vmem:[%s2019 + $0x280] sm:%s2011] %v2060
                %v2062 = vld [vmem:[%s2018 + $0x930] sm:%s2011]
                %2063 = vst [vmem:[%s2019 + $0x2a0] sm:%s2011] %v2062
                %v2064 = vld [vmem:[%s2018 + $0x9a0] sm:%s2011]
                %2065 = vst [vmem:[%s2019 + $0x2c0] sm:%s2011] %v2064
                %v2066 = vld [vmem:[%s2018 + $0xa10] sm:%s2011]
                %2067 = vst [vmem:[%s2019 + $0x2e0] sm:%s2011] %v2066
                %v2068 = vld [vmem:[%s2018 + $0xa80] sm:%s2011]
                %2069 = vst [vmem:[%s2019 + $0x300] sm:%s2011] %v2068
                %v2070 = vld [vmem:[%s2018 + $0xaf0] sm:%s2011]
                %2071 = vst [vmem:[%s2019 + $0x320] sm:%s2011] %v2070
                %v2072 = vld [vmem:[%s2018 + $0xb60] sm:%s2011]
                %2073 = vst [vmem:[%s2019 + $0x340] sm:%s2011] %v2072
                %v2074 = vld [vmem:[%s2018 + $0xbd0] sm:%s2011]
                %2075 = vst [vmem:[%s2019 + $0x360] sm:%s2011] %v2074
                %v2076 = vld [vmem:[%s2018 + $0xc40] sm:%s2011]
                %2077 = vst [vmem:[%s2019 + $0x380] sm:%s2011] %v2076
                %v2078 = vld [vmem:[%s2018 + $0xcb0] sm:%s2011]
                %2079 = vst [vmem:[%s2019 + $0x3a0] sm:%s2011] %v2078
                %v2080 = vld [vmem:[%s2018 + $0xd20] sm:%s2011]
                %2081 = vst [vmem:[%s2019 + $0x3c0] sm:%s2011] %v2080
                %v2082 = vld [vmem:[%s2018 + $0xd90] sm:%s2011]
                %2083 = vst [vmem:[%s2019 + $0x3e0] sm:%s2011] %v2082
                %v2084 = vld [vmem:[%s2018 + $0xe00] sm:%s2011]
                %2085 = vst [vmem:[%s2019 + $0x400] sm:%s2011] %v2084
                %v2086 = vld [vmem:[%s2018 + $0xe70] sm:%s2011]
                %2087 = vst [vmem:[%s2019 + $0x420] sm:%s2011] %v2086
                %v2088 = vld [vmem:[%s2018 + $0xee0] sm:%s2011]
                %2089 = vst [vmem:[%s2019 + $0x440] sm:%s2011] %v2088
                %v2090 = vld [vmem:[%s2018 + $0xf50] sm:%s2011]
                %2091 = vst [vmem:[%s2019 + $0x460] sm:%s2011] %v2090
                %v2092 = vld [vmem:[%s2018 + $0xfc0] sm:%s2011]
                %2093 = vst [vmem:[%s2019 + $0x480] sm:%s2011] %v2092
                %v2094 = vld [vmem:[%s2018 + $0x1030] sm:%s2011]
                %2095 = vst [vmem:[%s2019 + $0x4a0] sm:%s2011] %v2094
                %v2096 = vld [vmem:[%s2018 + $0x10a0] sm:%s2011]
                %2097 = vst [vmem:[%s2019 + $0x4c0] sm:%s2011] %v2096
                %v2098 = vld [vmem:[%s2018 + $0x1110] sm:%s2011]
                %2099 = vst [vmem:[%s2019 + $0x4e0] sm:%s2011] %v2098
                %v2100 = vld [vmem:[%s2018 + $0x1180] sm:%s2011]
                %2101 = vst [vmem:[%s2019 + $0x500] sm:%s2011] %v2100
                %v2102 = vld [vmem:[%s2018 + $0x11f0] sm:%s2011]
                %2103 = vst [vmem:[%s2019 + $0x520] sm:%s2011] %v2102
                %v2104 = vld [vmem:[%s2018 + $0x1260] sm:%s2011]
                %2105 = vst [vmem:[%s2019 + $0x540] sm:%s2011] %v2104
                %v2106 = vld [vmem:[%s2018 + $0x12d0] sm:%s2011]
                %2107 = vst [vmem:[%s2019 + $0x560] sm:%s2011] %v2106
                %v2108 = vld [vmem:[%s2018 + $0x1340] sm:%s2011]
                %2109 = vst [vmem:[%s2019 + $0x580] sm:%s2011] %v2108
                %v2110 = vld [vmem:[%s2018 + $0x13b0] sm:%s2011]
                %2111 = vst [vmem:[%s2019 + $0x5a0] sm:%s2011] %v2110
              $region177: #{forward.3} parent=171 // loop_footer
                %s2017 = sadd.s32 1, %s2013
              $region178: #{forward.3} parent=171 // loop_footer_branch
                %2012 = sbr.rel target = $region174
              $region179: #{forward.3} parent=171 // loop_exit
                _
            $region172: #{forward.3} parent=163 // pred_fallthru
              _
          $region164: #{forward.3} parent=159 // pred_fallthru
            _
          %2872 = vnop
        $region160: #{forward.3} parent=23 // pred_fallthru
          _
        // Predicated region
        $region223: #{forward.3} parent=23 // pred_check
          %p2873 = pneg %p152
        $region224: #{forward.3} parent=23 // pred_check_branch
          %2875 = sbr.rel (%p2873) target = $region226
        $region225: #{forward.3} parent=23 // pred_region
          %s2876 = sand.u32 %s142, 1
          %s2877 = sand.u32 %s142, 1
          %s2878 = smul.addr %s2877, 1472
          %s2879 = scalar_lea.vmem [#allocation5], %s2878
          %s2880 = smul.u32 4, %s12
          %s2881 = ssub.s32 14, %s2880
          %p2882 = scmp.lt.s32.totalorder %s2881, 4
          %s2883 = scalar_select %p2882, %s2881, 4
          %s2884 = smul.u32 5888, %s2883
          %p2885 = scmp.ne.s32.totalorder 0, %s2884
          %s2886 = smul.addr %s2880, 8
          %s2887 = scalar_lea.vmem %s5, %s2886
          %s2888 = smul.u32 %s2883, 8
          // Predicated region
          $region227: #{forward.3} parent=225 // pred_check
            %p2889 = pneg %p2885
          $region228: #{forward.3} parent=225 // pred_check_branch
            %2891 = sbr.rel (%p2889) target = $region230
          $region229: #{forward.3} parent=225 // pred_region
            %p2892 = scmp.lt.u32.totalorder %s2888, 8
            %p2893 = pneg %p2892
            // Predicated region
            $region231: #{forward.3} parent=229 // pred_check
              _
            $region232: #{forward.3} parent=229 // pred_check_branch
              %2895 = sbr.rel (%p2892) target = $region234
            $region233: #{forward.3} parent=229 // pred_region
              %s3000 = sand.u32 %s2888, 7
              %p3001 = scmp.eq.s32.totalorder %s3000, 0
              // Predicated region
              $region246: #{forward.3} parent=233 // pred_check
                %p3002 = pneg %p3001
              $region247: #{forward.3} parent=233 // pred_check_branch
                %3004 = sbr.rel (%p3002) target = $region249
              $region248: #{forward.3} parent=233 // pred_region
                %s3005 = sshrl.u32 %s2888, 3
                %s3006 = sshrl.u32 %s3005, 1
                // While loop
                $region250: #{forward.3} parent=248 // loop_pre_header
                  _
                $region251: #{forward.3} parent=248 // loop_header
                  %s3010 = sphi 0, %s3012
                  %p3011 = scmp.ge.s32.totalorder %s3010, %s3006
                  %s3015 = sphi 0, %s3204
                  %s3016 = sphi %s2887, %s3207
                  %s3017 = sphi %s2879, %s3208
                $region252: #{forward.3} parent=248 // loop_header_branch
                  %3014 = sbr.rel (%p3011) target = $region256
                $region253: #{forward.3} parent=248 // loop_body
                  %v3018 = vld [vmem:[%s3016] sm:$0xff]
                  %3019 = vst [vmem:[%s3017] sm:$0xff] %v3018
                  %v3020 = vld [vmem:[%s3016 + $0x8] sm:$0xff]
                  %3021 = vst [vmem:[%s3017 + $0x8] sm:$0xff] %v3020
                  %v3022 = vld [vmem:[%s3016 + $0x70] sm:$0xff]
                  %3023 = vst [vmem:[%s3017 + $0x20] sm:$0xff] %v3022
                  %v3024 = vld [vmem:[%s3016 + $0x78] sm:$0xff]
                  %3025 = vst [vmem:[%s3017 + $0x28] sm:$0xff] %v3024
                  %v3026 = vld [vmem:[%s3016 + $0xe0] sm:$0xff]
                  %3027 = vst [vmem:[%s3017 + $0x40] sm:$0xff] %v3026
                  %v3028 = vld [vmem:[%s3016 + $0xe8] sm:$0xff]
                  %3029 = vst [vmem:[%s3017 + $0x48] sm:$0xff] %v3028
                  %v3030 = vld [vmem:[%s3016 + $0x150] sm:$0xff]
                  %3031 = vst [vmem:[%s3017 + $0x60] sm:$0xff] %v3030
                  %v3032 = vld [vmem:[%s3016 + $0x158] sm:$0xff]
                  %3033 = vst [vmem:[%s3017 + $0x68] sm:$0xff] %v3032
                  %v3034 = vld [vmem:[%s3016 + $0x1c0] sm:$0xff]
                  %3035 = vst [vmem:[%s3017 + $0x80] sm:$0xff] %v3034
                  %v3036 = vld [vmem:[%s3016 + $0x1c8] sm:$0xff]
                  %3037 = vst [vmem:[%s3017 + $0x88] sm:$0xff] %v3036
                  %v3038 = vld [vmem:[%s3016 + $0x230] sm:$0xff]
                  %3039 = vst [vmem:[%s3017 + $0xa0] sm:$0xff] %v3038
                  %v3040 = vld [vmem:[%s3016 + $0x238] sm:$0xff]
                  %3041 = vst [vmem:[%s3017 + $0xa8] sm:$0xff] %v3040
                  %v3042 = vld [vmem:[%s3016 + $0x2a0] sm:$0xff]
                  %3043 = vst [vmem:[%s3017 + $0xc0] sm:$0xff] %v3042
                  %v3044 = vld [vmem:[%s3016 + $0x2a8] sm:$0xff]
                  %3045 = vst [vmem:[%s3017 + $0xc8] sm:$0xff] %v3044
                  %v3046 = vld [vmem:[%s3016 + $0x310] sm:$0xff]
                  %3047 = vst [vmem:[%s3017 + $0xe0] sm:$0xff] %v3046
                  %v3048 = vld [vmem:[%s3016 + $0x318] sm:$0xff]
                  %3049 = vst [vmem:[%s3017 + $0xe8] sm:$0xff] %v3048
                  %v3050 = vld [vmem:[%s3016 + $0x380] sm:$0xff]
                  %3051 = vst [vmem:[%s3017 + $0x100] sm:$0xff] %v3050
                  %v3052 = vld [vmem:[%s3016 + $0x388] sm:$0xff]
                  %3053 = vst [vmem:[%s3017 + $0x108] sm:$0xff] %v3052
                  %v3054 = vld [vmem:[%s3016 + $0x3f0] sm:$0xff]
                  %3055 = vst [vmem:[%s3017 + $0x120] sm:$0xff] %v3054
                  %v3056 = vld [vmem:[%s3016 + $0x3f8] sm:$0xff]
                  %3057 = vst [vmem:[%s3017 + $0x128] sm:$0xff] %v3056
                  %v3058 = vld [vmem:[%s3016 + $0x460] sm:$0xff]
                  %3059 = vst [vmem:[%s3017 + $0x140] sm:$0xff] %v3058
                  %v3060 = vld [vmem:[%s3016 + $0x468] sm:$0xff]
                  %3061 = vst [vmem:[%s3017 + $0x148] sm:$0xff] %v3060
                  %v3062 = vld [vmem:[%s3016 + $0x4d0] sm:$0xff]
                  %3063 = vst [vmem:[%s3017 + $0x160] sm:$0xff] %v3062
                  %v3064 = vld [vmem:[%s3016 + $0x4d8] sm:$0xff]
                  %3065 = vst [vmem:[%s3017 + $0x168] sm:$0xff] %v3064
                  %v3066 = vld [vmem:[%s3016 + $0x540] sm:$0xff]
                  %3067 = vst [vmem:[%s3017 + $0x180] sm:$0xff] %v3066
                  %v3068 = vld [vmem:[%s3016 + $0x548] sm:$0xff]
                  %3069 = vst [vmem:[%s3017 + $0x188] sm:$0xff] %v3068
                  %v3070 = vld [vmem:[%s3016 + $0x5b0] sm:$0xff]
                  %3071 = vst [vmem:[%s3017 + $0x1a0] sm:$0xff] %v3070
                  %v3072 = vld [vmem:[%s3016 + $0x5b8] sm:$0xff]
                  %3073 = vst [vmem:[%s3017 + $0x1a8] sm:$0xff] %v3072
                  %v3074 = vld [vmem:[%s3016 + $0x620] sm:$0xff]
                  %3075 = vst [vmem:[%s3017 + $0x1c0] sm:$0xff] %v3074
                  %v3076 = vld [vmem:[%s3016 + $0x628] sm:$0xff]
                  %3077 = vst [vmem:[%s3017 + $0x1c8] sm:$0xff] %v3076
                  %v3078 = vld [vmem:[%s3016 + $0x690] sm:$0xff]
                  %3079 = vst [vmem:[%s3017 + $0x1e0] sm:$0xff] %v3078
                  %v3080 = vld [vmem:[%s3016 + $0x698] sm:$0xff]
                  %3081 = vst [vmem:[%s3017 + $0x1e8] sm:$0xff] %v3080
                  %v3082 = vld [vmem:[%s3016 + $0x700] sm:$0xff]
                  %3083 = vst [vmem:[%s3017 + $0x200] sm:$0xff] %v3082
                  %v3084 = vld [vmem:[%s3016 + $0x708] sm:$0xff]
                  %3085 = vst [vmem:[%s3017 + $0x208] sm:$0xff] %v3084
                  %v3086 = vld [vmem:[%s3016 + $0x770] sm:$0xff]
                  %3087 = vst [vmem:[%s3017 + $0x220] sm:$0xff] %v3086
                  %v3088 = vld [vmem:[%s3016 + $0x778] sm:$0xff]
                  %3089 = vst [vmem:[%s3017 + $0x228] sm:$0xff] %v3088
                  %v3090 = vld [vmem:[%s3016 + $0x7e0] sm:$0xff]
                  %3091 = vst [vmem:[%s3017 + $0x240] sm:$0xff] %v3090
                  %v3092 = vld [vmem:[%s3016 + $0x7e8] sm:$0xff]
                  %3093 = vst [vmem:[%s3017 + $0x248] sm:$0xff] %v3092
                  %v3094 = vld [vmem:[%s3016 + $0x850] sm:$0xff]
                  %3095 = vst [vmem:[%s3017 + $0x260] sm:$0xff] %v3094
                  %v3096 = vld [vmem:[%s3016 + $0x858] sm:$0xff]
                  %3097 = vst [vmem:[%s3017 + $0x268] sm:$0xff] %v3096
                  %v3098 = vld [vmem:[%s3016 + $0x8c0] sm:$0xff]
                  %3099 = vst [vmem:[%s3017 + $0x280] sm:$0xff] %v3098
                  %v3100 = vld [vmem:[%s3016 + $0x8c8] sm:$0xff]
                  %3101 = vst [vmem:[%s3017 + $0x288] sm:$0xff] %v3100
                  %v3102 = vld [vmem:[%s3016 + $0x930] sm:$0xff]
                  %3103 = vst [vmem:[%s3017 + $0x2a0] sm:$0xff] %v3102
                  %v3104 = vld [vmem:[%s3016 + $0x938] sm:$0xff]
                  %3105 = vst [vmem:[%s3017 + $0x2a8] sm:$0xff] %v3104
                  %v3106 = vld [vmem:[%s3016 + $0x9a0] sm:$0xff]
                  %3107 = vst [vmem:[%s3017 + $0x2c0] sm:$0xff] %v3106
                  %v3108 = vld [vmem:[%s3016 + $0x9a8] sm:$0xff]
                  %3109 = vst [vmem:[%s3017 + $0x2c8] sm:$0xff] %v3108
                  %v3110 = vld [vmem:[%s3016 + $0xa10] sm:$0xff]
                  %3111 = vst [vmem:[%s3017 + $0x2e0] sm:$0xff] %v3110
                  %v3112 = vld [vmem:[%s3016 + $0xa18] sm:$0xff]
                  %3113 = vst [vmem:[%s3017 + $0x2e8] sm:$0xff] %v3112
                  %v3114 = vld [vmem:[%s3016 + $0xa80] sm:$0xff]
                  %3115 = vst [vmem:[%s3017 + $0x300] sm:$0xff] %v3114
                  %v3116 = vld [vmem:[%s3016 + $0xa88] sm:$0xff]
                  %3117 = vst [vmem:[%s3017 + $0x308] sm:$0xff] %v3116
                  %v3118 = vld [vmem:[%s3016 + $0xaf0] sm:$0xff]
                  %3119 = vst [vmem:[%s3017 + $0x320] sm:$0xff] %v3118
                  %v3120 = vld [vmem:[%s3016 + $0xaf8] sm:$0xff]
                  %3121 = vst [vmem:[%s3017 + $0x328] sm:$0xff] %v3120
                  %v3122 = vld [vmem:[%s3016 + $0xb60] sm:$0xff]
                  %3123 = vst [vmem:[%s3017 + $0x340] sm:$0xff] %v3122
                  %v3124 = vld [vmem:[%s3016 + $0xb68] sm:$0xff]
                  %3125 = vst [vmem:[%s3017 + $0x348] sm:$0xff] %v3124
                  %v3126 = vld [vmem:[%s3016 + $0xbd0] sm:$0xff]
                  %3127 = vst [vmem:[%s3017 + $0x360] sm:$0xff] %v3126
                  %v3128 = vld [vmem:[%s3016 + $0xbd8] sm:$0xff]
                  %3129 = vst [vmem:[%s3017 + $0x368] sm:$0xff] %v3128
                  %v3130 = vld [vmem:[%s3016 + $0xc40] sm:$0xff]
                  %3131 = vst [vmem:[%s3017 + $0x380] sm:$0xff] %v3130
                  %v3132 = vld [vmem:[%s3016 + $0xc48] sm:$0xff]
                  %3133 = vst [vmem:[%s3017 + $0x388] sm:$0xff] %v3132
                  %v3134 = vld [vmem:[%s3016 + $0xcb0] sm:$0xff]
                  %3135 = vst [vmem:[%s3017 + $0x3a0] sm:$0xff] %v3134
                  %v3136 = vld [vmem:[%s3016 + $0xcb8] sm:$0xff]
                  %3137 = vst [vmem:[%s3017 + $0x3a8] sm:$0xff] %v3136
                  %v3138 = vld [vmem:[%s3016 + $0xd20] sm:$0xff]
                  %3139 = vst [vmem:[%s3017 + $0x3c0] sm:$0xff] %v3138
                  %v3140 = vld [vmem:[%s3016 + $0xd28] sm:$0xff]
                  %3141 = vst [vmem:[%s3017 + $0x3c8] sm:$0xff] %v3140
                  %v3142 = vld [vmem:[%s3016 + $0xd90] sm:$0xff]
                  %3143 = vst [vmem:[%s3017 + $0x3e0] sm:$0xff] %v3142
                  %v3144 = vld [vmem:[%s3016 + $0xd98] sm:$0xff]
                  %3145 = vst [vmem:[%s3017 + $0x3e8] sm:$0xff] %v3144
                  %v3146 = vld [vmem:[%s3016 + $0xe00] sm:$0xff]
                  %3147 = vst [vmem:[%s3017 + $0x400] sm:$0xff] %v3146
                  %v3148 = vld [vmem:[%s3016 + $0xe08] sm:$0xff]
                  %3149 = vst [vmem:[%s3017 + $0x408] sm:$0xff] %v3148
                  %v3150 = vld [vmem:[%s3016 + $0xe70] sm:$0xff]
                  %3151 = vst [vmem:[%s3017 + $0x420] sm:$0xff] %v3150
                  %v3152 = vld [vmem:[%s3016 + $0xe78] sm:$0xff]
                  %3153 = vst [vmem:[%s3017 + $0x428] sm:$0xff] %v3152
                  %v3154 = vld [vmem:[%s3016 + $0xee0] sm:$0xff]
                  %3155 = vst [vmem:[%s3017 + $0x440] sm:$0xff] %v3154
                  %v3156 = vld [vmem:[%s3016 + $0xee8] sm:$0xff]
                  %3157 = vst [vmem:[%s3017 + $0x448] sm:$0xff] %v3156
                  %v3158 = vld [vmem:[%s3016 + $0xf50] sm:$0xff]
                  %3159 = vst [vmem:[%s3017 + $0x460] sm:$0xff] %v3158
                  %v3160 = vld [vmem:[%s3016 + $0xf58] sm:$0xff]
                  %3161 = vst [vmem:[%s3017 + $0x468] sm:$0xff] %v3160
                  %v3162 = vld [vmem:[%s3016 + $0xfc0] sm:$0xff]
                  %3163 = vst [vmem:[%s3017 + $0x480] sm:$0xff] %v3162
                  %v3164 = vld [vmem:[%s3016 + $0xfc8] sm:$0xff]
                  %3165 = vst [vmem:[%s3017 + $0x488] sm:$0xff] %v3164
                  %v3166 = vld [vmem:[%s3016 + $0x1030] sm:$0xff]
                  %3167 = vst [vmem:[%s3017 + $0x4a0] sm:$0xff] %v3166
                  %v3168 = vld [vmem:[%s3016 + $0x1038] sm:$0xff]
                  %3169 = vst [vmem:[%s3017 + $0x4a8] sm:$0xff] %v3168
                  %v3170 = vld [vmem:[%s3016 + $0x10a0] sm:$0xff]
                  %3171 = vst [vmem:[%s3017 + $0x4c0] sm:$0xff] %v3170
                  %v3172 = vld [vmem:[%s3016 + $0x10a8] sm:$0xff]
                  %3173 = vst [vmem:[%s3017 + $0x4c8] sm:$0xff] %v3172
                  %v3174 = vld [vmem:[%s3016 + $0x1110] sm:$0xff]
                  %3175 = vst [vmem:[%s3017 + $0x4e0] sm:$0xff] %v3174
                  %v3176 = vld [vmem:[%s3016 + $0x1118] sm:$0xff]
                  %3177 = vst [vmem:[%s3017 + $0x4e8] sm:$0xff] %v3176
                  %v3178 = vld [vmem:[%s3016 + $0x1180] sm:$0xff]
                  %3179 = vst [vmem:[%s3017 + $0x500] sm:$0xff] %v3178
                  %v3180 = vld [vmem:[%s3016 + $0x1188] sm:$0xff]
                  %3181 = vst [vmem:[%s3017 + $0x508] sm:$0xff] %v3180
                  %v3182 = vld [vmem:[%s3016 + $0x11f0] sm:$0xff]
                  %3183 = vst [vmem:[%s3017 + $0x520] sm:$0xff] %v3182
                  %v3184 = vld [vmem:[%s3016 + $0x11f8] sm:$0xff]
                  %3185 = vst [vmem:[%s3017 + $0x528] sm:$0xff] %v3184
                  %v3186 = vld [vmem:[%s3016 + $0x1260] sm:$0xff]
                  %3187 = vst [vmem:[%s3017 + $0x540] sm:$0xff] %v3186
                  %v3188 = vld [vmem:[%s3016 + $0x1268] sm:$0xff]
                  %3189 = vst [vmem:[%s3017 + $0x548] sm:$0xff] %v3188
                  %v3190 = vld [vmem:[%s3016 + $0x12d0] sm:$0xff]
                  %3191 = vst [vmem:[%s3017 + $0x560] sm:$0xff] %v3190
                  %v3192 = vld [vmem:[%s3016 + $0x12d8] sm:$0xff]
                  %3193 = vst [vmem:[%s3017 + $0x568] sm:$0xff] %v3192
                  %v3194 = vld [vmem:[%s3016 + $0x1340] sm:$0xff]
                  %3195 = vst [vmem:[%s3017 + $0x580] sm:$0xff] %v3194
                  %v3196 = vld [vmem:[%s3016 + $0x1348] sm:$0xff]
                  %3197 = vst [vmem:[%s3017 + $0x588] sm:$0xff] %v3196
                  %v3198 = vld [vmem:[%s3016 + $0x13b0] sm:$0xff]
                  %3199 = vst [vmem:[%s3017 + $0x5a0] sm:$0xff] %v3198
                  %v3200 = vld [vmem:[%s3016 + $0x13b8] sm:$0xff]
                  %3201 = vst [vmem:[%s3017 + $0x5a8] sm:$0xff] %v3200
                  %s3202 = sadd.s32 1, %s3015
                  %p3203 = scmp.ge.s32.totalorder %s3202, %s3006
                  %s3204 = scalar_select %p3203, 0, %s3202
                  %s3205 = smul.u32 %s3204, 16
                  %s3206 = smul.u32 %s3204, 16
                  %s3207 = scalar_lea.vmem %s2887, %s3205
                  %s3208 = scalar_lea.vmem %s2879, %s3206 [#allocation5]
                $region254: #{forward.3} parent=248 // loop_footer
                  %s3012 = sadd.s32 %s3010, 1
                $region255: #{forward.3} parent=248 // loop_footer_branch
                  %3009 = sbr.rel target = $region251
                $region256: #{forward.3} parent=248 // loop_exit
                  _
                %s3209 = sshrl.u32 %s3005, 1
                %s3210 = sand.u32 %s3005, 1
                %s3211 = smul.u32 %s3209, 2
                %s3212 = smul.u32 128, %s3211
                %s3213 = sshra.s32 %s3212, 4
                %s3214 = scalar_lea.vmem %s2887, %s3213
                %s3215 = smul.u32 128, %s3211
                %s3216 = sshra.s32 %s3215, 4
                %s3217 = scalar_lea.vmem %s2879, %s3216 [#allocation5]
                // While loop
                $region257: #{forward.3} parent=248 // loop_pre_header
                  _
                $region258: #{forward.3} parent=248 // loop_header
                  %s3221 = sphi 0, %s3223
                  %p3222 = scmp.ge.s32.totalorder %s3221, %s3210
                  %s3226 = sphi 0, %s3323
                  %s3227 = sphi %s3214, %s3326
                  %s3228 = sphi %s3217, %s3327
                $region259: #{forward.3} parent=248 // loop_header_branch
                  %3225 = sbr.rel (%p3222) target = $region263
                $region260: #{forward.3} parent=248 // loop_body
                  %v3229 = vld [vmem:[%s3227] sm:$0xff]
                  %3230 = vst [vmem:[%s3228] sm:$0xff] %v3229
                  %v3231 = vld [vmem:[%s3227 + $0x70] sm:$0xff]
                  %3232 = vst [vmem:[%s3228 + $0x20] sm:$0xff] %v3231
                  %v3233 = vld [vmem:[%s3227 + $0xe0] sm:$0xff]
                  %3234 = vst [vmem:[%s3228 + $0x40] sm:$0xff] %v3233
                  %v3235 = vld [vmem:[%s3227 + $0x150] sm:$0xff]
                  %3236 = vst [vmem:[%s3228 + $0x60] sm:$0xff] %v3235
                  %v3237 = vld [vmem:[%s3227 + $0x1c0] sm:$0xff]
                  %3238 = vst [vmem:[%s3228 + $0x80] sm:$0xff] %v3237
                  %v3239 = vld [vmem:[%s3227 + $0x230] sm:$0xff]
                  %3240 = vst [vmem:[%s3228 + $0xa0] sm:$0xff] %v3239
                  %v3241 = vld [vmem:[%s3227 + $0x2a0] sm:$0xff]
                  %3242 = vst [vmem:[%s3228 + $0xc0] sm:$0xff] %v3241
                  %v3243 = vld [vmem:[%s3227 + $0x310] sm:$0xff]
                  %3244 = vst [vmem:[%s3228 + $0xe0] sm:$0xff] %v3243
                  %v3245 = vld [vmem:[%s3227 + $0x380] sm:$0xff]
                  %3246 = vst [vmem:[%s3228 + $0x100] sm:$0xff] %v3245
                  %v3247 = vld [vmem:[%s3227 + $0x3f0] sm:$0xff]
                  %3248 = vst [vmem:[%s3228 + $0x120] sm:$0xff] %v3247
                  %v3249 = vld [vmem:[%s3227 + $0x460] sm:$0xff]
                  %3250 = vst [vmem:[%s3228 + $0x140] sm:$0xff] %v3249
                  %v3251 = vld [vmem:[%s3227 + $0x4d0] sm:$0xff]
                  %3252 = vst [vmem:[%s3228 + $0x160] sm:$0xff] %v3251
                  %v3253 = vld [vmem:[%s3227 + $0x540] sm:$0xff]
                  %3254 = vst [vmem:[%s3228 + $0x180] sm:$0xff] %v3253
                  %v3255 = vld [vmem:[%s3227 + $0x5b0] sm:$0xff]
                  %3256 = vst [vmem:[%s3228 + $0x1a0] sm:$0xff] %v3255
                  %v3257 = vld [vmem:[%s3227 + $0x620] sm:$0xff]
                  %3258 = vst [vmem:[%s3228 + $0x1c0] sm:$0xff] %v3257
                  %v3259 = vld [vmem:[%s3227 + $0x690] sm:$0xff]
                  %3260 = vst [vmem:[%s3228 + $0x1e0] sm:$0xff] %v3259
                  %v3261 = vld [vmem:[%s3227 + $0x700] sm:$0xff]
                  %3262 = vst [vmem:[%s3228 + $0x200] sm:$0xff] %v3261
                  %v3263 = vld [vmem:[%s3227 + $0x770] sm:$0xff]
                  %3264 = vst [vmem:[%s3228 + $0x220] sm:$0xff] %v3263
                  %v3265 = vld [vmem:[%s3227 + $0x7e0] sm:$0xff]
                  %3266 = vst [vmem:[%s3228 + $0x240] sm:$0xff] %v3265
                  %v3267 = vld [vmem:[%s3227 + $0x850] sm:$0xff]
                  %3268 = vst [vmem:[%s3228 + $0x260] sm:$0xff] %v3267
                  %v3269 = vld [vmem:[%s3227 + $0x8c0] sm:$0xff]
                  %3270 = vst [vmem:[%s3228 + $0x280] sm:$0xff] %v3269
                  %v3271 = vld [vmem:[%s3227 + $0x930] sm:$0xff]
                  %3272 = vst [vmem:[%s3228 + $0x2a0] sm:$0xff] %v3271
                  %v3273 = vld [vmem:[%s3227 + $0x9a0] sm:$0xff]
                  %3274 = vst [vmem:[%s3228 + $0x2c0] sm:$0xff] %v3273
                  %v3275 = vld [vmem:[%s3227 + $0xa10] sm:$0xff]
                  %3276 = vst [vmem:[%s3228 + $0x2e0] sm:$0xff] %v3275
                  %v3277 = vld [vmem:[%s3227 + $0xa80] sm:$0xff]
                  %3278 = vst [vmem:[%s3228 + $0x300] sm:$0xff] %v3277
                  %v3279 = vld [vmem:[%s3227 + $0xaf0] sm:$0xff]
                  %3280 = vst [vmem:[%s3228 + $0x320] sm:$0xff] %v3279
                  %v3281 = vld [vmem:[%s3227 + $0xb60] sm:$0xff]
                  %3282 = vst [vmem:[%s3228 + $0x340] sm:$0xff] %v3281
                  %v3283 = vld [vmem:[%s3227 + $0xbd0] sm:$0xff]
                  %3284 = vst [vmem:[%s3228 + $0x360] sm:$0xff] %v3283
                  %v3285 = vld [vmem:[%s3227 + $0xc40] sm:$0xff]
                  %3286 = vst [vmem:[%s3228 + $0x380] sm:$0xff] %v3285
                  %v3287 = vld [vmem:[%s3227 + $0xcb0] sm:$0xff]
                  %3288 = vst [vmem:[%s3228 + $0x3a0] sm:$0xff] %v3287
                  %v3289 = vld [vmem:[%s3227 + $0xd20] sm:$0xff]
                  %3290 = vst [vmem:[%s3228 + $0x3c0] sm:$0xff] %v3289
                  %v3291 = vld [vmem:[%s3227 + $0xd90] sm:$0xff]
                  %3292 = vst [vmem:[%s3228 + $0x3e0] sm:$0xff] %v3291
                  %v3293 = vld [vmem:[%s3227 + $0xe00] sm:$0xff]
                  %3294 = vst [vmem:[%s3228 + $0x400] sm:$0xff] %v3293
                  %v3295 = vld [vmem:[%s3227 + $0xe70] sm:$0xff]
                  %3296 = vst [vmem:[%s3228 + $0x420] sm:$0xff] %v3295
                  %v3297 = vld [vmem:[%s3227 + $0xee0] sm:$0xff]
                  %3298 = vst [vmem:[%s3228 + $0x440] sm:$0xff] %v3297
                  %v3299 = vld [vmem:[%s3227 + $0xf50] sm:$0xff]
                  %3300 = vst [vmem:[%s3228 + $0x460] sm:$0xff] %v3299
                  %v3301 = vld [vmem:[%s3227 + $0xfc0] sm:$0xff]
                  %3302 = vst [vmem:[%s3228 + $0x480] sm:$0xff] %v3301
                  %v3303 = vld [vmem:[%s3227 + $0x1030] sm:$0xff]
                  %3304 = vst [vmem:[%s3228 + $0x4a0] sm:$0xff] %v3303
                  %v3305 = vld [vmem:[%s3227 + $0x10a0] sm:$0xff]
                  %3306 = vst [vmem:[%s3228 + $0x4c0] sm:$0xff] %v3305
                  %v3307 = vld [vmem:[%s3227 + $0x1110] sm:$0xff]
                  %3308 = vst [vmem:[%s3228 + $0x4e0] sm:$0xff] %v3307
                  %v3309 = vld [vmem:[%s3227 + $0x1180] sm:$0xff]
                  %3310 = vst [vmem:[%s3228 + $0x500] sm:$0xff] %v3309
                  %v3311 = vld [vmem:[%s3227 + $0x11f0] sm:$0xff]
                  %3312 = vst [vmem:[%s3228 + $0x520] sm:$0xff] %v3311
                  %v3313 = vld [vmem:[%s3227 + $0x1260] sm:$0xff]
                  %3314 = vst [vmem:[%s3228 + $0x540] sm:$0xff] %v3313
                  %v3315 = vld [vmem:[%s3227 + $0x12d0] sm:$0xff]
                  %3316 = vst [vmem:[%s3228 + $0x560] sm:$0xff] %v3315
                  %v3317 = vld [vmem:[%s3227 + $0x1340] sm:$0xff]
                  %3318 = vst [vmem:[%s3228 + $0x580] sm:$0xff] %v3317
                  %v3319 = vld [vmem:[%s3227 + $0x13b0] sm:$0xff]
                  %3320 = vst [vmem:[%s3228 + $0x5a0] sm:$0xff] %v3319
                  %s3321 = sadd.s32 1, %s3226
                  %p3322 = scmp.ge.s32.totalorder %s3321, %s3210
                  %s3323 = scalar_select %p3322, 0, %s3321
                  %s3324 = smul.u32 %s3323, 8
                  %s3325 = smul.u32 %s3323, 8
                  %s3326 = scalar_lea.vmem %s3214, %s3324
                  %s3327 = scalar_lea.vmem %s3217, %s3325 [#allocation5]
                $region261: #{forward.3} parent=248 // loop_footer
                  %s3223 = sadd.s32 %s3221, 1
                $region262: #{forward.3} parent=248 // loop_footer_branch
                  %3220 = sbr.rel target = $region258
                $region263: #{forward.3} parent=248 // loop_exit
                  _
              $region249: #{forward.3} parent=233 // pred_fallthru
                _
              %p3328 = pneg %p3001
              // Predicated region
              $region264: #{forward.3} parent=233 // pred_check
                _
              $region265: #{forward.3} parent=233 // pred_check_branch
                %3330 = sbr.rel (%p3001) target = $region267
              $region266: #{forward.3} parent=233 // pred_region
                %s3331 = sand.u32 %s2888, 7
                %s3332 = ssub.s32 %s2888, %s3331
                %s3333 = scalar_lea.vmem %s2887, %s3332
                %s3334 = ssub.s32 %s2888, %s3331
                %s3335 = scalar_lea.vmem %s2879, %s3334 [#allocation5]
                %s3336 = sshrl.u32 %s2888, 3
                %s3337 = sshrl.u32 %s3336, 1
                // While loop
                $region268: #{forward.3} parent=266 // loop_pre_header
                  _
                $region269: #{forward.3} parent=266 // loop_header
                  %s3341 = sphi 0, %s3343
                  %p3342 = scmp.ge.s32.totalorder %s3341, %s3337
                  %s3346 = sphi 0, %s3535
                  %s3347 = sphi %s2887, %s3538
                  %s3348 = sphi %s2879, %s3539
                $region270: #{forward.3} parent=266 // loop_header_branch
                  %3345 = sbr.rel (%p3342) target = $region274
                $region271: #{forward.3} parent=266 // loop_body
                  %v3349 = vld [vmem:[%s3347] sm:$0xff]
                  %3350 = vst [vmem:[%s3348] sm:$0xff] %v3349
                  %v3351 = vld [vmem:[%s3347 + $0x8] sm:$0xff]
                  %3352 = vst [vmem:[%s3348 + $0x8] sm:$0xff] %v3351
                  %v3353 = vld [vmem:[%s3347 + $0x70] sm:$0xff]
                  %3354 = vst [vmem:[%s3348 + $0x20] sm:$0xff] %v3353
                  %v3355 = vld [vmem:[%s3347 + $0x78] sm:$0xff]
                  %3356 = vst [vmem:[%s3348 + $0x28] sm:$0xff] %v3355
                  %v3357 = vld [vmem:[%s3347 + $0xe0] sm:$0xff]
                  %3358 = vst [vmem:[%s3348 + $0x40] sm:$0xff] %v3357
                  %v3359 = vld [vmem:[%s3347 + $0xe8] sm:$0xff]
                  %3360 = vst [vmem:[%s3348 + $0x48] sm:$0xff] %v3359
                  %v3361 = vld [vmem:[%s3347 + $0x150] sm:$0xff]
                  %3362 = vst [vmem:[%s3348 + $0x60] sm:$0xff] %v3361
                  %v3363 = vld [vmem:[%s3347 + $0x158] sm:$0xff]
                  %3364 = vst [vmem:[%s3348 + $0x68] sm:$0xff] %v3363
                  %v3365 = vld [vmem:[%s3347 + $0x1c0] sm:$0xff]
                  %3366 = vst [vmem:[%s3348 + $0x80] sm:$0xff] %v3365
                  %v3367 = vld [vmem:[%s3347 + $0x1c8] sm:$0xff]
                  %3368 = vst [vmem:[%s3348 + $0x88] sm:$0xff] %v3367
                  %v3369 = vld [vmem:[%s3347 + $0x230] sm:$0xff]
                  %3370 = vst [vmem:[%s3348 + $0xa0] sm:$0xff] %v3369
                  %v3371 = vld [vmem:[%s3347 + $0x238] sm:$0xff]
                  %3372 = vst [vmem:[%s3348 + $0xa8] sm:$0xff] %v3371
                  %v3373 = vld [vmem:[%s3347 + $0x2a0] sm:$0xff]
                  %3374 = vst [vmem:[%s3348 + $0xc0] sm:$0xff] %v3373
                  %v3375 = vld [vmem:[%s3347 + $0x2a8] sm:$0xff]
                  %3376 = vst [vmem:[%s3348 + $0xc8] sm:$0xff] %v3375
                  %v3377 = vld [vmem:[%s3347 + $0x310] sm:$0xff]
                  %3378 = vst [vmem:[%s3348 + $0xe0] sm:$0xff] %v3377
                  %v3379 = vld [vmem:[%s3347 + $0x318] sm:$0xff]
                  %3380 = vst [vmem:[%s3348 + $0xe8] sm:$0xff] %v3379
                  %v3381 = vld [vmem:[%s3347 + $0x380] sm:$0xff]
                  %3382 = vst [vmem:[%s3348 + $0x100] sm:$0xff] %v3381
                  %v3383 = vld [vmem:[%s3347 + $0x388] sm:$0xff]
                  %3384 = vst [vmem:[%s3348 + $0x108] sm:$0xff] %v3383
                  %v3385 = vld [vmem:[%s3347 + $0x3f0] sm:$0xff]
                  %3386 = vst [vmem:[%s3348 + $0x120] sm:$0xff] %v3385
                  %v3387 = vld [vmem:[%s3347 + $0x3f8] sm:$0xff]
                  %3388 = vst [vmem:[%s3348 + $0x128] sm:$0xff] %v3387
                  %v3389 = vld [vmem:[%s3347 + $0x460] sm:$0xff]
                  %3390 = vst [vmem:[%s3348 + $0x140] sm:$0xff] %v3389
                  %v3391 = vld [vmem:[%s3347 + $0x468] sm:$0xff]
                  %3392 = vst [vmem:[%s3348 + $0x148] sm:$0xff] %v3391
                  %v3393 = vld [vmem:[%s3347 + $0x4d0] sm:$0xff]
                  %3394 = vst [vmem:[%s3348 + $0x160] sm:$0xff] %v3393
                  %v3395 = vld [vmem:[%s3347 + $0x4d8] sm:$0xff]
                  %3396 = vst [vmem:[%s3348 + $0x168] sm:$0xff] %v3395
                  %v3397 = vld [vmem:[%s3347 + $0x540] sm:$0xff]
                  %3398 = vst [vmem:[%s3348 + $0x180] sm:$0xff] %v3397
                  %v3399 = vld [vmem:[%s3347 + $0x548] sm:$0xff]
                  %3400 = vst [vmem:[%s3348 + $0x188] sm:$0xff] %v3399
                  %v3401 = vld [vmem:[%s3347 + $0x5b0] sm:$0xff]
                  %3402 = vst [vmem:[%s3348 + $0x1a0] sm:$0xff] %v3401
                  %v3403 = vld [vmem:[%s3347 + $0x5b8] sm:$0xff]
                  %3404 = vst [vmem:[%s3348 + $0x1a8] sm:$0xff] %v3403
                  %v3405 = vld [vmem:[%s3347 + $0x620] sm:$0xff]
                  %3406 = vst [vmem:[%s3348 + $0x1c0] sm:$0xff] %v3405
                  %v3407 = vld [vmem:[%s3347 + $0x628] sm:$0xff]
                  %3408 = vst [vmem:[%s3348 + $0x1c8] sm:$0xff] %v3407
                  %v3409 = vld [vmem:[%s3347 + $0x690] sm:$0xff]
                  %3410 = vst [vmem:[%s3348 + $0x1e0] sm:$0xff] %v3409
                  %v3411 = vld [vmem:[%s3347 + $0x698] sm:$0xff]
                  %3412 = vst [vmem:[%s3348 + $0x1e8] sm:$0xff] %v3411
                  %v3413 = vld [vmem:[%s3347 + $0x700] sm:$0xff]
                  %3414 = vst [vmem:[%s3348 + $0x200] sm:$0xff] %v3413
                  %v3415 = vld [vmem:[%s3347 + $0x708] sm:$0xff]
                  %3416 = vst [vmem:[%s3348 + $0x208] sm:$0xff] %v3415
                  %v3417 = vld [vmem:[%s3347 + $0x770] sm:$0xff]
                  %3418 = vst [vmem:[%s3348 + $0x220] sm:$0xff] %v3417
                  %v3419 = vld [vmem:[%s3347 + $0x778] sm:$0xff]
                  %3420 = vst [vmem:[%s3348 + $0x228] sm:$0xff] %v3419
                  %v3421 = vld [vmem:[%s3347 + $0x7e0] sm:$0xff]
                  %3422 = vst [vmem:[%s3348 + $0x240] sm:$0xff] %v3421
                  %v3423 = vld [vmem:[%s3347 + $0x7e8] sm:$0xff]
                  %3424 = vst [vmem:[%s3348 + $0x248] sm:$0xff] %v3423
                  %v3425 = vld [vmem:[%s3347 + $0x850] sm:$0xff]
                  %3426 = vst [vmem:[%s3348 + $0x260] sm:$0xff] %v3425
                  %v3427 = vld [vmem:[%s3347 + $0x858] sm:$0xff]
                  %3428 = vst [vmem:[%s3348 + $0x268] sm:$0xff] %v3427
                  %v3429 = vld [vmem:[%s3347 + $0x8c0] sm:$0xff]
                  %3430 = vst [vmem:[%s3348 + $0x280] sm:$0xff] %v3429
                  %v3431 = vld [vmem:[%s3347 + $0x8c8] sm:$0xff]
                  %3432 = vst [vmem:[%s3348 + $0x288] sm:$0xff] %v3431
                  %v3433 = vld [vmem:[%s3347 + $0x930] sm:$0xff]
                  %3434 = vst [vmem:[%s3348 + $0x2a0] sm:$0xff] %v3433
                  %v3435 = vld [vmem:[%s3347 + $0x938] sm:$0xff]
                  %3436 = vst [vmem:[%s3348 + $0x2a8] sm:$0xff] %v3435
                  %v3437 = vld [vmem:[%s3347 + $0x9a0] sm:$0xff]
                  %3438 = vst [vmem:[%s3348 + $0x2c0] sm:$0xff] %v3437
                  %v3439 = vld [vmem:[%s3347 + $0x9a8] sm:$0xff]
                  %3440 = vst [vmem:[%s3348 + $0x2c8] sm:$0xff] %v3439
                  %v3441 = vld [vmem:[%s3347 + $0xa10] sm:$0xff]
                  %3442 = vst [vmem:[%s3348 + $0x2e0] sm:$0xff] %v3441
                  %v3443 = vld [vmem:[%s3347 + $0xa18] sm:$0xff]
                  %3444 = vst [vmem:[%s3348 + $0x2e8] sm:$0xff] %v3443
                  %v3445 = vld [vmem:[%s3347 + $0xa80] sm:$0xff]
                  %3446 = vst [vmem:[%s3348 + $0x300] sm:$0xff] %v3445
                  %v3447 = vld [vmem:[%s3347 + $0xa88] sm:$0xff]
                  %3448 = vst [vmem:[%s3348 + $0x308] sm:$0xff] %v3447
                  %v3449 = vld [vmem:[%s3347 + $0xaf0] sm:$0xff]
                  %3450 = vst [vmem:[%s3348 + $0x320] sm:$0xff] %v3449
                  %v3451 = vld [vmem:[%s3347 + $0xaf8] sm:$0xff]
                  %3452 = vst [vmem:[%s3348 + $0x328] sm:$0xff] %v3451
                  %v3453 = vld [vmem:[%s3347 + $0xb60] sm:$0xff]
                  %3454 = vst [vmem:[%s3348 + $0x340] sm:$0xff] %v3453
                  %v3455 = vld [vmem:[%s3347 + $0xb68] sm:$0xff]
                  %3456 = vst [vmem:[%s3348 + $0x348] sm:$0xff] %v3455
                  %v3457 = vld [vmem:[%s3347 + $0xbd0] sm:$0xff]
                  %3458 = vst [vmem:[%s3348 + $0x360] sm:$0xff] %v3457
                  %v3459 = vld [vmem:[%s3347 + $0xbd8] sm:$0xff]
                  %3460 = vst [vmem:[%s3348 + $0x368] sm:$0xff] %v3459
                  %v3461 = vld [vmem:[%s3347 + $0xc40] sm:$0xff]
                  %3462 = vst [vmem:[%s3348 + $0x380] sm:$0xff] %v3461
                  %v3463 = vld [vmem:[%s3347 + $0xc48] sm:$0xff]
                  %3464 = vst [vmem:[%s3348 + $0x388] sm:$0xff] %v3463
                  %v3465 = vld [vmem:[%s3347 + $0xcb0] sm:$0xff]
                  %3466 = vst [vmem:[%s3348 + $0x3a0] sm:$0xff] %v3465
                  %v3467 = vld [vmem:[%s3347 + $0xcb8] sm:$0xff]
                  %3468 = vst [vmem:[%s3348 + $0x3a8] sm:$0xff] %v3467
                  %v3469 = vld [vmem:[%s3347 + $0xd20] sm:$0xff]
                  %3470 = vst [vmem:[%s3348 + $0x3c0] sm:$0xff] %v3469
                  %v3471 = vld [vmem:[%s3347 + $0xd28] sm:$0xff]
                  %3472 = vst [vmem:[%s3348 + $0x3c8] sm:$0xff] %v3471
                  %v3473 = vld [vmem:[%s3347 + $0xd90] sm:$0xff]
                  %3474 = vst [vmem:[%s3348 + $0x3e0] sm:$0xff] %v3473
                  %v3475 = vld [vmem:[%s3347 + $0xd98] sm:$0xff]
                  %3476 = vst [vmem:[%s3348 + $0x3e8] sm:$0xff] %v3475
                  %v3477 = vld [vmem:[%s3347 + $0xe00] sm:$0xff]
                  %3478 = vst [vmem:[%s3348 + $0x400] sm:$0xff] %v3477
                  %v3479 = vld [vmem:[%s3347 + $0xe08] sm:$0xff]
                  %3480 = vst [vmem:[%s3348 + $0x408] sm:$0xff] %v3479
                  %v3481 = vld [vmem:[%s3347 + $0xe70] sm:$0xff]
                  %3482 = vst [vmem:[%s3348 + $0x420] sm:$0xff] %v3481
                  %v3483 = vld [vmem:[%s3347 + $0xe78] sm:$0xff]
                  %3484 = vst [vmem:[%s3348 + $0x428] sm:$0xff] %v3483
                  %v3485 = vld [vmem:[%s3347 + $0xee0] sm:$0xff]
                  %3486 = vst [vmem:[%s3348 + $0x440] sm:$0xff] %v3485
                  %v3487 = vld [vmem:[%s3347 + $0xee8] sm:$0xff]
                  %3488 = vst [vmem:[%s3348 + $0x448] sm:$0xff] %v3487
                  %v3489 = vld [vmem:[%s3347 + $0xf50] sm:$0xff]
                  %3490 = vst [vmem:[%s3348 + $0x460] sm:$0xff] %v3489
                  %v3491 = vld [vmem:[%s3347 + $0xf58] sm:$0xff]
                  %3492 = vst [vmem:[%s3348 + $0x468] sm:$0xff] %v3491
                  %v3493 = vld [vmem:[%s3347 + $0xfc0] sm:$0xff]
                  %3494 = vst [vmem:[%s3348 + $0x480] sm:$0xff] %v3493
                  %v3495 = vld [vmem:[%s3347 + $0xfc8] sm:$0xff]
                  %3496 = vst [vmem:[%s3348 + $0x488] sm:$0xff] %v3495
                  %v3497 = vld [vmem:[%s3347 + $0x1030] sm:$0xff]
                  %3498 = vst [vmem:[%s3348 + $0x4a0] sm:$0xff] %v3497
                  %v3499 = vld [vmem:[%s3347 + $0x1038] sm:$0xff]
                  %3500 = vst [vmem:[%s3348 + $0x4a8] sm:$0xff] %v3499
                  %v3501 = vld [vmem:[%s3347 + $0x10a0] sm:$0xff]
                  %3502 = vst [vmem:[%s3348 + $0x4c0] sm:$0xff] %v3501
                  %v3503 = vld [vmem:[%s3347 + $0x10a8] sm:$0xff]
                  %3504 = vst [vmem:[%s3348 + $0x4c8] sm:$0xff] %v3503
                  %v3505 = vld [vmem:[%s3347 + $0x1110] sm:$0xff]
                  %3506 = vst [vmem:[%s3348 + $0x4e0] sm:$0xff] %v3505
                  %v3507 = vld [vmem:[%s3347 + $0x1118] sm:$0xff]
                  %3508 = vst [vmem:[%s3348 + $0x4e8] sm:$0xff] %v3507
                  %v3509 = vld [vmem:[%s3347 + $0x1180] sm:$0xff]
                  %3510 = vst [vmem:[%s3348 + $0x500] sm:$0xff] %v3509
                  %v3511 = vld [vmem:[%s3347 + $0x1188] sm:$0xff]
                  %3512 = vst [vmem:[%s3348 + $0x508] sm:$0xff] %v3511
                  %v3513 = vld [vmem:[%s3347 + $0x11f0] sm:$0xff]
                  %3514 = vst [vmem:[%s3348 + $0x520] sm:$0xff] %v3513
                  %v3515 = vld [vmem:[%s3347 + $0x11f8] sm:$0xff]
                  %3516 = vst [vmem:[%s3348 + $0x528] sm:$0xff] %v3515
                  %v3517 = vld [vmem:[%s3347 + $0x1260] sm:$0xff]
                  %3518 = vst [vmem:[%s3348 + $0x540] sm:$0xff] %v3517
                  %v3519 = vld [vmem:[%s3347 + $0x1268] sm:$0xff]
                  %3520 = vst [vmem:[%s3348 + $0x548] sm:$0xff] %v3519
                  %v3521 = vld [vmem:[%s3347 + $0x12d0] sm:$0xff]
                  %3522 = vst [vmem:[%s3348 + $0x560] sm:$0xff] %v3521
                  %v3523 = vld [vmem:[%s3347 + $0x12d8] sm:$0xff]
                  %3524 = vst [vmem:[%s3348 + $0x568] sm:$0xff] %v3523
                  %v3525 = vld [vmem:[%s3347 + $0x1340] sm:$0xff]
                  %3526 = vst [vmem:[%s3348 + $0x580] sm:$0xff] %v3525
                  %v3527 = vld [vmem:[%s3347 + $0x1348] sm:$0xff]
                  %3528 = vst [vmem:[%s3348 + $0x588] sm:$0xff] %v3527
                  %v3529 = vld [vmem:[%s3347 + $0x13b0] sm:$0xff]
                  %3530 = vst [vmem:[%s3348 + $0x5a0] sm:$0xff] %v3529
                  %v3531 = vld [vmem:[%s3347 + $0x13b8] sm:$0xff]
                  %3532 = vst [vmem:[%s3348 + $0x5a8] sm:$0xff] %v3531
                  %s3533 = sadd.s32 1, %s3346
                  %p3534 = scmp.ge.s32.totalorder %s3533, %s3337
                  %s3535 = scalar_select %p3534, 0, %s3533
                  %s3536 = smul.u32 %s3535, 16
                  %s3537 = smul.u32 %s3535, 16
                  %s3538 = scalar_lea.vmem %s2887, %s3536
                  %s3539 = scalar_lea.vmem %s2879, %s3537 [#allocation5]
                $region272: #{forward.3} parent=266 // loop_footer
                  %s3343 = sadd.s32 %s3341, 1
                $region273: #{forward.3} parent=266 // loop_footer_branch
                  %3340 = sbr.rel target = $region269
                $region274: #{forward.3} parent=266 // loop_exit
                  _
                %s3540 = sshrl.u32 %s3336, 1
                %s3541 = sand.u32 %s3336, 1
                %s3542 = smul.u32 %s3540, 2
                %s3543 = smul.u32 128, %s3542
                %s3544 = sshra.s32 %s3543, 4
                %s3545 = scalar_lea.vmem %s2887, %s3544
                %s3546 = smul.u32 128, %s3542
                %s3547 = sshra.s32 %s3546, 4
                %s3548 = scalar_lea.vmem %s2879, %s3547 [#allocation5]
                // While loop
                $region275: #{forward.3} parent=266 // loop_pre_header
                  _
                $region276: #{forward.3} parent=266 // loop_header
                  %s3552 = sphi 0, %s3554
                  %p3553 = scmp.ge.s32.totalorder %s3552, %s3541
                  %s3557 = sphi 0, %s3654
                  %s3558 = sphi %s3545, %s3657
                  %s3559 = sphi %s3548, %s3658
                $region277: #{forward.3} parent=266 // loop_header_branch
                  %3556 = sbr.rel (%p3553) target = $region281
                $region278: #{forward.3} parent=266 // loop_body
                  %v3560 = vld [vmem:[%s3558] sm:$0xff]
                  %3561 = vst [vmem:[%s3559] sm:$0xff] %v3560
                  %v3562 = vld [vmem:[%s3558 + $0x70] sm:$0xff]
                  %3563 = vst [vmem:[%s3559 + $0x20] sm:$0xff] %v3562
                  %v3564 = vld [vmem:[%s3558 + $0xe0] sm:$0xff]
                  %3565 = vst [vmem:[%s3559 + $0x40] sm:$0xff] %v3564
                  %v3566 = vld [vmem:[%s3558 + $0x150] sm:$0xff]
                  %3567 = vst [vmem:[%s3559 + $0x60] sm:$0xff] %v3566
                  %v3568 = vld [vmem:[%s3558 + $0x1c0] sm:$0xff]
                  %3569 = vst [vmem:[%s3559 + $0x80] sm:$0xff] %v3568
                  %v3570 = vld [vmem:[%s3558 + $0x230] sm:$0xff]
                  %3571 = vst [vmem:[%s3559 + $0xa0] sm:$0xff] %v3570
                  %v3572 = vld [vmem:[%s3558 + $0x2a0] sm:$0xff]
                  %3573 = vst [vmem:[%s3559 + $0xc0] sm:$0xff] %v3572
                  %v3574 = vld [vmem:[%s3558 + $0x310] sm:$0xff]
                  %3575 = vst [vmem:[%s3559 + $0xe0] sm:$0xff] %v3574
                  %v3576 = vld [vmem:[%s3558 + $0x380] sm:$0xff]
                  %3577 = vst [vmem:[%s3559 + $0x100] sm:$0xff] %v3576
                  %v3578 = vld [vmem:[%s3558 + $0x3f0] sm:$0xff]
                  %3579 = vst [vmem:[%s3559 + $0x120] sm:$0xff] %v3578
                  %v3580 = vld [vmem:[%s3558 + $0x460] sm:$0xff]
                  %3581 = vst [vmem:[%s3559 + $0x140] sm:$0xff] %v3580
                  %v3582 = vld [vmem:[%s3558 + $0x4d0] sm:$0xff]
                  %3583 = vst [vmem:[%s3559 + $0x160] sm:$0xff] %v3582
                  %v3584 = vld [vmem:[%s3558 + $0x540] sm:$0xff]
                  %3585 = vst [vmem:[%s3559 + $0x180] sm:$0xff] %v3584
                  %v3586 = vld [vmem:[%s3558 + $0x5b0] sm:$0xff]
                  %3587 = vst [vmem:[%s3559 + $0x1a0] sm:$0xff] %v3586
                  %v3588 = vld [vmem:[%s3558 + $0x620] sm:$0xff]
                  %3589 = vst [vmem:[%s3559 + $0x1c0] sm:$0xff] %v3588
                  %v3590 = vld [vmem:[%s3558 + $0x690] sm:$0xff]
                  %3591 = vst [vmem:[%s3559 + $0x1e0] sm:$0xff] %v3590
                  %v3592 = vld [vmem:[%s3558 + $0x700] sm:$0xff]
                  %3593 = vst [vmem:[%s3559 + $0x200] sm:$0xff] %v3592
                  %v3594 = vld [vmem:[%s3558 + $0x770] sm:$0xff]
                  %3595 = vst [vmem:[%s3559 + $0x220] sm:$0xff] %v3594
                  %v3596 = vld [vmem:[%s3558 + $0x7e0] sm:$0xff]
                  %3597 = vst [vmem:[%s3559 + $0x240] sm:$0xff] %v3596
                  %v3598 = vld [vmem:[%s3558 + $0x850] sm:$0xff]
                  %3599 = vst [vmem:[%s3559 + $0x260] sm:$0xff] %v3598
                  %v3600 = vld [vmem:[%s3558 + $0x8c0] sm:$0xff]
                  %3601 = vst [vmem:[%s3559 + $0x280] sm:$0xff] %v3600
                  %v3602 = vld [vmem:[%s3558 + $0x930] sm:$0xff]
                  %3603 = vst [vmem:[%s3559 + $0x2a0] sm:$0xff] %v3602
                  %v3604 = vld [vmem:[%s3558 + $0x9a0] sm:$0xff]
                  %3605 = vst [vmem:[%s3559 + $0x2c0] sm:$0xff] %v3604
                  %v3606 = vld [vmem:[%s3558 + $0xa10] sm:$0xff]
                  %3607 = vst [vmem:[%s3559 + $0x2e0] sm:$0xff] %v3606
                  %v3608 = vld [vmem:[%s3558 + $0xa80] sm:$0xff]
                  %3609 = vst [vmem:[%s3559 + $0x300] sm:$0xff] %v3608
                  %v3610 = vld [vmem:[%s3558 + $0xaf0] sm:$0xff]
                  %3611 = vst [vmem:[%s3559 + $0x320] sm:$0xff] %v3610
                  %v3612 = vld [vmem:[%s3558 + $0xb60] sm:$0xff]
                  %3613 = vst [vmem:[%s3559 + $0x340] sm:$0xff] %v3612
                  %v3614 = vld [vmem:[%s3558 + $0xbd0] sm:$0xff]
                  %3615 = vst [vmem:[%s3559 + $0x360] sm:$0xff] %v3614
                  %v3616 = vld [vmem:[%s3558 + $0xc40] sm:$0xff]
                  %3617 = vst [vmem:[%s3559 + $0x380] sm:$0xff] %v3616
                  %v3618 = vld [vmem:[%s3558 + $0xcb0] sm:$0xff]
                  %3619 = vst [vmem:[%s3559 + $0x3a0] sm:$0xff] %v3618
                  %v3620 = vld [vmem:[%s3558 + $0xd20] sm:$0xff]
                  %3621 = vst [vmem:[%s3559 + $0x3c0] sm:$0xff] %v3620
                  %v3622 = vld [vmem:[%s3558 + $0xd90] sm:$0xff]
                  %3623 = vst [vmem:[%s3559 + $0x3e0] sm:$0xff] %v3622
                  %v3624 = vld [vmem:[%s3558 + $0xe00] sm:$0xff]
                  %3625 = vst [vmem:[%s3559 + $0x400] sm:$0xff] %v3624
                  %v3626 = vld [vmem:[%s3558 + $0xe70] sm:$0xff]
                  %3627 = vst [vmem:[%s3559 + $0x420] sm:$0xff] %v3626
                  %v3628 = vld [vmem:[%s3558 + $0xee0] sm:$0xff]
                  %3629 = vst [vmem:[%s3559 + $0x440] sm:$0xff] %v3628
                  %v3630 = vld [vmem:[%s3558 + $0xf50] sm:$0xff]
                  %3631 = vst [vmem:[%s3559 + $0x460] sm:$0xff] %v3630
                  %v3632 = vld [vmem:[%s3558 + $0xfc0] sm:$0xff]
                  %3633 = vst [vmem:[%s3559 + $0x480] sm:$0xff] %v3632
                  %v3634 = vld [vmem:[%s3558 + $0x1030] sm:$0xff]
                  %3635 = vst [vmem:[%s3559 + $0x4a0] sm:$0xff] %v3634
                  %v3636 = vld [vmem:[%s3558 + $0x10a0] sm:$0xff]
                  %3637 = vst [vmem:[%s3559 + $0x4c0] sm:$0xff] %v3636
                  %v3638 = vld [vmem:[%s3558 + $0x1110] sm:$0xff]
                  %3639 = vst [vmem:[%s3559 + $0x4e0] sm:$0xff] %v3638
                  %v3640 = vld [vmem:[%s3558 + $0x1180] sm:$0xff]
                  %3641 = vst [vmem:[%s3559 + $0x500] sm:$0xff] %v3640
                  %v3642 = vld [vmem:[%s3558 + $0x11f0] sm:$0xff]
                  %3643 = vst [vmem:[%s3559 + $0x520] sm:$0xff] %v3642
                  %v3644 = vld [vmem:[%s3558 + $0x1260] sm:$0xff]
                  %3645 = vst [vmem:[%s3559 + $0x540] sm:$0xff] %v3644
                  %v3646 = vld [vmem:[%s3558 + $0x12d0] sm:$0xff]
                  %3647 = vst [vmem:[%s3559 + $0x560] sm:$0xff] %v3646
                  %v3648 = vld [vmem:[%s3558 + $0x1340] sm:$0xff]
                  %3649 = vst [vmem:[%s3559 + $0x580] sm:$0xff] %v3648
                  %v3650 = vld [vmem:[%s3558 + $0x13b0] sm:$0xff]
                  %3651 = vst [vmem:[%s3559 + $0x5a0] sm:$0xff] %v3650
                  %s3652 = sadd.s32 1, %s3557
                  %p3653 = scmp.ge.s32.totalorder %s3652, %s3541
                  %s3654 = scalar_select %p3653, 0, %s3652
                  %s3655 = smul.u32 %s3654, 8
                  %s3656 = smul.u32 %s3654, 8
                  %s3657 = scalar_lea.vmem %s3545, %s3655
                  %s3658 = scalar_lea.vmem %s3548, %s3656 [#allocation5]
                $region279: #{forward.3} parent=266 // loop_footer
                  %s3554 = sadd.s32 %s3552, 1
                $region280: #{forward.3} parent=266 // loop_footer_branch
                  %3551 = sbr.rel target = $region276
                $region281: #{forward.3} parent=266 // loop_exit
                  _
                %s3659 = sshllo.u32 0, %s3331
                loop: start=0, step=1, limit=1
                $region282: #{forward.3} parent=266 // loop_pre_header
                  _
                $region283: #{forward.3} parent=266 // loop_header
                  %s3661 = sphi 0, %s3665
                  %p3662 = scmp.ge.s32.totalorder %s3661, 1
                  %s3666 = sphi %s3333, %s3333
                  %s3667 = sphi %s3335, %s3335
                $region284: #{forward.3} parent=266 // loop_header_branch
                  %3664 = sbr.rel (%p3662) target = $region288
                $region285: #{forward.3} parent=266 // loop_body
                  %v3668 = vld [vmem:[%s3666] sm:%s3659]
                  %3669 = vst [vmem:[%s3667] sm:%s3659] %v3668
                  %v3670 = vld [vmem:[%s3666 + $0x70] sm:%s3659]
                  %3671 = vst [vmem:[%s3667 + $0x20] sm:%s3659] %v3670
                  %v3672 = vld [vmem:[%s3666 + $0xe0] sm:%s3659]
                  %3673 = vst [vmem:[%s3667 + $0x40] sm:%s3659] %v3672
                  %v3674 = vld [vmem:[%s3666 + $0x150] sm:%s3659]
                  %3675 = vst [vmem:[%s3667 + $0x60] sm:%s3659] %v3674
                  %v3676 = vld [vmem:[%s3666 + $0x1c0] sm:%s3659]
                  %3677 = vst [vmem:[%s3667 + $0x80] sm:%s3659] %v3676
                  %v3678 = vld [vmem:[%s3666 + $0x230] sm:%s3659]
                  %3679 = vst [vmem:[%s3667 + $0xa0] sm:%s3659] %v3678
                  %v3680 = vld [vmem:[%s3666 + $0x2a0] sm:%s3659]
                  %3681 = vst [vmem:[%s3667 + $0xc0] sm:%s3659] %v3680
                  %v3682 = vld [vmem:[%s3666 + $0x310] sm:%s3659]
                  %3683 = vst [vmem:[%s3667 + $0xe0] sm:%s3659] %v3682
                  %v3684 = vld [vmem:[%s3666 + $0x380] sm:%s3659]
                  %3685 = vst [vmem:[%s3667 + $0x100] sm:%s3659] %v3684
                  %v3686 = vld [vmem:[%s3666 + $0x3f0] sm:%s3659]
                  %3687 = vst [vmem:[%s3667 + $0x120] sm:%s3659] %v3686
                  %v3688 = vld [vmem:[%s3666 + $0x460] sm:%s3659]
                  %3689 = vst [vmem:[%s3667 + $0x140] sm:%s3659] %v3688
                  %v3690 = vld [vmem:[%s3666 + $0x4d0] sm:%s3659]
                  %3691 = vst [vmem:[%s3667 + $0x160] sm:%s3659] %v3690
                  %v3692 = vld [vmem:[%s3666 + $0x540] sm:%s3659]
                  %3693 = vst [vmem:[%s3667 + $0x180] sm:%s3659] %v3692
                  %v3694 = vld [vmem:[%s3666 + $0x5b0] sm:%s3659]
                  %3695 = vst [vmem:[%s3667 + $0x1a0] sm:%s3659] %v3694
                  %v3696 = vld [vmem:[%s3666 + $0x620] sm:%s3659]
                  %3697 = vst [vmem:[%s3667 + $0x1c0] sm:%s3659] %v3696
                  %v3698 = vld [vmem:[%s3666 + $0x690] sm:%s3659]
                  %3699 = vst [vmem:[%s3667 + $0x1e0] sm:%s3659] %v3698
                  %v3700 = vld [vmem:[%s3666 + $0x700] sm:%s3659]
                  %3701 = vst [vmem:[%s3667 + $0x200] sm:%s3659] %v3700
                  %v3702 = vld [vmem:[%s3666 + $0x770] sm:%s3659]
                  %3703 = vst [vmem:[%s3667 + $0x220] sm:%s3659] %v3702
                  %v3704 = vld [vmem:[%s3666 + $0x7e0] sm:%s3659]
                  %3705 = vst [vmem:[%s3667 + $0x240] sm:%s3659] %v3704
                  %v3706 = vld [vmem:[%s3666 + $0x850] sm:%s3659]
                  %3707 = vst [vmem:[%s3667 + $0x260] sm:%s3659] %v3706
                  %v3708 = vld [vmem:[%s3666 + $0x8c0] sm:%s3659]
                  %3709 = vst [vmem:[%s3667 + $0x280] sm:%s3659] %v3708
                  %v3710 = vld [vmem:[%s3666 + $0x930] sm:%s3659]
                  %3711 = vst [vmem:[%s3667 + $0x2a0] sm:%s3659] %v3710
                  %v3712 = vld [vmem:[%s3666 + $0x9a0] sm:%s3659]
                  %3713 = vst [vmem:[%s3667 + $0x2c0] sm:%s3659] %v3712
                  %v3714 = vld [vmem:[%s3666 + $0xa10] sm:%s3659]
                  %3715 = vst [vmem:[%s3667 + $0x2e0] sm:%s3659] %v3714
                  %v3716 = vld [vmem:[%s3666 + $0xa80] sm:%s3659]
                  %3717 = vst [vmem:[%s3667 + $0x300] sm:%s3659] %v3716
                  %v3718 = vld [vmem:[%s3666 + $0xaf0] sm:%s3659]
                  %3719 = vst [vmem:[%s3667 + $0x320] sm:%s3659] %v3718
                  %v3720 = vld [vmem:[%s3666 + $0xb60] sm:%s3659]
                  %3721 = vst [vmem:[%s3667 + $0x340] sm:%s3659] %v3720
                  %v3722 = vld [vmem:[%s3666 + $0xbd0] sm:%s3659]
                  %3723 = vst [vmem:[%s3667 + $0x360] sm:%s3659] %v3722
                  %v3724 = vld [vmem:[%s3666 + $0xc40] sm:%s3659]
                  %3725 = vst [vmem:[%s3667 + $0x380] sm:%s3659] %v3724
                  %v3726 = vld [vmem:[%s3666 + $0xcb0] sm:%s3659]
                  %3727 = vst [vmem:[%s3667 + $0x3a0] sm:%s3659] %v3726
                  %v3728 = vld [vmem:[%s3666 + $0xd20] sm:%s3659]
                  %3729 = vst [vmem:[%s3667 + $0x3c0] sm:%s3659] %v3728
                  %v3730 = vld [vmem:[%s3666 + $0xd90] sm:%s3659]
                  %3731 = vst [vmem:[%s3667 + $0x3e0] sm:%s3659] %v3730
                  %v3732 = vld [vmem:[%s3666 + $0xe00] sm:%s3659]
                  %3733 = vst [vmem:[%s3667 + $0x400] sm:%s3659] %v3732
                  %v3734 = vld [vmem:[%s3666 + $0xe70] sm:%s3659]
                  %3735 = vst [vmem:[%s3667 + $0x420] sm:%s3659] %v3734
                  %v3736 = vld [vmem:[%s3666 + $0xee0] sm:%s3659]
                  %3737 = vst [vmem:[%s3667 + $0x440] sm:%s3659] %v3736
                  %v3738 = vld [vmem:[%s3666 + $0xf50] sm:%s3659]
                  %3739 = vst [vmem:[%s3667 + $0x460] sm:%s3659] %v3738
                  %v3740 = vld [vmem:[%s3666 + $0xfc0] sm:%s3659]
                  %3741 = vst [vmem:[%s3667 + $0x480] sm:%s3659] %v3740
                  %v3742 = vld [vmem:[%s3666 + $0x1030] sm:%s3659]
                  %3743 = vst [vmem:[%s3667 + $0x4a0] sm:%s3659] %v3742
                  %v3744 = vld [vmem:[%s3666 + $0x10a0] sm:%s3659]
                  %3745 = vst [vmem:[%s3667 + $0x4c0] sm:%s3659] %v3744
                  %v3746 = vld [vmem:[%s3666 + $0x1110] sm:%s3659]
                  %3747 = vst [vmem:[%s3667 + $0x4e0] sm:%s3659] %v3746
                  %v3748 = vld [vmem:[%s3666 + $0x1180] sm:%s3659]
                  %3749 = vst [vmem:[%s3667 + $0x500] sm:%s3659] %v3748
                  %v3750 = vld [vmem:[%s3666 + $0x11f0] sm:%s3659]
                  %3751 = vst [vmem:[%s3667 + $0x520] sm:%s3659] %v3750
                  %v3752 = vld [vmem:[%s3666 + $0x1260] sm:%s3659]
                  %3753 = vst [vmem:[%s3667 + $0x540] sm:%s3659] %v3752
                  %v3754 = vld [vmem:[%s3666 + $0x12d0] sm:%s3659]
                  %3755 = vst [vmem:[%s3667 + $0x560] sm:%s3659] %v3754
                  %v3756 = vld [vmem:[%s3666 + $0x1340] sm:%s3659]
                  %3757 = vst [vmem:[%s3667 + $0x580] sm:%s3659] %v3756
                  %v3758 = vld [vmem:[%s3666 + $0x13b0] sm:%s3659]
                  %3759 = vst [vmem:[%s3667 + $0x5a0] sm:%s3659] %v3758
                $region286: #{forward.3} parent=266 // loop_footer
                  %s3665 = sadd.s32 1, %s3661
                $region287: #{forward.3} parent=266 // loop_footer_branch
                  %3660 = sbr.rel target = $region283
                $region288: #{forward.3} parent=266 // loop_exit
                  _
              $region267: #{forward.3} parent=233 // pred_fallthru
                _
            $region234: #{forward.3} parent=229 // pred_fallthru
              _
            // Predicated region
            $region235: #{forward.3} parent=229 // pred_check
              %p2896 = pneg %p2892
            $region236: #{forward.3} parent=229 // pred_check_branch
              %2898 = sbr.rel (%p2896) target = $region238
            $region237: #{forward.3} parent=229 // pred_region
              %s2899 = sshllo.u32 0, %s2888
              loop: start=0, step=1, limit=1
              $region239: #{forward.3} parent=237 // loop_pre_header
                _
              $region240: #{forward.3} parent=237 // loop_header
                %s2901 = sphi 0, %s2905
                %p2902 = scmp.ge.s32.totalorder %s2901, 1
                %s2906 = sphi %s2887, %s2887
                %s2907 = sphi %s2879, %s2879
              $region241: #{forward.3} parent=237 // loop_header_branch
                %2904 = sbr.rel (%p2902) target = $region245
              $region242: #{forward.3} parent=237 // loop_body
                %v2908 = vld [vmem:[%s2906] sm:%s2899]
                %2909 = vst [vmem:[%s2907] sm:%s2899] %v2908
                %v2910 = vld [vmem:[%s2906 + $0x70] sm:%s2899]
                %2911 = vst [vmem:[%s2907 + $0x20] sm:%s2899] %v2910
                %v2912 = vld [vmem:[%s2906 + $0xe0] sm:%s2899]
                %2913 = vst [vmem:[%s2907 + $0x40] sm:%s2899] %v2912
                %v2914 = vld [vmem:[%s2906 + $0x150] sm:%s2899]
                %2915 = vst [vmem:[%s2907 + $0x60] sm:%s2899] %v2914
                %v2916 = vld [vmem:[%s2906 + $0x1c0] sm:%s2899]
                %2917 = vst [vmem:[%s2907 + $0x80] sm:%s2899] %v2916
                %v2918 = vld [vmem:[%s2906 + $0x230] sm:%s2899]
                %2919 = vst [vmem:[%s2907 + $0xa0] sm:%s2899] %v2918
                %v2920 = vld [vmem:[%s2906 + $0x2a0] sm:%s2899]
                %2921 = vst [vmem:[%s2907 + $0xc0] sm:%s2899] %v2920
                %v2922 = vld [vmem:[%s2906 + $0x310] sm:%s2899]
                %2923 = vst [vmem:[%s2907 + $0xe0] sm:%s2899] %v2922
                %v2924 = vld [vmem:[%s2906 + $0x380] sm:%s2899]
                %2925 = vst [vmem:[%s2907 + $0x100] sm:%s2899] %v2924
                %v2926 = vld [vmem:[%s2906 + $0x3f0] sm:%s2899]
                %2927 = vst [vmem:[%s2907 + $0x120] sm:%s2899] %v2926
                %v2928 = vld [vmem:[%s2906 + $0x460] sm:%s2899]
                %2929 = vst [vmem:[%s2907 + $0x140] sm:%s2899] %v2928
                %v2930 = vld [vmem:[%s2906 + $0x4d0] sm:%s2899]
                %2931 = vst [vmem:[%s2907 + $0x160] sm:%s2899] %v2930
                %v2932 = vld [vmem:[%s2906 + $0x540] sm:%s2899]
                %2933 = vst [vmem:[%s2907 + $0x180] sm:%s2899] %v2932
                %v2934 = vld [vmem:[%s2906 + $0x5b0] sm:%s2899]
                %2935 = vst [vmem:[%s2907 + $0x1a0] sm:%s2899] %v2934
                %v2936 = vld [vmem:[%s2906 + $0x620] sm:%s2899]
                %2937 = vst [vmem:[%s2907 + $0x1c0] sm:%s2899] %v2936
                %v2938 = vld [vmem:[%s2906 + $0x690] sm:%s2899]
                %2939 = vst [vmem:[%s2907 + $0x1e0] sm:%s2899] %v2938
                %v2940 = vld [vmem:[%s2906 + $0x700] sm:%s2899]
                %2941 = vst [vmem:[%s2907 + $0x200] sm:%s2899] %v2940
                %v2942 = vld [vmem:[%s2906 + $0x770] sm:%s2899]
                %2943 = vst [vmem:[%s2907 + $0x220] sm:%s2899] %v2942
                %v2944 = vld [vmem:[%s2906 + $0x7e0] sm:%s2899]
                %2945 = vst [vmem:[%s2907 + $0x240] sm:%s2899] %v2944
                %v2946 = vld [vmem:[%s2906 + $0x850] sm:%s2899]
                %2947 = vst [vmem:[%s2907 + $0x260] sm:%s2899] %v2946
                %v2948 = vld [vmem:[%s2906 + $0x8c0] sm:%s2899]
                %2949 = vst [vmem:[%s2907 + $0x280] sm:%s2899] %v2948
                %v2950 = vld [vmem:[%s2906 + $0x930] sm:%s2899]
                %2951 = vst [vmem:[%s2907 + $0x2a0] sm:%s2899] %v2950
                %v2952 = vld [vmem:[%s2906 + $0x9a0] sm:%s2899]
                %2953 = vst [vmem:[%s2907 + $0x2c0] sm:%s2899] %v2952
                %v2954 = vld [vmem:[%s2906 + $0xa10] sm:%s2899]
                %2955 = vst [vmem:[%s2907 + $0x2e0] sm:%s2899] %v2954
                %v2956 = vld [vmem:[%s2906 + $0xa80] sm:%s2899]
                %2957 = vst [vmem:[%s2907 + $0x300] sm:%s2899] %v2956
                %v2958 = vld [vmem:[%s2906 + $0xaf0] sm:%s2899]
                %2959 = vst [vmem:[%s2907 + $0x320] sm:%s2899] %v2958
                %v2960 = vld [vmem:[%s2906 + $0xb60] sm:%s2899]
                %2961 = vst [vmem:[%s2907 + $0x340] sm:%s2899] %v2960
                %v2962 = vld [vmem:[%s2906 + $0xbd0] sm:%s2899]
                %2963 = vst [vmem:[%s2907 + $0x360] sm:%s2899] %v2962
                %v2964 = vld [vmem:[%s2906 + $0xc40] sm:%s2899]
                %2965 = vst [vmem:[%s2907 + $0x380] sm:%s2899] %v2964
                %v2966 = vld [vmem:[%s2906 + $0xcb0] sm:%s2899]
                %2967 = vst [vmem:[%s2907 + $0x3a0] sm:%s2899] %v2966
                %v2968 = vld [vmem:[%s2906 + $0xd20] sm:%s2899]
                %2969 = vst [vmem:[%s2907 + $0x3c0] sm:%s2899] %v2968
                %v2970 = vld [vmem:[%s2906 + $0xd90] sm:%s2899]
                %2971 = vst [vmem:[%s2907 + $0x3e0] sm:%s2899] %v2970
                %v2972 = vld [vmem:[%s2906 + $0xe00] sm:%s2899]
                %2973 = vst [vmem:[%s2907 + $0x400] sm:%s2899] %v2972
                %v2974 = vld [vmem:[%s2906 + $0xe70] sm:%s2899]
                %2975 = vst [vmem:[%s2907 + $0x420] sm:%s2899] %v2974
                %v2976 = vld [vmem:[%s2906 + $0xee0] sm:%s2899]
                %2977 = vst [vmem:[%s2907 + $0x440] sm:%s2899] %v2976
                %v2978 = vld [vmem:[%s2906 + $0xf50] sm:%s2899]
                %2979 = vst [vmem:[%s2907 + $0x460] sm:%s2899] %v2978
                %v2980 = vld [vmem:[%s2906 + $0xfc0] sm:%s2899]
                %2981 = vst [vmem:[%s2907 + $0x480] sm:%s2899] %v2980
                %v2982 = vld [vmem:[%s2906 + $0x1030] sm:%s2899]
                %2983 = vst [vmem:[%s2907 + $0x4a0] sm:%s2899] %v2982
                %v2984 = vld [vmem:[%s2906 + $0x10a0] sm:%s2899]
                %2985 = vst [vmem:[%s2907 + $0x4c0] sm:%s2899] %v2984
                %v2986 = vld [vmem:[%s2906 + $0x1110] sm:%s2899]
                %2987 = vst [vmem:[%s2907 + $0x4e0] sm:%s2899] %v2986
                %v2988 = vld [vmem:[%s2906 + $0x1180] sm:%s2899]
                %2989 = vst [vmem:[%s2907 + $0x500] sm:%s2899] %v2988
                %v2990 = vld [vmem:[%s2906 + $0x11f0] sm:%s2899]
                %2991 = vst [vmem:[%s2907 + $0x520] sm:%s2899] %v2990
                %v2992 = vld [vmem:[%s2906 + $0x1260] sm:%s2899]
                %2993 = vst [vmem:[%s2907 + $0x540] sm:%s2899] %v2992
                %v2994 = vld [vmem:[%s2906 + $0x12d0] sm:%s2899]
                %2995 = vst [vmem:[%s2907 + $0x560] sm:%s2899] %v2994
                %v2996 = vld [vmem:[%s2906 + $0x1340] sm:%s2899]
                %2997 = vst [vmem:[%s2907 + $0x580] sm:%s2899] %v2996
                %v2998 = vld [vmem:[%s2906 + $0x13b0] sm:%s2899]
                %2999 = vst [vmem:[%s2907 + $0x5a0] sm:%s2899] %v2998
              $region243: #{forward.3} parent=237 // loop_footer
                %s2905 = sadd.s32 1, %s2901
              $region244: #{forward.3} parent=237 // loop_footer_branch
                %2900 = sbr.rel target = $region240
              $region245: #{forward.3} parent=237 // loop_exit
                _
            $region238: #{forward.3} parent=229 // pred_fallthru
              _
          $region230: #{forward.3} parent=225 // pred_fallthru
            _
          %3760 = vnop
        $region226: #{forward.3} parent=23 // pred_fallthru
          _
      $region24: #{forward.3} parent=5 // pred_fallthru
        _
      %p3761 = scmp.le.s32.totalorder 1, %s12
      %p3762 = scmp.lt.s32.totalorder %s12, 5
      %p3763 = pnand %p3761, %p3762
      %p3764 = pneg %p3763
      // Predicated region
      $region289: #{forward.3} parent=5 // pred_check
        _
      $region290: #{forward.3} parent=5 // pred_check_branch
        %3766 = sbr.rel (%p3763) target = $region292
      $region291: #{forward.3} parent=5 // pred_region
        %s3767 = ssub.s32 %s12, 1
        %s3768 = sand.u32 %s67, 1
        %s3769 = sand.u32 %s67, 1
        %s3770 = smul.addr %s3769, 1472
        %s3771 = scalar_lea.vmem [#allocation2], %s3770
        // Predicated region
        $region293: #{forward.3} parent=291 // pred_check
          %p3772 = pneg %p80
        $region294: #{forward.3} parent=291 // pred_check_branch
          %3774 = sbr.rel (%p3772) target = $region296
        $region295: #{forward.3} parent=291 // pred_region
          _
        $region296: #{forward.3} parent=291 // pred_fallthru
          _
        %s3775 = sand.u32 %s93, 1
        %s3776 = sand.u32 %s93, 1
        %s3777 = smul.addr %s3776, 1472
        %s3778 = scalar_lea.vmem [#allocation3], %s3777
        // Predicated region
        $region297: #{forward.3} parent=291 // pred_check
          %p3779 = pneg %p106
        $region298: #{forward.3} parent=291 // pred_check_branch
          %3781 = sbr.rel (%p3779) target = $region300
        $region299: #{forward.3} parent=291 // pred_region
          _
        $region300: #{forward.3} parent=291 // pred_fallthru
          _
        %s3782 = sand.u32 %s119, 1
        %s3783 = sand.u32 %s119, 1
        %s3784 = smul.addr %s3783, 1472
        %s3785 = scalar_lea.vmem [#allocation4], %s3784
        // Predicated region
        $region301: #{forward.3} parent=291 // pred_check
          %p3786 = pneg %p132
        $region302: #{forward.3} parent=291 // pred_check_branch
          %3788 = sbr.rel (%p3786) target = $region304
        $region303: #{forward.3} parent=291 // pred_region
          _
        $region304: #{forward.3} parent=291 // pred_fallthru
          _
        %s3789 = sand.u32 %s145, 1
        %s3790 = sand.u32 %s145, 1
        %s3791 = smul.addr %s3790, 1472
        %s3792 = scalar_lea.vmem [#allocation5], %s3791
        // Predicated region
        $region305: #{forward.3} parent=291 // pred_check
          %p3793 = pneg %p158
        $region306: #{forward.3} parent=291 // pred_check_branch
          %3795 = sbr.rel (%p3793) target = $region308
        $region307: #{forward.3} parent=291 // pred_region
          _
        $region308: #{forward.3} parent=291 // pred_fallthru
          _
        %p3796 = pneg %p33
        %p3797 = pneg %p30
        %p3798 = pneg %p54
        %p3799 = pneg %p51
        %s3800 = sand.u32 %s67, 1
        %s3801 = sand.u32 %s67, 1
        %s3802 = smul.addr %s3801, 1472
        %s3803 = scalar_lea.vmem [#allocation2], %s3802
        %p3804 = pneg %p80
        %p3805 = pneg %p77
        %s3806 = sand.u32 %s93, 1
        %s3807 = sand.u32 %s93, 1
        %s3808 = smul.addr %s3807, 1472
        %s3809 = scalar_lea.vmem [#allocation3], %s3808
        %p3810 = pneg %p106
        %p3811 = pneg %p103
        %s3812 = sand.u32 %s119, 1
        %s3813 = sand.u32 %s119, 1
        %s3814 = smul.addr %s3813, 1472
        %s3815 = scalar_lea.vmem [#allocation4], %s3814
        %p3816 = pneg %p132
        %p3817 = pneg %p129
        %s3818 = sand.u32 %s145, 1
        %s3819 = sand.u32 %s145, 1
        %s3820 = smul.addr %s3819, 1472
        %s3821 = scalar_lea.vmem [#allocation5], %s3820
        %p3822 = pneg %p158
        %p3823 = pneg %p155
        %p3824 = pneg %p184
        %p3825 = pneg %p181
        %s3826 = sand.u32 %s171, 1
        %s3827 = sand.u32 %s171, 1
        %s3828 = smul.addr %s3827, 32
        %s3829 = scalar_lea.vmem [#allocation6], %s3828
        %s3830 = smul.u32 4, %s17
        %s3831 = ssub.s32 14, %s3830
        %p3832 = scmp.lt.s32.totalorder %s3831, 4
        %s3833 = scalar_select %p3832, %s3831, 4
        %s3834 = smul.u32 5888, %s3833
        %s3835 = smul.u32 4, %s17
        %s3836 = ssub.s32 14, %s3835
        %p3837 = scmp.lt.s32.totalorder %s3836, 4
        %s3838 = scalar_select %p3837, %s3836, 4
        %s3839 = smul.u32 5888, %s3838
        %s3840 = smul.u32 4, %s17
        %s3841 = ssub.s32 14, %s3840
        %p3842 = scmp.lt.s32.totalorder %s3841, 4
        %s3843 = scalar_select %p3842, %s3841, 4
        %s3844 = smul.u32 5888, %s3843
        %s3845 = smul.u32 4, %s17
        %s3846 = ssub.s32 14, %s3845
        %p3847 = scmp.lt.s32.totalorder %s3846, 4
        %s3848 = scalar_select %p3847, %s3846, 4
        %s3849 = smul.u32 5888, %s3848
        %s3850 = smul.u32 4, %s17
        %s3851 = ssub.s32 14, %s3850
        %p3852 = scmp.lt.s32.totalorder %s3851, 4
        %s3853 = scalar_select %p3852, %s3851, 4
        %s3854 = smul.u32 128, %s3853
        %v3855 = vld [vmem:[%s0] sm:$0x3f]
        %v3856 = vld [vmem:[%s0 + $0x8] sm:$0x3f]
        %v3857 = vld [vmem:[%s0 + $0x10] sm:$0x3f]
        %v3858 = vld [vmem:[%s3771] sm:$0xff]
        %v3859 = vld [vmem:[%s3771 + $0x8] sm:$0xff]
        %v3860 = vld [vmem:[%s3771 + $0x10] sm:$0xff]
        %v3861 = vld [vmem:[%s3771 + $0x18] sm:$0xff]
        %v3862 = vld [vmem:[%s3771 + $0x20] sm:$0xff]
        %v3863 = vld [vmem:[%s3771 + $0x28] sm:$0xff]
        %v3864 = vld [vmem:[%s3771 + $0x30] sm:$0xff]
        %v3865 = vld [vmem:[%s3771 + $0x38] sm:$0xff]
        %v3866 = vld [vmem:[%s3771 + $0x40] sm:$0xff]
        %v3867 = vld [vmem:[%s3771 + $0x48] sm:$0xff]
        %v3868 = vld [vmem:[%s3771 + $0x50] sm:$0xff]
        %v3869 = vld [vmem:[%s3771 + $0x58] sm:$0xff]
        %v3870 = vld [vmem:[%s3771 + $0x60] sm:$0xff]
        %v3871 = vld [vmem:[%s3771 + $0x68] sm:$0xff]
        %v3872 = vld [vmem:[%s3771 + $0x70] sm:$0xff]
        %v3873 = vld [vmem:[%s3771 + $0x78] sm:$0xff]
        %v3874 = vld [vmem:[%s3771 + $0x80] sm:$0xff]
        %v3875 = vld [vmem:[%s3771 + $0x88] sm:$0xff]
        %v3876 = vld [vmem:[%s3771 + $0x90] sm:$0xff]
        %v3877 = vld [vmem:[%s3771 + $0x98] sm:$0xff]
        %v3878 = vld [vmem:[%s3771 + $0xa0] sm:$0xff]
        %v3879 = vld [vmem:[%s3771 + $0xa8] sm:$0xff]
        %v3880 = vld [vmem:[%s3771 + $0xb0] sm:$0xff]
        %v3881 = vld [vmem:[%s3771 + $0xb8] sm:$0xff]
        %v3882 = vld [vmem:[%s3771 + $0xc0] sm:$0xff]
        %v3883 = vld [vmem:[%s3771 + $0xc8] sm:$0xff]
        %v3884 = vld [vmem:[%s3771 + $0xd0] sm:$0xff]
        %v3885 = vld [vmem:[%s3771 + $0xd8] sm:$0xff]
        %v3886 = vld [vmem:[%s3771 + $0xe0] sm:$0xff]
        %v3887 = vld [vmem:[%s3771 + $0xe8] sm:$0xff]
        %v3888 = vld [vmem:[%s3771 + $0xf0] sm:$0xff]
        %v3889 = vld [vmem:[%s3771 + $0xf8] sm:$0xff]
        %v3890 = vld [vmem:[%s3771 + $0x100] sm:$0xff]
        %v3891 = vld [vmem:[%s3771 + $0x108] sm:$0xff]
        %v3892 = vld [vmem:[%s3771 + $0x110] sm:$0xff]
        %v3893 = vld [vmem:[%s3771 + $0x118] sm:$0xff]
        %v3894 = vld [vmem:[%s3771 + $0x120] sm:$0xff]
        %v3895 = vld [vmem:[%s3771 + $0x128] sm:$0xff]
        %v3896 = vld [vmem:[%s3771 + $0x130] sm:$0xff]
        %v3897 = vld [vmem:[%s3771 + $0x138] sm:$0xff]
        %v3898 = vld [vmem:[%s3771 + $0x140] sm:$0xff]
        %v3899 = vld [vmem:[%s3771 + $0x148] sm:$0xff]
        %v3900 = vld [vmem:[%s3771 + $0x150] sm:$0xff]
        %v3901 = vld [vmem:[%s3771 + $0x158] sm:$0xff]
        %v3902 = vld [vmem:[%s3771 + $0x160] sm:$0xff]
        %v3903 = vld [vmem:[%s3771 + $0x168] sm:$0xff]
        %v3904 = vld [vmem:[%s3771 + $0x170] sm:$0xff]
        %v3905 = vld [vmem:[%s3771 + $0x178] sm:$0xff]
        %v3906 = vld [vmem:[%s3771 + $0x180] sm:$0xff]
        %v3907 = vld [vmem:[%s3771 + $0x188] sm:$0xff]
        %v3908 = vld [vmem:[%s3771 + $0x190] sm:$0xff]
        %v3909 = vld [vmem:[%s3771 + $0x198] sm:$0xff]
        %v3910 = vld [vmem:[%s3771 + $0x1a0] sm:$0xff]
        %v3911 = vld [vmem:[%s3771 + $0x1a8] sm:$0xff]
        %v3912 = vld [vmem:[%s3771 + $0x1b0] sm:$0xff]
        %v3913 = vld [vmem:[%s3771 + $0x1b8] sm:$0xff]
        %v3914 = vld [vmem:[%s3771 + $0x1c0] sm:$0xff]
        %v3915 = vld [vmem:[%s3771 + $0x1c8] sm:$0xff]
        %v3916 = vld [vmem:[%s3771 + $0x1d0] sm:$0xff]
        %v3917 = vld [vmem:[%s3771 + $0x1d8] sm:$0xff]
        %v3918 = vld [vmem:[%s3771 + $0x1e0] sm:$0xff]
        %v3919 = vld [vmem:[%s3771 + $0x1e8] sm:$0xff]
        %v3920 = vld [vmem:[%s3771 + $0x1f0] sm:$0xff]
        %v3921 = vld [vmem:[%s3771 + $0x1f8] sm:$0xff]
        %v3922 = vld [vmem:[%s3771 + $0x200] sm:$0xff]
        %v3923 = vld [vmem:[%s3771 + $0x208] sm:$0xff]
        %v3924 = vld [vmem:[%s3771 + $0x210] sm:$0xff]
        %v3925 = vld [vmem:[%s3771 + $0x218] sm:$0xff]
        %v3926 = vld [vmem:[%s3771 + $0x220] sm:$0xff]
        %v3927 = vld [vmem:[%s3771 + $0x228] sm:$0xff]
        %v3928 = vld [vmem:[%s3771 + $0x230] sm:$0xff]
        %v3929 = vld [vmem:[%s3771 + $0x238] sm:$0xff]
        %v3930 = vld [vmem:[%s3771 + $0x240] sm:$0xff]
        %v3931 = vld [vmem:[%s3771 + $0x248] sm:$0xff]
        %v3932 = vld [vmem:[%s3771 + $0x250] sm:$0xff]
        %v3933 = vld [vmem:[%s3771 + $0x258] sm:$0xff]
        %v3934 = vld [vmem:[%s3771 + $0x260] sm:$0xff]
        %v3935 = vld [vmem:[%s3771 + $0x268] sm:$0xff]
        %v3936 = vld [vmem:[%s3771 + $0x270] sm:$0xff]
        %v3937 = vld [vmem:[%s3771 + $0x278] sm:$0xff]
        %v3938 = vld [vmem:[%s3771 + $0x280] sm:$0xff]
        %v3939 = vld [vmem:[%s3771 + $0x288] sm:$0xff]
        %v3940 = vld [vmem:[%s3771 + $0x290] sm:$0xff]
        %v3941 = vld [vmem:[%s3771 + $0x298] sm:$0xff]
        %v3942 = vld [vmem:[%s3771 + $0x2a0] sm:$0xff]
        %v3943 = vld [vmem:[%s3771 + $0x2a8] sm:$0xff]
        %v3944 = vld [vmem:[%s3771 + $0x2b0] sm:$0xff]
        %v3945 = vld [vmem:[%s3771 + $0x2b8] sm:$0xff]
        %v3946 = vld [vmem:[%s3771 + $0x2c0] sm:$0xff]
        %v3947 = vld [vmem:[%s3771 + $0x2c8] sm:$0xff]
        %v3948 = vld [vmem:[%s3771 + $0x2d0] sm:$0xff]
        %v3949 = vld [vmem:[%s3771 + $0x2d8] sm:$0xff]
        %v3950 = vld [vmem:[%s3771 + $0x2e0] sm:$0xff]
        %v3951 = vld [vmem:[%s3771 + $0x2e8] sm:$0xff]
        %v3952 = vld [vmem:[%s3771 + $0x2f0] sm:$0xff]
        %v3953 = vld [vmem:[%s3771 + $0x2f8] sm:$0xff]
        %v3954 = vld [vmem:[%s3771 + $0x300] sm:$0xff]
        %v3955 = vld [vmem:[%s3771 + $0x308] sm:$0xff]
        %v3956 = vld [vmem:[%s3771 + $0x310] sm:$0xff]
        %v3957 = vld [vmem:[%s3771 + $0x318] sm:$0xff]
        %v3958 = vld [vmem:[%s3771 + $0x320] sm:$0xff]
        %v3959 = vld [vmem:[%s3771 + $0x328] sm:$0xff]
        %v3960 = vld [vmem:[%s3771 + $0x330] sm:$0xff]
        %v3961 = vld [vmem:[%s3771 + $0x338] sm:$0xff]
        %v3962 = vld [vmem:[%s3771 + $0x340] sm:$0xff]
        %v3963 = vld [vmem:[%s3771 + $0x348] sm:$0xff]
        %v3964 = vld [vmem:[%s3771 + $0x350] sm:$0xff]
        %v3965 = vld [vmem:[%s3771 + $0x358] sm:$0xff]
        %v3966 = vld [vmem:[%s3771 + $0x360] sm:$0xff]
        %v3967 = vld [vmem:[%s3771 + $0x368] sm:$0xff]
        %v3968 = vld [vmem:[%s3771 + $0x370] sm:$0xff]
        %v3969 = vld [vmem:[%s3771 + $0x378] sm:$0xff]
        %v3970 = vld [vmem:[%s3771 + $0x380] sm:$0xff]
        %v3971 = vld [vmem:[%s3771 + $0x388] sm:$0xff]
        %v3972 = vld [vmem:[%s3771 + $0x390] sm:$0xff]
        %v3973 = vld [vmem:[%s3771 + $0x398] sm:$0xff]
        %v3974 = vld [vmem:[%s3771 + $0x3a0] sm:$0xff]
        %v3975 = vld [vmem:[%s3771 + $0x3a8] sm:$0xff]
        %v3976 = vld [vmem:[%s3771 + $0x3b0] sm:$0xff]
        %v3977 = vld [vmem:[%s3771 + $0x3b8] sm:$0xff]
        %v3978 = vld [vmem:[%s3771 + $0x3c0] sm:$0xff]
        %v3979 = vld [vmem:[%s3771 + $0x3c8] sm:$0xff]
        %v3980 = vld [vmem:[%s3771 + $0x3d0] sm:$0xff]
        %v3981 = vld [vmem:[%s3771 + $0x3d8] sm:$0xff]
        %v3982 = vld [vmem:[%s3771 + $0x3e0] sm:$0xff]
        %v3983 = vld [vmem:[%s3771 + $0x3e8] sm:$0xff]
        %v3984 = vld [vmem:[%s3771 + $0x3f0] sm:$0xff]
        %v3985 = vld [vmem:[%s3771 + $0x3f8] sm:$0xff]
        %v3986 = vld [vmem:[%s3771 + $0x400] sm:$0xff]
        %v3987 = vld [vmem:[%s3771 + $0x408] sm:$0xff]
        %v3988 = vld [vmem:[%s3771 + $0x410] sm:$0xff]
        %v3989 = vld [vmem:[%s3771 + $0x418] sm:$0xff]
        %v3990 = vld [vmem:[%s3771 + $0x420] sm:$0xff]
        %v3991 = vld [vmem:[%s3771 + $0x428] sm:$0xff]
        %v3992 = vld [vmem:[%s3771 + $0x430] sm:$0xff]
        %v3993 = vld [vmem:[%s3771 + $0x438] sm:$0xff]
        %v3994 = vld [vmem:[%s3771 + $0x440] sm:$0xff]
        %v3995 = vld [vmem:[%s3771 + $0x448] sm:$0xff]
        %v3996 = vld [vmem:[%s3771 + $0x450] sm:$0xff]
        %v3997 = vld [vmem:[%s3771 + $0x458] sm:$0xff]
        %v3998 = vld [vmem:[%s3771 + $0x460] sm:$0xff]
        %v3999 = vld [vmem:[%s3771 + $0x468] sm:$0xff]
        %v4000 = vld [vmem:[%s3771 + $0x470] sm:$0xff]
        %v4001 = vld [vmem:[%s3771 + $0x478] sm:$0xff]
        %v4002 = vld [vmem:[%s3771 + $0x480] sm:$0xff]
        %v4003 = vld [vmem:[%s3771 + $0x488] sm:$0xff]
        %v4004 = vld [vmem:[%s3771 + $0x490] sm:$0xff]
        %v4005 = vld [vmem:[%s3771 + $0x498] sm:$0xff]
        %v4006 = vld [vmem:[%s3771 + $0x4a0] sm:$0xff]
        %v4007 = vld [vmem:[%s3771 + $0x4a8] sm:$0xff]
        %v4008 = vld [vmem:[%s3771 + $0x4b0] sm:$0xff]
        %v4009 = vld [vmem:[%s3771 + $0x4b8] sm:$0xff]
        %v4010 = vld [vmem:[%s3771 + $0x4c0] sm:$0xff]
        %v4011 = vld [vmem:[%s3771 + $0x4c8] sm:$0xff]
        %v4012 = vld [vmem:[%s3771 + $0x4d0] sm:$0xff]
        %v4013 = vld [vmem:[%s3771 + $0x4d8] sm:$0xff]
        %v4014 = vld [vmem:[%s3771 + $0x4e0] sm:$0xff]
        %v4015 = vld [vmem:[%s3771 + $0x4e8] sm:$0xff]
        %v4016 = vld [vmem:[%s3771 + $0x4f0] sm:$0xff]
        %v4017 = vld [vmem:[%s3771 + $0x4f8] sm:$0xff]
        %v4018 = vld [vmem:[%s3771 + $0x500] sm:$0xff]
        %v4019 = vld [vmem:[%s3771 + $0x508] sm:$0xff]
        %v4020 = vld [vmem:[%s3771 + $0x510] sm:$0xff]
        %v4021 = vld [vmem:[%s3771 + $0x518] sm:$0xff]
        %v4022 = vld [vmem:[%s3771 + $0x520] sm:$0xff]
        %v4023 = vld [vmem:[%s3771 + $0x528] sm:$0xff]
        %v4024 = vld [vmem:[%s3771 + $0x530] sm:$0xff]
        %v4025 = vld [vmem:[%s3771 + $0x538] sm:$0xff]
        %v4026 = vld [vmem:[%s3771 + $0x540] sm:$0xff]
        %v4027 = vld [vmem:[%s3771 + $0x548] sm:$0xff]
        %v4028 = vld [vmem:[%s3771 + $0x550] sm:$0xff]
        %v4029 = vld [vmem:[%s3771 + $0x558] sm:$0xff]
        %v4030 = vld [vmem:[%s3771 + $0x560] sm:$0xff]
        %v4031 = vld [vmem:[%s3771 + $0x568] sm:$0xff]
        %v4032 = vld [vmem:[%s3771 + $0x570] sm:$0xff]
        %v4033 = vld [vmem:[%s3771 + $0x578] sm:$0xff]
        %v4034 = vld [vmem:[%s3771 + $0x580] sm:$0xff]
        %v4035 = vld [vmem:[%s3771 + $0x588] sm:$0xff]
        %v4036 = vld [vmem:[%s3771 + $0x590] sm:$0xff]
        %v4037 = vld [vmem:[%s3771 + $0x598] sm:$0xff]
        %v4038 = vld [vmem:[%s3771 + $0x5a0] sm:$0x7]
        %v4039 = vld [vmem:[%s3771 + $0x5a8] sm:$0x7]
        %v4040 = vld [vmem:[%s3771 + $0x5b0] sm:$0x7]
        %v4041 = vld [vmem:[%s3771 + $0x5b8] sm:$0x7]
        %vm4042 = vcmask 875520
        %v4044 = vsel %vm4042, %v3857, 0
        %vm4046 = vcmask 1042432
        %v4048 = vsel %vm4046, %v4038, 0
        %v4051 = vsel %vm4046, %v4039, 0
        %v4054 = vsel %vm4046, %v4040, 0
        %v4057 = vsel %vm4046, %v4041, 0
        %4059 = vmatprep.subr.mxu0 %v3859
        %4060 = vmatpush1.msra.mxu0 %v3858
        %4061 = vmatprep.subr.mxu0 %v3863
        %4062 = vmatpush1.msra.mxu0 %v3862
        %4063 = vmatprep.subr.mxu0 %v3867
        %4064 = vmatpush1.msra.mxu0 %v3866
        %4065 = vmatprep.subr.mxu0 %v3871
        %4066 = vmatpush1.msra.mxu0 %v3870
        %4067 = vmatprep.subr.mxu0 %v3875
        %4068 = vmatpush1.msra.mxu0 %v3874
        %4069 = vmatprep.subr.mxu0 %v3879
        %4070 = vmatpush1.msra.mxu0 %v3878
        %4071 = vmatprep.subr.mxu0 %v3883
        %4072 = vmatpush1.msra.mxu0 %v3882
        %4073 = vmatprep.subr.mxu0 %v3887
        %4074 = vmatpush1.msra.mxu0 %v3886
        %4075 = vmatprep.subr.mxu0 %v3891
        %4076 = vmatpush1.msra.mxu0 %v3890
        %4077 = vmatprep.subr.mxu0 %v3895
        %4078 = vmatpush1.msra.mxu0 %v3894
        %4079 = vmatprep.subr.mxu0 %v3899
        %4080 = vmatpush1.msra.mxu0 %v3898
        %4081 = vmatprep.subr.mxu0 %v3903
        %4082 = vmatpush1.msra.mxu0 %v3902
        %4083 = vmatprep.subr.mxu0 %v3907
        %4084 = vmatpush1.msra.mxu0 %v3906
        %4085 = vmatprep.subr.mxu0 %v3911
        %4086 = vmatpush1.msra.mxu0 %v3910
        %4087 = vmatprep.subr.mxu0 %v3915
        %4088 = vmatpush1.msra.mxu0 %v3914
        %4089 = vmatprep.subr.mxu0 %v3919
        %4090 = vmatpush1.msra.mxu0 %v3918
        %4091 = vmatprep.subr.mxu0 %v3923
        %4092 = vmatpush1.msra.mxu0 %v3922
        %4093 = vmatprep.subr.mxu0 %v3927
        %4094 = vmatpush1.msra.mxu0 %v3926
        %4095 = vmatprep.subr.mxu0 %v3931
        %4096 = vmatpush1.msra.mxu0 %v3930
        %4097 = vmatprep.subr.mxu0 %v3935
        %4098 = vmatpush1.msra.mxu0 %v3934
        %4099 = vmatprep.subr.mxu0 %v3939
        %4100 = vmatpush1.msra.mxu0 %v3938
        %4101 = vmatprep.subr.mxu0 %v3943
        %4102 = vmatpush1.msra.mxu0 %v3942
        %4103 = vmatprep.subr.mxu0 %v3947
        %4104 = vmatpush1.msra.mxu0 %v3946
        %4105 = vmatprep.subr.mxu0 %v3951
        %4106 = vmatpush1.msra.mxu0 %v3950
        %4107 = vmatprep.subr.mxu0 %v3955
        %4108 = vmatpush1.msra.mxu0 %v3954
        %4109 = vmatprep.subr.mxu0 %v3959
        %4110 = vmatpush1.msra.mxu0 %v3958
        %4111 = vmatprep.subr.mxu0 %v3963
        %4112 = vmatpush1.msra.mxu0 %v3962
        %4113 = vmatprep.subr.mxu0 %v3967
        %4114 = vmatpush1.msra.mxu0 %v3966
        %4115 = vmatprep.subr.mxu0 %v3971
        %4116 = vmatpush1.msra.mxu0 %v3970
        %4117 = vmatprep.subr.mxu0 %v3975
        %4118 = vmatpush1.msra.mxu0 %v3974
        %4119 = vmatprep.subr.mxu0 %v3979
        %4120 = vmatpush1.msra.mxu0 %v3978
        %4121 = vmatprep.subr.mxu0 %v3983
        %4122 = vmatpush1.msra.mxu0 %v3982
        %4123 = vmatprep.mubr.f32.mxu0 %v3856
        %4124 = vmatmul.mubr.f32.gmra.mrb[0].mxu0 %v3855
        %v4125 = vpop.f32.mrb[0].mxu0
        %v4126 = vadd.f32 0.0, %v4125
        %v4127 = vpop.f32.mrb[0].mxu0
        %v4128 = vadd.f32 0.0, %v4127
        %4129 = vdwg.mxu0
        %4130 = vmatprep.subr.mxu0 %v3987
        %4131 = vmatpush1.msra.mxu0 %v3986
        %4132 = vmatprep.subr.mxu0 %v3991
        %4133 = vmatpush1.msra.mxu0 %v3990
        %4134 = vmatprep.subr.mxu0 %v3995
        %4135 = vmatpush1.msra.mxu0 %v3994
        %4136 = vmatprep.subr.mxu0 %v3999
        %4137 = vmatpush1.msra.mxu0 %v3998
        %4138 = vmatprep.subr.mxu0 %v4003
        %4139 = vmatpush1.msra.mxu0 %v4002
        %4140 = vmatprep.subr.mxu0 %v4007
        %4141 = vmatpush1.msra.mxu0 %v4006
        %4142 = vmatprep.subr.mxu0 %v4011
        %4143 = vmatpush1.msra.mxu0 %v4010
        %4144 = vmatprep.subr.mxu0 %v4015
        %4145 = vmatpush1.msra.mxu0 %v4014
        %4146 = vmatprep.subr.mxu0 %v4019
        %4147 = vmatpush1.msra.mxu0 %v4018
        %4148 = vmatprep.subr.mxu0 %v4023
        %4149 = vmatpush1.msra.mxu0 %v4022
        %4150 = vmatprep.subr.mxu0 %v4027
        %4151 = vmatpush1.msra.mxu0 %v4026
        %4152 = vmatprep.subr.mxu0 %v4031
        %4153 = vmatpush1.msra.mxu0 %v4030
        %4154 = vmatprep.subr.mxu0 %v4035
        %4155 = vmatpush1.msra.mxu0 %v4034
        %4156 = vmatprep.subr.mxu0 %v4051
        %4157 = vmatpush1.msra.mxu0 %v4048
        %4158 = vmatprep.subr.mxu0 0.0
        %4159 = vmatpush1.msra.mxu0 0.0
        %4160 = vmatprep.subr.mxu0 0.0
        %4161 = vmatpush1.msra.mxu0 0.0
        %4162 = vmatprep.subr.mxu0 0.0
        %4163 = vmatpush1.msra.mxu0 0.0
        %4164 = vmatprep.subr.mxu0 0.0
        %4165 = vmatpush1.msra.mxu0 0.0
        %4166 = vmatprep.subr.mxu0 0.0
        %4167 = vmatpush1.msra.mxu0 0.0
        %4168 = vmatprep.subr.mxu0 0.0
        %4169 = vmatpush1.msra.mxu0 0.0
        %4170 = vmatprep.subr.mxu0 0.0
        %4171 = vmatpush1.msra.mxu0 0.0
        %4172 = vmatprep.subr.mxu0 0.0
        %4173 = vmatpush1.msra.mxu0 0.0
        %4174 = vmatprep.subr.mxu0 0.0
        %4175 = vmatpush1.msra.mxu0 0.0
        %4176 = vmatprep.subr.mxu0 0.0
        %4177 = vmatpush1.msra.mxu0 0.0
        %4178 = vmatprep.subr.mxu0 0.0
        %4179 = vmatpush1.msra.mxu0 0.0
        %4180 = vmatprep.subr.mxu0 0.0
        %4181 = vmatpush1.msra.mxu0 0.0
        %4182 = vmatprep.subr.mxu0 0.0
        %4183 = vmatpush1.msra.mxu0 0.0
        %4184 = vmatprep.subr.mxu0 0.0
        %4185 = vmatpush1.msra.mxu0 0.0
        %4186 = vmatprep.subr.mxu0 0.0
        %4187 = vmatpush1.msra.mxu0 0.0
        %4188 = vmatprep.subr.mxu0 0.0
        %4189 = vmatpush1.msra.mxu0 0.0
        %4190 = vmatprep.subr.mxu0 0.0
        %4191 = vmatpush1.msra.mxu0 0.0
        %4192 = vmatprep.subr.mxu0 0.0
        %4193 = vmatpush1.msra.mxu0 0.0
        %4194 = vmatprep.mubr.f32.mxu0 0.0
        %4195 = vmatmul.mubr.f32.gmra.mrb[0].mxu0 %v4044
        %v4196 = vpop.f32.mrb[0].mxu0
        %v4197 = vadd.f32 %v4126, %v4196
        %v4198 = vpop.f32.mrb[0].mxu0
        %v4199 = vadd.f32 %v4128, %v4198
        %4200 = vdwg.mxu0
        %4201 = vmatprep.subr.mxu0 %v3861
        %4202 = vmatpush1.msra.mxu0 %v3860
        %4203 = vmatprep.subr.mxu0 %v3865
        %4204 = vmatpush1.msra.mxu0 %v3864
        %4205 = vmatprep.subr.mxu0 %v3869
        %4206 = vmatpush1.msra.mxu0 %v3868
        %4207 = vmatprep.subr.mxu0 %v3873
        %4208 = vmatpush1.msra.mxu0 %v3872
        %4209 = vmatprep.subr.mxu0 %v3877
        %4210 = vmatpush1.msra.mxu0 %v3876
        %4211 = vmatprep.subr.mxu0 %v3881
        %4212 = vmatpush1.msra.mxu0 %v3880
        %4213 = vmatprep.subr.mxu0 %v3885
        %4214 = vmatpush1.msra.mxu0 %v3884
        %4215 = vmatprep.subr.mxu0 %v3889
        %4216 = vmatpush1.msra.mxu0 %v3888
        %4217 = vmatprep.subr.mxu0 %v3893
        %4218 = vmatpush1.msra.mxu0 %v3892
        %4219 = vmatprep.subr.mxu0 %v3897
        %4220 = vmatpush1.msra.mxu0 %v3896
        %4221 = vmatprep.subr.mxu0 %v3901
        %4222 = vmatpush1.msra.mxu0 %v3900
        %4223 = vmatprep.subr.mxu0 %v3905
        %4224 = vmatpush1.msra.mxu0 %v3904
        %4225 = vmatprep.subr.mxu0 %v3909
        %4226 = vmatpush1.msra.mxu0 %v3908
        %4227 = vmatprep.subr.mxu0 %v3913
        %4228 = vmatpush1.msra.mxu0 %v3912
        %4229 = vmatprep.subr.mxu0 %v3917
        %4230 = vmatpush1.msra.mxu0 %v3916
        %4231 = vmatprep.subr.mxu0 %v3921
        %4232 = vmatpush1.msra.mxu0 %v3920
        %4233 = vmatprep.subr.mxu0 %v3925
        %4234 = vmatpush1.msra.mxu0 %v3924
        %4235 = vmatprep.subr.mxu0 %v3929
        %4236 = vmatpush1.msra.mxu0 %v3928
        %4237 = vmatprep.subr.mxu0 %v3933
        %4238 = vmatpush1.msra.mxu0 %v3932
        %4239 = vmatprep.subr.mxu0 %v3937
        %4240 = vmatpush1.msra.mxu0 %v3936
        %4241 = vmatprep.subr.mxu0 %v3941
        %4242 = vmatpush1.msra.mxu0 %v3940
        %4243 = vmatprep.subr.mxu0 %v3945
        %4244 = vmatpush1.msra.mxu0 %v3944
        %4245 = vmatprep.subr.mxu0 %v3949
        %4246 = vmatpush1.msra.mxu0 %v3948
        %4247 = vmatprep.subr.mxu0 %v3953
        %4248 = vmatpush1.msra.mxu0 %v3952
        %4249 = vmatprep.subr.mxu0 %v3957
        %4250 = vmatpush1.msra.mxu0 %v3956
        %4251 = vmatprep.subr.mxu0 %v3961
        %4252 = vmatpush1.msra.mxu0 %v3960
        %4253 = vmatprep.subr.mxu0 %v3965
        %4254 = vmatpush1.msra.mxu0 %v3964
        %4255 = vmatprep.subr.mxu0 %v3969
        %4256 = vmatpush1.msra.mxu0 %v3968
        %4257 = vmatprep.subr.mxu0 %v3973
        %4258 = vmatpush1.msra.mxu0 %v3972
        %4259 = vmatprep.subr.mxu0 %v3977
        %4260 = vmatpush1.msra.mxu0 %v3976
        %4261 = vmatprep.subr.mxu0 %v3981
        %4262 = vmatpush1.msra.mxu0 %v3980
        %4263 = vmatprep.subr.mxu0 %v3985
        %4264 = vmatpush1.msra.mxu0 %v3984
        %4265 = vmatprep.mubr.f32.mxu0 %v3856
        %4266 = vmatmul.mubr.f32.gmra.mrb[0].mxu0 %v3855
        %v4267 = vpop.f32.mrb[0].mxu0
        %v4268 = vadd.f32 0.0, %v4267
        %v4269 = vpop.f32.mrb[0].mxu0
        %v4270 = vadd.f32 0.0, %v4269
        %4271 = vdwg.mxu0
        %4272 = vmatprep.subr.mxu0 %v3989
        %4273 = vmatpush1.msra.mxu0 %v3988
        %4274 = vmatprep.subr.mxu0 %v3993
        %4275 = vmatpush1.msra.mxu0 %v3992
        %4276 = vmatprep.subr.mxu0 %v3997
        %4277 = vmatpush1.msra.mxu0 %v3996
        %4278 = vmatprep.subr.mxu0 %v4001
        %4279 = vmatpush1.msra.mxu0 %v4000
        %4280 = vmatprep.subr.mxu0 %v4005
        %4281 = vmatpush1.msra.mxu0 %v4004
        %4282 = vmatprep.subr.mxu0 %v4009
        %4283 = vmatpush1.msra.mxu0 %v4008
        %4284 = vmatprep.subr.mxu0 %v4013
        %4285 = vmatpush1.msra.mxu0 %v4012
        %4286 = vmatprep.subr.mxu0 %v4017
        %4287 = vmatpush1.msra.mxu0 %v4016
        %4288 = vmatprep.subr.mxu0 %v4021
        %4289 = vmatpush1.msra.mxu0 %v4020
        %4290 = vmatprep.subr.mxu0 %v4025
        %4291 = vmatpush1.msra.mxu0 %v4024
        %4292 = vmatprep.subr.mxu0 %v4029
        %4293 = vmatpush1.msra.mxu0 %v4028
        %4294 = vmatprep.subr.mxu0 %v4033
        %4295 = vmatpush1.msra.mxu0 %v4032
        %4296 = vmatprep.subr.mxu0 %v4037
        %4297 = vmatpush1.msra.mxu0 %v4036
        %4298 = vmatprep.subr.mxu0 %v4057
        %4299 = vmatpush1.msra.mxu0 %v4054
        %4300 = vmatprep.subr.mxu0 0.0
        %4301 = vmatpush1.msra.mxu0 0.0
        %4302 = vmatprep.subr.mxu0 0.0
        %4303 = vmatpush1.msra.mxu0 0.0
        %4304 = vmatprep.subr.mxu0 0.0
        %4305 = vmatpush1.msra.mxu0 0.0
        %4306 = vmatprep.subr.mxu0 0.0
        %4307 = vmatpush1.msra.mxu0 0.0
        %4308 = vmatprep.subr.mxu0 0.0
        %4309 = vmatpush1.msra.mxu0 0.0
        %4310 = vmatprep.subr.mxu0 0.0
        %4311 = vmatpush1.msra.mxu0 0.0
        %4312 = vmatprep.subr.mxu0 0.0
        %4313 = vmatpush1.msra.mxu0 0.0
        %4314 = vmatprep.subr.mxu0 0.0
        %4315 = vmatpush1.msra.mxu0 0.0
        %4316 = vmatprep.subr.mxu0 0.0
        %4317 = vmatpush1.msra.mxu0 0.0
        %4318 = vmatprep.subr.mxu0 0.0
        %4319 = vmatpush1.msra.mxu0 0.0
        %4320 = vmatprep.subr.mxu0 0.0
        %4321 = vmatpush1.msra.mxu0 0.0
        %4322 = vmatprep.subr.mxu0 0.0
        %4323 = vmatpush1.msra.mxu0 0.0
        %4324 = vmatprep.subr.mxu0 0.0
        %4325 = vmatpush1.msra.mxu0 0.0
        %4326 = vmatprep.subr.mxu0 0.0
        %4327 = vmatpush1.msra.mxu0 0.0
        %4328 = vmatprep.subr.mxu0 0.0
        %4329 = vmatpush1.msra.mxu0 0.0
        %4330 = vmatprep.subr.mxu0 0.0
        %4331 = vmatpush1.msra.mxu0 0.0
        %4332 = vmatprep.subr.mxu0 0.0
        %4333 = vmatpush1.msra.mxu0 0.0
        %4334 = vmatprep.subr.mxu0 0.0
        %4335 = vmatpush1.msra.mxu0 0.0
        %4336 = vmatprep.mubr.f32.mxu0 0.0
        %4337 = vmatmul.mubr.f32.gmra.mrb[0].mxu0 %v4044
        %v4338 = vpop.f32.mrb[0].mxu0
        %v4339 = vadd.f32 %v4268, %v4338
        %v4340 = vpop.f32.mrb[0].mxu0
        %v4341 = vadd.f32 %v4270, %v4340
        %4342 = vdwg.mxu0
        %v4343 = vld [vmem:[%s3778] sm:$0xff]
        %v4344 = vld [vmem:[%s3778 + $0x8] sm:$0xff]
        %v4345 = vld [vmem:[%s3778 + $0x10] sm:$0xff]
        %v4346 = vld [vmem:[%s3778 + $0x18] sm:$0xff]
        %v4347 = vld [vmem:[%s3778 + $0x20] sm:$0xff]
        %v4348 = vld [vmem:[%s3778 + $0x28] sm:$0xff]
        %v4349 = vld [vmem:[%s3778 + $0x30] sm:$0xff]
        %v4350 = vld [vmem:[%s3778 + $0x38] sm:$0xff]
        %v4351 = vld [vmem:[%s3778 + $0x40] sm:$0xff]
        %v4352 = vld [vmem:[%s3778 + $0x48] sm:$0xff]
        %v4353 = vld [vmem:[%s3778 + $0x50] sm:$0xff]
        %v4354 = vld [vmem:[%s3778 + $0x58] sm:$0xff]
        %v4355 = vld [vmem:[%s3778 + $0x60] sm:$0xff]
        %v4356 = vld [vmem:[%s3778 + $0x68] sm:$0xff]
        %v4357 = vld [vmem:[%s3778 + $0x70] sm:$0xff]
        %v4358 = vld [vmem:[%s3778 + $0x78] sm:$0xff]
        %v4359 = vld [vmem:[%s3778 + $0x80] sm:$0xff]
        %v4360 = vld [vmem:[%s3778 + $0x88] sm:$0xff]
        %v4361 = vld [vmem:[%s3778 + $0x90] sm:$0xff]
        %v4362 = vld [vmem:[%s3778 + $0x98] sm:$0xff]
        %v4363 = vld [vmem:[%s3778 + $0xa0] sm:$0xff]
        %v4364 = vld [vmem:[%s3778 + $0xa8] sm:$0xff]
        %v4365 = vld [vmem:[%s3778 + $0xb0] sm:$0xff]
        %v4366 = vld [vmem:[%s3778 + $0xb8] sm:$0xff]
        %v4367 = vld [vmem:[%s3778 + $0xc0] sm:$0xff]
        %v4368 = vld [vmem:[%s3778 + $0xc8] sm:$0xff]
        %v4369 = vld [vmem:[%s3778 + $0xd0] sm:$0xff]
        %v4370 = vld [vmem:[%s3778 + $0xd8] sm:$0xff]
        %v4371 = vld [vmem:[%s3778 + $0xe0] sm:$0xff]
        %v4372 = vld [vmem:[%s3778 + $0xe8] sm:$0xff]
        %v4373 = vld [vmem:[%s3778 + $0xf0] sm:$0xff]
        %v4374 = vld [vmem:[%s3778 + $0xf8] sm:$0xff]
        %v4375 = vld [vmem:[%s3778 + $0x100] sm:$0xff]
        %v4376 = vld [vmem:[%s3778 + $0x108] sm:$0xff]
        %v4377 = vld [vmem:[%s3778 + $0x110] sm:$0xff]
        %v4378 = vld [vmem:[%s3778 + $0x118] sm:$0xff]
        %v4379 = vld [vmem:[%s3778 + $0x120] sm:$0xff]
        %v4380 = vld [vmem:[%s3778 + $0x128] sm:$0xff]
        %v4381 = vld [vmem:[%s3778 + $0x130] sm:$0xff]
        %v4382 = vld [vmem:[%s3778 + $0x138] sm:$0xff]
        %v4383 = vld [vmem:[%s3778 + $0x140] sm:$0xff]
        %v4384 = vld [vmem:[%s3778 + $0x148] sm:$0xff]
        %v4385 = vld [vmem:[%s3778 + $0x150] sm:$0xff]
        %v4386 = vld [vmem:[%s3778 + $0x158] sm:$0xff]
        %v4387 = vld [vmem:[%s3778 + $0x160] sm:$0xff]
        %v4388 = vld [vmem:[%s3778 + $0x168] sm:$0xff]
        %v4389 = vld [vmem:[%s3778 + $0x170] sm:$0xff]
        %v4390 = vld [vmem:[%s3778 + $0x178] sm:$0xff]
        %v4391 = vld [vmem:[%s3778 + $0x180] sm:$0xff]
        %v4392 = vld [vmem:[%s3778 + $0x188] sm:$0xff]
        %v4393 = vld [vmem:[%s3778 + $0x190] sm:$0xff]
        %v4394 = vld [vmem:[%s3778 + $0x198] sm:$0xff]
        %v4395 = vld [vmem:[%s3778 + $0x1a0] sm:$0xff]
        %v4396 = vld [vmem:[%s3778 + $0x1a8] sm:$0xff]
        %v4397 = vld [vmem:[%s3778 + $0x1b0] sm:$0xff]
        %v4398 = vld [vmem:[%s3778 + $0x1b8] sm:$0xff]
        %v4399 = vld [vmem:[%s3778 + $0x1c0] sm:$0xff]
        %v4400 = vld [vmem:[%s3778 + $0x1c8] sm:$0xff]
        %v4401 = vld [vmem:[%s3778 + $0x1d0] sm:$0xff]
        %v4402 = vld [vmem:[%s3778 + $0x1d8] sm:$0xff]
        %v4403 = vld [vmem:[%s3778 + $0x1e0] sm:$0xff]
        %v4404 = vld [vmem:[%s3778 + $0x1e8] sm:$0xff]
        %v4405 = vld [vmem:[%s3778 + $0x1f0] sm:$0xff]
        %v4406 = vld [vmem:[%s3778 + $0x1f8] sm:$0xff]
        %v4407 = vld [vmem:[%s3778 + $0x200] sm:$0xff]
        %v4408 = vld [vmem:[%s3778 + $0x208] sm:$0xff]
        %v4409 = vld [vmem:[%s3778 + $0x210] sm:$0xff]
        %v4410 = vld [vmem:[%s3778 + $0x218] sm:$0xff]
        %v4411 = vld [vmem:[%s3778 + $0x220] sm:$0xff]
        %v4412 = vld [vmem:[%s3778 + $0x228] sm:$0xff]
        %v4413 = vld [vmem:[%s3778 + $0x230] sm:$0xff]
        %v4414 = vld [vmem:[%s3778 + $0x238] sm:$0xff]
        %v4415 = vld [vmem:[%s3778 + $0x240] sm:$0xff]
        %v4416 = vld [vmem:[%s3778 + $0x248] sm:$0xff]
        %v4417 = vld [vmem:[%s3778 + $0x250] sm:$0xff]
        %v4418 = vld [vmem:[%s3778 + $0x258] sm:$0xff]
        %v4419 = vld [vmem:[%s3778 + $0x260] sm:$0xff]
        %v4420 = vld [vmem:[%s3778 + $0x268] sm:$0xff]
        %v4421 = vld [vmem:[%s3778 + $0x270] sm:$0xff]
        %v4422 = vld [vmem:[%s3778 + $0x278] sm:$0xff]
        %v4423 = vld [vmem:[%s3778 + $0x280] sm:$0xff]
        %v4424 = vld [vmem:[%s3778 + $0x288] sm:$0xff]
        %v4425 = vld [vmem:[%s3778 + $0x290] sm:$0xff]
        %v4426 = vld [vmem:[%s3778 + $0x298] sm:$0xff]
        %v4427 = vld [vmem:[%s3778 + $0x2a0] sm:$0xff]
        %v4428 = vld [vmem:[%s3778 + $0x2a8] sm:$0xff]
        %v4429 = vld [vmem:[%s3778 + $0x2b0] sm:$0xff]
        %v4430 = vld [vmem:[%s3778 + $0x2b8] sm:$0xff]
        %v4431 = vld [vmem:[%s3778 + $0x2c0] sm:$0xff]
        %v4432 = vld [vmem:[%s3778 + $0x2c8] sm:$0xff]
        %v4433 = vld [vmem:[%s3778 + $0x2d0] sm:$0xff]
        %v4434 = vld [vmem:[%s3778 + $0x2d8] sm:$0xff]
        %v4435 = vld [vmem:[%s3778 + $0x2e0] sm:$0xff]
        %v4436 = vld [vmem:[%s3778 + $0x2e8] sm:$0xff]
        %v4437 = vld [vmem:[%s3778 + $0x2f0] sm:$0xff]
        %v4438 = vld [vmem:[%s3778 + $0x2f8] sm:$0xff]
        %v4439 = vld [vmem:[%s3778 + $0x300] sm:$0xff]
        %v4440 = vld [vmem:[%s3778 + $0x308] sm:$0xff]
        %v4441 = vld [vmem:[%s3778 + $0x310] sm:$0xff]
        %v4442 = vld [vmem:[%s3778 + $0x318] sm:$0xff]
        %v4443 = vld [vmem:[%s3778 + $0x320] sm:$0xff]
        %v4444 = vld [vmem:[%s3778 + $0x328] sm:$0xff]
        %v4445 = vld [vmem:[%s3778 + $0x330] sm:$0xff]
        %v4446 = vld [vmem:[%s3778 + $0x338] sm:$0xff]
        %v4447 = vld [vmem:[%s3778 + $0x340] sm:$0xff]
        %v4448 = vld [vmem:[%s3778 + $0x348] sm:$0xff]
        %v4449 = vld [vmem:[%s3778 + $0x350] sm:$0xff]
        %v4450 = vld [vmem:[%s3778 + $0x358] sm:$0xff]
        %v4451 = vld [vmem:[%s3778 + $0x360] sm:$0xff]
        %v4452 = vld [vmem:[%s3778 + $0x368] sm:$0xff]
        %v4453 = vld [vmem:[%s3778 + $0x370] sm:$0xff]
        %v4454 = vld [vmem:[%s3778 + $0x378] sm:$0xff]
        %v4455 = vld [vmem:[%s3778 + $0x380] sm:$0xff]
        %v4456 = vld [vmem:[%s3778 + $0x388] sm:$0xff]
        %v4457 = vld [vmem:[%s3778 + $0x390] sm:$0xff]
        %v4458 = vld [vmem:[%s3778 + $0x398] sm:$0xff]
        %v4459 = vld [vmem:[%s3778 + $0x3a0] sm:$0xff]
        %v4460 = vld [vmem:[%s3778 + $0x3a8] sm:$0xff]
        %v4461 = vld [vmem:[%s3778 + $0x3b0] sm:$0xff]
        %v4462 = vld [vmem:[%s3778 + $0x3b8] sm:$0xff]
        %v4463 = vld [vmem:[%s3778 + $0x3c0] sm:$0xff]
        %v4464 = vld [vmem:[%s3778 + $0x3c8] sm:$0xff]
        %v4465 = vld [vmem:[%s3778 + $0x3d0] sm:$0xff]
        %v4466 = vld [vmem:[%s3778 + $0x3d8] sm:$0xff]
        %v4467 = vld [vmem:[%s3778 + $0x3e0] sm:$0xff]
        %v4468 = vld [vmem:[%s3778 + $0x3e8] sm:$0xff]
        %v4469 = vld [vmem:[%s3778 + $0x3f0] sm:$0xff]
        %v4470 = vld [vmem:[%s3778 + $0x3f8] sm:$0xff]
        %v4471 = vld [vmem:[%s3778 + $0x400] sm:$0xff]
        %v4472 = vld [vmem:[%s3778 + $0x408] sm:$0xff]
        %v4473 = vld [vmem:[%s3778 + $0x410] sm:$0xff]
        %v4474 = vld [vmem:[%s3778 + $0x418] sm:$0xff]
        %v4475 = vld [vmem:[%s3778 + $0x420] sm:$0xff]
        %v4476 = vld [vmem:[%s3778 + $0x428] sm:$0xff]
        %v4477 = vld [vmem:[%s3778 + $0x430] sm:$0xff]
        %v4478 = vld [vmem:[%s3778 + $0x438] sm:$0xff]
        %v4479 = vld [vmem:[%s3778 + $0x440] sm:$0xff]
        %v4480 = vld [vmem:[%s3778 + $0x448] sm:$0xff]
        %v4481 = vld [vmem:[%s3778 + $0x450] sm:$0xff]
        %v4482 = vld [vmem:[%s3778 + $0x458] sm:$0xff]
        %v4483 = vld [vmem:[%s3778 + $0x460] sm:$0xff]
        %v4484 = vld [vmem:[%s3778 + $0x468] sm:$0xff]
        %v4485 = vld [vmem:[%s3778 + $0x470] sm:$0xff]
        %v4486 = vld [vmem:[%s3778 + $0x478] sm:$0xff]
        %v4487 = vld [vmem:[%s3778 + $0x480] sm:$0xff]
        %v4488 = vld [vmem:[%s3778 + $0x488] sm:$0xff]
        %v4489 = vld [vmem:[%s3778 + $0x490] sm:$0xff]
        %v4490 = vld [vmem:[%s3778 + $0x498] sm:$0xff]
        %v4491 = vld [vmem:[%s3778 + $0x4a0] sm:$0xff]
        %v4492 = vld [vmem:[%s3778 + $0x4a8] sm:$0xff]
        %v4493 = vld [vmem:[%s3778 + $0x4b0] sm:$0xff]
        %v4494 = vld [vmem:[%s3778 + $0x4b8] sm:$0xff]
        %v4495 = vld [vmem:[%s3778 + $0x4c0] sm:$0xff]
        %v4496 = vld [vmem:[%s3778 + $0x4c8] sm:$0xff]
        %v4497 = vld [vmem:[%s3778 + $0x4d0] sm:$0xff]
        %v4498 = vld [vmem:[%s3778 + $0x4d8] sm:$0xff]
        %v4499 = vld [vmem:[%s3778 + $0x4e0] sm:$0xff]
        %v4500 = vld [vmem:[%s3778 + $0x4e8] sm:$0xff]
        %v4501 = vld [vmem:[%s3778 + $0x4f0] sm:$0xff]
        %v4502 = vld [vmem:[%s3778 + $0x4f8] sm:$0xff]
        %v4503 = vld [vmem:[%s3778 + $0x500] sm:$0xff]
        %v4504 = vld [vmem:[%s3778 + $0x508] sm:$0xff]
        %v4505 = vld [vmem:[%s3778 + $0x510] sm:$0xff]
        %v4506 = vld [vmem:[%s3778 + $0x518] sm:$0xff]
        %v4507 = vld [vmem:[%s3778 + $0x520] sm:$0xff]
        %v4508 = vld [vmem:[%s3778 + $0x528] sm:$0xff]
        %v4509 = vld [vmem:[%s3778 + $0x530] sm:$0xff]
        %v4510 = vld [vmem:[%s3778 + $0x538] sm:$0xff]
        %v4511 = vld [vmem:[%s3778 + $0x540] sm:$0xff]
        %v4512 = vld [vmem:[%s3778 + $0x548] sm:$0xff]
        %v4513 = vld [vmem:[%s3778 + $0x550] sm:$0xff]
        %v4514 = vld [vmem:[%s3778 + $0x558] sm:$0xff]
        %v4515 = vld [vmem:[%s3778 + $0x560] sm:$0xff]
        %v4516 = vld [vmem:[%s3778 + $0x568] sm:$0xff]
        %v4517 = vld [vmem:[%s3778 + $0x570] sm:$0xff]
        %v4518 = vld [vmem:[%s3778 + $0x578] sm:$0xff]
        %v4519 = vld [vmem:[%s3778 + $0x580] sm:$0xff]
        %v4520 = vld [vmem:[%s3778 + $0x588] sm:$0xff]
        %v4521 = vld [vmem:[%s3778 + $0x590] sm:$0xff]
        %v4522 = vld [vmem:[%s3778 + $0x598] sm:$0xff]
        %v4523 = vld [vmem:[%s3778 + $0x5a0] sm:$0x7]
        %v4524 = vld [vmem:[%s3778 + $0x5a8] sm:$0x7]
        %v4525 = vld [vmem:[%s3778 + $0x5b0] sm:$0x7]
        %v4526 = vld [vmem:[%s3778 + $0x5b8] sm:$0x7]
        %v4528 = vsel %vm4046, %v4523, 0
        %v4531 = vsel %vm4046, %v4524, 0
        %v4534 = vsel %vm4046, %v4525, 0
        %v4537 = vsel %vm4046, %v4526, 0
        %4539 = vmatprep.subr.mxu0 %v4344
        %4540 = vmatpush1.msra.mxu0 %v4343
        %4541 = vmatprep.subr.mxu0 %v4348
        %4542 = vmatpush1.msra.mxu0 %v4347
        %4543 = vmatprep.subr.mxu0 %v4352
        %4544 = vmatpush1.msra.mxu0 %v4351
        %4545 = vmatprep.subr.mxu0 %v4356
        %4546 = vmatpush1.msra.mxu0 %v4355
        %4547 = vmatprep.subr.mxu0 %v4360
        %4548 = vmatpush1.msra.mxu0 %v4359
        %4549 = vmatprep.subr.mxu0 %v4364
        %4550 = vmatpush1.msra.mxu0 %v4363
        %4551 = vmatprep.subr.mxu0 %v4368
        %4552 = vmatpush1.msra.mxu0 %v4367
        %4553 = vmatprep.subr.mxu0 %v4372
        %4554 = vmatpush1.msra.mxu0 %v4371
        %4555 = vmatprep.subr.mxu0 %v4376
        %4556 = vmatpush1.msra.mxu0 %v4375
        %4557 = vmatprep.subr.mxu0 %v4380
        %4558 = vmatpush1.msra.mxu0 %v4379
        %4559 = vmatprep.subr.mxu0 %v4384
        %4560 = vmatpush1.msra.mxu0 %v4383
        %4561 = vmatprep.subr.mxu0 %v4388
        %4562 = vmatpush1.msra.mxu0 %v4387
        %4563 = vmatprep.subr.mxu0 %v4392
        %4564 = vmatpush1.msra.mxu0 %v4391
        %4565 = vmatprep.subr.mxu0 %v4396
        %4566 = vmatpush1.msra.mxu0 %v4395
        %4567 = vmatprep.subr.mxu0 %v4400
        %4568 = vmatpush1.msra.mxu0 %v4399
        %4569 = vmatprep.subr.mxu0 %v4404
        %4570 = vmatpush1.msra.mxu0 %v4403
        %4571 = vmatprep.subr.mxu0 %v4408
        %4572 = vmatpush1.msra.mxu0 %v4407
        %4573 = vmatprep.subr.mxu0 %v4412
        %4574 = vmatpush1.msra.mxu0 %v4411
        %4575 = vmatprep.subr.mxu0 %v4416
        %4576 = vmatpush1.msra.mxu0 %v4415
        %4577 = vmatprep.subr.mxu0 %v4420
        %4578 = vmatpush1.msra.mxu0 %v4419
        %4579 = vmatprep.subr.mxu0 %v4424
        %4580 = vmatpush1.msra.mxu0 %v4423
        %4581 = vmatprep.subr.mxu0 %v4428
        %4582 = vmatpush1.msra.mxu0 %v4427
        %4583 = vmatprep.subr.mxu0 %v4432
        %4584 = vmatpush1.msra.mxu0 %v4431
        %4585 = vmatprep.subr.mxu0 %v4436
        %4586 = vmatpush1.msra.mxu0 %v4435
        %4587 = vmatprep.subr.mxu0 %v4440
        %4588 = vmatpush1.msra.mxu0 %v4439
        %4589 = vmatprep.subr.mxu0 %v4444
        %4590 = vmatpush1.msra.mxu0 %v4443
        %4591 = vmatprep.subr.mxu0 %v4448
        %4592 = vmatpush1.msra.mxu0 %v4447
        %4593 = vmatprep.subr.mxu0 %v4452
        %4594 = vmatpush1.msra.mxu0 %v4451
        %4595 = vmatprep.subr.mxu0 %v4456
        %4596 = vmatpush1.msra.mxu0 %v4455
        %4597 = vmatprep.subr.mxu0 %v4460
        %4598 = vmatpush1.msra.mxu0 %v4459
        %4599 = vmatprep.subr.mxu0 %v4464
        %4600 = vmatpush1.msra.mxu0 %v4463
        %4601 = vmatprep.subr.mxu0 %v4468
        %4602 = vmatpush1.msra.mxu0 %v4467
        %4603 = vmatprep.mubr.f32.mxu0 %v3856
        %4604 = vmatmul.mubr.f32.gmra.mrb[0].mxu0 %v3855
        %v4605 = vpop.f32.mrb[0].mxu0
        %v4606 = vadd.f32 0.0, %v4605
        %v4607 = vpop.f32.mrb[0].mxu0
        %v4608 = vadd.f32 0.0, %v4607
        %4609 = vdwg.mxu0
        %4610 = vmatprep.subr.mxu0 %v4472
        %4611 = vmatpush1.msra.mxu0 %v4471
        %4612 = vmatprep.subr.mxu0 %v4476
        %4613 = vmatpush1.msra.mxu0 %v4475
        %4614 = vmatprep.subr.mxu0 %v4480
        %4615 = vmatpush1.msra.mxu0 %v4479
        %4616 = vmatprep.subr.mxu0 %v4484
        %4617 = vmatpush1.msra.mxu0 %v4483
        %4618 = vmatprep.subr.mxu0 %v4488
        %4619 = vmatpush1.msra.mxu0 %v4487
        %4620 = vmatprep.subr.mxu0 %v4492
        %4621 = vmatpush1.msra.mxu0 %v4491
        %4622 = vmatprep.subr.mxu0 %v4496
        %4623 = vmatpush1.msra.mxu0 %v4495
        %4624 = vmatprep.subr.mxu0 %v4500
        %4625 = vmatpush1.msra.mxu0 %v4499
        %4626 = vmatprep.subr.mxu0 %v4504
        %4627 = vmatpush1.msra.mxu0 %v4503
        %4628 = vmatprep.subr.mxu0 %v4508
        %4629 = vmatpush1.msra.mxu0 %v4507
        %4630 = vmatprep.subr.mxu0 %v4512
        %4631 = vmatpush1.msra.mxu0 %v4511
        %4632 = vmatprep.subr.mxu0 %v4516
        %4633 = vmatpush1.msra.mxu0 %v4515
        %4634 = vmatprep.subr.mxu0 %v4520
        %4635 = vmatpush1.msra.mxu0 %v4519
        %4636 = vmatprep.subr.mxu0 %v4531
        %4637 = vmatpush1.msra.mxu0 %v4528
        %4638 = vmatprep.subr.mxu0 0.0
        %4639 = vmatpush1.msra.mxu0 0.0
        %4640 = vmatprep.subr.mxu0 0.0
        %4641 = vmatpush1.msra.mxu0 0.0
        %4642 = vmatprep.subr.mxu0 0.0
        %4643 = vmatpush1.msra.mxu0 0.0
        %4644 = vmatprep.subr.mxu0 0.0
        %4645 = vmatpush1.msra.mxu0 0.0
        %4646 = vmatprep.subr.mxu0 0.0
        %4647 = vmatpush1.msra.mxu0 0.0
        %4648 = vmatprep.subr.mxu0 0.0
        %4649 = vmatpush1.msra.mxu0 0.0
        %4650 = vmatprep.subr.mxu0 0.0
        %4651 = vmatpush1.msra.mxu0 0.0
        %4652 = vmatprep.subr.mxu0 0.0
        %4653 = vmatpush1.msra.mxu0 0.0
        %4654 = vmatprep.subr.mxu0 0.0
        %4655 = vmatpush1.msra.mxu0 0.0
        %4656 = vmatprep.subr.mxu0 0.0
        %4657 = vmatpush1.msra.mxu0 0.0
        %4658 = vmatprep.subr.mxu0 0.0
        %4659 = vmatpush1.msra.mxu0 0.0
        %4660 = vmatprep.subr.mxu0 0.0
        %4661 = vmatpush1.msra.mxu0 0.0
        %4662 = vmatprep.subr.mxu0 0.0
        %4663 = vmatpush1.msra.mxu0 0.0
        %4664 = vmatprep.subr.mxu0 0.0
        %4665 = vmatpush1.msra.mxu0 0.0
        %4666 = vmatprep.subr.mxu0 0.0
        %4667 = vmatpush1.msra.mxu0 0.0
        %4668 = vmatprep.subr.mxu0 0.0
        %4669 = vmatpush1.msra.mxu0 0.0
        %4670 = vmatprep.subr.mxu0 0.0
        %4671 = vmatpush1.msra.mxu0 0.0
        %4672 = vmatprep.subr.mxu0 0.0
        %4673 = vmatpush1.msra.mxu0 0.0
        %4674 = vmatprep.mubr.f32.mxu0 0.0
        %4675 = vmatmul.mubr.f32.gmra.mrb[0].mxu0 %v4044
        %v4676 = vpop.f32.mrb[0].mxu0
        %v4677 = vadd.f32 %v4606, %v4676
        %v4678 = vpop.f32.mrb[0].mxu0
        %v4679 = vadd.f32 %v4608, %v4678
        %4680 = vdwg.mxu0
        %4681 = vmatprep.subr.mxu0 %v4346
        %4682 = vmatpush1.msra.mxu0 %v4345
        %4683 = vmatprep.subr.mxu0 %v4350
        %4684 = vmatpush1.msra.mxu0 %v4349
        %4685 = vmatprep.subr.mxu0 %v4354
        %4686 = vmatpush1.msra.mxu0 %v4353
        %4687 = vmatprep.subr.mxu0 %v4358
        %4688 = vmatpush1.msra.mxu0 %v4357
        %4689 = vmatprep.subr.mxu0 %v4362
        %4690 = vmatpush1.msra.mxu0 %v4361
        %4691 = vmatprep.subr.mxu0 %v4366
        %4692 = vmatpush1.msra.mxu0 %v4365
        %4693 = vmatprep.subr.mxu0 %v4370
        %4694 = vmatpush1.msra.mxu0 %v4369
        %4695 = vmatprep.subr.mxu0 %v4374
        %4696 = vmatpush1.msra.mxu0 %v4373
        %4697 = vmatprep.subr.mxu0 %v4378
        %4698 = vmatpush1.msra.mxu0 %v4377
        %4699 = vmatprep.subr.mxu0 %v4382
        %4700 = vmatpush1.msra.mxu0 %v4381
        %4701 = vmatprep.subr.mxu0 %v4386
        %4702 = vmatpush1.msra.mxu0 %v4385
        %4703 = vmatprep.subr.mxu0 %v4390
        %4704 = vmatpush1.msra.mxu0 %v4389
        %4705 = vmatprep.subr.mxu0 %v4394
        %4706 = vmatpush1.msra.mxu0 %v4393
        %4707 = vmatprep.subr.mxu0 %v4398
        %4708 = vmatpush1.msra.mxu0 %v4397
        %4709 = vmatprep.subr.mxu0 %v4402
        %4710 = vmatpush1.msra.mxu0 %v4401
        %4711 = vmatprep.subr.mxu0 %v4406
        %4712 = vmatpush1.msra.mxu0 %v4405
        %4713 = vmatprep.subr.mxu0 %v4410
        %4714 = vmatpush1.msra.mxu0 %v4409
        %4715 = vmatprep.subr.mxu0 %v4414
        %4716 = vmatpush1.msra.mxu0 %v4413
        %4717 = vmatprep.subr.mxu0 %v4418
        %4718 = vmatpush1.msra.mxu0 %v4417
        %4719 = vmatprep.subr.mxu0 %v4422
        %4720 = vmatpush1.msra.mxu0 %v4421
        %4721 = vmatprep.subr.mxu0 %v4426
        %4722 = vmatpush1.msra.mxu0 %v4425
        %4723 = vmatprep.subr.mxu0 %v4430
        %4724 = vmatpush1.msra.mxu0 %v4429
        %4725 = vmatprep.subr.mxu0 %v4434
        %4726 = vmatpush1.msra.mxu0 %v4433
        %4727 = vmatprep.subr.mxu0 %v4438
        %4728 = vmatpush1.msra.mxu0 %v4437
        %4729 = vmatprep.subr.mxu0 %v4442
        %4730 = vmatpush1.msra.mxu0 %v4441
        %4731 = vmatprep.subr.mxu0 %v4446
        %4732 = vmatpush1.msra.mxu0 %v4445
        %4733 = vmatprep.subr.mxu0 %v4450
        %4734 = vmatpush1.msra.mxu0 %v4449
        %4735 = vmatprep.subr.mxu0 %v4454
        %4736 = vmatpush1.msra.mxu0 %v4453
        %4737 = vmatprep.subr.mxu0 %v4458
        %4738 = vmatpush1.msra.mxu0 %v4457
        %4739 = vmatprep.subr.mxu0 %v4462
        %4740 = vmatpush1.msra.mxu0 %v4461
        %4741 = vmatprep.subr.mxu0 %v4466
        %4742 = vmatpush1.msra.mxu0 %v4465
        %4743 = vmatprep.subr.mxu0 %v4470
        %4744 = vmatpush1.msra.mxu0 %v4469
        %4745 = vmatprep.mubr.f32.mxu0 %v3856
        %4746 = vmatmul.mubr.f32.gmra.mrb[0].mxu0 %v3855
        %v4747 = vpop.f32.mrb[0].mxu0
        %v4748 = vadd.f32 0.0, %v4747
        %v4749 = vpop.f32.mrb[0].mxu0
        %v4750 = vadd.f32 0.0, %v4749
        %4751 = vdwg.mxu0
        %4752 = vmatprep.subr.mxu0 %v4474
        %4753 = vmatpush1.msra.mxu0 %v4473
        %4754 = vmatprep.subr.mxu0 %v4478
        %4755 = vmatpush1.msra.mxu0 %v4477
        %4756 = vmatprep.subr.mxu0 %v4482
        %4757 = vmatpush1.msra.mxu0 %v4481
        %4758 = vmatprep.subr.mxu0 %v4486
        %4759 = vmatpush1.msra.mxu0 %v4485
        %4760 = vmatprep.subr.mxu0 %v4490
        %4761 = vmatpush1.msra.mxu0 %v4489
        %4762 = vmatprep.subr.mxu0 %v4494
        %4763 = vmatpush1.msra.mxu0 %v4493
        %4764 = vmatprep.subr.mxu0 %v4498
        %4765 = vmatpush1.msra.mxu0 %v4497
        %4766 = vmatprep.subr.mxu0 %v4502
        %4767 = vmatpush1.msra.mxu0 %v4501
        %4768 = vmatprep.subr.mxu0 %v4506
        %4769 = vmatpush1.msra.mxu0 %v4505
        %4770 = vmatprep.subr.mxu0 %v4510
        %4771 = vmatpush1.msra.mxu0 %v4509
        %4772 = vmatprep.subr.mxu0 %v4514
        %4773 = vmatpush1.msra.mxu0 %v4513
        %4774 = vmatprep.subr.mxu0 %v4518
        %4775 = vmatpush1.msra.mxu0 %v4517
        %4776 = vmatprep.subr.mxu0 %v4522
        %4777 = vmatpush1.msra.mxu0 %v4521
        %4778 = vmatprep.subr.mxu0 %v4537
        %4779 = vmatpush1.msra.mxu0 %v4534
        %4780 = vmatprep.subr.mxu0 0.0
        %4781 = vmatpush1.msra.mxu0 0.0
        %4782 = vmatprep.subr.mxu0 0.0
        %4783 = vmatpush1.msra.mxu0 0.0
        %4784 = vmatprep.subr.mxu0 0.0
        %4785 = vmatpush1.msra.mxu0 0.0
        %4786 = vmatprep.subr.mxu0 0.0
        %4787 = vmatpush1.msra.mxu0 0.0
        %4788 = vmatprep.subr.mxu0 0.0
        %4789 = vmatpush1.msra.mxu0 0.0
        %4790 = vmatprep.subr.mxu0 0.0
        %4791 = vmatpush1.msra.mxu0 0.0
        %4792 = vmatprep.subr.mxu0 0.0
        %4793 = vmatpush1.msra.mxu0 0.0
        %4794 = vmatprep.subr.mxu0 0.0
        %4795 = vmatpush1.msra.mxu0 0.0
        %4796 = vmatprep.subr.mxu0 0.0
        %4797 = vmatpush1.msra.mxu0 0.0
        %4798 = vmatprep.subr.mxu0 0.0
        %4799 = vmatpush1.msra.mxu0 0.0
        %4800 = vmatprep.subr.mxu0 0.0
        %4801 = vmatpush1.msra.mxu0 0.0
        %4802 = vmatprep.subr.mxu0 0.0
        %4803 = vmatpush1.msra.mxu0 0.0
        %4804 = vmatprep.subr.mxu0 0.0
        %4805 = vmatpush1.msra.mxu0 0.0
        %4806 = vmatprep.subr.mxu0 0.0
        %4807 = vmatpush1.msra.mxu0 0.0
        %4808 = vmatprep.subr.mxu0 0.0
        %4809 = vmatpush1.msra.mxu0 0.0
        %4810 = vmatprep.subr.mxu0 0.0
        %4811 = vmatpush1.msra.mxu0 0.0
        %4812 = vmatprep.subr.mxu0 0.0
        %4813 = vmatpush1.msra.mxu0 0.0
        %4814 = vmatprep.subr.mxu0 0.0
        %4815 = vmatpush1.msra.mxu0 0.0
        %4816 = vmatprep.mubr.f32.mxu0 0.0
        %4817 = vmatmul.mubr.f32.gmra.mrb[0].mxu0 %v4044
        %v4818 = vpop.f32.mrb[0].mxu0
        %v4819 = vadd.f32 %v4748, %v4818
        %v4820 = vpop.f32.mrb[0].mxu0
        %v4821 = vadd.f32 %v4750, %v4820
        %4822 = vdwg.mxu0
        %v4823 = vmax.f32 %v4197, %v4677
        %v4824 = vmax.f32 %v4199, %v4679
        %v4825 = vmax.f32 %v4339, %v4819
        %v4826 = vmax.f32 %v4341, %v4821
        %v4827 = vld [vmem:[%s3785] sm:$0xff]
        %v4828 = vld [vmem:[%s3785 + $0x8] sm:$0xff]
        %v4829 = vld [vmem:[%s3785 + $0x10] sm:$0xff]
        %v4830 = vld [vmem:[%s3785 + $0x18] sm:$0xff]
        %v4831 = vld [vmem:[%s3785 + $0x20] sm:$0xff]
        %v4832 = vld [vmem:[%s3785 + $0x28] sm:$0xff]
        %v4833 = vld [vmem:[%s3785 + $0x30] sm:$0xff]
        %v4834 = vld [vmem:[%s3785 + $0x38] sm:$0xff]
        %v4835 = vld [vmem:[%s3785 + $0x40] sm:$0xff]
        %v4836 = vld [vmem:[%s3785 + $0x48] sm:$0xff]
        %v4837 = vld [vmem:[%s3785 + $0x50] sm:$0xff]
        %v4838 = vld [vmem:[%s3785 + $0x58] sm:$0xff]
        %v4839 = vld [vmem:[%s3785 + $0x60] sm:$0xff]
        %v4840 = vld [vmem:[%s3785 + $0x68] sm:$0xff]
        %v4841 = vld [vmem:[%s3785 + $0x70] sm:$0xff]
        %v4842 = vld [vmem:[%s3785 + $0x78] sm:$0xff]
        %v4843 = vld [vmem:[%s3785 + $0x80] sm:$0xff]
        %v4844 = vld [vmem:[%s3785 + $0x88] sm:$0xff]
        %v4845 = vld [vmem:[%s3785 + $0x90] sm:$0xff]
        %v4846 = vld [vmem:[%s3785 + $0x98] sm:$0xff]
        %v4847 = vld [vmem:[%s3785 + $0xa0] sm:$0xff]
        %v4848 = vld [vmem:[%s3785 + $0xa8] sm:$0xff]
        %v4849 = vld [vmem:[%s3785 + $0xb0] sm:$0xff]
        %v4850 = vld [vmem:[%s3785 + $0xb8] sm:$0xff]
        %v4851 = vld [vmem:[%s3785 + $0xc0] sm:$0xff]
        %v4852 = vld [vmem:[%s3785 + $0xc8] sm:$0xff]
        %v4853 = vld [vmem:[%s3785 + $0xd0] sm:$0xff]
        %v4854 = vld [vmem:[%s3785 + $0xd8] sm:$0xff]
        %v4855 = vld [vmem:[%s3785 + $0xe0] sm:$0xff]
        %v4856 = vld [vmem:[%s3785 + $0xe8] sm:$0xff]
        %v4857 = vld [vmem:[%s3785 + $0xf0] sm:$0xff]
        %v4858 = vld [vmem:[%s3785 + $0xf8] sm:$0xff]
        %v4859 = vld [vmem:[%s3785 + $0x100] sm:$0xff]
        %v4860 = vld [vmem:[%s3785 + $0x108] sm:$0xff]
        %v4861 = vld [vmem:[%s3785 + $0x110] sm:$0xff]
        %v4862 = vld [vmem:[%s3785 + $0x118] sm:$0xff]
        %v4863 = vld [vmem:[%s3785 + $0x120] sm:$0xff]
        %v4864 = vld [vmem:[%s3785 + $0x128] sm:$0xff]
        %v4865 = vld [vmem:[%s3785 + $0x130] sm:$0xff]
        %v4866 = vld [vmem:[%s3785 + $0x138] sm:$0xff]
        %v4867 = vld [vmem:[%s3785 + $0x140] sm:$0xff]
        %v4868 = vld [vmem:[%s3785 + $0x148] sm:$0xff]
        %v4869 = vld [vmem:[%s3785 + $0x150] sm:$0xff]
        %v4870 = vld [vmem:[%s3785 + $0x158] sm:$0xff]
        %v4871 = vld [vmem:[%s3785 + $0x160] sm:$0xff]
        %v4872 = vld [vmem:[%s3785 + $0x168] sm:$0xff]
        %v4873 = vld [vmem:[%s3785 + $0x170] sm:$0xff]
        %v4874 = vld [vmem:[%s3785 + $0x178] sm:$0xff]
        %v4875 = vld [vmem:[%s3785 + $0x180] sm:$0xff]
        %v4876 = vld [vmem:[%s3785 + $0x188] sm:$0xff]
        %v4877 = vld [vmem:[%s3785 + $0x190] sm:$0xff]
        %v4878 = vld [vmem:[%s3785 + $0x198] sm:$0xff]
        %v4879 = vld [vmem:[%s3785 + $0x1a0] sm:$0xff]
        %v4880 = vld [vmem:[%s3785 + $0x1a8] sm:$0xff]
        %v4881 = vld [vmem:[%s3785 + $0x1b0] sm:$0xff]
        %v4882 = vld [vmem:[%s3785 + $0x1b8] sm:$0xff]
        %v4883 = vld [vmem:[%s3785 + $0x1c0] sm:$0xff]
        %v4884 = vld [vmem:[%s3785 + $0x1c8] sm:$0xff]
        %v4885 = vld [vmem:[%s3785 + $0x1d0] sm:$0xff]
        %v4886 = vld [vmem:[%s3785 + $0x1d8] sm:$0xff]
        %v4887 = vld [vmem:[%s3785 + $0x1e0] sm:$0xff]
        %v4888 = vld [vmem:[%s3785 + $0x1e8] sm:$0xff]
        %v4889 = vld [vmem:[%s3785 + $0x1f0] sm:$0xff]
        %v4890 = vld [vmem:[%s3785 + $0x1f8] sm:$0xff]
        %v4891 = vld [vmem:[%s3785 + $0x200] sm:$0xff]
        %v4892 = vld [vmem:[%s3785 + $0x208] sm:$0xff]
        %v4893 = vld [vmem:[%s3785 + $0x210] sm:$0xff]
        %v4894 = vld [vmem:[%s3785 + $0x218] sm:$0xff]
        %v4895 = vld [vmem:[%s3785 + $0x220] sm:$0xff]
        %v4896 = vld [vmem:[%s3785 + $0x228] sm:$0xff]
        %v4897 = vld [vmem:[%s3785 + $0x230] sm:$0xff]
        %v4898 = vld [vmem:[%s3785 + $0x238] sm:$0xff]
        %v4899 = vld [vmem:[%s3785 + $0x240] sm:$0xff]
        %v4900 = vld [vmem:[%s3785 + $0x248] sm:$0xff]
        %v4901 = vld [vmem:[%s3785 + $0x250] sm:$0xff]
        %v4902 = vld [vmem:[%s3785 + $0x258] sm:$0xff]
        %v4903 = vld [vmem:[%s3785 + $0x260] sm:$0xff]
        %v4904 = vld [vmem:[%s3785 + $0x268] sm:$0xff]
        %v4905 = vld [vmem:[%s3785 + $0x270] sm:$0xff]
        %v4906 = vld [vmem:[%s3785 + $0x278] sm:$0xff]
        %v4907 = vld [vmem:[%s3785 + $0x280] sm:$0xff]
        %v4908 = vld [vmem:[%s3785 + $0x288] sm:$0xff]
        %v4909 = vld [vmem:[%s3785 + $0x290] sm:$0xff]
        %v4910 = vld [vmem:[%s3785 + $0x298] sm:$0xff]
        %v4911 = vld [vmem:[%s3785 + $0x2a0] sm:$0xff]
        %v4912 = vld [vmem:[%s3785 + $0x2a8] sm:$0xff]
        %v4913 = vld [vmem:[%s3785 + $0x2b0] sm:$0xff]
        %v4914 = vld [vmem:[%s3785 + $0x2b8] sm:$0xff]
        %v4915 = vld [vmem:[%s3785 + $0x2c0] sm:$0xff]
        %v4916 = vld [vmem:[%s3785 + $0x2c8] sm:$0xff]
        %v4917 = vld [vmem:[%s3785 + $0x2d0] sm:$0xff]
        %v4918 = vld [vmem:[%s3785 + $0x2d8] sm:$0xff]
        %v4919 = vld [vmem:[%s3785 + $0x2e0] sm:$0xff]
        %v4920 = vld [vmem:[%s3785 + $0x2e8] sm:$0xff]
        %v4921 = vld [vmem:[%s3785 + $0x2f0] sm:$0xff]
        %v4922 = vld [vmem:[%s3785 + $0x2f8] sm:$0xff]
        %v4923 = vld [vmem:[%s3785 + $0x300] sm:$0xff]
        %v4924 = vld [vmem:[%s3785 + $0x308] sm:$0xff]
        %v4925 = vld [vmem:[%s3785 + $0x310] sm:$0xff]
        %v4926 = vld [vmem:[%s3785 + $0x318] sm:$0xff]
        %v4927 = vld [vmem:[%s3785 + $0x320] sm:$0xff]
        %v4928 = vld [vmem:[%s3785 + $0x328] sm:$0xff]
        %v4929 = vld [vmem:[%s3785 + $0x330] sm:$0xff]
        %v4930 = vld [vmem:[%s3785 + $0x338] sm:$0xff]
        %v4931 = vld [vmem:[%s3785 + $0x340] sm:$0xff]
        %v4932 = vld [vmem:[%s3785 + $0x348] sm:$0xff]
        %v4933 = vld [vmem:[%s3785 + $0x350] sm:$0xff]
        %v4934 = vld [vmem:[%s3785 + $0x358] sm:$0xff]
        %v4935 = vld [vmem:[%s3785 + $0x360] sm:$0xff]
        %v4936 = vld [vmem:[%s3785 + $0x368] sm:$0xff]
        %v4937 = vld [vmem:[%s3785 + $0x370] sm:$0xff]
        %v4938 = vld [vmem:[%s3785 + $0x378] sm:$0xff]
        %v4939 = vld [vmem:[%s3785 + $0x380] sm:$0xff]
        %v4940 = vld [vmem:[%s3785 + $0x388] sm:$0xff]
        %v4941 = vld [vmem:[%s3785 + $0x390] sm:$0xff]
        %v4942 = vld [vmem:[%s3785 + $0x398] sm:$0xff]
        %v4943 = vld [vmem:[%s3785 + $0x3a0] sm:$0xff]
        %v4944 = vld [vmem:[%s3785 + $0x3a8] sm:$0xff]
        %v4945 = vld [vmem:[%s3785 + $0x3b0] sm:$0xff]
        %v4946 = vld [vmem:[%s3785 + $0x3b8] sm:$0xff]
        %v4947 = vld [vmem:[%s3785 + $0x3c0] sm:$0xff]
        %v4948 = vld [vmem:[%s3785 + $0x3c8] sm:$0xff]
        %v4949 = vld [vmem:[%s3785 + $0x3d0] sm:$0xff]
        %v4950 = vld [vmem:[%s3785 + $0x3d8] sm:$0xff]
        %v4951 = vld [vmem:[%s3785 + $0x3e0] sm:$0xff]
        %v4952 = vld [vmem:[%s3785 + $0x3e8] sm:$0xff]
        %v4953 = vld [vmem:[%s3785 + $0x3f0] sm:$0xff]
        %v4954 = vld [vmem:[%s3785 + $0x3f8] sm:$0xff]
        %v4955 = vld [vmem:[%s3785 + $0x400] sm:$0xff]
        %v4956 = vld [vmem:[%s3785 + $0x408] sm:$0xff]
        %v4957 = vld [vmem:[%s3785 + $0x410] sm:$0xff]
        %v4958 = vld [vmem:[%s3785 + $0x418] sm:$0xff]
        %v4959 = vld [vmem:[%s3785 + $0x420] sm:$0xff]
        %v4960 = vld [vmem:[%s3785 + $0x428] sm:$0xff]
        %v4961 = vld [vmem:[%s3785 + $0x430] sm:$0xff]
        %v4962 = vld [vmem:[%s3785 + $0x438] sm:$0xff]
        %v4963 = vld [vmem:[%s3785 + $0x440] sm:$0xff]
        %v4964 = vld [vmem:[%s3785 + $0x448] sm:$0xff]
        %v4965 = vld [vmem:[%s3785 + $0x450] sm:$0xff]
        %v4966 = vld [vmem:[%s3785 + $0x458] sm:$0xff]
        %v4967 = vld [vmem:[%s3785 + $0x460] sm:$0xff]
        %v4968 = vld [vmem:[%s3785 + $0x468] sm:$0xff]
        %v4969 = vld [vmem:[%s3785 + $0x470] sm:$0xff]
        %v4970 = vld [vmem:[%s3785 + $0x478] sm:$0xff]
        %v4971 = vld [vmem:[%s3785 + $0x480] sm:$0xff]
        %v4972 = vld [vmem:[%s3785 + $0x488] sm:$0xff]
        %v4973 = vld [vmem:[%s3785 + $0x490] sm:$0xff]
        %v4974 = vld [vmem:[%s3785 + $0x498] sm:$0xff]
        %v4975 = vld [vmem:[%s3785 + $0x4a0] sm:$0xff]
        %v4976 = vld [vmem:[%s3785 + $0x4a8] sm:$0xff]
        %v4977 = vld [vmem:[%s3785 + $0x4b0] sm:$0xff]
        %v4978 = vld [vmem:[%s3785 + $0x4b8] sm:$0xff]
        %v4979 = vld [vmem:[%s3785 + $0x4c0] sm:$0xff]
        %v4980 = vld [vmem:[%s3785 + $0x4c8] sm:$0xff]
        %v4981 = vld [vmem:[%s3785 + $0x4d0] sm:$0xff]
        %v4982 = vld [vmem:[%s3785 + $0x4d8] sm:$0xff]
        %v4983 = vld [vmem:[%s3785 + $0x4e0] sm:$0xff]
        %v4984 = vld [vmem:[%s3785 + $0x4e8] sm:$0xff]
        %v4985 = vld [vmem:[%s3785 + $0x4f0] sm:$0xff]
        %v4986 = vld [vmem:[%s3785 + $0x4f8] sm:$0xff]
        %v4987 = vld [vmem:[%s3785 + $0x500] sm:$0xff]
        %v4988 = vld [vmem:[%s3785 + $0x508] sm:$0xff]
        %v4989 = vld [vmem:[%s3785 + $0x510] sm:$0xff]
        %v4990 = vld [vmem:[%s3785 + $0x518] sm:$0xff]
        %v4991 = vld [vmem:[%s3785 + $0x520] sm:$0xff]
        %v4992 = vld [vmem:[%s3785 + $0x528] sm:$0xff]
        %v4993 = vld [vmem:[%s3785 + $0x530] sm:$0xff]
        %v4994 = vld [vmem:[%s3785 + $0x538] sm:$0xff]
        %v4995 = vld [vmem:[%s3785 + $0x540] sm:$0xff]
        %v4996 = vld [vmem:[%s3785 + $0x548] sm:$0xff]
        %v4997 = vld [vmem:[%s3785 + $0x550] sm:$0xff]
        %v4998 = vld [vmem:[%s3785 + $0x558] sm:$0xff]
        %v4999 = vld [vmem:[%s3785 + $0x560] sm:$0xff]
        %v5000 = vld [vmem:[%s3785 + $0x568] sm:$0xff]
        %v5001 = vld [vmem:[%s3785 + $0x570] sm:$0xff]
        %v5002 = vld [vmem:[%s3785 + $0x578] sm:$0xff]
        %v5003 = vld [vmem:[%s3785 + $0x580] sm:$0xff]
        %v5004 = vld [vmem:[%s3785 + $0x588] sm:$0xff]
        %v5005 = vld [vmem:[%s3785 + $0x590] sm:$0xff]
        %v5006 = vld [vmem:[%s3785 + $0x598] sm:$0xff]
        %v5007 = vld [vmem:[%s3785 + $0x5a0] sm:$0x7]
        %v5008 = vld [vmem:[%s3785 + $0x5a8] sm:$0x7]
        %v5009 = vld [vmem:[%s3785 + $0x5b0] sm:$0x7]
        %v5010 = vld [vmem:[%s3785 + $0x5b8] sm:$0x7]
        %v5012 = vsel %vm4046, %v5007, 0
        %v5015 = vsel %vm4046, %v5008, 0
        %v5018 = vsel %vm4046, %v5009, 0
        %v5021 = vsel %vm4046, %v5010, 0
        %5023 = vmatprep.subr.mxu0 %v4828
        %5024 = vmatpush1.msra.mxu0 %v4827
        %5025 = vmatprep.subr.mxu0 %v4832
        %5026 = vmatpush1.msra.mxu0 %v4831
        %5027 = vmatprep.subr.mxu0 %v4836
        %5028 = vmatpush1.msra.mxu0 %v4835
        %5029 = vmatprep.subr.mxu0 %v4840
        %5030 = vmatpush1.msra.mxu0 %v4839
        %5031 = vmatprep.subr.mxu0 %v4844
        %5032 = vmatpush1.msra.mxu0 %v4843
        %5033 = vmatprep.subr.mxu0 %v4848
        %5034 = vmatpush1.msra.mxu0 %v4847
        %5035 = vmatprep.subr.mxu0 %v4852
        %5036 = vmatpush1.msra.mxu0 %v4851
        %5037 = vmatprep.subr.mxu0 %v4856
        %5038 = vmatpush1.msra.mxu0 %v4855
        %5039 = vmatprep.subr.mxu0 %v4860
        %5040 = vmatpush1.msra.mxu0 %v4859
        %5041 = vmatprep.subr.mxu0 %v4864
        %5042 = vmatpush1.msra.mxu0 %v4863
        %5043 = vmatprep.subr.mxu0 %v4868
        %5044 = vmatpush1.msra.mxu0 %v4867
        %5045 = vmatprep.subr.mxu0 %v4872
        %5046 = vmatpush1.msra.mxu0 %v4871
        %5047 = vmatprep.subr.mxu0 %v4876
        %5048 = vmatpush1.msra.mxu0 %v4875
        %5049 = vmatprep.subr.mxu0 %v4880
        %5050 = vmatpush1.msra.mxu0 %v4879
        %5051 = vmatprep.subr.mxu0 %v4884
        %5052 = vmatpush1.msra.mxu0 %v4883
        %5053 = vmatprep.subr.mxu0 %v4888
        %5054 = vmatpush1.msra.mxu0 %v4887
        %5055 = vmatprep.subr.mxu0 %v4892
        %5056 = vmatpush1.msra.mxu0 %v4891
        %5057 = vmatprep.subr.mxu0 %v4896
        %5058 = vmatpush1.msra.mxu0 %v4895
        %5059 = vmatprep.subr.mxu0 %v4900
        %5060 = vmatpush1.msra.mxu0 %v4899
        %5061 = vmatprep.subr.mxu0 %v4904
        %5062 = vmatpush1.msra.mxu0 %v4903
        %5063 = vmatprep.subr.mxu0 %v4908
        %5064 = vmatpush1.msra.mxu0 %v4907
        %5065 = vmatprep.subr.mxu0 %v4912
        %5066 = vmatpush1.msra.mxu0 %v4911
        %5067 = vmatprep.subr.mxu0 %v4916
        %5068 = vmatpush1.msra.mxu0 %v4915
        %5069 = vmatprep.subr.mxu0 %v4920
        %5070 = vmatpush1.msra.mxu0 %v4919
        %5071 = vmatprep.subr.mxu0 %v4924
        %5072 = vmatpush1.msra.mxu0 %v4923
        %5073 = vmatprep.subr.mxu0 %v4928
        %5074 = vmatpush1.msra.mxu0 %v4927
        %5075 = vmatprep.subr.mxu0 %v4932
        %5076 = vmatpush1.msra.mxu0 %v4931
        %5077 = vmatprep.subr.mxu0 %v4936
        %5078 = vmatpush1.msra.mxu0 %v4935
        %5079 = vmatprep.subr.mxu0 %v4940
        %5080 = vmatpush1.msra.mxu0 %v4939
        %5081 = vmatprep.subr.mxu0 %v4944
        %5082 = vmatpush1.msra.mxu0 %v4943
        %5083 = vmatprep.subr.mxu0 %v4948
        %5084 = vmatpush1.msra.mxu0 %v4947
        %5085 = vmatprep.subr.mxu0 %v4952
        %5086 = vmatpush1.msra.mxu0 %v4951
        %5087 = vmatprep.mubr.f32.mxu0 %v3856
        %5088 = vmatmul.mubr.f32.gmra.mrb[0].mxu0 %v3855
        %v5089 = vpop.f32.mrb[0].mxu0
        %v5090 = vadd.f32 0.0, %v5089
        %v5091 = vpop.f32.mrb[0].mxu0
        %v5092 = vadd.f32 0.0, %v5091
        %5093 = vdwg.mxu0
        %5094 = vmatprep.subr.mxu0 %v4956
        %5095 = vmatpush1.msra.mxu0 %v4955
        %5096 = vmatprep.subr.mxu0 %v4960
        %5097 = vmatpush1.msra.mxu0 %v4959
        %5098 = vmatprep.subr.mxu0 %v4964
        %5099 = vmatpush1.msra.mxu0 %v4963
        %5100 = vmatprep.subr.mxu0 %v4968
        %5101 = vmatpush1.msra.mxu0 %v4967
        %5102 = vmatprep.subr.mxu0 %v4972
        %5103 = vmatpush1.msra.mxu0 %v4971
        %5104 = vmatprep.subr.mxu0 %v4976
        %5105 = vmatpush1.msra.mxu0 %v4975
        %5106 = vmatprep.subr.mxu0 %v4980
        %5107 = vmatpush1.msra.mxu0 %v4979
        %5108 = vmatprep.subr.mxu0 %v4984
        %5109 = vmatpush1.msra.mxu0 %v4983
        %5110 = vmatprep.subr.mxu0 %v4988
        %5111 = vmatpush1.msra.mxu0 %v4987
        %5112 = vmatprep.subr.mxu0 %v4992
        %5113 = vmatpush1.msra.mxu0 %v4991
        %5114 = vmatprep.subr.mxu0 %v4996
        %5115 = vmatpush1.msra.mxu0 %v4995
        %5116 = vmatprep.subr.mxu0 %v5000
        %5117 = vmatpush1.msra.mxu0 %v4999
        %5118 = vmatprep.subr.mxu0 %v5004
        %5119 = vmatpush1.msra.mxu0 %v5003
        %5120 = vmatprep.subr.mxu0 %v5015
        %5121 = vmatpush1.msra.mxu0 %v5012
        %5122 = vmatprep.subr.mxu0 0.0
        %5123 = vmatpush1.msra.mxu0 0.0
        %5124 = vmatprep.subr.mxu0 0.0
        %5125 = vmatpush1.msra.mxu0 0.0
        %5126 = vmatprep.subr.mxu0 0.0
        %5127 = vmatpush1.msra.mxu0 0.0
        %5128 = vmatprep.subr.mxu0 0.0
        %5129 = vmatpush1.msra.mxu0 0.0
        %5130 = vmatprep.subr.mxu0 0.0
        %5131 = vmatpush1.msra.mxu0 0.0
        %5132 = vmatprep.subr.mxu0 0.0
        %5133 = vmatpush1.msra.mxu0 0.0
        %5134 = vmatprep.subr.mxu0 0.0
        %5135 = vmatpush1.msra.mxu0 0.0
        %5136 = vmatprep.subr.mxu0 0.0
        %5137 = vmatpush1.msra.mxu0 0.0
        %5138 = vmatprep.subr.mxu0 0.0
        %5139 = vmatpush1.msra.mxu0 0.0
        %5140 = vmatprep.subr.mxu0 0.0
        %5141 = vmatpush1.msra.mxu0 0.0
        %5142 = vmatprep.subr.mxu0 0.0
        %5143 = vmatpush1.msra.mxu0 0.0
        %5144 = vmatprep.subr.mxu0 0.0
        %5145 = vmatpush1.msra.mxu0 0.0
        %5146 = vmatprep.subr.mxu0 0.0
        %5147 = vmatpush1.msra.mxu0 0.0
        %5148 = vmatprep.subr.mxu0 0.0
        %5149 = vmatpush1.msra.mxu0 0.0
        %5150 = vmatprep.subr.mxu0 0.0
        %5151 = vmatpush1.msra.mxu0 0.0
        %5152 = vmatprep.subr.mxu0 0.0
        %5153 = vmatpush1.msra.mxu0 0.0
        %5154 = vmatprep.subr.mxu0 0.0
        %5155 = vmatpush1.msra.mxu0 0.0
        %5156 = vmatprep.subr.mxu0 0.0
        %5157 = vmatpush1.msra.mxu0 0.0
        %5158 = vmatprep.mubr.f32.mxu0 0.0
        %5159 = vmatmul.mubr.f32.gmra.mrb[0].mxu0 %v4044
        %v5160 = vpop.f32.mrb[0].mxu0
        %v5161 = vadd.f32 %v5090, %v5160
        %v5162 = vpop.f32.mrb[0].mxu0
        %v5163 = vadd.f32 %v5092, %v5162
        %5164 = vdwg.mxu0
        %5165 = vmatprep.subr.mxu0 %v4830
        %5166 = vmatpush1.msra.mxu0 %v4829
        %5167 = vmatprep.subr.mxu0 %v4834
        %5168 = vmatpush1.msra.mxu0 %v4833
        %5169 = vmatprep.subr.mxu0 %v4838
        %5170 = vmatpush1.msra.mxu0 %v4837
        %5171 = vmatprep.subr.mxu0 %v4842
        %5172 = vmatpush1.msra.mxu0 %v4841
        %5173 = vmatprep.subr.mxu0 %v4846
        %5174 = vmatpush1.msra.mxu0 %v4845
        %5175 = vmatprep.subr.mxu0 %v4850
        %5176 = vmatpush1.msra.mxu0 %v4849
        %5177 = vmatprep.subr.mxu0 %v4854
        %5178 = vmatpush1.msra.mxu0 %v4853
        %5179 = vmatprep.subr.mxu0 %v4858
        %5180 = vmatpush1.msra.mxu0 %v4857
        %5181 = vmatprep.subr.mxu0 %v4862
        %5182 = vmatpush1.msra.mxu0 %v4861
        %5183 = vmatprep.subr.mxu0 %v4866
        %5184 = vmatpush1.msra.mxu0 %v4865
        %5185 = vmatprep.subr.mxu0 %v4870
        %5186 = vmatpush1.msra.mxu0 %v4869
        %5187 = vmatprep.subr.mxu0 %v4874
        %5188 = vmatpush1.msra.mxu0 %v4873
        %5189 = vmatprep.subr.mxu0 %v4878
        %5190 = vmatpush1.msra.mxu0 %v4877
        %5191 = vmatprep.subr.mxu0 %v4882
        %5192 = vmatpush1.msra.mxu0 %v4881
        %5193 = vmatprep.subr.mxu0 %v4886
        %5194 = vmatpush1.msra.mxu0 %v4885
        %5195 = vmatprep.subr.mxu0 %v4890
        %5196 = vmatpush1.msra.mxu0 %v4889
        %5197 = vmatprep.subr.mxu0 %v4894
        %5198 = vmatpush1.msra.mxu0 %v4893
        %5199 = vmatprep.subr.mxu0 %v4898
        %5200 = vmatpush1.msra.mxu0 %v4897
        %5201 = vmatprep.subr.mxu0 %v4902
        %5202 = vmatpush1.msra.mxu0 %v4901
        %5203 = vmatprep.subr.mxu0 %v4906
        %5204 = vmatpush1.msra.mxu0 %v4905
        %5205 = vmatprep.subr.mxu0 %v4910
        %5206 = vmatpush1.msra.mxu0 %v4909
        %5207 = vmatprep.subr.mxu0 %v4914
        %5208 = vmatpush1.msra.mxu0 %v4913
        %5209 = vmatprep.subr.mxu0 %v4918
        %5210 = vmatpush1.msra.mxu0 %v4917
        %5211 = vmatprep.subr.mxu0 %v4922
        %5212 = vmatpush1.msra.mxu0 %v4921
        %5213 = vmatprep.subr.mxu0 %v4926
        %5214 = vmatpush1.msra.mxu0 %v4925
        %5215 = vmatprep.subr.mxu0 %v4930
        %5216 = vmatpush1.msra.mxu0 %v4929
        %5217 = vmatprep.subr.mxu0 %v4934
        %5218 = vmatpush1.msra.mxu0 %v4933
        %5219 = vmatprep.subr.mxu0 %v4938
        %5220 = vmatpush1.msra.mxu0 %v4937
        %5221 = vmatprep.subr.mxu0 %v4942
        %5222 = vmatpush1.msra.mxu0 %v4941
        %5223 = vmatprep.subr.mxu0 %v4946
        %5224 = vmatpush1.msra.mxu0 %v4945
        %5225 = vmatprep.subr.mxu0 %v4950
        %5226 = vmatpush1.msra.mxu0 %v4949
        %5227 = vmatprep.subr.mxu0 %v4954
        %5228 = vmatpush1.msra.mxu0 %v4953
        %5229 = vmatprep.mubr.f32.mxu0 %v3856
        %5230 = vmatmul.mubr.f32.gmra.mrb[0].mxu0 %v3855
        %v5231 = vpop.f32.mrb[0].mxu0
        %v5232 = vadd.f32 0.0, %v5231
        %v5233 = vpop.f32.mrb[0].mxu0
        %v5234 = vadd.f32 0.0, %v5233
        %5235 = vdwg.mxu0
        %5236 = vmatprep.subr.mxu0 %v4958
        %5237 = vmatpush1.msra.mxu0 %v4957
        %5238 = vmatprep.subr.mxu0 %v4962
        %5239 = vmatpush1.msra.mxu0 %v4961
        %5240 = vmatprep.subr.mxu0 %v4966
        %5241 = vmatpush1.msra.mxu0 %v4965
        %5242 = vmatprep.subr.mxu0 %v4970
        %5243 = vmatpush1.msra.mxu0 %v4969
        %5244 = vmatprep.subr.mxu0 %v4974
        %5245 = vmatpush1.msra.mxu0 %v4973
        %5246 = vmatprep.subr.mxu0 %v4978
        %5247 = vmatpush1.msra.mxu0 %v4977
        %5248 = vmatprep.subr.mxu0 %v4982
        %5249 = vmatpush1.msra.mxu0 %v4981
        %5250 = vmatprep.subr.mxu0 %v4986
        %5251 = vmatpush1.msra.mxu0 %v4985
        %5252 = vmatprep.subr.mxu0 %v4990
        %5253 = vmatpush1.msra.mxu0 %v4989
        %5254 = vmatprep.subr.mxu0 %v4994
        %5255 = vmatpush1.msra.mxu0 %v4993
        %5256 = vmatprep.subr.mxu0 %v4998
        %5257 = vmatpush1.msra.mxu0 %v4997
        %5258 = vmatprep.subr.mxu0 %v5002
        %5259 = vmatpush1.msra.mxu0 %v5001
        %5260 = vmatprep.subr.mxu0 %v5006
        %5261 = vmatpush1.msra.mxu0 %v5005
        %5262 = vmatprep.subr.mxu0 %v5021
        %5263 = vmatpush1.msra.mxu0 %v5018
        %5264 = vmatprep.subr.mxu0 0.0
        %5265 = vmatpush1.msra.mxu0 0.0
        %5266 = vmatprep.subr.mxu0 0.0
        %5267 = vmatpush1.msra.mxu0 0.0
        %5268 = vmatprep.subr.mxu0 0.0
        %5269 = vmatpush1.msra.mxu0 0.0
        %5270 = vmatprep.subr.mxu0 0.0
        %5271 = vmatpush1.msra.mxu0 0.0
        %5272 = vmatprep.subr.mxu0 0.0
        %5273 = vmatpush1.msra.mxu0 0.0
        %5274 = vmatprep.subr.mxu0 0.0
        %5275 = vmatpush1.msra.mxu0 0.0
        %5276 = vmatprep.subr.mxu0 0.0
        %5277 = vmatpush1.msra.mxu0 0.0
        %5278 = vmatprep.subr.mxu0 0.0
        %5279 = vmatpush1.msra.mxu0 0.0
        %5280 = vmatprep.subr.mxu0 0.0
        %5281 = vmatpush1.msra.mxu0 0.0
        %5282 = vmatprep.subr.mxu0 0.0
        %5283 = vmatpush1.msra.mxu0 0.0
        %5284 = vmatprep.subr.mxu0 0.0
        %5285 = vmatpush1.msra.mxu0 0.0
        %5286 = vmatprep.subr.mxu0 0.0
        %5287 = vmatpush1.msra.mxu0 0.0
        %5288 = vmatprep.subr.mxu0 0.0
        %5289 = vmatpush1.msra.mxu0 0.0
        %5290 = vmatprep.subr.mxu0 0.0
        %5291 = vmatpush1.msra.mxu0 0.0
        %5292 = vmatprep.subr.mxu0 0.0
        %5293 = vmatpush1.msra.mxu0 0.0
        %5294 = vmatprep.subr.mxu0 0.0
        %5295 = vmatpush1.msra.mxu0 0.0
        %5296 = vmatprep.subr.mxu0 0.0
        %5297 = vmatpush1.msra.mxu0 0.0
        %5298 = vmatprep.subr.mxu0 0.0
        %5299 = vmatpush1.msra.mxu0 0.0
        %5300 = vmatprep.mubr.f32.mxu0 0.0
        %5301 = vmatmul.mubr.f32.gmra.mrb[0].mxu0 %v4044
        %v5302 = vpop.f32.mrb[0].mxu0
        %v5303 = vadd.f32 %v5232, %v5302
        %v5304 = vpop.f32.mrb[0].mxu0
        %v5305 = vadd.f32 %v5234, %v5304
        %5306 = vdwg.mxu0
        %v5307 = vmax.f32 %v4823, %v5161
        %v5308 = vmax.f32 %v4824, %v5163
        %v5309 = vmax.f32 %v4825, %v5303
        %v5310 = vmax.f32 %v4826, %v5305
        %v5311 = vld [vmem:[%s3792] sm:$0xff]
        %v5312 = vld [vmem:[%s3792 + $0x8] sm:$0xff]
        %v5313 = vld [vmem:[%s3792 + $0x10] sm:$0xff]
        %v5314 = vld [vmem:[%s3792 + $0x18] sm:$0xff]
        %v5315 = vld [vmem:[%s3792 + $0x20] sm:$0xff]
        %v5316 = vld [vmem:[%s3792 + $0x28] sm:$0xff]
        %v5317 = vld [vmem:[%s3792 + $0x30] sm:$0xff]
        %v5318 = vld [vmem:[%s3792 + $0x38] sm:$0xff]
        %v5319 = vld [vmem:[%s3792 + $0x40] sm:$0xff]
        %v5320 = vld [vmem:[%s3792 + $0x48] sm:$0xff]
        %v5321 = vld [vmem:[%s3792 + $0x50] sm:$0xff]
        %v5322 = vld [vmem:[%s3792 + $0x58] sm:$0xff]
        %v5323 = vld [vmem:[%s3792 + $0x60] sm:$0xff]
        %v5324 = vld [vmem:[%s3792 + $0x68] sm:$0xff]
        %v5325 = vld [vmem:[%s3792 + $0x70] sm:$0xff]
        %v5326 = vld [vmem:[%s3792 + $0x78] sm:$0xff]
        %v5327 = vld [vmem:[%s3792 + $0x80] sm:$0xff]
        %v5328 = vld [vmem:[%s3792 + $0x88] sm:$0xff]
        %v5329 = vld [vmem:[%s3792 + $0x90] sm:$0xff]
        %v5330 = vld [vmem:[%s3792 + $0x98] sm:$0xff]
        %v5331 = vld [vmem:[%s3792 + $0xa0] sm:$0xff]
        %v5332 = vld [vmem:[%s3792 + $0xa8] sm:$0xff]
        %v5333 = vld [vmem:[%s3792 + $0xb0] sm:$0xff]
        %v5334 = vld [vmem:[%s3792 + $0xb8] sm:$0xff]
        %v5335 = vld [vmem:[%s3792 + $0xc0] sm:$0xff]
        %v5336 = vld [vmem:[%s3792 + $0xc8] sm:$0xff]
        %v5337 = vld [vmem:[%s3792 + $0xd0] sm:$0xff]
        %v5338 = vld [vmem:[%s3792 + $0xd8] sm:$0xff]
        %v5339 = vld [vmem:[%s3792 + $0xe0] sm:$0xff]
        %v5340 = vld [vmem:[%s3792 + $0xe8] sm:$0xff]
        %v5341 = vld [vmem:[%s3792 + $0xf0] sm:$0xff]
        %v5342 = vld [vmem:[%s3792 + $0xf8] sm:$0xff]
        %v5343 = vld [vmem:[%s3792 + $0x100] sm:$0xff]
        %v5344 = vld [vmem:[%s3792 + $0x108] sm:$0xff]
        %v5345 = vld [vmem:[%s3792 + $0x110] sm:$0xff]
        %v5346 = vld [vmem:[%s3792 + $0x118] sm:$0xff]
        %v5347 = vld [vmem:[%s3792 + $0x120] sm:$0xff]
        %v5348 = vld [vmem:[%s3792 + $0x128] sm:$0xff]
        %v5349 = vld [vmem:[%s3792 + $0x130] sm:$0xff]
        %v5350 = vld [vmem:[%s3792 + $0x138] sm:$0xff]
        %v5351 = vld [vmem:[%s3792 + $0x140] sm:$0xff]
        %v5352 = vld [vmem:[%s3792 + $0x148] sm:$0xff]
        %v5353 = vld [vmem:[%s3792 + $0x150] sm:$0xff]
        %v5354 = vld [vmem:[%s3792 + $0x158] sm:$0xff]
        %v5355 = vld [vmem:[%s3792 + $0x160] sm:$0xff]
        %v5356 = vld [vmem:[%s3792 + $0x168] sm:$0xff]
        %v5357 = vld [vmem:[%s3792 + $0x170] sm:$0xff]
        %v5358 = vld [vmem:[%s3792 + $0x178] sm:$0xff]
        %v5359 = vld [vmem:[%s3792 + $0x180] sm:$0xff]
        %v5360 = vld [vmem:[%s3792 + $0x188] sm:$0xff]
        %v5361 = vld [vmem:[%s3792 + $0x190] sm:$0xff]
        %v5362 = vld [vmem:[%s3792 + $0x198] sm:$0xff]
        %v5363 = vld [vmem:[%s3792 + $0x1a0] sm:$0xff]
        %v5364 = vld [vmem:[%s3792 + $0x1a8] sm:$0xff]
        %v5365 = vld [vmem:[%s3792 + $0x1b0] sm:$0xff]
        %v5366 = vld [vmem:[%s3792 + $0x1b8] sm:$0xff]
        %v5367 = vld [vmem:[%s3792 + $0x1c0] sm:$0xff]
        %v5368 = vld [vmem:[%s3792 + $0x1c8] sm:$0xff]
        %v5369 = vld [vmem:[%s3792 + $0x1d0] sm:$0xff]
        %v5370 = vld [vmem:[%s3792 + $0x1d8] sm:$0xff]
        %v5371 = vld [vmem:[%s3792 + $0x1e0] sm:$0xff]
        %v5372 = vld [vmem:[%s3792 + $0x1e8] sm:$0xff]
        %v5373 = vld [vmem:[%s3792 + $0x1f0] sm:$0xff]
        %v5374 = vld [vmem:[%s3792 + $0x1f8] sm:$0xff]
        %v5375 = vld [vmem:[%s3792 + $0x200] sm:$0xff]
        %v5376 = vld [vmem:[%s3792 + $0x208] sm:$0xff]
        %v5377 = vld [vmem:[%s3792 + $0x210] sm:$0xff]
        %v5378 = vld [vmem:[%s3792 + $0x218] sm:$0xff]
        %v5379 = vld [vmem:[%s3792 + $0x220] sm:$0xff]
        %v5380 = vld [vmem:[%s3792 + $0x228] sm:$0xff]
        %v5381 = vld [vmem:[%s3792 + $0x230] sm:$0xff]
        %v5382 = vld [vmem:[%s3792 + $0x238] sm:$0xff]
        %v5383 = vld [vmem:[%s3792 + $0x240] sm:$0xff]
        %v5384 = vld [vmem:[%s3792 + $0x248] sm:$0xff]
        %v5385 = vld [vmem:[%s3792 + $0x250] sm:$0xff]
        %v5386 = vld [vmem:[%s3792 + $0x258] sm:$0xff]
        %v5387 = vld [vmem:[%s3792 + $0x260] sm:$0xff]
        %v5388 = vld [vmem:[%s3792 + $0x268] sm:$0xff]
        %v5389 = vld [vmem:[%s3792 + $0x270] sm:$0xff]
        %v5390 = vld [vmem:[%s3792 + $0x278] sm:$0xff]
        %v5391 = vld [vmem:[%s3792 + $0x280] sm:$0xff]
        %v5392 = vld [vmem:[%s3792 + $0x288] sm:$0xff]
        %v5393 = vld [vmem:[%s3792 + $0x290] sm:$0xff]
        %v5394 = vld [vmem:[%s3792 + $0x298] sm:$0xff]
        %v5395 = vld [vmem:[%s3792 + $0x2a0] sm:$0xff]
        %v5396 = vld [vmem:[%s3792 + $0x2a8] sm:$0xff]
        %v5397 = vld [vmem:[%s3792 + $0x2b0] sm:$0xff]
        %v5398 = vld [vmem:[%s3792 + $0x2b8] sm:$0xff]
        %v5399 = vld [vmem:[%s3792 + $0x2c0] sm:$0xff]
        %v5400 = vld [vmem:[%s3792 + $0x2c8] sm:$0xff]
        %v5401 = vld [vmem:[%s3792 + $0x2d0] sm:$0xff]
        %v5402 = vld [vmem:[%s3792 + $0x2d8] sm:$0xff]
        %v5403 = vld [vmem:[%s3792 + $0x2e0] sm:$0xff]
        %v5404 = vld [vmem:[%s3792 + $0x2e8] sm:$0xff]
        %v5405 = vld [vmem:[%s3792 + $0x2f0] sm:$0xff]
        %v5406 = vld [vmem:[%s3792 + $0x2f8] sm:$0xff]
        %v5407 = vld [vmem:[%s3792 + $0x300] sm:$0xff]
        %v5408 = vld [vmem:[%s3792 + $0x308] sm:$0xff]
        %v5409 = vld [vmem:[%s3792 + $0x310] sm:$0xff]
        %v5410 = vld [vmem:[%s3792 + $0x318] sm:$0xff]
        %v5411 = vld [vmem:[%s3792 + $0x320] sm:$0xff]
        %v5412 = vld [vmem:[%s3792 + $0x328] sm:$0xff]
        %v5413 = vld [vmem:[%s3792 + $0x330] sm:$0xff]
        %v5414 = vld [vmem:[%s3792 + $0x338] sm:$0xff]
        %v5415 = vld [vmem:[%s3792 + $0x340] sm:$0xff]
        %v5416 = vld [vmem:[%s3792 + $0x348] sm:$0xff]
        %v5417 = vld [vmem:[%s3792 + $0x350] sm:$0xff]
        %v5418 = vld [vmem:[%s3792 + $0x358] sm:$0xff]
        %v5419 = vld [vmem:[%s3792 + $0x360] sm:$0xff]
        %v5420 = vld [vmem:[%s3792 + $0x368] sm:$0xff]
        %v5421 = vld [vmem:[%s3792 + $0x370] sm:$0xff]
        %v5422 = vld [vmem:[%s3792 + $0x378] sm:$0xff]
        %v5423 = vld [vmem:[%s3792 + $0x380] sm:$0xff]
        %v5424 = vld [vmem:[%s3792 + $0x388] sm:$0xff]
        %v5425 = vld [vmem:[%s3792 + $0x390] sm:$0xff]
        %v5426 = vld [vmem:[%s3792 + $0x398] sm:$0xff]
        %v5427 = vld [vmem:[%s3792 + $0x3a0] sm:$0xff]
        %v5428 = vld [vmem:[%s3792 + $0x3a8] sm:$0xff]
        %v5429 = vld [vmem:[%s3792 + $0x3b0] sm:$0xff]
        %v5430 = vld [vmem:[%s3792 + $0x3b8] sm:$0xff]
        %v5431 = vld [vmem:[%s3792 + $0x3c0] sm:$0xff]
        %v5432 = vld [vmem:[%s3792 + $0x3c8] sm:$0xff]
        %v5433 = vld [vmem:[%s3792 + $0x3d0] sm:$0xff]
        %v5434 = vld [vmem:[%s3792 + $0x3d8] sm:$0xff]
        %v5435 = vld [vmem:[%s3792 + $0x3e0] sm:$0xff]
        %v5436 = vld [vmem:[%s3792 + $0x3e8] sm:$0xff]
        %v5437 = vld [vmem:[%s3792 + $0x3f0] sm:$0xff]
        %v5438 = vld [vmem:[%s3792 + $0x3f8] sm:$0xff]
        %v5439 = vld [vmem:[%s3792 + $0x400] sm:$0xff]
        %v5440 = vld [vmem:[%s3792 + $0x408] sm:$0xff]
        %v5441 = vld [vmem:[%s3792 + $0x410] sm:$0xff]
        %v5442 = vld [vmem:[%s3792 + $0x418] sm:$0xff]
        %v5443 = vld [vmem:[%s3792 + $0x420] sm:$0xff]
        %v5444 = vld [vmem:[%s3792 + $0x428] sm:$0xff]
        %v5445 = vld [vmem:[%s3792 + $0x430] sm:$0xff]
        %v5446 = vld [vmem:[%s3792 + $0x438] sm:$0xff]
        %v5447 = vld [vmem:[%s3792 + $0x440] sm:$0xff]
        %v5448 = vld [vmem:[%s3792 + $0x448] sm:$0xff]
        %v5449 = vld [vmem:[%s3792 + $0x450] sm:$0xff]
        %v5450 = vld [vmem:[%s3792 + $0x458] sm:$0xff]
        %v5451 = vld [vmem:[%s3792 + $0x460] sm:$0xff]
        %v5452 = vld [vmem:[%s3792 + $0x468] sm:$0xff]
        %v5453 = vld [vmem:[%s3792 + $0x470] sm:$0xff]
        %v5454 = vld [vmem:[%s3792 + $0x478] sm:$0xff]
        %v5455 = vld [vmem:[%s3792 + $0x480] sm:$0xff]
        %v5456 = vld [vmem:[%s3792 + $0x488] sm:$0xff]
        %v5457 = vld [vmem:[%s3792 + $0x490] sm:$0xff]
        %v5458 = vld [vmem:[%s3792 + $0x498] sm:$0xff]
        %v5459 = vld [vmem:[%s3792 + $0x4a0] sm:$0xff]
        %v5460 = vld [vmem:[%s3792 + $0x4a8] sm:$0xff]
        %v5461 = vld [vmem:[%s3792 + $0x4b0] sm:$0xff]
        %v5462 = vld [vmem:[%s3792 + $0x4b8] sm:$0xff]
        %v5463 = vld [vmem:[%s3792 + $0x4c0] sm:$0xff]
        %v5464 = vld [vmem:[%s3792 + $0x4c8] sm:$0xff]
        %v5465 = vld [vmem:[%s3792 + $0x4d0] sm:$0xff]
        %v5466 = vld [vmem:[%s3792 + $0x4d8] sm:$0xff]
        %v5467 = vld [vmem:[%s3792 + $0x4e0] sm:$0xff]
        %v5468 = vld [vmem:[%s3792 + $0x4e8] sm:$0xff]
        %v5469 = vld [vmem:[%s3792 + $0x4f0] sm:$0xff]
        %v5470 = vld [vmem:[%s3792 + $0x4f8] sm:$0xff]
        %v5471 = vld [vmem:[%s3792 + $0x500] sm:$0xff]
        %v5472 = vld [vmem:[%s3792 + $0x508] sm:$0xff]
        %v5473 = vld [vmem:[%s3792 + $0x510] sm:$0xff]
        %v5474 = vld [vmem:[%s3792 + $0x518] sm:$0xff]
        %v5475 = vld [vmem:[%s3792 + $0x520] sm:$0xff]
        %v5476 = vld [vmem:[%s3792 + $0x528] sm:$0xff]
        %v5477 = vld [vmem:[%s3792 + $0x530] sm:$0xff]
        %v5478 = vld [vmem:[%s3792 + $0x538] sm:$0xff]
        %v5479 = vld [vmem:[%s3792 + $0x540] sm:$0xff]
        %v5480 = vld [vmem:[%s3792 + $0x548] sm:$0xff]
        %v5481 = vld [vmem:[%s3792 + $0x550] sm:$0xff]
        %v5482 = vld [vmem:[%s3792 + $0x558] sm:$0xff]
        %v5483 = vld [vmem:[%s3792 + $0x560] sm:$0xff]
        %v5484 = vld [vmem:[%s3792 + $0x568] sm:$0xff]
        %v5485 = vld [vmem:[%s3792 + $0x570] sm:$0xff]
        %v5486 = vld [vmem:[%s3792 + $0x578] sm:$0xff]
        %v5487 = vld [vmem:[%s3792 + $0x580] sm:$0xff]
        %v5488 = vld [vmem:[%s3792 + $0x588] sm:$0xff]
        %v5489 = vld [vmem:[%s3792 + $0x590] sm:$0xff]
        %v5490 = vld [vmem:[%s3792 + $0x598] sm:$0xff]
        %v5491 = vld [vmem:[%s3792 + $0x5a0] sm:$0x7]
        %v5492 = vld [vmem:[%s3792 + $0x5a8] sm:$0x7]
        %v5493 = vld [vmem:[%s3792 + $0x5b0] sm:$0x7]
        %v5494 = vld [vmem:[%s3792 + $0x5b8] sm:$0x7]
        %v5496 = vsel %vm4046, %v5491, 0
        %v5499 = vsel %vm4046, %v5492, 0
        %v5502 = vsel %vm4046, %v5493, 0
        %v5505 = vsel %vm4046, %v5494, 0
        %5507 = vmatprep.subr.mxu0 %v5312
        %5508 = vmatpush1.msra.mxu0 %v5311
        %5509 = vmatprep.subr.mxu0 %v5316
        %5510 = vmatpush1.msra.mxu0 %v5315
        %5511 = vmatprep.subr.mxu0 %v5320
        %5512 = vmatpush1.msra.mxu0 %v5319
        %5513 = vmatprep.subr.mxu0 %v5324
        %5514 = vmatpush1.msra.mxu0 %v5323
        %5515 = vmatprep.subr.mxu0 %v5328
        %5516 = vmatpush1.msra.mxu0 %v5327
        %5517 = vmatprep.subr.mxu0 %v5332
        %5518 = vmatpush1.msra.mxu0 %v5331
        %5519 = vmatprep.subr.mxu0 %v5336
        %5520 = vmatpush1.msra.mxu0 %v5335
        %5521 = vmatprep.subr.mxu0 %v5340
        %5522 = vmatpush1.msra.mxu0 %v5339
        %5523 = vmatprep.subr.mxu0 %v5344
        %5524 = vmatpush1.msra.mxu0 %v5343
        %5525 = vmatprep.subr.mxu0 %v5348
        %5526 = vmatpush1.msra.mxu0 %v5347
        %5527 = vmatprep.subr.mxu0 %v5352
        %5528 = vmatpush1.msra.mxu0 %v5351
        %5529 = vmatprep.subr.mxu0 %v5356
        %5530 = vmatpush1.msra.mxu0 %v5355
        %5531 = vmatprep.subr.mxu0 %v5360
        %5532 = vmatpush1.msra.mxu0 %v5359
        %5533 = vmatprep.subr.mxu0 %v5364
        %5534 = vmatpush1.msra.mxu0 %v5363
        %5535 = vmatprep.subr.mxu0 %v5368
        %5536 = vmatpush1.msra.mxu0 %v5367
        %5537 = vmatprep.subr.mxu0 %v5372
        %5538 = vmatpush1.msra.mxu0 %v5371
        %5539 = vmatprep.subr.mxu0 %v5376
        %5540 = vmatpush1.msra.mxu0 %v5375
        %5541 = vmatprep.subr.mxu0 %v5380
        %5542 = vmatpush1.msra.mxu0 %v5379
        %5543 = vmatprep.subr.mxu0 %v5384
        %5544 = vmatpush1.msra.mxu0 %v5383
        %5545 = vmatprep.subr.mxu0 %v5388
        %5546 = vmatpush1.msra.mxu0 %v5387
        %5547 = vmatprep.subr.mxu0 %v5392
        %5548 = vmatpush1.msra.mxu0 %v5391
        %5549 = vmatprep.subr.mxu0 %v5396
        %5550 = vmatpush1.msra.mxu0 %v5395
        %5551 = vmatprep.subr.mxu0 %v5400
        %5552 = vmatpush1.msra.mxu0 %v5399
        %5553 = vmatprep.subr.mxu0 %v5404
        %5554 = vmatpush1.msra.mxu0 %v5403
        %5555 = vmatprep.subr.mxu0 %v5408
        %5556 = vmatpush1.msra.mxu0 %v5407
        %5557 = vmatprep.subr.mxu0 %v5412
        %5558 = vmatpush1.msra.mxu0 %v5411
        %5559 = vmatprep.subr.mxu0 %v5416
        %5560 = vmatpush1.msra.mxu0 %v5415
        %5561 = vmatprep.subr.mxu0 %v5420
        %5562 = vmatpush1.msra.mxu0 %v5419
        %5563 = vmatprep.subr.mxu0 %v5424
        %5564 = vmatpush1.msra.mxu0 %v5423
        %5565 = vmatprep.subr.mxu0 %v5428
        %5566 = vmatpush1.msra.mxu0 %v5427
        %5567 = vmatprep.subr.mxu0 %v5432
        %5568 = vmatpush1.msra.mxu0 %v5431
        %5569 = vmatprep.subr.mxu0 %v5436
        %5570 = vmatpush1.msra.mxu0 %v5435
        %5571 = vmatprep.mubr.f32.mxu0 %v3856
        %5572 = vmatmul.mubr.f32.gmra.mrb[0].mxu0 %v3855
        %v5573 = vpop.f32.mrb[0].mxu0
        %v5574 = vadd.f32 0.0, %v5573
        %v5575 = vpop.f32.mrb[0].mxu0
        %v5576 = vadd.f32 0.0, %v5575
        %5577 = vdwg.mxu0
        %5578 = vmatprep.subr.mxu0 %v5440
        %5579 = vmatpush1.msra.mxu0 %v5439
        %5580 = vmatprep.subr.mxu0 %v5444
        %5581 = vmatpush1.msra.mxu0 %v5443
        %5582 = vmatprep.subr.mxu0 %v5448
        %5583 = vmatpush1.msra.mxu0 %v5447
        %5584 = vmatprep.subr.mxu0 %v5452
        %5585 = vmatpush1.msra.mxu0 %v5451
        %5586 = vmatprep.subr.mxu0 %v5456
        %5587 = vmatpush1.msra.mxu0 %v5455
        %5588 = vmatprep.subr.mxu0 %v5460
        %5589 = vmatpush1.msra.mxu0 %v5459
        %5590 = vmatprep.subr.mxu0 %v5464
        %5591 = vmatpush1.msra.mxu0 %v5463
        %5592 = vmatprep.subr.mxu0 %v5468
        %5593 = vmatpush1.msra.mxu0 %v5467
        %5594 = vmatprep.subr.mxu0 %v5472
        %5595 = vmatpush1.msra.mxu0 %v5471
        %5596 = vmatprep.subr.mxu0 %v5476
        %5597 = vmatpush1.msra.mxu0 %v5475
        %5598 = vmatprep.subr.mxu0 %v5480
        %5599 = vmatpush1.msra.mxu0 %v5479
        %5600 = vmatprep.subr.mxu0 %v5484
        %5601 = vmatpush1.msra.mxu0 %v5483
        %5602 = vmatprep.subr.mxu0 %v5488
        %5603 = vmatpush1.msra.mxu0 %v5487
        %5604 = vmatprep.subr.mxu0 %v5499
        %5605 = vmatpush1.msra.mxu0 %v5496
        %5606 = vmatprep.subr.mxu0 0.0
        %5607 = vmatpush1.msra.mxu0 0.0
        %5608 = vmatprep.subr.mxu0 0.0
        %5609 = vmatpush1.msra.mxu0 0.0
        %5610 = vmatprep.subr.mxu0 0.0
        %5611 = vmatpush1.msra.mxu0 0.0
        %5612 = vmatprep.subr.mxu0 0.0
        %5613 = vmatpush1.msra.mxu0 0.0
        %5614 = vmatprep.subr.mxu0 0.0
        %5615 = vmatpush1.msra.mxu0 0.0
        %5616 = vmatprep.subr.mxu0 0.0
        %5617 = vmatpush1.msra.mxu0 0.0
        %5618 = vmatprep.subr.mxu0 0.0
        %5619 = vmatpush1.msra.mxu0 0.0
        %5620 = vmatprep.subr.mxu0 0.0
        %5621 = vmatpush1.msra.mxu0 0.0
        %5622 = vmatprep.subr.mxu0 0.0
        %5623 = vmatpush1.msra.mxu0 0.0
        %5624 = vmatprep.subr.mxu0 0.0
        %5625 = vmatpush1.msra.mxu0 0.0
        %5626 = vmatprep.subr.mxu0 0.0
        %5627 = vmatpush1.msra.mxu0 0.0
        %5628 = vmatprep.subr.mxu0 0.0
        %5629 = vmatpush1.msra.mxu0 0.0
        %5630 = vmatprep.subr.mxu0 0.0
        %5631 = vmatpush1.msra.mxu0 0.0
        %5632 = vmatprep.subr.mxu0 0.0
        %5633 = vmatpush1.msra.mxu0 0.0
        %5634 = vmatprep.subr.mxu0 0.0
        %5635 = vmatpush1.msra.mxu0 0.0
        %5636 = vmatprep.subr.mxu0 0.0
        %5637 = vmatpush1.msra.mxu0 0.0
        %5638 = vmatprep.subr.mxu0 0.0
        %5639 = vmatpush1.msra.mxu0 0.0
        %5640 = vmatprep.subr.mxu0 0.0
        %5641 = vmatpush1.msra.mxu0 0.0
        %5642 = vmatprep.mubr.f32.mxu0 0.0
        %5643 = vmatmul.mubr.f32.gmra.mrb[0].mxu0 %v4044
        %v5644 = vpop.f32.mrb[0].mxu0
        %v5645 = vadd.f32 %v5574, %v5644
        %v5646 = vpop.f32.mrb[0].mxu0
        %v5647 = vadd.f32 %v5576, %v5646
        %5648 = vdwg.mxu0
        %5649 = vmatprep.subr.mxu0 %v5314
        %5650 = vmatpush1.msra.mxu0 %v5313
        %5651 = vmatprep.subr.mxu0 %v5318
        %5652 = vmatpush1.msra.mxu0 %v5317
        %5653 = vmatprep.subr.mxu0 %v5322
        %5654 = vmatpush1.msra.mxu0 %v5321
        %5655 = vmatprep.subr.mxu0 %v5326
        %5656 = vmatpush1.msra.mxu0 %v5325
        %5657 = vmatprep.subr.mxu0 %v5330
        %5658 = vmatpush1.msra.mxu0 %v5329
        %5659 = vmatprep.subr.mxu0 %v5334
        %5660 = vmatpush1.msra.mxu0 %v5333
        %5661 = vmatprep.subr.mxu0 %v5338
        %5662 = vmatpush1.msra.mxu0 %v5337
        %5663 = vmatprep.subr.mxu0 %v5342
        %5664 = vmatpush1.msra.mxu0 %v5341
        %5665 = vmatprep.subr.mxu0 %v5346
        %5666 = vmatpush1.msra.mxu0 %v5345
        %5667 = vmatprep.subr.mxu0 %v5350
        %5668 = vmatpush1.msra.mxu0 %v5349
        %5669 = vmatprep.subr.mxu0 %v5354
        %5670 = vmatpush1.msra.mxu0 %v5353
        %5671 = vmatprep.subr.mxu0 %v5358
        %5672 = vmatpush1.msra.mxu0 %v5357
        %5673 = vmatprep.subr.mxu0 %v5362
        %5674 = vmatpush1.msra.mxu0 %v5361
        %5675 = vmatprep.subr.mxu0 %v5366
        %5676 = vmatpush1.msra.mxu0 %v5365
        %5677 = vmatprep.subr.mxu0 %v5370
        %5678 = vmatpush1.msra.mxu0 %v5369
        %5679 = vmatprep.subr.mxu0 %v5374
        %5680 = vmatpush1.msra.mxu0 %v5373
        %5681 = vmatprep.subr.mxu0 %v5378
        %5682 = vmatpush1.msra.mxu0 %v5377
        %5683 = vmatprep.subr.mxu0 %v5382
        %5684 = vmatpush1.msra.mxu0 %v5381
        %5685 = vmatprep.subr.mxu0 %v5386
        %5686 = vmatpush1.msra.mxu0 %v5385
        %5687 = vmatprep.subr.mxu0 %v5390
        %5688 = vmatpush1.msra.mxu0 %v5389
        %5689 = vmatprep.subr.mxu0 %v5394
        %5690 = vmatpush1.msra.mxu0 %v5393
        %5691 = vmatprep.subr.mxu0 %v5398
        %5692 = vmatpush1.msra.mxu0 %v5397
        %5693 = vmatprep.subr.mxu0 %v5402
        %5694 = vmatpush1.msra.mxu0 %v5401
        %5695 = vmatprep.subr.mxu0 %v5406
        %5696 = vmatpush1.msra.mxu0 %v5405
        %5697 = vmatprep.subr.mxu0 %v5410
        %5698 = vmatpush1.msra.mxu0 %v5409
        %5699 = vmatprep.subr.mxu0 %v5414
        %5700 = vmatpush1.msra.mxu0 %v5413
        %5701 = vmatprep.subr.mxu0 %v5418
        %5702 = vmatpush1.msra.mxu0 %v5417
        %5703 = vmatprep.subr.mxu0 %v5422
        %5704 = vmatpush1.msra.mxu0 %v5421
        %5705 = vmatprep.subr.mxu0 %v5426
        %5706 = vmatpush1.msra.mxu0 %v5425
        %5707 = vmatprep.subr.mxu0 %v5430
        %5708 = vmatpush1.msra.mxu0 %v5429
        %5709 = vmatprep.subr.mxu0 %v5434
        %5710 = vmatpush1.msra.mxu0 %v5433
        %5711 = vmatprep.subr.mxu0 %v5438
        %5712 = vmatpush1.msra.mxu0 %v5437
        %5713 = vmatprep.mubr.f32.mxu0 %v3856
        %5714 = vmatmul.mubr.f32.gmra.mrb[0].mxu0 %v3855
        %v5715 = vpop.f32.mrb[0].mxu0
        %v5716 = vadd.f32 0.0, %v5715
        %v5717 = vpop.f32.mrb[0].mxu0
        %v5718 = vadd.f32 0.0, %v5717
        %5719 = vdwg.mxu0
        %5720 = vmatprep.subr.mxu0 %v5442
        %5721 = vmatpush1.msra.mxu0 %v5441
        %5722 = vmatprep.subr.mxu0 %v5446
        %5723 = vmatpush1.msra.mxu0 %v5445
        %5724 = vmatprep.subr.mxu0 %v5450
        %5725 = vmatpush1.msra.mxu0 %v5449
        %5726 = vmatprep.subr.mxu0 %v5454
        %5727 = vmatpush1.msra.mxu0 %v5453
        %5728 = vmatprep.subr.mxu0 %v5458
        %5729 = vmatpush1.msra.mxu0 %v5457
        %5730 = vmatprep.subr.mxu0 %v5462
        %5731 = vmatpush1.msra.mxu0 %v5461
        %5732 = vmatprep.subr.mxu0 %v5466
        %5733 = vmatpush1.msra.mxu0 %v5465
        %5734 = vmatprep.subr.mxu0 %v5470
        %5735 = vmatpush1.msra.mxu0 %v5469
        %5736 = vmatprep.subr.mxu0 %v5474
        %5737 = vmatpush1.msra.mxu0 %v5473
        %5738 = vmatprep.subr.mxu0 %v5478
        %5739 = vmatpush1.msra.mxu0 %v5477
        %5740 = vmatprep.subr.mxu0 %v5482
        %5741 = vmatpush1.msra.mxu0 %v5481
        %5742 = vmatprep.subr.mxu0 %v5486
        %5743 = vmatpush1.msra.mxu0 %v5485
        %5744 = vmatprep.subr.mxu0 %v5490
        %5745 = vmatpush1.msra.mxu0 %v5489
        %5746 = vmatprep.subr.mxu0 %v5505
        %5747 = vmatpush1.msra.mxu0 %v5502
        %5748 = vmatprep.subr.mxu0 0.0
        %5749 = vmatpush1.msra.mxu0 0.0
        %5750 = vmatprep.subr.mxu0 0.0
        %5751 = vmatpush1.msra.mxu0 0.0
        %5752 = vmatprep.subr.mxu0 0.0
        %5753 = vmatpush1.msra.mxu0 0.0
        %5754 = vmatprep.subr.mxu0 0.0
        %5755 = vmatpush1.msra.mxu0 0.0
        %5756 = vmatprep.subr.mxu0 0.0
        %5757 = vmatpush1.msra.mxu0 0.0
        %5758 = vmatprep.subr.mxu0 0.0
        %5759 = vmatpush1.msra.mxu0 0.0
        %5760 = vmatprep.subr.mxu0 0.0
        %5761 = vmatpush1.msra.mxu0 0.0
        %5762 = vmatprep.subr.mxu0 0.0
        %5763 = vmatpush1.msra.mxu0 0.0
        %5764 = vmatprep.subr.mxu0 0.0
        %5765 = vmatpush1.msra.mxu0 0.0
        %5766 = vmatprep.subr.mxu0 0.0
        %5767 = vmatpush1.msra.mxu0 0.0
        %5768 = vmatprep.subr.mxu0 0.0
        %5769 = vmatpush1.msra.mxu0 0.0
        %5770 = vmatprep.subr.mxu0 0.0
        %5771 = vmatpush1.msra.mxu0 0.0
        %5772 = vmatprep.subr.mxu0 0.0
        %5773 = vmatpush1.msra.mxu0 0.0
        %5774 = vmatprep.subr.mxu0 0.0
        %5775 = vmatpush1.msra.mxu0 0.0
        %5776 = vmatprep.subr.mxu0 0.0
        %5777 = vmatpush1.msra.mxu0 0.0
        %5778 = vmatprep.subr.mxu0 0.0
        %5779 = vmatpush1.msra.mxu0 0.0
        %5780 = vmatprep.subr.mxu0 0.0
        %5781 = vmatpush1.msra.mxu0 0.0
        %5782 = vmatprep.subr.mxu0 0.0
        %5783 = vmatpush1.msra.mxu0 0.0
        %5784 = vmatprep.mubr.f32.mxu0 0.0
        %5785 = vmatmul.mubr.f32.gmra.mrb[0].mxu0 %v4044
        %v5786 = vpop.f32.mrb[0].mxu0
        %v5787 = vadd.f32 %v5716, %v5786
        %v5788 = vpop.f32.mrb[0].mxu0
        %v5789 = vadd.f32 %v5718, %v5788
        %5790 = vdwg.mxu0
        %v5791 = vmax.f32 %v5307, %v5645
        %v5792 = vmax.f32 %v5308, %v5647
        %v5793 = vmax.f32 %v5309, %v5787
        %v5794 = vmax.f32 %v5310, %v5789
        %v5795 = vld [vmem:[%s1] sm:$0x3f]
        %5797 = vset.pattern.permute.xlu0 0
        %5798 = vperm.xlu0 %5797, %v5795
        %v5799 = vpop.permute.xlu0 %5798
        %v5801 = vadd.f32 %v5791, %v5799
        %v5802 = vadd.f32 %v5792, %v5799
        %v5803 = vadd.f32 %v5793, %v5799
        %v5804 = vadd.f32 %v5794, %v5799
        %v5805 = vmax.f32 %v5801, 0.0
        %v5806 = vmax.f32 %v5802, 0.0
        %v5807 = vmax.f32 %v5803, 0.0
        %v5808 = vmax.f32 %v5804, 0.0
        %5809 = vst [vmem:[%s3829] sm:$0x3f] %v5805
        %5810 = vst [vmem:[%s3829 + $0x8] sm:$0x3f] %v5806
        %5811 = vst [vmem:[%s3829 + $0x10] sm:$0x3f] %v5807
        %5812 = vst [vmem:[%s3829 + $0x18] sm:$0x3f] %v5808
        %s5813 = sand.u32 %s171, 1
        %s5814 = sand.u32 %s171, 1
        %s5815 = smul.addr %s5814, 32
        %s5816 = scalar_lea.vmem [#allocation6], %s5815
        // Predicated region
        $region309: #{forward.3} parent=291 // pred_check
          %p5817 = pneg %p181
        $region310: #{forward.3} parent=291 // pred_check_branch
          %5819 = sbr.rel (%p5817) target = $region312
        $region311: #{forward.3} parent=291 // pred_region
          %s5820 = smul.u32 4, %s17
          %s5821 = ssub.s32 14, %s5820
          %p5822 = scmp.lt.s32.totalorder %s5821, 4
          %s5823 = scalar_select %p5822, %s5821, 4
          %s5824 = smul.u32 128, %s5823
          %p5825 = scmp.ne.s32.totalorder 0, %s5824
          %s5826 = smul.addr %s5820, 8
          %s5827 = scalar_lea.vmem %s6, %s5826
          %s5828 = smul.u32 %s5823, 8
          // Predicated region
          $region313: #{forward.3} parent=311 // pred_check
            %p5829 = pneg %p5825
          $region314: #{forward.3} parent=311 // pred_check_branch
            %5831 = sbr.rel (%p5829) target = $region316
          $region315: #{forward.3} parent=311 // pred_region
            %p5832 = scmp.lt.u32.totalorder %s5828, 8
            %p5833 = pneg %p5832
            // Predicated region
            $region317: #{forward.3} parent=315 // pred_check
              _
            $region318: #{forward.3} parent=315 // pred_check_branch
              %5835 = sbr.rel (%p5832) target = $region320
            $region319: #{forward.3} parent=315 // pred_region
              %s5850 = sand.u32 %s5828, 7
              %p5851 = scmp.eq.s32.totalorder %s5850, 0
              // Predicated region
              $region332: #{forward.3} parent=319 // pred_check
                %p5852 = pneg %p5851
              $region333: #{forward.3} parent=319 // pred_check_branch
                %5854 = sbr.rel (%p5852) target = $region335
              $region334: #{forward.3} parent=319 // pred_region
                %s5855 = sshrl.u32 %s5828, 3
                %s5856 = sshrl.u32 %s5855, 6
                // While loop
                $region336: #{forward.3} parent=334 // loop_pre_header
                  _
                $region337: #{forward.3} parent=334 // loop_header
                  %s5860 = sphi 0, %s5862
                  %p5861 = scmp.ge.s32.totalorder %s5860, %s5856
                  %s5865 = sphi 0, %s5998
                  %s5866 = sphi %s5816, %s6001
                  %s5867 = sphi %s5827, %s6002
                $region338: #{forward.3} parent=334 // loop_header_branch
                  %5864 = sbr.rel (%p5861) target = $region342
                $region339: #{forward.3} parent=334 // loop_body
                  %v5868 = vld [vmem:[%s5866] sm:$0xff]
                  %5869 = vst [vmem:[%s5867] sm:$0xff] %v5868
                  %v5870 = vld [vmem:[%s5866 + $0x8] sm:$0xff]
                  %5871 = vst [vmem:[%s5867 + $0x8] sm:$0xff] %v5870
                  %v5872 = vld [vmem:[%s5866 + $0x10] sm:$0xff]
                  %5873 = vst [vmem:[%s5867 + $0x10] sm:$0xff] %v5872
                  %v5874 = vld [vmem:[%s5866 + $0x18] sm:$0xff]
                  %5875 = vst [vmem:[%s5867 + $0x18] sm:$0xff] %v5874
                  %v5876 = vld [vmem:[%s5866 + $0x20] sm:$0xff]
                  %5877 = vst [vmem:[%s5867 + $0x20] sm:$0xff] %v5876
                  %v5878 = vld [vmem:[%s5866 + $0x28] sm:$0xff]
                  %5879 = vst [vmem:[%s5867 + $0x28] sm:$0xff] %v5878
                  %v5880 = vld [vmem:[%s5866 + $0x30] sm:$0xff]
                  %5881 = vst [vmem:[%s5867 + $0x30] sm:$0xff] %v5880
                  %v5882 = vld [vmem:[%s5866 + $0x38] sm:$0xff]
                  %5883 = vst [vmem:[%s5867 + $0x38] sm:$0xff] %v5882
                  %v5884 = vld [vmem:[%s5866 + $0x40] sm:$0xff]
                  %5885 = vst [vmem:[%s5867 + $0x40] sm:$0xff] %v5884
                  %v5886 = vld [vmem:[%s5866 + $0x48] sm:$0xff]
                  %5887 = vst [vmem:[%s5867 + $0x48] sm:$0xff] %v5886
                  %v5888 = vld [vmem:[%s5866 + $0x50] sm:$0xff]
                  %5889 = vst [vmem:[%s5867 + $0x50] sm:$0xff] %v5888
                  %v5890 = vld [vmem:[%s5866 + $0x58] sm:$0xff]
                  %5891 = vst [vmem:[%s5867 + $0x58] sm:$0xff] %v5890
                  %v5892 = vld [vmem:[%s5866 + $0x60] sm:$0xff]
                  %5893 = vst [vmem:[%s5867 + $0x60] sm:$0xff] %v5892
                  %v5894 = vld [vmem:[%s5866 + $0x68] sm:$0xff]
                  %5895 = vst [vmem:[%s5867 + $0x68] sm:$0xff] %v5894
                  %v5896 = vld [vmem:[%s5866 + $0x70] sm:$0xff]
                  %5897 = vst [vmem:[%s5867 + $0x70] sm:$0xff] %v5896
                  %v5898 = vld [vmem:[%s5866 + $0x78] sm:$0xff]
                  %5899 = vst [vmem:[%s5867 + $0x78] sm:$0xff] %v5898
                  %v5900 = vld [vmem:[%s5866 + $0x80] sm:$0xff]
                  %5901 = vst [vmem:[%s5867 + $0x80] sm:$0xff] %v5900
                  %v5902 = vld [vmem:[%s5866 + $0x88] sm:$0xff]
                  %5903 = vst [vmem:[%s5867 + $0x88] sm:$0xff] %v5902
                  %v5904 = vld [vmem:[%s5866 + $0x90] sm:$0xff]
                  %5905 = vst [vmem:[%s5867 + $0x90] sm:$0xff] %v5904
                  %v5906 = vld [vmem:[%s5866 + $0x98] sm:$0xff]
                  %5907 = vst [vmem:[%s5867 + $0x98] sm:$0xff] %v5906
                  %v5908 = vld [vmem:[%s5866 + $0xa0] sm:$0xff]
                  %5909 = vst [vmem:[%s5867 + $0xa0] sm:$0xff] %v5908
                  %v5910 = vld [vmem:[%s5866 + $0xa8] sm:$0xff]
                  %5911 = vst [vmem:[%s5867 + $0xa8] sm:$0xff] %v5910
                  %v5912 = vld [vmem:[%s5866 + $0xb0] sm:$0xff]
                  %5913 = vst [vmem:[%s5867 + $0xb0] sm:$0xff] %v5912
                  %v5914 = vld [vmem:[%s5866 + $0xb8] sm:$0xff]
                  %5915 = vst [vmem:[%s5867 + $0xb8] sm:$0xff] %v5914
                  %v5916 = vld [vmem:[%s5866 + $0xc0] sm:$0xff]
                  %5917 = vst [vmem:[%s5867 + $0xc0] sm:$0xff] %v5916
                  %v5918 = vld [vmem:[%s5866 + $0xc8] sm:$0xff]
                  %5919 = vst [vmem:[%s5867 + $0xc8] sm:$0xff] %v5918
                  %v5920 = vld [vmem:[%s5866 + $0xd0] sm:$0xff]
                  %5921 = vst [vmem:[%s5867 + $0xd0] sm:$0xff] %v5920
                  %v5922 = vld [vmem:[%s5866 + $0xd8] sm:$0xff]
                  %5923 = vst [vmem:[%s5867 + $0xd8] sm:$0xff] %v5922
                  %v5924 = vld [vmem:[%s5866 + $0xe0] sm:$0xff]
                  %5925 = vst [vmem:[%s5867 + $0xe0] sm:$0xff] %v5924
                  %v5926 = vld [vmem:[%s5866 + $0xe8] sm:$0xff]
                  %5927 = vst [vmem:[%s5867 + $0xe8] sm:$0xff] %v5926
                  %v5928 = vld [vmem:[%s5866 + $0xf0] sm:$0xff]
                  %5929 = vst [vmem:[%s5867 + $0xf0] sm:$0xff] %v5928
                  %v5930 = vld [vmem:[%s5866 + $0xf8] sm:$0xff]
                  %5931 = vst [vmem:[%s5867 + $0xf8] sm:$0xff] %v5930
                  %v5932 = vld [vmem:[%s5866 + $0x100] sm:$0xff]
                  %5933 = vst [vmem:[%s5867 + $0x100] sm:$0xff] %v5932
                  %v5934 = vld [vmem:[%s5866 + $0x108] sm:$0xff]
                  %5935 = vst [vmem:[%s5867 + $0x108] sm:$0xff] %v5934
                  %v5936 = vld [vmem:[%s5866 + $0x110] sm:$0xff]
                  %5937 = vst [vmem:[%s5867 + $0x110] sm:$0xff] %v5936
                  %v5938 = vld [vmem:[%s5866 + $0x118] sm:$0xff]
                  %5939 = vst [vmem:[%s5867 + $0x118] sm:$0xff] %v5938
                  %v5940 = vld [vmem:[%s5866 + $0x120] sm:$0xff]
                  %5941 = vst [vmem:[%s5867 + $0x120] sm:$0xff] %v5940
                  %v5942 = vld [vmem:[%s5866 + $0x128] sm:$0xff]
                  %5943 = vst [vmem:[%s5867 + $0x128] sm:$0xff] %v5942
                  %v5944 = vld [vmem:[%s5866 + $0x130] sm:$0xff]
                  %5945 = vst [vmem:[%s5867 + $0x130] sm:$0xff] %v5944
                  %v5946 = vld [vmem:[%s5866 + $0x138] sm:$0xff]
                  %5947 = vst [vmem:[%s5867 + $0x138] sm:$0xff] %v5946
                  %v5948 = vld [vmem:[%s5866 + $0x140] sm:$0xff]
                  %5949 = vst [vmem:[%s5867 + $0x140] sm:$0xff] %v5948
                  %v5950 = vld [vmem:[%s5866 + $0x148] sm:$0xff]
                  %5951 = vst [vmem:[%s5867 + $0x148] sm:$0xff] %v5950
                  %v5952 = vld [vmem:[%s5866 + $0x150] sm:$0xff]
                  %5953 = vst [vmem:[%s5867 + $0x150] sm:$0xff] %v5952
                  %v5954 = vld [vmem:[%s5866 + $0x158] sm:$0xff]
                  %5955 = vst [vmem:[%s5867 + $0x158] sm:$0xff] %v5954
                  %v5956 = vld [vmem:[%s5866 + $0x160] sm:$0xff]
                  %5957 = vst [vmem:[%s5867 + $0x160] sm:$0xff] %v5956
                  %v5958 = vld [vmem:[%s5866 + $0x168] sm:$0xff]
                  %5959 = vst [vmem:[%s5867 + $0x168] sm:$0xff] %v5958
                  %v5960 = vld [vmem:[%s5866 + $0x170] sm:$0xff]
                  %5961 = vst [vmem:[%s5867 + $0x170] sm:$0xff] %v5960
                  %v5962 = vld [vmem:[%s5866 + $0x178] sm:$0xff]
                  %5963 = vst [vmem:[%s5867 + $0x178] sm:$0xff] %v5962
                  %v5964 = vld [vmem:[%s5866 + $0x180] sm:$0xff]
                  %5965 = vst [vmem:[%s5867 + $0x180] sm:$0xff] %v5964
                  %v5966 = vld [vmem:[%s5866 + $0x188] sm:$0xff]
                  %5967 = vst [vmem:[%s5867 + $0x188] sm:$0xff] %v5966
                  %v5968 = vld [vmem:[%s5866 + $0x190] sm:$0xff]
                  %5969 = vst [vmem:[%s5867 + $0x190] sm:$0xff] %v5968
                  %v5970 = vld [vmem:[%s5866 + $0x198] sm:$0xff]
                  %5971 = vst [vmem:[%s5867 + $0x198] sm:$0xff] %v5970
                  %v5972 = vld [vmem:[%s5866 + $0x1a0] sm:$0xff]
                  %5973 = vst [vmem:[%s5867 + $0x1a0] sm:$0xff] %v5972
                  %v5974 = vld [vmem:[%s5866 + $0x1a8] sm:$0xff]
                  %5975 = vst [vmem:[%s5867 + $0x1a8] sm:$0xff] %v5974
                  %v5976 = vld [vmem:[%s5866 + $0x1b0] sm:$0xff]
                  %5977 = vst [vmem:[%s5867 + $0x1b0] sm:$0xff] %v5976
                  %v5978 = vld [vmem:[%s5866 + $0x1b8] sm:$0xff]
                  %5979 = vst [vmem:[%s5867 + $0x1b8] sm:$0xff] %v5978
                  %v5980 = vld [vmem:[%s5866 + $0x1c0] sm:$0xff]
                  %5981 = vst [vmem:[%s5867 + $0x1c0] sm:$0xff] %v5980
                  %v5982 = vld [vmem:[%s5866 + $0x1c8] sm:$0xff]
                  %5983 = vst [vmem:[%s5867 + $0x1c8] sm:$0xff] %v5982
                  %v5984 = vld [vmem:[%s5866 + $0x1d0] sm:$0xff]
                  %5985 = vst [vmem:[%s5867 + $0x1d0] sm:$0xff] %v5984
                  %v5986 = vld [vmem:[%s5866 + $0x1d8] sm:$0xff]
                  %5987 = vst [vmem:[%s5867 + $0x1d8] sm:$0xff] %v5986
                  %v5988 = vld [vmem:[%s5866 + $0x1e0] sm:$0xff]
                  %5989 = vst [vmem:[%s5867 + $0x1e0] sm:$0xff] %v5988
                  %v5990 = vld [vmem:[%s5866 + $0x1e8] sm:$0xff]
                  %5991 = vst [vmem:[%s5867 + $0x1e8] sm:$0xff] %v5990
                  %v5992 = vld [vmem:[%s5866 + $0x1f0] sm:$0xff]
                  %5993 = vst [vmem:[%s5867 + $0x1f0] sm:$0xff] %v5992
                  %v5994 = vld [vmem:[%s5866 + $0x1f8] sm:$0xff]
                  %5995 = vst [vmem:[%s5867 + $0x1f8] sm:$0xff] %v5994
                  %s5996 = sadd.s32 1, %s5865
                  %p5997 = scmp.ge.s32.totalorder %s5996, %s5856
                  %s5998 = scalar_select %p5997, 0, %s5996
                  %s5999 = smul.u32 %s5998, 512
                  %s6000 = smul.u32 %s5998, 512
                  %s6001 = scalar_lea.vmem %s5816, %s5999 [#allocation6]
                  %s6002 = scalar_lea.vmem %s5827, %s6000
                $region340: #{forward.3} parent=334 // loop_footer
                  %s5862 = sadd.s32 %s5860, 1
                $region341: #{forward.3} parent=334 // loop_footer_branch
                  %5859 = sbr.rel target = $region337
                $region342: #{forward.3} parent=334 // loop_exit
                  _
                %s6003 = sshrl.u32 %s5855, 6
                %s6004 = sand.u32 %s5855, 63
                %s6005 = smul.u32 %s6003, 64
                %s6006 = smul.u32 128, %s6005
                %s6007 = sshra.s32 %s6006, 4
                %s6008 = scalar_lea.vmem %s5816, %s6007 [#allocation6]
                %s6009 = smul.u32 128, %s6005
                %s6010 = sshra.s32 %s6009, 4
                %s6011 = scalar_lea.vmem %s5827, %s6010
                // While loop
                $region343: #{forward.3} parent=334 // loop_pre_header
                  _
                $region344: #{forward.3} parent=334 // loop_header
                  %s6015 = sphi 0, %s6017
                  %p6016 = scmp.ge.s32.totalorder %s6015, %s6004
                  %s6020 = sphi 0, %s6027
                  %s6021 = sphi %s6008, %s6030
                  %s6022 = sphi %s6011, %s6031
                $region345: #{forward.3} parent=334 // loop_header_branch
                  %6019 = sbr.rel (%p6016) target = $region349
                $region346: #{forward.3} parent=334 // loop_body
                  %v6023 = vld [vmem:[%s6021] sm:$0xff]
                  %6024 = vst [vmem:[%s6022] sm:$0xff] %v6023
                  %s6025 = sadd.s32 1, %s6020
                  %p6026 = scmp.ge.s32.totalorder %s6025, %s6004
                  %s6027 = scalar_select %p6026, 0, %s6025
                  %s6028 = smul.u32 %s6027, 8
                  %s6029 = smul.u32 %s6027, 8
                  %s6030 = scalar_lea.vmem %s6008, %s6028 [#allocation6]
                  %s6031 = scalar_lea.vmem %s6011, %s6029
                $region347: #{forward.3} parent=334 // loop_footer
                  %s6017 = sadd.s32 %s6015, 1
                $region348: #{forward.3} parent=334 // loop_footer_branch
                  %6014 = sbr.rel target = $region344
                $region349: #{forward.3} parent=334 // loop_exit
                  _
              $region335: #{forward.3} parent=319 // pred_fallthru
                _
              %p6032 = pneg %p5851
              // Predicated region
              $region350: #{forward.3} parent=319 // pred_check
                _
              $region351: #{forward.3} parent=319 // pred_check_branch
                %6034 = sbr.rel (%p5851) target = $region353
              $region352: #{forward.3} parent=319 // pred_region
                %s6035 = sand.u32 %s5828, 7
                %s6036 = ssub.s32 %s5828, %s6035
                %s6037 = scalar_lea.vmem %s5816, %s6036 [#allocation6]
                %s6038 = ssub.s32 %s5828, %s6035
                %s6039 = scalar_lea.vmem %s5827, %s6038
                %s6040 = sshrl.u32 %s5828, 3
                %s6041 = sshrl.u32 %s6040, 6
                // While loop
                $region354: #{forward.3} parent=352 // loop_pre_header
                  _
                $region355: #{forward.3} parent=352 // loop_header
                  %s6045 = sphi 0, %s6047
                  %p6046 = scmp.ge.s32.totalorder %s6045, %s6041
                  %s6050 = sphi 0, %s6183
                  %s6051 = sphi %s5816, %s6186
                  %s6052 = sphi %s5827, %s6187
                $region356: #{forward.3} parent=352 // loop_header_branch
                  %6049 = sbr.rel (%p6046) target = $region360
                $region357: #{forward.3} parent=352 // loop_body
                  %v6053 = vld [vmem:[%s6051] sm:$0xff]
                  %6054 = vst [vmem:[%s6052] sm:$0xff] %v6053
                  %v6055 = vld [vmem:[%s6051 + $0x8] sm:$0xff]
                  %6056 = vst [vmem:[%s6052 + $0x8] sm:$0xff] %v6055
                  %v6057 = vld [vmem:[%s6051 + $0x10] sm:$0xff]
                  %6058 = vst [vmem:[%s6052 + $0x10] sm:$0xff] %v6057
                  %v6059 = vld [vmem:[%s6051 + $0x18] sm:$0xff]
                  %6060 = vst [vmem:[%s6052 + $0x18] sm:$0xff] %v6059
                  %v6061 = vld [vmem:[%s6051 + $0x20] sm:$0xff]
                  %6062 = vst [vmem:[%s6052 + $0x20] sm:$0xff] %v6061
                  %v6063 = vld [vmem:[%s6051 + $0x28] sm:$0xff]
                  %6064 = vst [vmem:[%s6052 + $0x28] sm:$0xff] %v6063
                  %v6065 = vld [vmem:[%s6051 + $0x30] sm:$0xff]
                  %6066 = vst [vmem:[%s6052 + $0x30] sm:$0xff] %v6065
                  %v6067 = vld [vmem:[%s6051 + $0x38] sm:$0xff]
                  %6068 = vst [vmem:[%s6052 + $0x38] sm:$0xff] %v6067
                  %v6069 = vld [vmem:[%s6051 + $0x40] sm:$0xff]
                  %6070 = vst [vmem:[%s6052 + $0x40] sm:$0xff] %v6069
                  %v6071 = vld [vmem:[%s6051 + $0x48] sm:$0xff]
                  %6072 = vst [vmem:[%s6052 + $0x48] sm:$0xff] %v6071
                  %v6073 = vld [vmem:[%s6051 + $0x50] sm:$0xff]
                  %6074 = vst [vmem:[%s6052 + $0x50] sm:$0xff] %v6073
                  %v6075 = vld [vmem:[%s6051 + $0x58] sm:$0xff]
                  %6076 = vst [vmem:[%s6052 + $0x58] sm:$0xff] %v6075
                  %v6077 = vld [vmem:[%s6051 + $0x60] sm:$0xff]
                  %6078 = vst [vmem:[%s6052 + $0x60] sm:$0xff] %v6077
                  %v6079 = vld [vmem:[%s6051 + $0x68] sm:$0xff]
                  %6080 = vst [vmem:[%s6052 + $0x68] sm:$0xff] %v6079
                  %v6081 = vld [vmem:[%s6051 + $0x70] sm:$0xff]
                  %6082 = vst [vmem:[%s6052 + $0x70] sm:$0xff] %v6081
                  %v6083 = vld [vmem:[%s6051 + $0x78] sm:$0xff]
                  %6084 = vst [vmem:[%s6052 + $0x78] sm:$0xff] %v6083
                  %v6085 = vld [vmem:[%s6051 + $0x80] sm:$0xff]
                  %6086 = vst [vmem:[%s6052 + $0x80] sm:$0xff] %v6085
                  %v6087 = vld [vmem:[%s6051 + $0x88] sm:$0xff]
                  %6088 = vst [vmem:[%s6052 + $0x88] sm:$0xff] %v6087
                  %v6089 = vld [vmem:[%s6051 + $0x90] sm:$0xff]
                  %6090 = vst [vmem:[%s6052 + $0x90] sm:$0xff] %v6089
                  %v6091 = vld [vmem:[%s6051 + $0x98] sm:$0xff]
                  %6092 = vst [vmem:[%s6052 + $0x98] sm:$0xff] %v6091
                  %v6093 = vld [vmem:[%s6051 + $0xa0] sm:$0xff]
                  %6094 = vst [vmem:[%s6052 + $0xa0] sm:$0xff] %v6093
                  %v6095 = vld [vmem:[%s6051 + $0xa8] sm:$0xff]
                  %6096 = vst [vmem:[%s6052 + $0xa8] sm:$0xff] %v6095
                  %v6097 = vld [vmem:[%s6051 + $0xb0] sm:$0xff]
                  %6098 = vst [vmem:[%s6052 + $0xb0] sm:$0xff] %v6097
                  %v6099 = vld [vmem:[%s6051 + $0xb8] sm:$0xff]
                  %6100 = vst [vmem:[%s6052 + $0xb8] sm:$0xff] %v6099
                  %v6101 = vld [vmem:[%s6051 + $0xc0] sm:$0xff]
                  %6102 = vst [vmem:[%s6052 + $0xc0] sm:$0xff] %v6101
                  %v6103 = vld [vmem:[%s6051 + $0xc8] sm:$0xff]
                  %6104 = vst [vmem:[%s6052 + $0xc8] sm:$0xff] %v6103
                  %v6105 = vld [vmem:[%s6051 + $0xd0] sm:$0xff]
                  %6106 = vst [vmem:[%s6052 + $0xd0] sm:$0xff] %v6105
                  %v6107 = vld [vmem:[%s6051 + $0xd8] sm:$0xff]
                  %6108 = vst [vmem:[%s6052 + $0xd8] sm:$0xff] %v6107
                  %v6109 = vld [vmem:[%s6051 + $0xe0] sm:$0xff]
                  %6110 = vst [vmem:[%s6052 + $0xe0] sm:$0xff] %v6109
                  %v6111 = vld [vmem:[%s6051 + $0xe8] sm:$0xff]
                  %6112 = vst [vmem:[%s6052 + $0xe8] sm:$0xff] %v6111
                  %v6113 = vld [vmem:[%s6051 + $0xf0] sm:$0xff]
                  %6114 = vst [vmem:[%s6052 + $0xf0] sm:$0xff] %v6113
                  %v6115 = vld [vmem:[%s6051 + $0xf8] sm:$0xff]
                  %6116 = vst [vmem:[%s6052 + $0xf8] sm:$0xff] %v6115
                  %v6117 = vld [vmem:[%s6051 + $0x100] sm:$0xff]
                  %6118 = vst [vmem:[%s6052 + $0x100] sm:$0xff] %v6117
                  %v6119 = vld [vmem:[%s6051 + $0x108] sm:$0xff]
                  %6120 = vst [vmem:[%s6052 + $0x108] sm:$0xff] %v6119
                  %v6121 = vld [vmem:[%s6051 + $0x110] sm:$0xff]
                  %6122 = vst [vmem:[%s6052 + $0x110] sm:$0xff] %v6121
                  %v6123 = vld [vmem:[%s6051 + $0x118] sm:$0xff]
                  %6124 = vst [vmem:[%s6052 + $0x118] sm:$0xff] %v6123
                  %v6125 = vld [vmem:[%s6051 + $0x120] sm:$0xff]
                  %6126 = vst [vmem:[%s6052 + $0x120] sm:$0xff] %v6125
                  %v6127 = vld [vmem:[%s6051 + $0x128] sm:$0xff]
                  %6128 = vst [vmem:[%s6052 + $0x128] sm:$0xff] %v6127
                  %v6129 = vld [vmem:[%s6051 + $0x130] sm:$0xff]
                  %6130 = vst [vmem:[%s6052 + $0x130] sm:$0xff] %v6129
                  %v6131 = vld [vmem:[%s6051 + $0x138] sm:$0xff]
                  %6132 = vst [vmem:[%s6052 + $0x138] sm:$0xff] %v6131
                  %v6133 = vld [vmem:[%s6051 + $0x140] sm:$0xff]
                  %6134 = vst [vmem:[%s6052 + $0x140] sm:$0xff] %v6133
                  %v6135 = vld [vmem:[%s6051 + $0x148] sm:$0xff]
                  %6136 = vst [vmem:[%s6052 + $0x148] sm:$0xff] %v6135
                  %v6137 = vld [vmem:[%s6051 + $0x150] sm:$0xff]
                  %6138 = vst [vmem:[%s6052 + $0x150] sm:$0xff] %v6137
                  %v6139 = vld [vmem:[%s6051 + $0x158] sm:$0xff]
                  %6140 = vst [vmem:[%s6052 + $0x158] sm:$0xff] %v6139
                  %v6141 = vld [vmem:[%s6051 + $0x160] sm:$0xff]
                  %6142 = vst [vmem:[%s6052 + $0x160] sm:$0xff] %v6141
                  %v6143 = vld [vmem:[%s6051 + $0x168] sm:$0xff]
                  %6144 = vst [vmem:[%s6052 + $0x168] sm:$0xff] %v6143
                  %v6145 = vld [vmem:[%s6051 + $0x170] sm:$0xff]
                  %6146 = vst [vmem:[%s6052 + $0x170] sm:$0xff] %v6145
                  %v6147 = vld [vmem:[%s6051 + $0x178] sm:$0xff]
                  %6148 = vst [vmem:[%s6052 + $0x178] sm:$0xff] %v6147
                  %v6149 = vld [vmem:[%s6051 + $0x180] sm:$0xff]
                  %6150 = vst [vmem:[%s6052 + $0x180] sm:$0xff] %v6149
                  %v6151 = vld [vmem:[%s6051 + $0x188] sm:$0xff]
                  %6152 = vst [vmem:[%s6052 + $0x188] sm:$0xff] %v6151
                  %v6153 = vld [vmem:[%s6051 + $0x190] sm:$0xff]
                  %6154 = vst [vmem:[%s6052 + $0x190] sm:$0xff] %v6153
                  %v6155 = vld [vmem:[%s6051 + $0x198] sm:$0xff]
                  %6156 = vst [vmem:[%s6052 + $0x198] sm:$0xff] %v6155
                  %v6157 = vld [vmem:[%s6051 + $0x1a0] sm:$0xff]
                  %6158 = vst [vmem:[%s6052 + $0x1a0] sm:$0xff] %v6157
                  %v6159 = vld [vmem:[%s6051 + $0x1a8] sm:$0xff]
                  %6160 = vst [vmem:[%s6052 + $0x1a8] sm:$0xff] %v6159
                  %v6161 = vld [vmem:[%s6051 + $0x1b0] sm:$0xff]
                  %6162 = vst [vmem:[%s6052 + $0x1b0] sm:$0xff] %v6161
                  %v6163 = vld [vmem:[%s6051 + $0x1b8] sm:$0xff]
                  %6164 = vst [vmem:[%s6052 + $0x1b8] sm:$0xff] %v6163
                  %v6165 = vld [vmem:[%s6051 + $0x1c0] sm:$0xff]
                  %6166 = vst [vmem:[%s6052 + $0x1c0] sm:$0xff] %v6165
                  %v6167 = vld [vmem:[%s6051 + $0x1c8] sm:$0xff]
                  %6168 = vst [vmem:[%s6052 + $0x1c8] sm:$0xff] %v6167
                  %v6169 = vld [vmem:[%s6051 + $0x1d0] sm:$0xff]
                  %6170 = vst [vmem:[%s6052 + $0x1d0] sm:$0xff] %v6169
                  %v6171 = vld [vmem:[%s6051 + $0x1d8] sm:$0xff]
                  %6172 = vst [vmem:[%s6052 + $0x1d8] sm:$0xff] %v6171
                  %v6173 = vld [vmem:[%s6051 + $0x1e0] sm:$0xff]
                  %6174 = vst [vmem:[%s6052 + $0x1e0] sm:$0xff] %v6173
                  %v6175 = vld [vmem:[%s6051 + $0x1e8] sm:$0xff]
                  %6176 = vst [vmem:[%s6052 + $0x1e8] sm:$0xff] %v6175
                  %v6177 = vld [vmem:[%s6051 + $0x1f0] sm:$0xff]
                  %6178 = vst [vmem:[%s6052 + $0x1f0] sm:$0xff] %v6177
                  %v6179 = vld [vmem:[%s6051 + $0x1f8] sm:$0xff]
                  %6180 = vst [vmem:[%s6052 + $0x1f8] sm:$0xff] %v6179
                  %s6181 = sadd.s32 1, %s6050
                  %p6182 = scmp.ge.s32.totalorder %s6181, %s6041
                  %s6183 = scalar_select %p6182, 0, %s6181
                  %s6184 = smul.u32 %s6183, 512
                  %s6185 = smul.u32 %s6183, 512
                  %s6186 = scalar_lea.vmem %s5816, %s6184 [#allocation6]
                  %s6187 = scalar_lea.vmem %s5827, %s6185
                $region358: #{forward.3} parent=352 // loop_footer
                  %s6047 = sadd.s32 %s6045, 1
                $region359: #{forward.3} parent=352 // loop_footer_branch
                  %6044 = sbr.rel target = $region355
                $region360: #{forward.3} parent=352 // loop_exit
                  _
                %s6188 = sshrl.u32 %s6040, 6
                %s6189 = sand.u32 %s6040, 63
                %s6190 = smul.u32 %s6188, 64
                %s6191 = smul.u32 128, %s6190
                %s6192 = sshra.s32 %s6191, 4
                %s6193 = scalar_lea.vmem %s5816, %s6192 [#allocation6]
                %s6194 = smul.u32 128, %s6190
                %s6195 = sshra.s32 %s6194, 4
                %s6196 = scalar_lea.vmem %s5827, %s6195
                // While loop
                $region361: #{forward.3} parent=352 // loop_pre_header
                  _
                $region362: #{forward.3} parent=352 // loop_header
                  %s6200 = sphi 0, %s6202
                  %p6201 = scmp.ge.s32.totalorder %s6200, %s6189
                  %s6205 = sphi 0, %s6212
                  %s6206 = sphi %s6193, %s6215
                  %s6207 = sphi %s6196, %s6216
                $region363: #{forward.3} parent=352 // loop_header_branch
                  %6204 = sbr.rel (%p6201) target = $region367
                $region364: #{forward.3} parent=352 // loop_body
                  %v6208 = vld [vmem:[%s6206] sm:$0xff]
                  %6209 = vst [vmem:[%s6207] sm:$0xff] %v6208
                  %s6210 = sadd.s32 1, %s6205
                  %p6211 = scmp.ge.s32.totalorder %s6210, %s6189
                  %s6212 = scalar_select %p6211, 0, %s6210
                  %s6213 = smul.u32 %s6212, 8
                  %s6214 = smul.u32 %s6212, 8
                  %s6215 = scalar_lea.vmem %s6193, %s6213 [#allocation6]
                  %s6216 = scalar_lea.vmem %s6196, %s6214
                $region365: #{forward.3} parent=352 // loop_footer
                  %s6202 = sadd.s32 %s6200, 1
                $region366: #{forward.3} parent=352 // loop_footer_branch
                  %6199 = sbr.rel target = $region362
                $region367: #{forward.3} parent=352 // loop_exit
                  _
                %s6217 = sshllo.u32 0, %s6035
                loop: start=0, step=1, limit=1
                $region368: #{forward.3} parent=352 // loop_pre_header
                  _
                $region369: #{forward.3} parent=352 // loop_header
                  %s6219 = sphi 0, %s6223
                  %p6220 = scmp.ge.s32.totalorder %s6219, 1
                  %s6224 = sphi %s6037, %s6037
                  %s6225 = sphi %s6039, %s6039
                $region370: #{forward.3} parent=352 // loop_header_branch
                  %6222 = sbr.rel (%p6220) target = $region374
                $region371: #{forward.3} parent=352 // loop_body
                  %v6226 = vld [vmem:[%s6224] sm:%s6217]
                  %6227 = vst [vmem:[%s6225] sm:%s6217] %v6226
                $region372: #{forward.3} parent=352 // loop_footer
                  %s6223 = sadd.s32 1, %s6219
                $region373: #{forward.3} parent=352 // loop_footer_branch
                  %6218 = sbr.rel target = $region369
                $region374: #{forward.3} parent=352 // loop_exit
                  _
              $region353: #{forward.3} parent=319 // pred_fallthru
                _
            $region320: #{forward.3} parent=315 // pred_fallthru
              _
            // Predicated region
            $region321: #{forward.3} parent=315 // pred_check
              %p5836 = pneg %p5832
            $region322: #{forward.3} parent=315 // pred_check_branch
              %5838 = sbr.rel (%p5836) target = $region324
            $region323: #{forward.3} parent=315 // pred_region
              %s5839 = sshllo.u32 0, %s5828
              loop: start=0, step=1, limit=1
              $region325: #{forward.3} parent=323 // loop_pre_header
                _
              $region326: #{forward.3} parent=323 // loop_header
                %s5841 = sphi 0, %s5845
                %p5842 = scmp.ge.s32.totalorder %s5841, 1
                %s5846 = sphi %s5816, %s5816
                %s5847 = sphi %s5827, %s5827
              $region327: #{forward.3} parent=323 // loop_header_branch
                %5844 = sbr.rel (%p5842) target = $region331
              $region328: #{forward.3} parent=323 // loop_body
                %v5848 = vld [vmem:[%s5846] sm:%s5839]
                %5849 = vst [vmem:[%s5847] sm:%s5839] %v5848
              $region329: #{forward.3} parent=323 // loop_footer
                %s5845 = sadd.s32 1, %s5841
              $region330: #{forward.3} parent=323 // loop_footer_branch
                %5840 = sbr.rel target = $region326
              $region331: #{forward.3} parent=323 // loop_exit
                _
            $region324: #{forward.3} parent=315 // pred_fallthru
              _
          $region316: #{forward.3} parent=311 // pred_fallthru
            _
          %6228 = vnop
        $region312: #{forward.3} parent=291 // pred_fallthru
          _
      $region292: #{forward.3} parent=5 // pred_fallthru
        _
      %p6229 = scmp.le.s32.totalorder 2, %s12
      // Predicated region
      $region375: #{forward.3} parent=5 // pred_check
        %p6230 = pneg %p6229
      $region376: #{forward.3} parent=5 // pred_check_branch
        %6232 = sbr.rel (%p6230) target = $region378
      $region377: #{forward.3} parent=5 // pred_region
        %s6233 = ssub.s32 %s12, 2
        // Predicated region
        $region379: #{forward.3} parent=377 // pred_check
          %p6234 = pneg %p187
        $region380: #{forward.3} parent=377 // pred_check_branch
          %6236 = sbr.rel (%p6234) target = $region382
        $region381: #{forward.3} parent=377 // pred_region
          %s6237 = sand.u32 %s172, 1
          %s6238 = sand.u32 %s172, 1
          %s6239 = smul.addr %s6238, 32
          %s6240 = scalar_lea.vmem [#allocation6], %s6239
        $region382: #{forward.3} parent=377 // pred_fallthru
          _
      $region378: #{forward.3} parent=5 // pred_fallthru
        _
    $region6: #{forward.3} parent=1 // loop_footer
      %s16 = sadd.s32 1, %s12
    $region7: #{forward.3} parent=1 // loop_footer_branch
      %11 = sbr.rel target = $region3
    $region8: #{forward.3} parent=1 // loop_exit
      _

// kernel: forward.4
$region0: #{forward.4}
  #allocation0 [shape = 'u32[]', space=smem, size = 0x4, offset = 0x4, fixed_abs, tag = 'smem constant byte address 0x4 - core index']
  #allocation1 [shape = 'u32[144,128]{1,0:T(1,128)}', space=vmem, size = 0x12000, scoped, tag = 'internal scratch']
  %s0 = inlined_call_operand.vmem [shape: f32[15,150], index: 0, kind: input, shape index: {}]
  %s1 = inlined_call_operand.vmem [shape: f32[150,450], index: 1, kind: input, shape index: {}]
  %s2 = inlined_call_operand.vmem [shape: f32[15,1], index: 2, kind: input, shape index: {}]
  %s3 = inlined_call_operand.vmem [shape: f32[15,450], index: 3, kind: output, shape index: {}]
  %s4 = sld [smem:[#allocation0]]
  $region22: #{forward.4} parent=0
    _
  %s6 = ssub.s32 1, %s4
  %s7 = scalar_select 0, %s6, %s4
  // Predicated region
  $region2: #{forward.4} parent=0 // pred_check
    _
  $region3: #{forward.4} parent=0 // pred_check_branch
    %9 = sbr.rel (0) target = $region5
  $region4: #{forward.4} parent=0 // pred_region
    _
  $region5: #{forward.4} parent=0 // pred_fallthru
    _
  // Predicated region
  $region6: #{forward.4} parent=0 // pred_check
    _
  $region7: #{forward.4} parent=0 // pred_check_branch
    %11 = sbr.rel (0) target = $region9
  $region8: #{forward.4} parent=0 // pred_region
    _
  $region9: #{forward.4} parent=0 // pred_fallthru
    _
  // Predicated region
  $region10: #{forward.4} parent=0 // pred_check
    _
  $region11: #{forward.4} parent=0 // pred_check_branch
    %13 = sbr.rel (0) target = $region13
  $region12: #{forward.4} parent=0 // pred_region
    _
  $region13: #{forward.4} parent=0 // pred_fallthru
    _
  %v14 = vld [vmem:[%s0] sm:$0xff]
  %v15 = vld [vmem:[%s0 + $0x8] sm:$0xff]
  %v16 = vld [vmem:[%s0 + $0x10] sm:$0x7f]
  %v17 = vld [vmem:[%s0 + $0x18] sm:$0x7f]
  %v18 = vld [vmem:[%s1] sm:$0xff]
  %v19 = vld [vmem:[%s1 + $0x8] sm:$0xff]
  %v20 = vld [vmem:[%s1 + $0x10] sm:$0xff]
  %v21 = vld [vmem:[%s1 + $0x18] sm:$0xff]
  %v22 = vld [vmem:[%s1 + $0x20] sm:$0xff]
  %v23 = vld [vmem:[%s1 + $0x28] sm:$0xff]
  %v24 = vld [vmem:[%s1 + $0x30] sm:$0xff]
  %v25 = vld [vmem:[%s1 + $0x38] sm:$0xff]
  %v26 = vld [vmem:[%s1 + $0x40] sm:$0xff]
  %v27 = vld [vmem:[%s1 + $0x48] sm:$0xff]
  %v28 = vld [vmem:[%s1 + $0x50] sm:$0xff]
  %v29 = vld [vmem:[%s1 + $0x58] sm:$0xff]
  %v30 = vld [vmem:[%s1 + $0x60] sm:$0xff]
  %v31 = vld [vmem:[%s1 + $0x68] sm:$0xff]
  %v32 = vld [vmem:[%s1 + $0x70] sm:$0xff]
  %v33 = vld [vmem:[%s1 + $0x78] sm:$0xff]
  %v34 = vld [vmem:[%s1 + $0x80] sm:$0xff]
  %v35 = vld [vmem:[%s1 + $0x88] sm:$0xff]
  %v36 = vld [vmem:[%s1 + $0x90] sm:$0xff]
  %v37 = vld [vmem:[%s1 + $0x98] sm:$0xff]
  %v38 = vld [vmem:[%s1 + $0xa0] sm:$0xff]
  %v39 = vld [vmem:[%s1 + $0xa8] sm:$0xff]
  %v40 = vld [vmem:[%s1 + $0xb0] sm:$0xff]
  %v41 = vld [vmem:[%s1 + $0xb8] sm:$0xff]
  %v42 = vld [vmem:[%s1 + $0xc0] sm:$0xff]
  %v43 = vld [vmem:[%s1 + $0xc8] sm:$0xff]
  %v44 = vld [vmem:[%s1 + $0xd0] sm:$0xff]
  %v45 = vld [vmem:[%s1 + $0xd8] sm:$0xff]
  %v46 = vld [vmem:[%s1 + $0xe0] sm:$0xff]
  %v47 = vld [vmem:[%s1 + $0xe8] sm:$0xff]
  %v48 = vld [vmem:[%s1 + $0xf0] sm:$0xff]
  %v49 = vld [vmem:[%s1 + $0xf8] sm:$0xff]
  %v50 = vld [vmem:[%s1 + $0x100] sm:$0xff]
  %v51 = vld [vmem:[%s1 + $0x108] sm:$0xff]
  %v52 = vld [vmem:[%s1 + $0x110] sm:$0xff]
  %v53 = vld [vmem:[%s1 + $0x118] sm:$0xff]
  %v54 = vld [vmem:[%s1 + $0x120] sm:$0xff]
  %v55 = vld [vmem:[%s1 + $0x128] sm:$0xff]
  %v56 = vld [vmem:[%s1 + $0x130] sm:$0xff]
  %v57 = vld [vmem:[%s1 + $0x138] sm:$0xff]
  %v58 = vld [vmem:[%s1 + $0x140] sm:$0xff]
  %v59 = vld [vmem:[%s1 + $0x148] sm:$0xff]
  %v60 = vld [vmem:[%s1 + $0x150] sm:$0xff]
  %v61 = vld [vmem:[%s1 + $0x158] sm:$0xff]
  %v62 = vld [vmem:[%s1 + $0x160] sm:$0xff]
  %v63 = vld [vmem:[%s1 + $0x168] sm:$0xff]
  %v64 = vld [vmem:[%s1 + $0x170] sm:$0xff]
  %v65 = vld [vmem:[%s1 + $0x178] sm:$0xff]
  %v66 = vld [vmem:[%s1 + $0x180] sm:$0xff]
  %v67 = vld [vmem:[%s1 + $0x188] sm:$0xff]
  %v68 = vld [vmem:[%s1 + $0x190] sm:$0xff]
  %v69 = vld [vmem:[%s1 + $0x198] sm:$0xff]
  %v70 = vld [vmem:[%s1 + $0x1a0] sm:$0xff]
  %v71 = vld [vmem:[%s1 + $0x1a8] sm:$0xff]
  %v72 = vld [vmem:[%s1 + $0x1b0] sm:$0xff]
  %v73 = vld [vmem:[%s1 + $0x1b8] sm:$0xff]
  %v74 = vld [vmem:[%s1 + $0x1c0] sm:$0xff]
  %v75 = vld [vmem:[%s1 + $0x1c8] sm:$0xff]
  %v76 = vld [vmem:[%s1 + $0x1d0] sm:$0xff]
  %v77 = vld [vmem:[%s1 + $0x1d8] sm:$0xff]
  %v78 = vld [vmem:[%s1 + $0x1e0] sm:$0xff]
  %v79 = vld [vmem:[%s1 + $0x1e8] sm:$0xff]
  %v80 = vld [vmem:[%s1 + $0x1f0] sm:$0xff]
  %v81 = vld [vmem:[%s1 + $0x1f8] sm:$0xff]
  %v82 = vld [vmem:[%s1 + $0x200] sm:$0xff]
  %v83 = vld [vmem:[%s1 + $0x208] sm:$0xff]
  %v84 = vld [vmem:[%s1 + $0x210] sm:$0xff]
  %v85 = vld [vmem:[%s1 + $0x218] sm:$0xff]
  %v86 = vld [vmem:[%s1 + $0x220] sm:$0xff]
  %v87 = vld [vmem:[%s1 + $0x228] sm:$0xff]
  %v88 = vld [vmem:[%s1 + $0x230] sm:$0xff]
  %v89 = vld [vmem:[%s1 + $0x238] sm:$0xff]
  %v90 = vld [vmem:[%s1 + $0x240] sm:$0x3f]
  %v91 = vld [vmem:[%s1 + $0x248] sm:$0x3f]
  %v92 = vld [vmem:[%s1 + $0x250] sm:$0x3f]
  %v93 = vld [vmem:[%s1 + $0x258] sm:$0x3f]
  %v94 = vld [vmem:[%s2] sm:$0xff]
  %v95 = vld [vmem:[%s2 + $0x8] sm:$0x7f]
  %97 = vset.pattern.permute.xlu0 0
  %98 = vperm.xlu0 %97, %v94
  %v99 = vpop.permute.xlu0 %98
  %102 = vset.pattern.permute.xlu0 0
  %103 = vperm.xlu0 %102, %v95
  %v104 = vpop.permute.xlu0 %103
  %vm106 = vcmask 179200
  %v108 = vsel %vm106, %v15, 0
  %v111 = vsel %vm106, %v17, 0
  %vm113 = vcmask 1045504
  %v115 = vsel %vm113, %v90, 0
  %v118 = vsel %vm113, %v91, 0
  %v121 = vsel %vm113, %v92, 0
  %v124 = vsel %vm113, %v93, 0
  %126 = vmatprep.subr.mxu0 %v19
  %127 = vmatpush1.msra.mxu0 %v18
  %128 = vmatprep.subr.mxu0 %v23
  %129 = vmatpush1.msra.mxu0 %v22
  %130 = vmatprep.subr.mxu0 %v27
  %131 = vmatpush1.msra.mxu0 %v26
  %132 = vmatprep.subr.mxu0 %v31
  %133 = vmatpush1.msra.mxu0 %v30
  %134 = vmatprep.subr.mxu0 %v35
  %135 = vmatpush1.msra.mxu0 %v34
  %136 = vmatprep.subr.mxu0 %v39
  %137 = vmatpush1.msra.mxu0 %v38
  %138 = vmatprep.subr.mxu0 %v43
  %139 = vmatpush1.msra.mxu0 %v42
  %140 = vmatprep.subr.mxu0 %v47
  %141 = vmatpush1.msra.mxu0 %v46
  %142 = vmatprep.subr.mxu0 %v51
  %143 = vmatpush1.msra.mxu0 %v50
  %144 = vmatprep.subr.mxu0 %v55
  %145 = vmatpush1.msra.mxu0 %v54
  %146 = vmatprep.subr.mxu0 %v59
  %147 = vmatpush1.msra.mxu0 %v58
  %148 = vmatprep.subr.mxu0 %v63
  %149 = vmatpush1.msra.mxu0 %v62
  %150 = vmatprep.subr.mxu0 %v67
  %151 = vmatpush1.msra.mxu0 %v66
  %152 = vmatprep.subr.mxu0 %v71
  %153 = vmatpush1.msra.mxu0 %v70
  %154 = vmatprep.subr.mxu0 %v75
  %155 = vmatpush1.msra.mxu0 %v74
  %156 = vmatprep.subr.mxu0 %v79
  %157 = vmatpush1.msra.mxu0 %v78
  %158 = vmatprep.subr.mxu0 %v83
  %159 = vmatpush1.msra.mxu0 %v82
  %160 = vmatprep.subr.mxu0 %v87
  %161 = vmatpush1.msra.mxu0 %v86
  %162 = vmatprep.subr.mxu0 %v118
  %163 = vmatpush1.msra.mxu0 %v115
  %164 = vmatprep.subr.mxu0 0.0
  %165 = vmatpush1.msra.mxu0 0.0
  %166 = vmatprep.subr.mxu0 0.0
  %167 = vmatpush1.msra.mxu0 0.0
  %168 = vmatprep.subr.mxu0 0.0
  %169 = vmatpush1.msra.mxu0 0.0
  %170 = vmatprep.subr.mxu0 0.0
  %171 = vmatpush1.msra.mxu0 0.0
  %172 = vmatprep.subr.mxu0 0.0
  %173 = vmatpush1.msra.mxu0 0.0
  %174 = vmatprep.subr.mxu0 0.0
  %175 = vmatpush1.msra.mxu0 0.0
  %176 = vmatprep.subr.mxu0 0.0
  %177 = vmatpush1.msra.mxu0 0.0
  %178 = vmatprep.subr.mxu0 0.0
  %179 = vmatpush1.msra.mxu0 0.0
  %180 = vmatprep.subr.mxu0 0.0
  %181 = vmatpush1.msra.mxu0 0.0
  %182 = vmatprep.subr.mxu0 0.0
  %183 = vmatpush1.msra.mxu0 0.0
  %184 = vmatprep.subr.mxu0 0.0
  %185 = vmatpush1.msra.mxu0 0.0
  %186 = vmatprep.subr.mxu0 0.0
  %187 = vmatpush1.msra.mxu0 0.0
  %188 = vmatprep.subr.mxu0 0.0
  %189 = vmatpush1.msra.mxu0 0.0
  %190 = vmatprep.mubr.f32.mxu0 %v108
  %191 = vmatmul.mubr.f32.gmra.mrb[0].mxu0 %v14
  %v192 = vpop.f32.mrb[0].mxu0
  %v193 = vadd.f32 %v99, %v192
  %v194 = vpop.f32.mrb[0].mxu0
  %v195 = vadd.f32 %v99, %v194
  %196 = vmatprep.mubr.f32.mxu0 %v111
  %197 = vmatmul.mubr.f32.gmra.mrb[0].mxu0 %v16
  %v198 = vpop.f32.mrb[0].mxu0
  %v199 = vadd.f32 %v104, %v198
  %v200 = vpop.f32.mrb[0].mxu0
  %v201 = vadd.f32 %v104, %v200
  %202 = vdwg.mxu0
  %203 = vmatprep.subr.mxu0 %v21
  %204 = vmatpush1.msra.mxu0 %v20
  %205 = vmatprep.subr.mxu0 %v25
  %206 = vmatpush1.msra.mxu0 %v24
  %207 = vmatprep.subr.mxu0 %v29
  %208 = vmatpush1.msra.mxu0 %v28
  %209 = vmatprep.subr.mxu0 %v33
  %210 = vmatpush1.msra.mxu0 %v32
  %211 = vmatprep.subr.mxu0 %v37
  %212 = vmatpush1.msra.mxu0 %v36
  %213 = vmatprep.subr.mxu0 %v41
  %214 = vmatpush1.msra.mxu0 %v40
  %215 = vmatprep.subr.mxu0 %v45
  %216 = vmatpush1.msra.mxu0 %v44
  %217 = vmatprep.subr.mxu0 %v49
  %218 = vmatpush1.msra.mxu0 %v48
  %219 = vmatprep.subr.mxu0 %v53
  %220 = vmatpush1.msra.mxu0 %v52
  %221 = vmatprep.subr.mxu0 %v57
  %222 = vmatpush1.msra.mxu0 %v56
  %223 = vmatprep.subr.mxu0 %v61
  %224 = vmatpush1.msra.mxu0 %v60
  %225 = vmatprep.subr.mxu0 %v65
  %226 = vmatpush1.msra.mxu0 %v64
  %227 = vmatprep.subr.mxu0 %v69
  %228 = vmatpush1.msra.mxu0 %v68
  %229 = vmatprep.subr.mxu0 %v73
  %230 = vmatpush1.msra.mxu0 %v72
  %231 = vmatprep.subr.mxu0 %v77
  %232 = vmatpush1.msra.mxu0 %v76
  %233 = vmatprep.subr.mxu0 %v81
  %234 = vmatpush1.msra.mxu0 %v80
  %235 = vmatprep.subr.mxu0 %v85
  %236 = vmatpush1.msra.mxu0 %v84
  %237 = vmatprep.subr.mxu0 %v89
  %238 = vmatpush1.msra.mxu0 %v88
  %239 = vmatprep.subr.mxu0 %v124
  %240 = vmatpush1.msra.mxu0 %v121
  %241 = vmatprep.subr.mxu0 0.0
  %242 = vmatpush1.msra.mxu0 0.0
  %243 = vmatprep.subr.mxu0 0.0
  %244 = vmatpush1.msra.mxu0 0.0
  %245 = vmatprep.subr.mxu0 0.0
  %246 = vmatpush1.msra.mxu0 0.0
  %247 = vmatprep.subr.mxu0 0.0
  %248 = vmatpush1.msra.mxu0 0.0
  %249 = vmatprep.subr.mxu0 0.0
  %250 = vmatpush1.msra.mxu0 0.0
  %251 = vmatprep.subr.mxu0 0.0
  %252 = vmatpush1.msra.mxu0 0.0
  %253 = vmatprep.subr.mxu0 0.0
  %254 = vmatpush1.msra.mxu0 0.0
  %255 = vmatprep.subr.mxu0 0.0
  %256 = vmatpush1.msra.mxu0 0.0
  %257 = vmatprep.subr.mxu0 0.0
  %258 = vmatpush1.msra.mxu0 0.0
  %259 = vmatprep.subr.mxu0 0.0
  %260 = vmatpush1.msra.mxu0 0.0
  %261 = vmatprep.subr.mxu0 0.0
  %262 = vmatpush1.msra.mxu0 0.0
  %263 = vmatprep.subr.mxu0 0.0
  %264 = vmatpush1.msra.mxu0 0.0
  %265 = vmatprep.subr.mxu0 0.0
  %266 = vmatpush1.msra.mxu0 0.0
  %267 = vmatprep.mubr.f32.mxu0 %v108
  %268 = vmatmul.mubr.f32.gmra.mrb[0].mxu0 %v14
  %v269 = vpop.f32.mrb[0].mxu0
  %v270 = vadd.f32 %v99, %v269
  %v271 = vpop.f32.mrb[0].mxu0
  %v272 = vadd.f32 %v99, %v271
  %273 = vmatprep.mubr.f32.mxu0 %v111
  %274 = vmatmul.mubr.f32.gmra.mrb[0].mxu0 %v16
  %v275 = vpop.f32.mrb[0].mxu0
  %v276 = vadd.f32 %v104, %v275
  %v277 = vpop.f32.mrb[0].mxu0
  %v278 = vadd.f32 %v104, %v277
  %279 = vdwg.mxu0
  %v280 = vmax.f32 %v193, 0.0
  %v281 = vmax.f32 %v195, 0.0
  %v282 = vmax.f32 %v270, 0.0
  %v283 = vmax.f32 %v272, 0.0
  %v284 = vmax.f32 %v199, 0.0
  %v285 = vmax.f32 %v201, 0.0
  %v286 = vmax.f32 %v276, 0.0
  %v287 = vmax.f32 %v278, 0.0
  %288 = vst [vmem:[%s3] sm:$0xff] %v280
  %289 = vst [vmem:[%s3 + $0x8] sm:$0xff] %v281
  %290 = vst [vmem:[%s3 + $0x10] sm:$0xff] %v282
  %vm291 = vcmask 539648
  %292 = vst.msk [vmem:[%s3 + $0x18] sm:$0xff] %vm291, %v283
  %293 = vst [vmem:[%s3 + $0x20] sm:$0x7f] %v284
  %294 = vst [vmem:[%s3 + $0x28] sm:$0x7f] %v285
  %295 = vst [vmem:[%s3 + $0x30] sm:$0x7f] %v286
  %vm296 = vcmask 538624
  %297 = vst.msk [vmem:[%s3 + $0x38] sm:$0x7f] %vm296, %v287
  // Predicated region
  $region14: #{forward.4} parent=0 // pred_check
    _
  $region15: #{forward.4} parent=0 // pred_check_branch
    %299 = sbr.rel (0) target = $region17
  $region16: #{forward.4} parent=0 // pred_region
    _
  $region17: #{forward.4} parent=0 // pred_fallthru
    _
  // Predicated region
  $region18: #{forward.4} parent=0 // pred_check
    _
  $region19: #{forward.4} parent=0 // pred_check_branch
    %301 = sbr.rel (0) target = $region21
  $region20: #{forward.4} parent=0 // pred_region
    _
  $region21: #{forward.4} parent=0 // pred_fallthru
    _

// kernel: forward.5
$region0: #{forward.5}
  #allocation0 [shape = 'u32[]', space=smem, size = 0x4, offset = 0x4, fixed_abs, tag = 'smem constant byte address 0x4 - core index']
  #allocation1 [shape = 'u32[144,128]{1,0:T(1,128)}', space=vmem, size = 0x12000, scoped, tag = 'internal scratch']
  %s0 = inlined_call_operand.vmem [shape: f32[2,135], index: 0, kind: input, shape index: {}]
  %s1 = inlined_call_operand.vmem [shape: f32[135,96], index: 1, kind: input, shape index: {}]
  %s2 = inlined_call_operand.vmem [shape: f32[1,96], index: 2, kind: input, shape index: {}]
  %s3 = inlined_call_operand.vmem [shape: f32[96,15], index: 3, kind: input, shape index: {}]
  %s4 = inlined_call_operand.vmem [shape: f32[1,15], index: 4, kind: input, shape index: {}]
  %s5 = inlined_call_operand.hbm [shape: f32[2,15], index: 5, kind: output, shape index: {}]
  %s6 = sld [smem:[#allocation0]]
  $region30: #{forward.5} parent=0
    _
  %s8 = ssub.s32 1, %s6
  %s9 = scalar_select 0, %s8, %s6
  $region1: #{forward.5} parent=0
    #allocation2 [shape = 'u8[1024]{0}', space=vmem, size = 0x400, scoped, tag = 'output window, operand 0, single buffered']
    #allocation3 [shape = 's32[1]{0}', space=sflag, size = 0x4, scoped, tag = 'scoped memory for forward.5']
    %10 = vsyncpa [#allocation3], 0
    // Predicated region
    $region2: #{forward.5} parent=1 // pred_check
      _
    $region3: #{forward.5} parent=1 // pred_check_branch
      %12 = sbr.rel (0) target = $region5
    $region4: #{forward.5} parent=1 // pred_region
      _
    $region5: #{forward.5} parent=1 // pred_fallthru
      _
    // Predicated region
    $region6: #{forward.5} parent=1 // pred_check
      _
    $region7: #{forward.5} parent=1 // pred_check_branch
      %14 = sbr.rel (0) target = $region9
    $region8: #{forward.5} parent=1 // pred_region
      _
    $region9: #{forward.5} parent=1 // pred_fallthru
      _
    // Predicated region
    $region10: #{forward.5} parent=1 // pred_check
      _
    $region11: #{forward.5} parent=1 // pred_check_branch
      %16 = sbr.rel (0) target = $region13
    $region12: #{forward.5} parent=1 // pred_region
      _
    $region13: #{forward.5} parent=1 // pred_fallthru
      _
    // Predicated region
    $region14: #{forward.5} parent=1 // pred_check
      _
    $region15: #{forward.5} parent=1 // pred_check_branch
      %18 = sbr.rel (0) target = $region17
    $region16: #{forward.5} parent=1 // pred_region
      _
    $region17: #{forward.5} parent=1 // pred_fallthru
      _
    // Predicated region
    $region18: #{forward.5} parent=1 // pred_check
      _
    $region19: #{forward.5} parent=1 // pred_check_branch
      %20 = sbr.rel (0) target = $region21
    $region20: #{forward.5} parent=1 // pred_region
      _
    $region21: #{forward.5} parent=1 // pred_fallthru
      _
    %v21 = vld [vmem:[%s0] sm:$0xf]
    %v22 = vld [vmem:[%s1] sm:$0xff]
    %v23 = vld [vmem:[%s1 + $0x8] sm:$0xff]
    %v24 = vld [vmem:[%s1 + $0x10] sm:$0xff]
    %v25 = vld [vmem:[%s1 + $0x18] sm:$0xff]
    %v26 = vld [vmem:[%s1 + $0x20] sm:$0xff]
    %v27 = vld [vmem:[%s1 + $0x28] sm:$0xff]
    %v28 = vld [vmem:[%s1 + $0x30] sm:$0xff]
    %v29 = vld [vmem:[%s1 + $0x38] sm:$0xff]
    %v30 = vld [vmem:[%s1 + $0x40] sm:$0xff]
    %v31 = vld [vmem:[%s1 + $0x48] sm:$0xff]
    %v32 = vld [vmem:[%s1 + $0x50] sm:$0xff]
    %v33 = vld [vmem:[%s1 + $0x58] sm:$0xff]
    %v34 = vld [vmem:[%s1 + $0x60] sm:$0xff]
    %v35 = vld [vmem:[%s1 + $0x68] sm:$0xff]
    %v36 = vld [vmem:[%s1 + $0x70] sm:$0xff]
    %v37 = vld [vmem:[%s1 + $0x78] sm:$0xff]
    %v38 = vld [vmem:[%s1 + $0x80] sm:$0x7f]
    %v39 = vld [vmem:[%s2] sm:$0x1]
    %v41 = vlaneseq
    %v42 = vshrl.u32 %v41, 7
    %v43 = vsub.s32 0, %v42
    %v44 = vrot.slane %v39, %v43
    %v48 = vunpack.c.l.s4 1983009808
    %v49 = vunpack.c.0.s8 %v48
    %v50 = vlaneseq
    %v51 = vshrl.u32 %v50, 7
    %v52 = vsub.s32 %v49, %v51
    %v53 = vrot.slane %v21, %v52
    %v54 = vcombine.high %v53, %v53
    %vm56 = vcmask 56320
    %v57 = vsel %vm56, %v54, 0
    %vm59 = vcmask 1046528
    %v61 = vsel %vm59, %v38, 0
    %63 = vmatprep.subr.mxu0 0.0
    %64 = vmatpush1.msra.mxu0 %v22
    %65 = vmatprep.subr.mxu0 0.0
    %66 = vmatpush1.msra.mxu0 %v23
    %67 = vmatprep.subr.mxu0 0.0
    %68 = vmatpush1.msra.mxu0 %v24
    %69 = vmatprep.subr.mxu0 0.0
    %70 = vmatpush1.msra.mxu0 %v25
    %71 = vmatprep.subr.mxu0 0.0
    %72 = vmatpush1.msra.mxu0 %v26
    %73 = vmatprep.subr.mxu0 0.0
    %74 = vmatpush1.msra.mxu0 %v27
    %75 = vmatprep.subr.mxu0 0.0
    %76 = vmatpush1.msra.mxu0 %v28
    %77 = vmatprep.subr.mxu0 0.0
    %78 = vmatpush1.msra.mxu0 %v29
    %79 = vmatprep.subr.mxu0 0.0
    %80 = vmatpush1.msra.mxu0 %v30
    %81 = vmatprep.subr.mxu0 0.0
    %82 = vmatpush1.msra.mxu0 %v31
    %83 = vmatprep.subr.mxu0 0.0
    %84 = vmatpush1.msra.mxu0 %v32
    %85 = vmatprep.subr.mxu0 0.0
    %86 = vmatpush1.msra.mxu0 %v33
    %87 = vmatprep.subr.mxu0 0.0
    %88 = vmatpush1.msra.mxu0 %v34
    %89 = vmatprep.subr.mxu0 0.0
    %90 = vmatpush1.msra.mxu0 %v35
    %91 = vmatprep.subr.mxu0 0.0
    %92 = vmatpush1.msra.mxu0 %v36
    %93 = vmatprep.subr.mxu0 0.0
    %94 = vmatpush1.msra.mxu0 %v37
    %95 = vmatprep.subr.mxu0 0.0
    %96 = vmatpush1.msra.mxu0 %v61
    %97 = vmatprep.subr.mxu0 0.0
    %98 = vmatpush1.msra.mxu0 0.0
    %99 = vmatprep.subr.mxu0 0.0
    %100 = vmatpush1.msra.mxu0 0.0
    %101 = vmatprep.subr.mxu0 0.0
    %102 = vmatpush1.msra.mxu0 0.0
    %103 = vmatprep.subr.mxu0 0.0
    %104 = vmatpush1.msra.mxu0 0.0
    %105 = vmatprep.subr.mxu0 0.0
    %106 = vmatpush1.msra.mxu0 0.0
    %107 = vmatprep.subr.mxu0 0.0
    %108 = vmatpush1.msra.mxu0 0.0
    %109 = vmatprep.subr.mxu0 0.0
    %110 = vmatpush1.msra.mxu0 0.0
    %111 = vmatprep.subr.mxu0 0.0
    %112 = vmatpush1.msra.mxu0 0.0
    %113 = vmatprep.subr.mxu0 0.0
    %114 = vmatpush1.msra.mxu0 0.0
    %115 = vmatprep.subr.mxu0 0.0
    %116 = vmatpush1.msra.mxu0 0.0
    %117 = vmatprep.subr.mxu0 0.0
    %118 = vmatpush1.msra.mxu0 0.0
    %119 = vmatprep.subr.mxu0 0.0
    %120 = vmatpush1.msra.mxu0 0.0
    %121 = vmatprep.subr.mxu0 0.0
    %122 = vmatpush1.msra.mxu0 0.0
    %123 = vmatprep.subr.mxu0 0.0
    %124 = vmatpush1.msra.mxu0 0.0
    %125 = vmatprep.subr.mxu0 0.0
    %126 = vmatpush1.msra.mxu0 0.0
    %127 = vmatprep.mubr.f32.mxu0 %v57
    %128 = vmatmul.mubr.f32.gmra.mrb[0].mxu0 %v53
    %v129 = vpop.f32.mrb[0].mxu0
    %v130 = vadd.f32 %v44, %v129
    %v131 = vpop.f32.mrb[0].mxu0
    %132 = vdwg.mxu0
    %v133 = vmax.f32 %v130, 0.0
    %v134 = vld [vmem:[%s3] sm:$0xff]
    %v135 = vld [vmem:[%s3 + $0x8] sm:$0xff]
    %v136 = vld [vmem:[%s3 + $0x10] sm:$0xff]
    %v137 = vld [vmem:[%s3 + $0x18] sm:$0xff]
    %v138 = vld [vmem:[%s3 + $0x20] sm:$0xff]
    %v139 = vld [vmem:[%s3 + $0x28] sm:$0xff]
    %v140 = vld [vmem:[%s3 + $0x30] sm:$0xff]
    %v141 = vld [vmem:[%s3 + $0x38] sm:$0xff]
    %v142 = vld [vmem:[%s3 + $0x40] sm:$0xff]
    %v143 = vld [vmem:[%s3 + $0x48] sm:$0xff]
    %v144 = vld [vmem:[%s3 + $0x50] sm:$0xff]
    %v145 = vld [vmem:[%s3 + $0x58] sm:$0xff]
    %v146 = vld [vmem:[%s4] sm:$0x1]
    %v148 = vlaneseq
    %v149 = vshrl.u32 %v148, 7
    %v150 = vsub.s32 0, %v149
    %v151 = vrot.slane %v146, %v150
    %vm153 = vcmask 785408
    %v155 = vsel %vm153, %v133, 0
    %157 = vmatprep.subr.mxu0 0.0
    %158 = vmatpush1.msra.mxu0 %v134
    %159 = vmatprep.subr.mxu0 0.0
    %160 = vmatpush1.msra.mxu0 %v135
    %161 = vmatprep.subr.mxu0 0.0
    %162 = vmatpush1.msra.mxu0 %v136
    %163 = vmatprep.subr.mxu0 0.0
    %164 = vmatpush1.msra.mxu0 %v137
    %165 = vmatprep.subr.mxu0 0.0
    %166 = vmatpush1.msra.mxu0 %v138
    %167 = vmatprep.subr.mxu0 0.0
    %168 = vmatpush1.msra.mxu0 %v139
    %169 = vmatprep.subr.mxu0 0.0
    %170 = vmatpush1.msra.mxu0 %v140
    %171 = vmatprep.subr.mxu0 0.0
    %172 = vmatpush1.msra.mxu0 %v141
    %173 = vmatprep.subr.mxu0 0.0
    %174 = vmatpush1.msra.mxu0 %v142
    %175 = vmatprep.subr.mxu0 0.0
    %176 = vmatpush1.msra.mxu0 %v143
    %177 = vmatprep.subr.mxu0 0.0
    %178 = vmatpush1.msra.mxu0 %v144
    %179 = vmatprep.subr.mxu0 0.0
    %180 = vmatpush1.msra.mxu0 %v145
    %181 = vmatprep.subr.mxu0 0.0
    %182 = vmatpush1.msra.mxu0 0.0
    %183 = vmatprep.subr.mxu0 0.0
    %184 = vmatpush1.msra.mxu0 0.0
    %185 = vmatprep.subr.mxu0 0.0
    %186 = vmatpush1.msra.mxu0 0.0
    %187 = vmatprep.subr.mxu0 0.0
    %188 = vmatpush1.msra.mxu0 0.0
    %189 = vmatprep.subr.mxu0 0.0
    %190 = vmatpush1.msra.mxu0 0.0
    %191 = vmatprep.subr.mxu0 0.0
    %192 = vmatpush1.msra.mxu0 0.0
    %193 = vmatprep.subr.mxu0 0.0
    %194 = vmatpush1.msra.mxu0 0.0
    %195 = vmatprep.subr.mxu0 0.0
    %196 = vmatpush1.msra.mxu0 0.0
    %197 = vmatprep.subr.mxu0 0.0
    %198 = vmatpush1.msra.mxu0 0.0
    %199 = vmatprep.subr.mxu0 0.0
    %200 = vmatpush1.msra.mxu0 0.0
    %201 = vmatprep.subr.mxu0 0.0
    %202 = vmatpush1.msra.mxu0 0.0
    %203 = vmatprep.subr.mxu0 0.0
    %204 = vmatpush1.msra.mxu0 0.0
    %205 = vmatprep.subr.mxu0 0.0
    %206 = vmatpush1.msra.mxu0 0.0
    %207 = vmatprep.subr.mxu0 0.0
    %208 = vmatpush1.msra.mxu0 0.0
    %209 = vmatprep.subr.mxu0 0.0
    %210 = vmatpush1.msra.mxu0 0.0
    %211 = vmatprep.subr.mxu0 0.0
    %212 = vmatpush1.msra.mxu0 0.0
    %213 = vmatprep.subr.mxu0 0.0
    %214 = vmatpush1.msra.mxu0 0.0
    %215 = vmatprep.subr.mxu0 0.0
    %216 = vmatpush1.msra.mxu0 0.0
    %217 = vmatprep.subr.mxu0 0.0
    %218 = vmatpush1.msra.mxu0 0.0
    %219 = vmatprep.subr.mxu0 0.0
    %220 = vmatpush1.msra.mxu0 0.0
    %221 = vmatprep.mubr.f32.mxu0 0.0
    %222 = vmatmul.mubr.f32.gmra.mrb[0].mxu0 %v155
    %v223 = vpop.f32.mrb[0].mxu0
    %v224 = vadd.f32 %v151, %v223
    %v225 = vpop.f32.mrb[0].mxu0
    %226 = vdwg.mxu0
    %v227 = vmax.f32 %v224, 0.0
    %vm228 = vcmask 115712
    %229 = vst.msk [vmem:[#allocation2] sm:$0x3] %vm228, %v227
    // Predicated region
    $region22: #{forward.5} parent=1 // pred_check
      _
    $region23: #{forward.5} parent=1 // pred_check_branch
      %231 = sbr.rel (0) target = $region25
    $region24: #{forward.5} parent=1 // pred_region
      %s233 = ssub.s32 32, 32
      %234 = vsyncadd [#allocation3], %s233
      %s236 = sshll.u32 [#allocation2], 4
      %s237 = int_to_ptr.vmem [resolvable:$true] %s236
      %239 = dma.vmem_to_hbm [thread:$0]  %s237, 32, %s5, [#allocation3]
    $region25: #{forward.5} parent=1 // pred_fallthru
      _
    // Predicated region
    $region26: #{forward.5} parent=1 // pred_check
      _
    $region27: #{forward.5} parent=1 // pred_check_branch
      %241 = sbr.rel (0) target = $region29
    $region28: #{forward.5} parent=1 // pred_region
      %242 = dma.done [#allocation3], 32
    $region29: #{forward.5} parent=1 // pred_fallthru
      _
    %243 = vsyncpa [#allocation3], 1

</llo_original>
